<compile_context>
chip_gen: v5e
topology: v5e:2x2
jax: 0.10.0
libtpu: 0.0.40
codegen_flags: <defaults>
</compile_context>

<pallas_src>
import jax
import jax.numpy as jnp
from jax.experimental import pallas as pl
from jax.experimental.pallas import tpu as pltpu

BN_EPS = 1e-5
LANE = 128


# ----------------------------------------------------------------------------
# Small helpers
# ----------------------------------------------------------------------------
def _round_up(x, m):
    return ((x + m - 1) // m) * m


def _pad_last(a, c_pad):
    c = a.shape[-1]
    if c == c_pad:
        return a
    pad = [(0, 0)] * (a.ndim - 1) + [(0, c_pad - c)]
    return jnp.pad(a, pad)


def _fold_bn(gamma, beta, mean, var):
    scale = gamma / jnp.sqrt(var + BN_EPS)
    bias = beta - mean * scale
    return scale, bias


def _vmem_cap_bytes():
    # Per-generation physical VMEM with ~15% headroom (review item).
    try:
        cap = pltpu.get_tpu_info().vmem_capacity_bytes
    except Exception:
        cap = 64 * 1024 * 1024
    return int(cap * 0.85)


def _compiler_params(working_set_bytes):
    kwargs = dict(dimension_semantics=("parallel",))
    # Only override the scoped-VMEM default (16 MiB v5e / 32 MiB v6e,v7x) when
    # the double-buffered working set actually needs it.
    if working_set_bytes > 16 * 1024 * 1024:
        kwargs["vmem_limit_bytes"] = int(
            min(working_set_bytes + (4 << 20), _vmem_cap_bytes()))
    return pltpu.CompilerParams(**kwargs)


def _make_tap_masks(H, W):
    """(9, H*W, 1) bf16 border masks: 1 where the (kh,kw) tap is inside the image."""
    hw = H * W
    hh = jnp.arange(hw, dtype=jnp.int32) // W
    ww = jnp.arange(hw, dtype=jnp.int32) % W
    masks = []
    for kh in range(3):
        for kw in range(3):
            oh, ow = kh - 1, kw - 1
            valid = ((hh + oh >= 0) & (hh + oh < H) &
                     (ww + ow >= 0) & (ww + ow < W))
            masks.append(valid)
    return jnp.stack(masks, axis=0).astype(jnp.bfloat16)[:, :, None]


# ----------------------------------------------------------------------------
# The fused kernel: 1x1 conv+bn1+relu -> 3x3 conv+bn2+relu -> 1x1 conv+bn3
#                   -> +residual -> relu     (one image per grid step)
# ----------------------------------------------------------------------------
def _make_kernel(W, HW, p_p):
    def kernel(x_ref, masks_ref, w1_ref, b1_ref, w2_ref, b2_ref,
               w3_ref, b3_ref, o_ref, y1d_ref):
        x2 = x_ref[0]                                            # (HW, Cin_p) bf16

        # ---- stage 1: 1x1 conv (bn1 scale folded into w1) + bias + relu ----
        y1 = jnp.dot(x2, w1_ref[...], preferred_element_type=jnp.float32)
        y1 = jnp.maximum(y1 + b1_ref[...], 0.0).astype(jnp.bfloat16)

        # Duplicate y1 so every 3x3 tap is a static-offset circular row slice.
        y1d_ref[0:HW, :] = y1
        y1d_ref[HW:2 * HW, :] = y1

        # ---- stage 2: 3x3 conv (bn2 scale folded into w2) as 9 shifted taps ----
        acc = jnp.zeros((HW, p_p), jnp.float32)
        for kh in range(3):
            for kw in range(3):
                t = kh * 3 + kw
                d0 = ((kh - 1) * W + (kw - 1)) % HW
                # row m of `shifted` holds y1[(m + delta) mod HW]
                shifted = y1d_ref[pl.ds(d0, HW), :]
                tap = shifted * masks_ref[t]                     # zero taps outside image
                acc = acc + jnp.dot(tap, w2_ref[t],
                                    preferred_element_type=jnp.float32)
        h2 = jnp.maximum(acc + b2_ref[...], 0.0).astype(jnp.bfloat16)

        # ---- stage 3: 1x1 conv (bn3 scale folded) + bias + residual + relu ----
        y3 = jnp.dot(h2, w3_ref[...], preferred_element_type=jnp.float32)
        y3 = y3 + b3_ref[...] + x2.astype(jnp.float32)           # identity residual
        o_ref[0] = jnp.maximum(y3, 0.0).astype(o_ref.dtype)

    return kernel


def _fused_block_call(x3, masks, prep, H, W):
    """x3: (N, H*W, Cin_p) bf16 -> (N, H*W, C_p) bf16."""
    N, HW, cin_p = x3.shape
    p_p, c_p = prep["p_p"], prep["c_p"]
    w1, b1, w2, b2, w3, b3 = (prep["w1"], prep["b1"], prep["w2"],
                              prep["b2"], prep["w3"], prep["b3"])

    kernel = _make_kernel(W, HW, p_p)

    flops = N * 2 * HW * (cin_p * p_p + 9 * p_p * p_p + p_p * c_p)
    bytes_accessed = (N * HW * cin_p * 2 + N * HW * c_p * 2
                      + cin_p * p_p * 2 + 9 * p_p * p_p * 2 + p_p * c_p * 2
                      + 9 * HW * 2 + (2 * p_p + c_p) * 4)
    cost = pl.CostEstimate(flops=flops, transcendentals=0,
                           bytes_accessed=bytes_accessed)

    # Per-step VMEM working set: double-buffered in/out streams + (double-
    # buffered) resident weights + the y1 scratch + generous room for the
    # in-kernel f32 y1/acc/h2 intermediates (review item).
    ws = (2 * HW * cin_p * 2 + 2 * HW * c_p * 2
          + 2 * (cin_p * p_p + 9 * p_p * p_p + p_p * c_p) * 2
          + 2 * HW * p_p * 2
          + 4 * HW * p_p * 4)

    return pl.pallas_call(
        kernel,
        out_shape=jax.ShapeDtypeStruct((N, HW, c_p), jnp.bfloat16),
        grid_spec=pltpu.PrefetchScalarGridSpec(
            num_scalar_prefetch=0,
            grid=(N,),
            in_specs=[
                pl.BlockSpec((1, HW, cin_p), lambda n: (n, 0, 0)),
                pl.BlockSpec((9, HW, 1), lambda n: (0, 0, 0)),       # tap masks
                pl.BlockSpec((cin_p, p_p), lambda n: (0, 0)),        # w1 (resident)
                pl.BlockSpec((1, p_p), lambda n: (0, 0)),            # b1
                pl.BlockSpec((9, p_p, p_p), lambda n: (0, 0, 0)),    # w2 taps (resident)
                pl.BlockSpec((1, p_p), lambda n: (0, 0)),            # b2
                pl.BlockSpec((p_p, c_p), lambda n: (0, 0)),          # w3 (resident)
                pl.BlockSpec((1, c_p), lambda n: (0, 0)),            # b3
            ],
            out_specs=pl.BlockSpec((1, HW, c_p), lambda n: (n, 0, 0)),
            scratch_shapes=[pltpu.VMEM((2 * HW, p_p), jnp.bfloat16)],
        ),
        compiler_params=_compiler_params(ws),
        cost_estimate=cost,
    )(x3, masks, w1, b1, w2, b2, w3, b3)


# ----------------------------------------------------------------------------
# One-time parameter preparation (BN folded into weights, 128-lane padding)
# ----------------------------------------------------------------------------
def prepare_bottleneck_params(params):
    planes, inplanes = params["w1"].shape[:2]
    cout = 4 * planes
    cin_p = _round_up(inplanes, LANE)
    p_p = _round_up(planes, LANE)
    c_p = _round_up(cout, LANE)

    s1, b1 = _fold_bn(params["g1"], params["be1"], params["m1"], params["v1"])
    s2, b2 = _fold_bn(params["g2"], params["be2"], params["m2"], params["v2"])
    s3, b3 = _fold_bn(params["g3"], params["be3"], params["m3"], params["v3"])

    # conv1 (planes, inplanes, 1, 1) -> (inplanes, planes), bn1 scale folded.
    w1 = jnp.transpose(params["w1"][:, :, 0, 0], (1, 0)) * s1[None, :]
    w1p = (jnp.zeros((cin_p, p_p), jnp.float32)
           .at[:inplanes, :planes].set(w1).astype(jnp.bfloat16))
    b1p = jnp.zeros((1, p_p), jnp.float32).at[0, :planes].set(b1)

    # conv2 (planes, planes, 3, 3) -> (3,3,cin,cout) -> (9, p_p, p_p), bn2 folded.
    w2 = jnp.transpose(params["w2"], (2, 3, 1, 0)) * s2[None, None, None, :]
    w2p = (jnp.zeros((3, 3, p_p, p_p), jnp.float32)
           .at[:, :, :planes, :planes].set(w2)
           .reshape(9, p_p, p_p).astype(jnp.bfloat16))
    b2p = jnp.zeros((1, p_p), jnp.float32).at[0, :planes].set(b2)

    # conv3 (4*planes, planes, 1, 1) -> (planes, 4*planes), bn3 folded.
    w3 = jnp.transpose(params["w3"][:, :, 0, 0], (1, 0)) * s3[None, :]
    w3p = (jnp.zeros((p_p, c_p), jnp.float32)
           .at[:planes, :cout].set(w3).astype(jnp.bfloat16))
    b3p = jnp.zeros((1, c_p), jnp.float32).at[0, :cout].set(b3)

    return dict(w1=w1p, b1=b1p, w2=w2p, b2=b2p, w3=w3p, b3=b3p,
                inplanes=inplanes, planes=planes, cout=cout,
                cin_p=cin_p, p_p=p_p, c_p=c_p)


# ----------------------------------------------------------------------------
# Bottleneck forward (stride=1, downsample=None / identity-residual path)
# ----------------------------------------------------------------------------
def bottleneck_forward(x_nchw, prep, stride=1):
    if stride != 1 or prep["inplanes"] != prep["cout"]:
        raise NotImplementedError(
            "only the identity-residual (downsample=None, stride=1) path is implemented")

    N, Cin, H, W = x_nchw.shape
    assert Cin == prep["inplanes"]
    HW = H * W
    cin_p, cout = prep["cin_p"], prep["cout"]

    # Channels-last, flattened rows, zero-padded lanes, bf16 activations.
    # TODO(synk): keep activations NHWC/bf16 across chained blocks to remove
    # this per-block transpose/pad/cast pass.
    x = jnp.transpose(x_nchw, (0, 2, 3, 1)).reshape(N, HW, Cin)
    x3 = _pad_last(x, cin_p).astype(jnp.bfloat16)
    masks = _make_tap_masks(H, W)

    out = _fused_block_call(x3, masks, prep, H, W)               # (N, HW, C_p) bf16
    out = out[:, :, :cout].astype(jnp.float32).reshape(N, H, W, cout)
    return jnp.transpose(out, (0, 3, 1, 2))                      # back to NCHW


# ----------------------------------------------------------------------------
# Pure-JAX reference (matmul_dtype=bf16 mirrors the kernel's MXU precision)
# ----------------------------------------------------------------------------
def bottleneck_reference(x_nchw, params, stride=1, matmul_dtype=jnp.float32):
    def conv(x, w, s, pad):
        return jax.lax.conv_general_dilated(
            x.astype(matmul_dtype), w.astype(matmul_dtype), (s, s),
            [(pad, pad), (pad, pad)],
            dimension_numbers=("NCHW", "OIHW", "NCHW"),
            preferred_element_type=jnp.float32)

    def bn(y, g, be, m, v):
        inv = g / jnp.sqrt(v + BN_EPS)
        return y * inv[None, :, None, None] + (be - m * inv)[None, :, None, None]

    x = x_nchw.astype(jnp.float32)
    out = jax.nn.relu(bn(conv(x, params["w1"], 1, 0),
                         params["g1"], params["be1"], params["m1"], params["v1"]))
    out = jax.nn.relu(bn(conv(out, params["w2"], stride, 1),
                         params["g2"], params["be2"], params["m2"], params["v2"]))
    out = bn(conv(out, params["w3"], 1, 0),
             params["g3"], params["be3"], params["m3"], params["v3"])
    return jax.nn.relu(out + x)


# ----------------------------------------------------------------------------
# Deterministic parameter construction
# ----------------------------------------------------------------------------
def make_params(key, inplanes, planes):
    keys = jax.random.split(key, 15)
    p = {}
    p["w1"] = 0.2 * jax.random.normal(keys[0], (planes, inplanes, 1, 1), jnp.float32)
    p["w2"] = 0.2 * jax.random.normal(keys[1], (planes, planes, 3, 3), jnp.float32)
    p["w3"] = 0.2 * jax.random.normal(keys[2], (planes * 4, planes, 1, 1), jnp.float32)
    for i, c in zip((1, 2, 3), (planes, planes, planes * 4)):
        k = keys[3 + 4 * (i - 1): 3 + 4 * i]
        p[f"g{i}"] = 1.0 + 0.1 * jax.random.normal(k[0], (c,), jnp.float32)
        p[f"be{i}"] = 0.05 * jax.random.normal(k[1], (c,), jnp.float32)
        p[f"m{i}"] = 0.1 * jax.random.normal(k[2], (c,), jnp.float32)
        p[f"v{i}"] = 1.0 + 0.1 * jnp.abs(jax.random.normal(k[3], (c,), jnp.float32))
    return p


if __name__ == "__main__":
    key = jax.random.PRNGKey(0)
    k_x, k_p = jax.random.split(key)

    # identity residual path requires inplanes == planes * expansion(=4)
    N, planes, H, W = 2, 4, 16, 16
    inplanes = planes * 4
    x = jax.random.normal(k_x, (N, inplanes, H, W), jnp.float32)
    params = make_params(k_p, inplanes, planes)

    prep = prepare_bottleneck_params(params)                  # hoisted weight prep
    out = jax.block_until_ready(bottleneck_forward(x, prep, stride=1))
    assert out.shape == (N, inplanes, H, W)

    # Tight check vs a reference using the same bf16 matmul inputs / f32 accumulation.
    ref_bf16 = jax.block_until_ready(
        bottleneck_reference(x, params, stride=1, matmul_dtype=jnp.bfloat16))
    # Loose check vs the pure-f32 reference (bounds the bf16 quantization error).
    ref_f32 = jax.block_until_ready(
        bottleneck_reference(x, params, stride=1, matmul_dtype=jnp.float32))

    err_b = float(jnp.max(jnp.abs(out - ref_bf16)))
    err_f = float(jnp.max(jnp.abs(out - ref_f32)))
    assert jnp.allclose(out, ref_bf16, atol=3e-2, rtol=3e-2), err_b
    assert jnp.allclose(out, ref_f32, atol=1.5e-1, rtol=1e-1), err_f

    print("KERNEL_OK")
</pallas_src>

<mosaic_0001>
module attributes {stable_mosaic.version = 11 : i64} {
  func.func @kernel(%arg0: i32, %arg1: memref<1x256x128xbf16, #tpu.memory_space<vmem>>, %arg2: memref<9x256x1xbf16, #tpu.memory_space<vmem>>, %arg3: memref<128x128xbf16, #tpu.memory_space<vmem>>, %arg4: memref<1x128xf32, #tpu.memory_space<vmem>>, %arg5: memref<9x128x128xbf16, #tpu.memory_space<vmem>>, %arg6: memref<1x128xf32, #tpu.memory_space<vmem>>, %arg7: memref<128x128xbf16, #tpu.memory_space<vmem>>, %arg8: memref<1x128xf32, #tpu.memory_space<vmem>>, %arg9: memref<1x256x128xbf16, #tpu.memory_space<vmem>>, %arg10: memref<512x128xbf16, #tpu.memory_space<vmem>>) attributes {dimension_semantics = [#tpu.dimension_semantics<parallel>], iteration_bounds = array<i64: 2>, scalar_prefetch = 0 : i64, scratch_operands = 1 : i64, tpu.core_type = #tpu.core_type<tc>, window_params = [{transform_indices = @transform_0, window_bounds = array<i64: 1, 256, 128>}, {pipeline_mode = #tpu.pipeline_mode<synchronous>, transform_indices = @transform_1, window_bounds = array<i64: 9, 256, 1>}, {pipeline_mode = #tpu.pipeline_mode<synchronous>, transform_indices = @transform_2, window_bounds = array<i64: 128, 128>}, {pipeline_mode = #tpu.pipeline_mode<synchronous>, transform_indices = @transform_3, window_bounds = array<i64: 1, 128>}, {pipeline_mode = #tpu.pipeline_mode<synchronous>, transform_indices = @transform_4, window_bounds = array<i64: 9, 128, 128>}, {pipeline_mode = #tpu.pipeline_mode<synchronous>, transform_indices = @transform_5, window_bounds = array<i64: 1, 128>}, {pipeline_mode = #tpu.pipeline_mode<synchronous>, transform_indices = @transform_6, window_bounds = array<i64: 128, 128>}, {pipeline_mode = #tpu.pipeline_mode<synchronous>, transform_indices = @transform_7, window_bounds = array<i64: 1, 128>}, {transform_indices = @transform_8, window_bounds = array<i64: 1, 256, 128>}]} {
    %c0 = arith.constant 0 : index
    %c0_0 = arith.constant 0 : index
    %c0_1 = arith.constant 0 : index
    %0 = vector.load %arg1[%c0, %c0_0, %c0_1] : memref<1x256x128xbf16, #tpu.memory_space<vmem>>, vector<1x256x128xbf16>
    %1 = vector.shape_cast %0 : vector<1x256x128xbf16> to vector<256x128xbf16>
    %c0_2 = arith.constant 0 : index
    %c0_3 = arith.constant 0 : index
    %2 = vector.load %arg3[%c0_2, %c0_3] : memref<128x128xbf16, #tpu.memory_space<vmem>>, vector<128x128xbf16>
    %cst = arith.constant dense<0.000000e+00> : vector<256x128xf32>
    %3 = tpu.matmul %1, %2, %cst {dimension_numbers = #tpu.dot_dimension_numbers<[1], [0], [0], [1], [0, 0, 1, 1], [], []>} : vector<256x128xbf16>, vector<128x128xbf16>, vector<256x128xf32> -> vector<256x128xf32>
    %c0_4 = arith.constant 0 : index
    %c0_5 = arith.constant 0 : index
    %4 = vector.load %arg4[%c0_4, %c0_5] : memref<1x128xf32, #tpu.memory_space<vmem>>, vector<1x128xf32>
    %5 = vector.broadcast %4 : vector<1x128xf32> to vector<256x128xf32>
    %6 = arith.addf %3, %5 : vector<256x128xf32>
    %cst_6 = arith.constant 0.000000e+00 : f32
    %7 = vector.broadcast %cst_6 : f32 to vector<256x128xf32>
    %8 = arith.maximumf %6, %7 : vector<256x128xf32>
    %9 = arith.truncf %8 : vector<256x128xf32> to vector<256x128xbf16>
    %c0_7 = arith.constant 0 : index
    %c0_8 = arith.constant 0 : index
    %10 = vector.load %arg10[%c0_7, %c0_8] : memref<512x128xbf16, #tpu.memory_space<vmem>>, vector<256x128xbf16>
    tpu.vector_store %arg10[%c0_7, %c0_8], %9 {strides = array<i32>} : memref<512x128xbf16, #tpu.memory_space<vmem>>, vector<256x128xbf16>,
    %c256 = arith.constant 256 : index
    %c0_9 = arith.constant 0 : index
    %11 = vector.load %arg10[%c256, %c0_9] : memref<512x128xbf16, #tpu.memory_space<vmem>>, vector<256x128xbf16>
    tpu.vector_store %arg10[%c256, %c0_9], %9 {strides = array<i32>} : memref<512x128xbf16, #tpu.memory_space<vmem>>, vector<256x128xbf16>,
    %cst_10 = arith.constant 0.000000e+00 : f32
    %12 = vector.broadcast %cst_10 : f32 to vector<256x128xf32>
    %c239 = arith.constant 239 : index
    %c0_11 = arith.constant 0 : index
    %13 = vector.load %arg10[%c239, %c0_11] : memref<512x128xbf16, #tpu.memory_space<vmem>>, vector<256x128xbf16>
    %c0_12 = arith.constant 0 : index
    %c0_13 = arith.constant 0 : index
    %c0_14 = arith.constant 0 : index
    %14 = vector.load %arg2[%c0_12, %c0_13, %c0_14] : memref<9x256x1xbf16, #tpu.memory_space<vmem>>, vector<1x256x1xbf16>
    %15 = vector.shape_cast %14 : vector<1x256x1xbf16> to vector<256x1xbf16>
    %16 = vector.broadcast %15 : vector<256x1xbf16> to vector<256x128xbf16>
    %17 = arith.mulf %13, %16 : vector<256x128xbf16>
    %c0_15 = arith.constant 0 : index
    %c0_16 = arith.constant 0 : index
    %c0_17 = arith.constant 0 : index
    %18 = vector.load %arg5[%c0_15, %c0_16, %c0_17] : memref<9x128x128xbf16, #tpu.memory_space<vmem>>, vector<1x128x128xbf16>
    %19 = vector.shape_cast %18 : vector<1x128x128xbf16> to vector<128x128xbf16>
    %cst_18 = arith.constant dense<0.000000e+00> : vector<256x128xf32>
    %20 = tpu.matmul %17, %19, %cst_18 {dimension_numbers = #tpu.dot_dimension_numbers<[1], [0], [0], [1], [0, 0, 1, 1], [], []>} : vector<256x128xbf16>, vector<128x128xbf16>, vector<256x128xf32> -> vector<256x128xf32>
    %21 = arith.addf %12, %20 : vector<256x128xf32>
    %c240 = arith.constant 240 : index
    %c0_19 = arith.constant 0 : index
    %22 = vector.load %arg10[%c240, %c0_19] : memref<512x128xbf16, #tpu.memory_space<vmem>>, vector<256x128xbf16>
    %c1 = arith.constant 1 : index
    %c0_20 = arith.constant 0 : index
    %c0_21 = arith.constant 0 : index
    %23 = vector.load %arg2[%c1, %c0_20, %c0_21] : memref<9x256x1xbf16, #tpu.memory_space<vmem>>, vector<1x256x1xbf16>
    %24 = vector.shape_cast %23 : vector<1x256x1xbf16> to vector<256x1xbf16>
    %25 = vector.broadcast %24 : vector<256x1xbf16> to vector<256x128xbf16>
    %26 = arith.mulf %22, %25 : vector<256x128xbf16>
    %c1_22 = arith.constant 1 : index
    %c0_23 = arith.constant 0 : index
    %c0_24 = arith.constant 0 : index
    %27 = vector.load %arg5[%c1_22, %c0_23, %c0_24] : memref<9x128x128xbf16, #tpu.memory_space<vmem>>, vector<1x128x128xbf16>
    %28 = vector.shape_cast %27 : vector<1x128x128xbf16> to vector<128x128xbf16>
    %cst_25 = arith.constant dense<0.000000e+00> : vector<256x128xf32>
    %29 = tpu.matmul %26, %28, %cst_25 {dimension_numbers = #tpu.dot_dimension_numbers<[1], [0], [0], [1], [0, 0, 1, 1], [], []>} : vector<256x128xbf16>, vector<128x128xbf16>, vector<256x128xf32> -> vector<256x128xf32>
    %30 = arith.addf %21, %29 : vector<256x128xf32>
    %c241 = arith.constant 241 : index
    %c0_26 = arith.constant 0 : index
    %31 = vector.load %arg10[%c241, %c0_26] : memref<512x128xbf16, #tpu.memory_space<vmem>>, vector<256x128xbf16>
    %c2 = arith.constant 2 : index
    %c0_27 = arith.constant 0 : index
    %c0_28 = arith.constant 0 : index
    %32 = vector.load %arg2[%c2, %c0_27, %c0_28] : memref<9x256x1xbf16, #tpu.memory_space<vmem>>, vector<1x256x1xbf16>
    %33 = vector.shape_cast %32 : vector<1x256x1xbf16> to vector<256x1xbf16>
    %34 = vector.broadcast %33 : vector<256x1xbf16> to vector<256x128xbf16>
    %35 = arith.mulf %31, %34 : vector<256x128xbf16>
    %c2_29 = arith.constant 2 : index
    %c0_30 = arith.constant 0 : index
    %c0_31 = arith.constant 0 : index
    %36 = vector.load %arg5[%c2_29, %c0_30, %c0_31] : memref<9x128x128xbf16, #tpu.memory_space<vmem>>, vector<1x128x128xbf16>
    %37 = vector.shape_cast %36 : vector<1x128x128xbf16> to vector<128x128xbf16>
    %cst_32 = arith.constant dense<0.000000e+00> : vector<256x128xf32>
    %38 = tpu.matmul %35, %37, %cst_32 {dimension_numbers = #tpu.dot_dimension_numbers<[1], [0], [0], [1], [0, 0, 1, 1], [], []>} : vector<256x128xbf16>, vector<128x128xbf16>, vector<256x128xf32> -> vector<256x128xf32>
    %39 = arith.addf %30, %38 : vector<256x128xf32>
    %c255 = arith.constant 255 : index
    %c0_33 = arith.constant 0 : index
    %40 = vector.load %arg10[%c255, %c0_33] : memref<512x128xbf16, #tpu.memory_space<vmem>>, vector<256x128xbf16>
    %c3 = arith.constant 3 : index
    %c0_34 = arith.constant 0 : index
    %c0_35 = arith.constant 0 : index
    %41 = vector.load %arg2[%c3, %c0_34, %c0_35] : memref<9x256x1xbf16, #tpu.memory_space<vmem>>, vector<1x256x1xbf16>
    %42 = vector.shape_cast %41 : vector<1x256x1xbf16> to vector<256x1xbf16>
    %43 = vector.broadcast %42 : vector<256x1xbf16> to vector<256x128xbf16>
    %44 = arith.mulf %40, %43 : vector<256x128xbf16>
    %c3_36 = arith.constant 3 : index
    %c0_37 = arith.constant 0 : index
    %c0_38 = arith.constant 0 : index
    %45 = vector.load %arg5[%c3_36, %c0_37, %c0_38] : memref<9x128x128xbf16, #tpu.memory_space<vmem>>, vector<1x128x128xbf16>
    %46 = vector.shape_cast %45 : vector<1x128x128xbf16> to vector<128x128xbf16>
    %cst_39 = arith.constant dense<0.000000e+00> : vector<256x128xf32>
    %47 = tpu.matmul %44, %46, %cst_39 {dimension_numbers = #tpu.dot_dimension_numbers<[1], [0], [0], [1], [0, 0, 1, 1], [], []>} : vector<256x128xbf16>, vector<128x128xbf16>, vector<256x128xf32> -> vector<256x128xf32>
    %48 = arith.addf %39, %47 : vector<256x128xf32>
    %c0_40 = arith.constant 0 : index
    %c0_41 = arith.constant 0 : index
    %49 = vector.load %arg10[%c0_40, %c0_41] : memref<512x128xbf16, #tpu.memory_space<vmem>>, vector<256x128xbf16>
    %c4 = arith.constant 4 : index
    %c0_42 = arith.constant 0 : index
    %c0_43 = arith.constant 0 : index
    %50 = vector.load %arg2[%c4, %c0_42, %c0_43] : memref<9x256x1xbf16, #tpu.memory_space<vmem>>, vector<1x256x1xbf16>
    %51 = vector.shape_cast %50 : vector<1x256x1xbf16> to vector<256x1xbf16>
    %52 = vector.broadcast %51 : vector<256x1xbf16> to vector<256x128xbf16>
    %53 = arith.mulf %49, %52 : vector<256x128xbf16>
    %c4_44 = arith.constant 4 : index
    %c0_45 = arith.constant 0 : index
    %c0_46 = arith.constant 0 : index
    %54 = vector.load %arg5[%c4_44, %c0_45, %c0_46] : memref<9x128x128xbf16, #tpu.memory_space<vmem>>, vector<1x128x128xbf16>
    %55 = vector.shape_cast %54 : vector<1x128x128xbf16> to vector<128x128xbf16>
    %cst_47 = arith.constant dense<0.000000e+00> : vector<256x128xf32>
    %56 = tpu.matmul %53, %55, %cst_47 {dimension_numbers = #tpu.dot_dimension_numbers<[1], [0], [0], [1], [0, 0, 1, 1], [], []>} : vector<256x128xbf16>, vector<128x128xbf16>, vector<256x128xf32> -> vector<256x128xf32>
    %57 = arith.addf %48, %56 : vector<256x128xf32>
    %c1_48 = arith.constant 1 : index
    %c0_49 = arith.constant 0 : index
    %58 = vector.load %arg10[%c1_48, %c0_49] : memref<512x128xbf16, #tpu.memory_space<vmem>>, vector<256x128xbf16>
    %c5 = arith.constant 5 : index
    %c0_50 = arith.constant 0 : index
    %c0_51 = arith.constant 0 : index
    %59 = vector.load %arg2[%c5, %c0_50, %c0_51] : memref<9x256x1xbf16, #tpu.memory_space<vmem>>, vector<1x256x1xbf16>
    %60 = vector.shape_cast %59 : vector<1x256x1xbf16> to vector<256x1xbf16>
    %61 = vector.broadcast %60 : vector<256x1xbf16> to vector<256x128xbf16>
    %62 = arith.mulf %58, %61 : vector<256x128xbf16>
    %c5_52 = arith.constant 5 : index
    %c0_53 = arith.constant 0 : index
    %c0_54 = arith.constant 0 : index
    %63 = vector.load %arg5[%c5_52, %c0_53, %c0_54] : memref<9x128x128xbf16, #tpu.memory_space<vmem>>, vector<1x128x128xbf16>
    %64 = vector.shape_cast %63 : vector<1x128x128xbf16> to vector<128x128xbf16>
    %cst_55 = arith.constant dense<0.000000e+00> : vector<256x128xf32>
    %65 = tpu.matmul %62, %64, %cst_55 {dimension_numbers = #tpu.dot_dimension_numbers<[1], [0], [0], [1], [0, 0, 1, 1], [], []>} : vector<256x128xbf16>, vector<128x128xbf16>, vector<256x128xf32> -> vector<256x128xf32>
    %66 = arith.addf %57, %65 : vector<256x128xf32>
    %c15 = arith.constant 15 : index
    %c0_56 = arith.constant 0 : index
    %67 = vector.load %arg10[%c15, %c0_56] : memref<512x128xbf16, #tpu.memory_space<vmem>>, vector<256x128xbf16>
    %c6 = arith.constant 6 : index
    %c0_57 = arith.constant 0 : index
    %c0_58 = arith.constant 0 : index
    %68 = vector.load %arg2[%c6, %c0_57, %c0_58] : memref<9x256x1xbf16, #tpu.memory_space<vmem>>, vector<1x256x1xbf16>
    %69 = vector.shape_cast %68 : vector<1x256x1xbf16> to vector<256x1xbf16>
    %70 = vector.broadcast %69 : vector<256x1xbf16> to vector<256x128xbf16>
    %71 = arith.mulf %67, %70 : vector<256x128xbf16>
    %c6_59 = arith.constant 6 : index
    %c0_60 = arith.constant 0 : index
    %c0_61 = arith.constant 0 : index
    %72 = vector.load %arg5[%c6_59, %c0_60, %c0_61] : memref<9x128x128xbf16, #tpu.memory_space<vmem>>, vector<1x128x128xbf16>
    %73 = vector.shape_cast %72 : vector<1x128x128xbf16> to vector<128x128xbf16>
    %cst_62 = arith.constant dense<0.000000e+00> : vector<256x128xf32>
    %74 = tpu.matmul %71, %73, %cst_62 {dimension_numbers = #tpu.dot_dimension_numbers<[1], [0], [0], [1], [0, 0, 1, 1], [], []>} : vector<256x128xbf16>, vector<128x128xbf16>, vector<256x128xf32> -> vector<256x128xf32>
    %75 = arith.addf %66, %74 : vector<256x128xf32>
    %c16 = arith.constant 16 : index
    %c0_63 = arith.constant 0 : index
    %76 = vector.load %arg10[%c16, %c0_63] : memref<512x128xbf16, #tpu.memory_space<vmem>>, vector<256x128xbf16>
    %c7 = arith.constant 7 : index
    %c0_64 = arith.constant 0 : index
    %c0_65 = arith.constant 0 : index
    %77 = vector.load %arg2[%c7, %c0_64, %c0_65] : memref<9x256x1xbf16, #tpu.memory_space<vmem>>, vector<1x256x1xbf16>
    %78 = vector.shape_cast %77 : vector<1x256x1xbf16> to vector<256x1xbf16>
    %79 = vector.broadcast %78 : vector<256x1xbf16> to vector<256x128xbf16>
    %80 = arith.mulf %76, %79 : vector<256x128xbf16>
    %c7_66 = arith.constant 7 : index
    %c0_67 = arith.constant 0 : index
    %c0_68 = arith.constant 0 : index
    %81 = vector.load %arg5[%c7_66, %c0_67, %c0_68] : memref<9x128x128xbf16, #tpu.memory_space<vmem>>, vector<1x128x128xbf16>
    %82 = vector.shape_cast %81 : vector<1x128x128xbf16> to vector<128x128xbf16>
    %cst_69 = arith.constant dense<0.000000e+00> : vector<256x128xf32>
    %83 = tpu.matmul %80, %82, %cst_69 {dimension_numbers = #tpu.dot_dimension_numbers<[1], [0], [0], [1], [0, 0, 1, 1], [], []>} : vector<256x128xbf16>, vector<128x128xbf16>, vector<256x128xf32> -> vector<256x128xf32>
    %84 = arith.addf %75, %83 : vector<256x128xf32>
    %c17 = arith.constant 17 : index
    %c0_70 = arith.constant 0 : index
    %85 = vector.load %arg10[%c17, %c0_70] : memref<512x128xbf16, #tpu.memory_space<vmem>>, vector<256x128xbf16>
    %c8 = arith.constant 8 : index
    %c0_71 = arith.constant 0 : index
    %c0_72 = arith.constant 0 : index
    %86 = vector.load %arg2[%c8, %c0_71, %c0_72] : memref<9x256x1xbf16, #tpu.memory_space<vmem>>, vector<1x256x1xbf16>
    %87 = vector.shape_cast %86 : vector<1x256x1xbf16> to vector<256x1xbf16>
    %88 = vector.broadcast %87 : vector<256x1xbf16> to vector<256x128xbf16>
    %89 = arith.mulf %85, %88 : vector<256x128xbf16>
    %c8_73 = arith.constant 8 : index
    %c0_74 = arith.constant 0 : index
    %c0_75 = arith.constant 0 : index
    %90 = vector.load %arg5[%c8_73, %c0_74, %c0_75] : memref<9x128x128xbf16, #tpu.memory_space<vmem>>, vector<1x128x128xbf16>
    %91 = vector.shape_cast %90 : vector<1x128x128xbf16> to vector<128x128xbf16>
    %cst_76 = arith.constant dense<0.000000e+00> : vector<256x128xf32>
    %92 = tpu.matmul %89, %91, %cst_76 {dimension_numbers = #tpu.dot_dimension_numbers<[1], [0], [0], [1], [0, 0, 1, 1], [], []>} : vector<256x128xbf16>, vector<128x128xbf16>, vector<256x128xf32> -> vector<256x128xf32>
    %93 = arith.addf %84, %92 : vector<256x128xf32>
    %c0_77 = arith.constant 0 : index
    %c0_78 = arith.constant 0 : index
    %94 = vector.load %arg6[%c0_77, %c0_78] : memref<1x128xf32, #tpu.memory_space<vmem>>, vector<1x128xf32>
    %95 = vector.broadcast %94 : vector<1x128xf32> to vector<256x128xf32>
    %96 = arith.addf %93, %95 : vector<256x128xf32>
    %cst_79 = arith.constant 0.000000e+00 : f32
    %97 = vector.broadcast %cst_79 : f32 to vector<256x128xf32>
    %98 = arith.maximumf %96, %97 : vector<256x128xf32>
    %99 = arith.truncf %98 : vector<256x128xf32> to vector<256x128xbf16>
    %c0_80 = arith.constant 0 : index
    %c0_81 = arith.constant 0 : index
    %100 = vector.load %arg7[%c0_80, %c0_81] : memref<128x128xbf16, #tpu.memory_space<vmem>>, vector<128x128xbf16>
    %cst_82 = arith.constant dense<0.000000e+00> : vector<256x128xf32>
    %101 = tpu.matmul %99, %100, %cst_82 {dimension_numbers = #tpu.dot_dimension_numbers<[1], [0], [0], [1], [0, 0, 1, 1], [], []>} : vector<256x128xbf16>, vector<128x128xbf16>, vector<256x128xf32> -> vector<256x128xf32>
    %c0_83 = arith.constant 0 : index
    %c0_84 = arith.constant 0 : index
    %102 = vector.load %arg8[%c0_83, %c0_84] : memref<1x128xf32, #tpu.memory_space<vmem>>, vector<1x128xf32>
    %103 = vector.broadcast %102 : vector<1x128xf32> to vector<256x128xf32>
    %104 = arith.addf %101, %103 : vector<256x128xf32>
    %105 = arith.extf %1 : vector<256x128xbf16> to vector<256x128xf32>
    %106 = arith.addf %104, %105 : vector<256x128xf32>
    %cst_85 = arith.constant 0.000000e+00 : f32
    %107 = vector.broadcast %cst_85 : f32 to vector<256x128xf32>
    %108 = arith.maximumf %106, %107 : vector<256x128xf32>
    %109 = arith.truncf %108 : vector<256x128xf32> to vector<256x128xbf16>
    %c0_86 = arith.constant 0 : index
    %c0_87 = arith.constant 0 : index
    %c0_88 = arith.constant 0 : index
    %110 = vector.load %arg9[%c0_86, %c0_87, %c0_88] : memref<1x256x128xbf16, #tpu.memory_space<vmem>>, vector<1x256x128xbf16>
    %111 = vector.shape_cast %110 : vector<1x256x128xbf16> to vector<256x128xbf16>
    %112 = vector.shape_cast %109 : vector<256x128xbf16> to vector<1x256x128xbf16>
    tpu.vector_store %arg9[%c0_86, %c0_87, %c0_88], %112 {strides = array<i32>} : memref<1x256x128xbf16, #tpu.memory_space<vmem>>, vector<1x256x128xbf16>,
    return
  }
  func.func @transform_0(%arg0: i32) -> (i32, i32, i32) {
    %c0_i32 = arith.constant 0 : i32
    %c0_i32_0 = arith.constant 0 : i32
    %c0_i32_1 = arith.constant 0 : i32
    return %arg0, %c0_i32, %c0_i32_0 : i32, i32, i32
  }
  func.func @transform_1(%arg0: i32) -> (i32, i32, i32) {
    %c0_i32 = arith.constant 0 : i32
    %c0_i32_0 = arith.constant 0 : i32
    %c0_i32_1 = arith.constant 0 : i32
    %c0_i32_2 = arith.constant 0 : i32
    return %c0_i32, %c0_i32_0, %c0_i32_1 : i32, i32, i32
  }
  func.func @transform_2(%arg0: i32) -> (i32, i32) {
    %c0_i32 = arith.constant 0 : i32
    %c0_i32_0 = arith.constant 0 : i32
    %c0_i32_1 = arith.constant 0 : i32
    return %c0_i32, %c0_i32_0 : i32, i32
  }
  func.func @transform_3(%arg0: i32) -> (i32, i32) {
    %c0_i32 = arith.constant 0 : i32
    %c0_i32_0 = arith.constant 0 : i32
    %c0_i32_1 = arith.constant 0 : i32
    return %c0_i32, %c0_i32_0 : i32, i32
  }
  func.func @transform_4(%arg0: i32) -> (i32, i32, i32) {
    %c0_i32 = arith.constant 0 : i32
    %c0_i32_0 = arith.constant 0 : i32
    %c0_i32_1 = arith.constant 0 : i32
    %c0_i32_2 = arith.constant 0 : i32
    return %c0_i32, %c0_i32_0, %c0_i32_1 : i32, i32, i32
  }
  func.func @transform_5(%arg0: i32) -> (i32, i32) {
    %c0_i32 = arith.constant 0 : i32
    %c0_i32_0 = arith.constant 0 : i32
    %c0_i32_1 = arith.constant 0 : i32
    return %c0_i32, %c0_i32_0 : i32, i32
  }
  func.func @transform_6(%arg0: i32) -> (i32, i32) {
    %c0_i32 = arith.constant 0 : i32
    %c0_i32_0 = arith.constant 0 : i32
    %c0_i32_1 = arith.constant 0 : i32
    return %c0_i32, %c0_i32_0 : i32, i32
  }
  func.func @transform_7(%arg0: i32) -> (i32, i32) {
    %c0_i32 = arith.constant 0 : i32
    %c0_i32_0 = arith.constant 0 : i32
    %c0_i32_1 = arith.constant 0 : i32
    return %c0_i32, %c0_i32_0 : i32, i32
  }
  func.func @transform_8(%arg0: i32) -> (i32, i32, i32) {
    %c0_i32 = arith.constant 0 : i32
    %c0_i32_0 = arith.constant 0 : i32
    %c0_i32_1 = arith.constant 0 : i32
    return %arg0, %c0_i32, %c0_i32_0 : i32, i32, i32
  }
}

</mosaic_0001>

<llo_original>
// kernel: tpu_custom_call.1
$region0: #{tpu_custom_call.1}
  #allocation0 [shape = 'u32[]', space=smem, size = 0x4, offset = 0x4, fixed_abs, tag = 'smem constant byte address 0x4 - core index']
  #allocation1 [shape = 'u32[72,128]{1,0:T(1,128)}', space=vmem, size = 0x9000, scoped, tag = 'internal scratch']
  #allocation2 [shape = 'bf16[512,128]{1,0:T(8,128)(2,1)}', space=vmem, size = 0x20000, scoped, tag = 'scratch operand']
  %s0 = inlined_call_operand.vmem [shape: bf16[2,256,128], index: 0, kind: input, shape index: {}]
  %s1 = inlined_call_operand.vmem [shape: bf16[9,256,1], index: 1, kind: input, shape index: {}]
  %s2 = inlined_call_operand.vmem [shape: bf16[128,128], index: 2, kind: input, shape index: {}]
  %s3 = inlined_call_operand.vmem [shape: f32[1,128], index: 3, kind: input, shape index: {}]
  %s4 = inlined_call_operand.vmem [shape: bf16[9,128,128], index: 4, kind: input, shape index: {}]
  %s5 = inlined_call_operand.vmem [shape: f32[1,128], index: 5, kind: input, shape index: {}]
  %s6 = inlined_call_operand.vmem [shape: bf16[128,128], index: 6, kind: input, shape index: {}]
  %s7 = inlined_call_operand.vmem [shape: f32[1,128], index: 7, kind: input, shape index: {}]
  %s8 = inlined_call_operand.hbm [shape: bf16[2,256,128], index: 8, kind: output, shape index: {}]
  %s9 = sld [smem:[#allocation0]]
  $region65: #{tpu_custom_call.1} parent=0
    _
  %s11 = ssub.s32 1, %s9
  %s12 = scalar_select 0, %s11, %s9
  $region1: #{tpu_custom_call.1} parent=0
    #allocation3 [shape = 'u8[131072]{0}', space=vmem, size = 0x20000, scoped, tag = 'output window, operand 0']
    #allocation4 [shape = 's32[2]{0}', space=sflag, size = 0x8, scoped, tag = 'scoped memory for tpu_custom_call.1']
    %13 = vsyncpa [#allocation4], 0
    %s14 = scalar_lea.sflag [#allocation4], 1
    %15 = vsyncpa %s14, 0
    loop: start=0, step=1, limit=4
    $region2: #{tpu_custom_call.1} parent=1 // loop_pre_header
      _
    $region3: #{tpu_custom_call.1} parent=1 // loop_header
      %s17 = sphi 0, %s21
      %p18 = scmp.ge.s32.totalorder %s17, 4
      %s27 = sphi 0, %s29
      %s30 = sphi 0, %s27
      %s31 = sphi 0, %s30
      %s47 = sphi 0, %s31
      %s51 = sphi 0, %s51
      %s53 = sphi 0, %s51
      %s54 = sphi 0, %s53
      %s68 = sphi 0, %s54
      %s72 = sphi 0, %s72
      %s74 = sphi 0, %s72
      %s75 = sphi 0, %s74
      %s89 = sphi 0, %s75
      %s93 = sphi 0, %s93
      %s95 = sphi 0, %s93
      %s96 = sphi 0, %s95
      %s110 = sphi 0, %s96
      %s114 = sphi 0, %s114
      %s116 = sphi 0, %s114
      %s117 = sphi 0, %s116
      %s131 = sphi 0, %s117
      %s135 = sphi 0, %s135
      %s137 = sphi 0, %s135
      %s138 = sphi 0, %s137
      %s152 = sphi 0, %s138
      %s156 = sphi 0, %s156
      %s158 = sphi 0, %s156
      %s159 = sphi 0, %s158
      %s173 = sphi 0, %s159
      %s177 = sphi 0, %s177
      %s179 = sphi 0, %s177
      %s180 = sphi 0, %s179
      %s194 = sphi 0, %s180
      %s200 = sphi 0, %s202
      %s203 = sphi 0, %s200
      %s204 = sphi 0, %s203
      %s220 = sphi 0, %s204
    $region4: #{tpu_custom_call.1} parent=1 // loop_header_branch
      %20 = sbr.rel (%p18) target = $region8
    $region5: #{tpu_custom_call.1} parent=1 // loop_body
      %s22 = ssub.s32 %s17, 1
      %s23 = ssub.s32 %s17, 2
      %s24 = sadd.s32 %s17, 1
      %s25 = ssub.s32 %s17, %s24
      %p26 = scmp.eq.s32.totalorder %s25, 0
      %s28 = sadd.s32 %s27, 1
      %s29 = scalar_select %p26, %s27, %s28
      %p32 = pneg %p26
      %p33 = scmp.eq.s32.totalorder %s17, 1
      %p34 = por %p32, %p33
      %p35 = scmp.ne.s32.totalorder %s27, %s30
      %p36 = scmp.eq.s32.totalorder %s17, 0
      %p37 = por %p35, %p36
      %p38 = scmp.ne.s32.totalorder %s27, %s30
      %p39 = scmp.eq.s32.totalorder %s22, 1
      %p40 = por %p38, %p39
      %p41 = scmp.ne.s32.totalorder %s30, %s31
      %p42 = scmp.eq.s32.totalorder %s22, 0
      %p43 = por %p41, %p42
      %p44 = scmp.ne.s32.totalorder %s30, %s31
      %p45 = scmp.eq.s32.totalorder %s23, 1
      %p46 = por %p44, %p45
      %p48 = scmp.ne.s32.totalorder %s31, %s47
      %p49 = scmp.eq.s32.totalorder %s23, 0
      %p50 = por %p48, %p49
      %s52 = sadd.s32 %s51, 1
      %p55 = scmp.eq.s32.totalorder %s17, 1
      %p56 = scmp.ne.s32.totalorder %s51, %s53
      %p57 = scmp.eq.s32.totalorder %s17, 0
      %p58 = por %p56, %p57
      %p59 = scmp.ne.s32.totalorder %s51, %s53
      %p60 = scmp.eq.s32.totalorder %s22, 1
      %p61 = por %p59, %p60
      %p62 = scmp.ne.s32.totalorder %s53, %s54
      %p63 = scmp.eq.s32.totalorder %s22, 0
      %p64 = por %p62, %p63
      %p65 = scmp.ne.s32.totalorder %s53, %s54
      %p66 = scmp.eq.s32.totalorder %s23, 1
      %p67 = por %p65, %p66
      %p69 = scmp.ne.s32.totalorder %s54, %s68
      %p70 = scmp.eq.s32.totalorder %s23, 0
      %p71 = por %p69, %p70
      %s73 = sadd.s32 %s72, 1
      %p76 = scmp.eq.s32.totalorder %s17, 1
      %p77 = scmp.ne.s32.totalorder %s72, %s74
      %p78 = scmp.eq.s32.totalorder %s17, 0
      %p79 = por %p77, %p78
      %p80 = scmp.ne.s32.totalorder %s72, %s74
      %p81 = scmp.eq.s32.totalorder %s22, 1
      %p82 = por %p80, %p81
      %p83 = scmp.ne.s32.totalorder %s74, %s75
      %p84 = scmp.eq.s32.totalorder %s22, 0
      %p85 = por %p83, %p84
      %p86 = scmp.ne.s32.totalorder %s74, %s75
      %p87 = scmp.eq.s32.totalorder %s23, 1
      %p88 = por %p86, %p87
      %p90 = scmp.ne.s32.totalorder %s75, %s89
      %p91 = scmp.eq.s32.totalorder %s23, 0
      %p92 = por %p90, %p91
      %s94 = sadd.s32 %s93, 1
      %p97 = scmp.eq.s32.totalorder %s17, 1
      %p98 = scmp.ne.s32.totalorder %s93, %s95
      %p99 = scmp.eq.s32.totalorder %s17, 0
      %p100 = por %p98, %p99
      %p101 = scmp.ne.s32.totalorder %s93, %s95
      %p102 = scmp.eq.s32.totalorder %s22, 1
      %p103 = por %p101, %p102
      %p104 = scmp.ne.s32.totalorder %s95, %s96
      %p105 = scmp.eq.s32.totalorder %s22, 0
      %p106 = por %p104, %p105
      %p107 = scmp.ne.s32.totalorder %s95, %s96
      %p108 = scmp.eq.s32.totalorder %s23, 1
      %p109 = por %p107, %p108
      %p111 = scmp.ne.s32.totalorder %s96, %s110
      %p112 = scmp.eq.s32.totalorder %s23, 0
      %p113 = por %p111, %p112
      %s115 = sadd.s32 %s114, 1
      %p118 = scmp.eq.s32.totalorder %s17, 1
      %p119 = scmp.ne.s32.totalorder %s114, %s116
      %p120 = scmp.eq.s32.totalorder %s17, 0
      %p121 = por %p119, %p120
      %p122 = scmp.ne.s32.totalorder %s114, %s116
      %p123 = scmp.eq.s32.totalorder %s22, 1
      %p124 = por %p122, %p123
      %p125 = scmp.ne.s32.totalorder %s116, %s117
      %p126 = scmp.eq.s32.totalorder %s22, 0
      %p127 = por %p125, %p126
      %p128 = scmp.ne.s32.totalorder %s116, %s117
      %p129 = scmp.eq.s32.totalorder %s23, 1
      %p130 = por %p128, %p129
      %p132 = scmp.ne.s32.totalorder %s117, %s131
      %p133 = scmp.eq.s32.totalorder %s23, 0
      %p134 = por %p132, %p133
      %s136 = sadd.s32 %s135, 1
      %p139 = scmp.eq.s32.totalorder %s17, 1
      %p140 = scmp.ne.s32.totalorder %s135, %s137
      %p141 = scmp.eq.s32.totalorder %s17, 0
      %p142 = por %p140, %p141
      %p143 = scmp.ne.s32.totalorder %s135, %s137
      %p144 = scmp.eq.s32.totalorder %s22, 1
      %p145 = por %p143, %p144
      %p146 = scmp.ne.s32.totalorder %s137, %s138
      %p147 = scmp.eq.s32.totalorder %s22, 0
      %p148 = por %p146, %p147
      %p149 = scmp.ne.s32.totalorder %s137, %s138
      %p150 = scmp.eq.s32.totalorder %s23, 1
      %p151 = por %p149, %p150
      %p153 = scmp.ne.s32.totalorder %s138, %s152
      %p154 = scmp.eq.s32.totalorder %s23, 0
      %p155 = por %p153, %p154
      %s157 = sadd.s32 %s156, 1
      %p160 = scmp.eq.s32.totalorder %s17, 1
      %p161 = scmp.ne.s32.totalorder %s156, %s158
      %p162 = scmp.eq.s32.totalorder %s17, 0
      %p163 = por %p161, %p162
      %p164 = scmp.ne.s32.totalorder %s156, %s158
      %p165 = scmp.eq.s32.totalorder %s22, 1
      %p166 = por %p164, %p165
      %p167 = scmp.ne.s32.totalorder %s158, %s159
      %p168 = scmp.eq.s32.totalorder %s22, 0
      %p169 = por %p167, %p168
      %p170 = scmp.ne.s32.totalorder %s158, %s159
      %p171 = scmp.eq.s32.totalorder %s23, 1
      %p172 = por %p170, %p171
      %p174 = scmp.ne.s32.totalorder %s159, %s173
      %p175 = scmp.eq.s32.totalorder %s23, 0
      %p176 = por %p174, %p175
      %s178 = sadd.s32 %s177, 1
      %p181 = scmp.eq.s32.totalorder %s17, 1
      %p182 = scmp.ne.s32.totalorder %s177, %s179
      %p183 = scmp.eq.s32.totalorder %s17, 0
      %p184 = por %p182, %p183
      %p185 = scmp.ne.s32.totalorder %s177, %s179
      %p186 = scmp.eq.s32.totalorder %s22, 1
      %p187 = por %p185, %p186
      %p188 = scmp.ne.s32.totalorder %s179, %s180
      %p189 = scmp.eq.s32.totalorder %s22, 0
      %p190 = por %p188, %p189
      %p191 = scmp.ne.s32.totalorder %s179, %s180
      %p192 = scmp.eq.s32.totalorder %s23, 1
      %p193 = por %p191, %p192
      %p195 = scmp.ne.s32.totalorder %s180, %s194
      %p196 = scmp.eq.s32.totalorder %s23, 0
      %p197 = por %p195, %p196
      %s198 = ssub.s32 %s17, %s24
      %p199 = scmp.eq.s32.totalorder %s198, 0
      %s201 = sadd.s32 %s200, 1
      %s202 = scalar_select %p199, %s200, %s201
      %p205 = pneg %p199
      %p206 = scmp.eq.s32.totalorder %s17, 1
      %p207 = por %p205, %p206
      %p208 = scmp.ne.s32.totalorder %s200, %s203
      %p209 = scmp.eq.s32.totalorder %s17, 0
      %p210 = por %p208, %p209
      %p211 = scmp.ne.s32.totalorder %s200, %s203
      %p212 = scmp.eq.s32.totalorder %s22, 1
      %p213 = por %p211, %p212
      %p214 = scmp.ne.s32.totalorder %s203, %s204
      %p215 = scmp.eq.s32.totalorder %s22, 0
      %p216 = por %p214, %p215
      %p217 = scmp.ne.s32.totalorder %s203, %s204
      %p218 = scmp.eq.s32.totalorder %s23, 1
      %p219 = por %p217, %p218
      %p221 = scmp.ne.s32.totalorder %s204, %s220
      %p222 = scmp.eq.s32.totalorder %s23, 0
      %p223 = por %p221, %p222
      %p224 = scmp.le.s32.totalorder 1, %s17
      %p225 = scmp.lt.s32.totalorder %s17, 3
      %p226 = pnand %p224, %p225
      %p227 = pneg %p226
      // Predicated region
      $region9: #{tpu_custom_call.1} parent=5 // pred_check
        _
      $region10: #{tpu_custom_call.1} parent=5 // pred_check_branch
        %229 = sbr.rel (%p226) target = $region12
      $region11: #{tpu_custom_call.1} parent=5 // pred_region
        %s230 = ssub.s32 %s17, 1
        // Predicated region
        $region13: #{tpu_custom_call.1} parent=11 // pred_check
          %p231 = pneg %p64
        $region14: #{tpu_custom_call.1} parent=11 // pred_check_branch
          %233 = sbr.rel (%p231) target = $region16
        $region15: #{tpu_custom_call.1} parent=11 // pred_region
          _
        $region16: #{tpu_custom_call.1} parent=11 // pred_fallthru
          _
        // Predicated region
        $region17: #{tpu_custom_call.1} parent=11 // pred_check
          %p234 = pneg %p85
        $region18: #{tpu_custom_call.1} parent=11 // pred_check_branch
          %236 = sbr.rel (%p234) target = $region20
        $region19: #{tpu_custom_call.1} parent=11 // pred_region
          _
        $region20: #{tpu_custom_call.1} parent=11 // pred_fallthru
          _
        // Predicated region
        $region21: #{tpu_custom_call.1} parent=11 // pred_check
          %p237 = pneg %p106
        $region22: #{tpu_custom_call.1} parent=11 // pred_check_branch
          %239 = sbr.rel (%p237) target = $region24
        $region23: #{tpu_custom_call.1} parent=11 // pred_region
          _
        $region24: #{tpu_custom_call.1} parent=11 // pred_fallthru
          _
        // Predicated region
        $region25: #{tpu_custom_call.1} parent=11 // pred_check
          %p240 = pneg %p127
        $region26: #{tpu_custom_call.1} parent=11 // pred_check_branch
          %242 = sbr.rel (%p240) target = $region28
        $region27: #{tpu_custom_call.1} parent=11 // pred_region
          _
        $region28: #{tpu_custom_call.1} parent=11 // pred_fallthru
          _
        // Predicated region
        $region29: #{tpu_custom_call.1} parent=11 // pred_check
          %p243 = pneg %p148
        $region30: #{tpu_custom_call.1} parent=11 // pred_check_branch
          %245 = sbr.rel (%p243) target = $region32
        $region31: #{tpu_custom_call.1} parent=11 // pred_region
          _
        $region32: #{tpu_custom_call.1} parent=11 // pred_fallthru
          _
        // Predicated region
        $region33: #{tpu_custom_call.1} parent=11 // pred_check
          %p246 = pneg %p169
        $region34: #{tpu_custom_call.1} parent=11 // pred_check_branch
          %248 = sbr.rel (%p246) target = $region36
        $region35: #{tpu_custom_call.1} parent=11 // pred_region
          _
        $region36: #{tpu_custom_call.1} parent=11 // pred_fallthru
          _
        // Predicated region
        $region37: #{tpu_custom_call.1} parent=11 // pred_check
          %p249 = pneg %p190
        $region38: #{tpu_custom_call.1} parent=11 // pred_check_branch
          %251 = sbr.rel (%p249) target = $region40
        $region39: #{tpu_custom_call.1} parent=11 // pred_region
          _
        $region40: #{tpu_custom_call.1} parent=11 // pred_fallthru
          _
      $region12: #{tpu_custom_call.1} parent=5 // pred_fallthru
        _
      %p252 = scmp.lt.s32.totalorder %s17, 2
      // Predicated region
      $region41: #{tpu_custom_call.1} parent=5 // pred_check
        %p253 = pneg %p252
      $region42: #{tpu_custom_call.1} parent=5 // pred_check_branch
        %255 = sbr.rel (%p253) target = $region44
      $region43: #{tpu_custom_call.1} parent=5 // pred_region
        // Predicated region
        $region45: #{tpu_custom_call.1} parent=43 // pred_check
          %p256 = pneg %p37
        $region46: #{tpu_custom_call.1} parent=43 // pred_check_branch
          %258 = sbr.rel (%p256) target = $region48
        $region47: #{tpu_custom_call.1} parent=43 // pred_region
          %p259 = scmp.lt.s32.totalorder %s17, 1
          %s260 = scalar_select %p259, %s17, 1
          %s261 = smul.addr %s260, 32
          %s262 = smul.addr %s261, 4
          %s263 = scalar_lea.vmem %s0, %s262
        $region48: #{tpu_custom_call.1} parent=43 // pred_fallthru
          _
      $region44: #{tpu_custom_call.1} parent=5 // pred_fallthru
        _
      %p264 = scmp.le.s32.totalorder 1, %s17
      %p265 = scmp.lt.s32.totalorder %s17, 3
      %p266 = pnand %p264, %p265
      %p267 = pneg %p266
      // Predicated region
      $region49: #{tpu_custom_call.1} parent=5 // pred_check
        _
      $region50: #{tpu_custom_call.1} parent=5 // pred_check_branch
        %269 = sbr.rel (%p266) target = $region52
      $region51: #{tpu_custom_call.1} parent=5 // pred_region
        %s270 = ssub.s32 %s17, 1
        %p271 = scmp.lt.s32.totalorder %s22, 1
        %s272 = scalar_select %p271, %s22, 1
        %s273 = smul.addr %s272, 32
        %s274 = smul.addr %s273, 4
        %s275 = scalar_lea.vmem %s0, %s274
        %p276 = pneg %p43
        %p277 = pneg %p40
        %p278 = pneg %p64
        %p279 = pneg %p61
        %p280 = pneg %p85
        %p281 = pneg %p82
        %p282 = pneg %p106
        %p283 = pneg %p103
        %p284 = pneg %p127
        %p285 = pneg %p124
        %p286 = pneg %p148
        %p287 = pneg %p145
        %p288 = pneg %p169
        %p289 = pneg %p166
        %p290 = pneg %p190
        %p291 = pneg %p187
        %p292 = pneg %p216
        %p293 = pneg %p213
        %s294 = sand.u32 %s203, 1
        %s295 = scalar_lea.sflag [#allocation4], %s294
        %s296 = sand.u32 %s203, 1
        %s297 = smul.addr %s296, 128
        %s298 = scalar_lea.vmem [#allocation3], %s297
        %p299 = scmp.lt.s32.totalorder %s22, 1
        %s300 = scalar_select %p299, %s22, 1
        %s301 = smul.addr %s300, 32
        %s302 = smul.addr %s301, 4
        %s303 = scalar_lea.vmem %s0, %s302
        %v304 = vld [vmem:[%s303] sm:$0xf]
        %v305 = vld [vmem:[%s303 + $0x4] sm:$0xf]
        %v306 = vld [vmem:[%s303 + $0x8] sm:$0xf]
        %v307 = vld [vmem:[%s303 + $0xc] sm:$0xf]
        %v308 = vld [vmem:[%s303 + $0x10] sm:$0xf]
        %v309 = vld [vmem:[%s303 + $0x14] sm:$0xf]
        %v310 = vld [vmem:[%s303 + $0x18] sm:$0xf]
        %v311 = vld [vmem:[%s303 + $0x1c] sm:$0xf]
        %v312 = vld [vmem:[%s303 + $0x20] sm:$0xf]
        %v313 = vld [vmem:[%s303 + $0x24] sm:$0xf]
        %v314 = vld [vmem:[%s303 + $0x28] sm:$0xf]
        %v315 = vld [vmem:[%s303 + $0x2c] sm:$0xf]
        %v316 = vld [vmem:[%s303 + $0x30] sm:$0xf]
        %v317 = vld [vmem:[%s303 + $0x34] sm:$0xf]
        %v318 = vld [vmem:[%s303 + $0x38] sm:$0xf]
        %v319 = vld [vmem:[%s303 + $0x3c] sm:$0xf]
        %v320 = vld [vmem:[%s303 + $0x40] sm:$0xf]
        %v321 = vld [vmem:[%s303 + $0x44] sm:$0xf]
        %v322 = vld [vmem:[%s303 + $0x48] sm:$0xf]
        %v323 = vld [vmem:[%s303 + $0x4c] sm:$0xf]
        %v324 = vld [vmem:[%s303 + $0x50] sm:$0xf]
        %v325 = vld [vmem:[%s303 + $0x54] sm:$0xf]
        %v326 = vld [vmem:[%s303 + $0x58] sm:$0xf]
        %v327 = vld [vmem:[%s303 + $0x5c] sm:$0xf]
        %v328 = vld [vmem:[%s303 + $0x60] sm:$0xf]
        %v329 = vld [vmem:[%s303 + $0x64] sm:$0xf]
        %v330 = vld [vmem:[%s303 + $0x68] sm:$0xf]
        %v331 = vld [vmem:[%s303 + $0x6c] sm:$0xf]
        %v332 = vld [vmem:[%s303 + $0x70] sm:$0xf]
        %v333 = vld [vmem:[%s303 + $0x74] sm:$0xf]
        %v334 = vld [vmem:[%s303 + $0x78] sm:$0xf]
        %v335 = vld [vmem:[%s303 + $0x7c] sm:$0xf]
        %v336 = vld [vmem:[%s2] sm:$0xf]
        %v337 = vld [vmem:[%s2 + $0x4] sm:$0xf]
        %v338 = vld [vmem:[%s2 + $0x8] sm:$0xf]
        %v339 = vld [vmem:[%s2 + $0xc] sm:$0xf]
        %v340 = vld [vmem:[%s2 + $0x10] sm:$0xf]
        %v341 = vld [vmem:[%s2 + $0x14] sm:$0xf]
        %v342 = vld [vmem:[%s2 + $0x18] sm:$0xf]
        %v343 = vld [vmem:[%s2 + $0x1c] sm:$0xf]
        %v344 = vld [vmem:[%s2 + $0x20] sm:$0xf]
        %v345 = vld [vmem:[%s2 + $0x24] sm:$0xf]
        %v346 = vld [vmem:[%s2 + $0x28] sm:$0xf]
        %v347 = vld [vmem:[%s2 + $0x2c] sm:$0xf]
        %v348 = vld [vmem:[%s2 + $0x30] sm:$0xf]
        %v349 = vld [vmem:[%s2 + $0x34] sm:$0xf]
        %v350 = vld [vmem:[%s2 + $0x38] sm:$0xf]
        %v351 = vld [vmem:[%s2 + $0x3c] sm:$0xf]
        %v352 = vld [vmem:[%s3] sm:$0x1]
        %v354 = vperm.slane %v352, 0
        %v388 = vunpack.c.l.b16 %v304
        %v389 = vunpack.c.l.b16 %v305
        %v390 = vunpack.c.l.b16 %v306
        %v391 = vunpack.c.l.b16 %v307
        %v392 = vunpack.c.l.b16 %v308
        %v393 = vunpack.c.l.b16 %v309
        %v394 = vunpack.c.l.b16 %v310
        %v395 = vunpack.c.l.b16 %v311
        %v396 = vunpack.c.l.b16 %v312
        %v397 = vunpack.c.l.b16 %v313
        %v398 = vunpack.c.l.b16 %v314
        %v399 = vunpack.c.l.b16 %v315
        %v400 = vunpack.c.l.b16 %v316
        %v401 = vunpack.c.l.b16 %v317
        %v402 = vunpack.c.l.b16 %v318
        %v403 = vunpack.c.l.b16 %v319
        %v404 = vunpack.c.l.b16 %v320
        %v405 = vunpack.c.l.b16 %v321
        %v406 = vunpack.c.l.b16 %v322
        %v407 = vunpack.c.l.b16 %v323
        %v408 = vunpack.c.l.b16 %v324
        %v409 = vunpack.c.l.b16 %v325
        %v410 = vunpack.c.l.b16 %v326
        %v411 = vunpack.c.l.b16 %v327
        %v412 = vunpack.c.l.b16 %v328
        %v413 = vunpack.c.l.b16 %v329
        %v414 = vunpack.c.l.b16 %v330
        %v415 = vunpack.c.l.b16 %v331
        %v416 = vunpack.c.l.b16 %v332
        %v417 = vunpack.c.l.b16 %v333
        %v418 = vunpack.c.l.b16 %v334
        %v419 = vunpack.c.l.b16 %v335
        %v420 = vpack.c.b16 %v389, %v388
        %v421 = vpack.c.b16 %v391, %v390
        %v422 = vpack.c.b16 %v393, %v392
        %v423 = vpack.c.b16 %v395, %v394
        %v424 = vpack.c.b16 %v397, %v396
        %v425 = vpack.c.b16 %v399, %v398
        %v426 = vpack.c.b16 %v401, %v400
        %v427 = vpack.c.b16 %v403, %v402
        %v428 = vpack.c.b16 %v405, %v404
        %v429 = vpack.c.b16 %v407, %v406
        %v430 = vpack.c.b16 %v409, %v408
        %v431 = vpack.c.b16 %v411, %v410
        %v432 = vpack.c.b16 %v413, %v412
        %v433 = vpack.c.b16 %v415, %v414
        %v434 = vpack.c.b16 %v417, %v416
        %v435 = vpack.c.b16 %v419, %v418
        %v468 = vunpack.c.l.b16 %v336
        %v469 = vunpack.c.l.b16 %v337
        %v470 = vunpack.c.l.b16 %v338
        %v471 = vunpack.c.l.b16 %v339
        %v472 = vunpack.c.l.b16 %v340
        %v473 = vunpack.c.l.b16 %v341
        %v474 = vunpack.c.l.b16 %v342
        %v475 = vunpack.c.l.b16 %v343
        %v476 = vunpack.c.l.b16 %v344
        %v477 = vunpack.c.l.b16 %v345
        %v478 = vunpack.c.l.b16 %v346
        %v479 = vunpack.c.l.b16 %v347
        %v480 = vunpack.c.l.b16 %v348
        %v481 = vunpack.c.l.b16 %v349
        %v482 = vunpack.c.l.b16 %v350
        %v483 = vunpack.c.l.b16 %v351
        %v484 = vpack.c.b16 %v469, %v468
        %v485 = vpack.c.b16 %v471, %v470
        %v486 = vpack.c.b16 %v473, %v472
        %v487 = vpack.c.b16 %v475, %v474
        %v488 = vpack.c.b16 %v477, %v476
        %v489 = vpack.c.b16 %v479, %v478
        %v490 = vpack.c.b16 %v481, %v480
        %v491 = vpack.c.b16 %v483, %v482
        %500 = vmatpush.bf16.msra.mxu0 %v491
        %501 = vmatpush.bf16.msra.mxu0 %v490
        %502 = vmatpush.bf16.msra.mxu0 %v489
        %503 = vmatpush.bf16.msra.mxu0 %v488
        %504 = vmatpush.bf16.msra.mxu0 %v487
        %505 = vmatpush.bf16.msra.mxu0 %v486
        %506 = vmatpush.bf16.msra.mxu0 %v485
        %507 = vmatpush.bf16.msra.mxu0 %v484
        %508 = vmatmul.bf16.gmra.mxu0 %v420
        %v509 = vpop.f32.mrf.mxu0
        %v510 = vadd.f32 %v354, %v509
        %v511 = vpop.f32.mrf.mxu0
        %v512 = vadd.f32 %v354, %v511
        %513 = vmatmul.bf16.gmra.mxu0 %v421
        %v514 = vpop.f32.mrf.mxu0
        %v515 = vadd.f32 %v354, %v514
        %v516 = vpop.f32.mrf.mxu0
        %v517 = vadd.f32 %v354, %v516
        %518 = vmatmul.bf16.gmra.mxu0 %v422
        %v519 = vpop.f32.mrf.mxu0
        %v520 = vadd.f32 %v354, %v519
        %v521 = vpop.f32.mrf.mxu0
        %v522 = vadd.f32 %v354, %v521
        %523 = vmatmul.bf16.gmra.mxu0 %v423
        %v524 = vpop.f32.mrf.mxu0
        %v525 = vadd.f32 %v354, %v524
        %v526 = vpop.f32.mrf.mxu0
        %v527 = vadd.f32 %v354, %v526
        %528 = vmatmul.bf16.gmra.mxu0 %v424
        %v529 = vpop.f32.mrf.mxu0
        %v530 = vadd.f32 %v354, %v529
        %v531 = vpop.f32.mrf.mxu0
        %v532 = vadd.f32 %v354, %v531
        %533 = vmatmul.bf16.gmra.mxu0 %v425
        %v534 = vpop.f32.mrf.mxu0
        %v535 = vadd.f32 %v354, %v534
        %v536 = vpop.f32.mrf.mxu0
        %v537 = vadd.f32 %v354, %v536
        %538 = vmatmul.bf16.gmra.mxu0 %v426
        %v539 = vpop.f32.mrf.mxu0
        %v540 = vadd.f32 %v354, %v539
        %v541 = vpop.f32.mrf.mxu0
        %v542 = vadd.f32 %v354, %v541
        %543 = vmatmul.bf16.gmra.mxu0 %v427
        %v544 = vpop.f32.mrf.mxu0
        %v545 = vadd.f32 %v354, %v544
        %v546 = vpop.f32.mrf.mxu0
        %v547 = vadd.f32 %v354, %v546
        %548 = vmatmul.bf16.gmra.mxu0 %v428
        %v549 = vpop.f32.mrf.mxu0
        %v550 = vadd.f32 %v354, %v549
        %v551 = vpop.f32.mrf.mxu0
        %v552 = vadd.f32 %v354, %v551
        %553 = vmatmul.bf16.gmra.mxu0 %v429
        %v554 = vpop.f32.mrf.mxu0
        %v555 = vadd.f32 %v354, %v554
        %v556 = vpop.f32.mrf.mxu0
        %v557 = vadd.f32 %v354, %v556
        %558 = vmatmul.bf16.gmra.mxu0 %v430
        %v559 = vpop.f32.mrf.mxu0
        %v560 = vadd.f32 %v354, %v559
        %v561 = vpop.f32.mrf.mxu0
        %v562 = vadd.f32 %v354, %v561
        %563 = vmatmul.bf16.gmra.mxu0 %v431
        %v564 = vpop.f32.mrf.mxu0
        %v565 = vadd.f32 %v354, %v564
        %v566 = vpop.f32.mrf.mxu0
        %v567 = vadd.f32 %v354, %v566
        %568 = vmatmul.bf16.gmra.mxu0 %v432
        %v569 = vpop.f32.mrf.mxu0
        %v570 = vadd.f32 %v354, %v569
        %v571 = vpop.f32.mrf.mxu0
        %v572 = vadd.f32 %v354, %v571
        %573 = vmatmul.bf16.gmra.mxu0 %v433
        %v574 = vpop.f32.mrf.mxu0
        %v575 = vadd.f32 %v354, %v574
        %v576 = vpop.f32.mrf.mxu0
        %v577 = vadd.f32 %v354, %v576
        %578 = vmatmul.bf16.gmra.mxu0 %v434
        %v579 = vpop.f32.mrf.mxu0
        %v580 = vadd.f32 %v354, %v579
        %v581 = vpop.f32.mrf.mxu0
        %v582 = vadd.f32 %v354, %v581
        %583 = vmatmul.bf16.gmra.mxu0 %v435
        %v584 = vpop.f32.mrf.mxu0
        %v585 = vadd.f32 %v354, %v584
        %v586 = vpop.f32.mrf.mxu0
        %v587 = vadd.f32 %v354, %v586
        %588 = vdwg.mxu0
        %v589 = vmax.f32 %v510, 0.0
        %v590 = vmax.f32 %v512, 0.0
        %v591 = vmax.f32 %v515, 0.0
        %v592 = vmax.f32 %v517, 0.0
        %v593 = vmax.f32 %v520, 0.0
        %v594 = vmax.f32 %v522, 0.0
        %v595 = vmax.f32 %v525, 0.0
        %v596 = vmax.f32 %v527, 0.0
        %v597 = vmax.f32 %v530, 0.0
        %v598 = vmax.f32 %v532, 0.0
        %v599 = vmax.f32 %v535, 0.0
        %v600 = vmax.f32 %v537, 0.0
        %v601 = vmax.f32 %v540, 0.0
        %v602 = vmax.f32 %v542, 0.0
        %v603 = vmax.f32 %v545, 0.0
        %v604 = vmax.f32 %v547, 0.0
        %v605 = vmax.f32 %v550, 0.0
        %v606 = vmax.f32 %v552, 0.0
        %v607 = vmax.f32 %v555, 0.0
        %v608 = vmax.f32 %v557, 0.0
        %v609 = vmax.f32 %v560, 0.0
        %v610 = vmax.f32 %v562, 0.0
        %v611 = vmax.f32 %v565, 0.0
        %v612 = vmax.f32 %v567, 0.0
        %v613 = vmax.f32 %v570, 0.0
        %v614 = vmax.f32 %v572, 0.0
        %v615 = vmax.f32 %v575, 0.0
        %v616 = vmax.f32 %v577, 0.0
        %v617 = vmax.f32 %v580, 0.0
        %v618 = vmax.f32 %v582, 0.0
        %v619 = vmax.f32 %v585, 0.0
        %v620 = vmax.f32 %v587, 0.0
        %v621 = vpack.c.bf16 %v589, %v589
        %v622 = vpack.c.bf16 %v590, %v590
        %v623 = vpack.c.bf16 %v591, %v591
        %v624 = vpack.c.bf16 %v592, %v592
        %v625 = vpack.c.bf16 %v593, %v593
        %v626 = vpack.c.bf16 %v594, %v594
        %v627 = vpack.c.bf16 %v595, %v595
        %v628 = vpack.c.bf16 %v596, %v596
        %v629 = vpack.c.bf16 %v597, %v597
        %v630 = vpack.c.bf16 %v598, %v598
        %v631 = vpack.c.bf16 %v599, %v599
        %v632 = vpack.c.bf16 %v600, %v600
        %v633 = vpack.c.bf16 %v601, %v601
        %v634 = vpack.c.bf16 %v602, %v602
        %v635 = vpack.c.bf16 %v603, %v603
        %v636 = vpack.c.bf16 %v604, %v604
        %v637 = vpack.c.bf16 %v605, %v605
        %v638 = vpack.c.bf16 %v606, %v606
        %v639 = vpack.c.bf16 %v607, %v607
        %v640 = vpack.c.bf16 %v608, %v608
        %v641 = vpack.c.bf16 %v609, %v609
        %v642 = vpack.c.bf16 %v610, %v610
        %v643 = vpack.c.bf16 %v611, %v611
        %v644 = vpack.c.bf16 %v612, %v612
        %v645 = vpack.c.bf16 %v613, %v613
        %v646 = vpack.c.bf16 %v614, %v614
        %v647 = vpack.c.bf16 %v615, %v615
        %v648 = vpack.c.bf16 %v616, %v616
        %v649 = vpack.c.bf16 %v617, %v617
        %v650 = vpack.c.bf16 %v618, %v618
        %v651 = vpack.c.bf16 %v619, %v619
        %v652 = vpack.c.bf16 %v620, %v620
        %653 = vst [vmem:[#allocation2] sm:$0xf] %v621
        %654 = vst [vmem:[#allocation2 + $0x4] sm:$0xf] %v622
        %655 = vst [vmem:[#allocation2 + $0x8] sm:$0xf] %v623
        %656 = vst [vmem:[#allocation2 + $0xc] sm:$0xf] %v624
        %657 = vst [vmem:[#allocation2 + $0x10] sm:$0xf] %v625
        %658 = vst [vmem:[#allocation2 + $0x14] sm:$0xf] %v626
        %659 = vst [vmem:[#allocation2 + $0x18] sm:$0xf] %v627
        %660 = vst [vmem:[#allocation2 + $0x1c] sm:$0xf] %v628
        %661 = vst [vmem:[#allocation2 + $0x20] sm:$0xf] %v629
        %662 = vst [vmem:[#allocation2 + $0x24] sm:$0xf] %v630
        %663 = vst [vmem:[#allocation2 + $0x28] sm:$0xf] %v631
        %664 = vst [vmem:[#allocation2 + $0x2c] sm:$0xf] %v632
        %665 = vst [vmem:[#allocation2 + $0x30] sm:$0xf] %v633
        %666 = vst [vmem:[#allocation2 + $0x34] sm:$0xf] %v634
        %667 = vst [vmem:[#allocation2 + $0x38] sm:$0xf] %v635
        %668 = vst [vmem:[#allocation2 + $0x3c] sm:$0xf] %v636
        %669 = vst [vmem:[#allocation2 + $0x40] sm:$0xf] %v637
        %670 = vst [vmem:[#allocation2 + $0x44] sm:$0xf] %v638
        %671 = vst [vmem:[#allocation2 + $0x48] sm:$0xf] %v639
        %672 = vst [vmem:[#allocation2 + $0x4c] sm:$0xf] %v640
        %673 = vst [vmem:[#allocation2 + $0x50] sm:$0xf] %v641
        %674 = vst [vmem:[#allocation2 + $0x54] sm:$0xf] %v642
        %675 = vst [vmem:[#allocation2 + $0x58] sm:$0xf] %v643
        %676 = vst [vmem:[#allocation2 + $0x5c] sm:$0xf] %v644
        %677 = vst [vmem:[#allocation2 + $0x60] sm:$0xf] %v645
        %678 = vst [vmem:[#allocation2 + $0x64] sm:$0xf] %v646
        %679 = vst [vmem:[#allocation2 + $0x68] sm:$0xf] %v647
        %680 = vst [vmem:[#allocation2 + $0x6c] sm:$0xf] %v648
        %681 = vst [vmem:[#allocation2 + $0x70] sm:$0xf] %v649
        %682 = vst [vmem:[#allocation2 + $0x74] sm:$0xf] %v650
        %683 = vst [vmem:[#allocation2 + $0x78] sm:$0xf] %v651
        %684 = vst [vmem:[#allocation2 + $0x7c] sm:$0xf] %v652
        %685 = vst [vmem:[#allocation2 + $0x80] sm:$0xf] %v621
        %686 = vst [vmem:[#allocation2 + $0x84] sm:$0xf] %v622
        %687 = vst [vmem:[#allocation2 + $0x88] sm:$0xf] %v623
        %688 = vst [vmem:[#allocation2 + $0x8c] sm:$0xf] %v624
        %689 = vst [vmem:[#allocation2 + $0x90] sm:$0xf] %v625
        %690 = vst [vmem:[#allocation2 + $0x94] sm:$0xf] %v626
        %691 = vst [vmem:[#allocation2 + $0x98] sm:$0xf] %v627
        %692 = vst [vmem:[#allocation2 + $0x9c] sm:$0xf] %v628
        %693 = vst [vmem:[#allocation2 + $0xa0] sm:$0xf] %v629
        %694 = vst [vmem:[#allocation2 + $0xa4] sm:$0xf] %v630
        %695 = vst [vmem:[#allocation2 + $0xa8] sm:$0xf] %v631
        %696 = vst [vmem:[#allocation2 + $0xac] sm:$0xf] %v632
        %697 = vst [vmem:[#allocation2 + $0xb0] sm:$0xf] %v633
        %698 = vst [vmem:[#allocation2 + $0xb4] sm:$0xf] %v634
        %699 = vst [vmem:[#allocation2 + $0xb8] sm:$0xf] %v635
        %700 = vst [vmem:[#allocation2 + $0xbc] sm:$0xf] %v636
        %701 = vst [vmem:[#allocation2 + $0xc0] sm:$0xf] %v637
        %702 = vst [vmem:[#allocation2 + $0xc4] sm:$0xf] %v638
        %703 = vst [vmem:[#allocation2 + $0xc8] sm:$0xf] %v639
        %704 = vst [vmem:[#allocation2 + $0xcc] sm:$0xf] %v640
        %705 = vst [vmem:[#allocation2 + $0xd0] sm:$0xf] %v641
        %706 = vst [vmem:[#allocation2 + $0xd4] sm:$0xf] %v642
        %707 = vst [vmem:[#allocation2 + $0xd8] sm:$0xf] %v643
        %708 = vst [vmem:[#allocation2 + $0xdc] sm:$0xf] %v644
        %709 = vst [vmem:[#allocation2 + $0xe0] sm:$0xf] %v645
        %710 = vst [vmem:[#allocation2 + $0xe4] sm:$0xf] %v646
        %711 = vst [vmem:[#allocation2 + $0xe8] sm:$0xf] %v647
        %712 = vst [vmem:[#allocation2 + $0xec] sm:$0xf] %v648
        %713 = vst [vmem:[#allocation2 + $0xf0] sm:$0xf] %v649
        %714 = vst [vmem:[#allocation2 + $0xf4] sm:$0xf] %v650
        %715 = vst [vmem:[#allocation2 + $0xf8] sm:$0xf] %v651
        %716 = vst [vmem:[#allocation2 + $0xfc] sm:$0xf] %v652
        %v717 = vld [vmem:[#allocation2 + $0x74] sm:$0x8]
        %v718 = vld [vmem:[#allocation2 + $0x78] sm:$0xf]
        %v719 = vld [vmem:[#allocation2 + $0x7c] sm:$0xf]
        %v720 = vld [vmem:[#allocation2 + $0x80] sm:$0xf]
        %v721 = vld [vmem:[#allocation2 + $0x84] sm:$0xf]
        %v722 = vld [vmem:[#allocation2 + $0x88] sm:$0xf]
        %v723 = vld [vmem:[#allocation2 + $0x8c] sm:$0xf]
        %v724 = vld [vmem:[#allocation2 + $0x90] sm:$0xf]
        %v725 = vld [vmem:[#allocation2 + $0x94] sm:$0xf]
        %v726 = vld [vmem:[#allocation2 + $0x98] sm:$0xf]
        %v727 = vld [vmem:[#allocation2 + $0x9c] sm:$0xf]
        %v728 = vld [vmem:[#allocation2 + $0xa0] sm:$0xf]
        %v729 = vld [vmem:[#allocation2 + $0xa4] sm:$0xf]
        %v730 = vld [vmem:[#allocation2 + $0xa8] sm:$0xf]
        %v731 = vld [vmem:[#allocation2 + $0xac] sm:$0xf]
        %v732 = vld [vmem:[#allocation2 + $0xb0] sm:$0xf]
        %v733 = vld [vmem:[#allocation2 + $0xb4] sm:$0xf]
        %v734 = vld [vmem:[#allocation2 + $0xb8] sm:$0xf]
        %v735 = vld [vmem:[#allocation2 + $0xbc] sm:$0xf]
        %v736 = vld [vmem:[#allocation2 + $0xc0] sm:$0xf]
        %v737 = vld [vmem:[#allocation2 + $0xc4] sm:$0xf]
        %v738 = vld [vmem:[#allocation2 + $0xc8] sm:$0xf]
        %v739 = vld [vmem:[#allocation2 + $0xcc] sm:$0xf]
        %v740 = vld [vmem:[#allocation2 + $0xd0] sm:$0xf]
        %v741 = vld [vmem:[#allocation2 + $0xd4] sm:$0xf]
        %v742 = vld [vmem:[#allocation2 + $0xd8] sm:$0xf]
        %v743 = vld [vmem:[#allocation2 + $0xdc] sm:$0xf]
        %v744 = vld [vmem:[#allocation2 + $0xe0] sm:$0xf]
        %v745 = vld [vmem:[#allocation2 + $0xe4] sm:$0xf]
        %v746 = vld [vmem:[#allocation2 + $0xe8] sm:$0xf]
        %v747 = vld [vmem:[#allocation2 + $0xec] sm:$0xf]
        %v748 = vld [vmem:[#allocation2 + $0xf0] sm:$0xf]
        %v749 = vld [vmem:[#allocation2 + $0xf4] sm:$0xf]
        %v750 = vld [vmem:[%s1] sm:$0xf]
        %v751 = vld [vmem:[%s1 + $0x4] sm:$0xf]
        %v752 = vld [vmem:[%s1 + $0x8] sm:$0xf]
        %v753 = vld [vmem:[%s1 + $0xc] sm:$0xf]
        %v754 = vld [vmem:[%s1 + $0x10] sm:$0xf]
        %v755 = vld [vmem:[%s1 + $0x14] sm:$0xf]
        %v756 = vld [vmem:[%s1 + $0x18] sm:$0xf]
        %v757 = vld [vmem:[%s1 + $0x1c] sm:$0xf]
        %v758 = vld [vmem:[%s1 + $0x20] sm:$0xf]
        %v759 = vld [vmem:[%s1 + $0x24] sm:$0xf]
        %v760 = vld [vmem:[%s1 + $0x28] sm:$0xf]
        %v761 = vld [vmem:[%s1 + $0x2c] sm:$0xf]
        %v762 = vld [vmem:[%s1 + $0x30] sm:$0xf]
        %v763 = vld [vmem:[%s1 + $0x34] sm:$0xf]
        %v764 = vld [vmem:[%s1 + $0x38] sm:$0xf]
        %v765 = vld [vmem:[%s1 + $0x3c] sm:$0xf]
        %v766 = vld [vmem:[%s1 + $0x40] sm:$0xf]
        %v767 = vld [vmem:[%s1 + $0x44] sm:$0xf]
        %v768 = vld [vmem:[%s1 + $0x48] sm:$0xf]
        %v769 = vld [vmem:[%s1 + $0x4c] sm:$0xf]
        %v770 = vld [vmem:[%s1 + $0x50] sm:$0xf]
        %v771 = vld [vmem:[%s1 + $0x54] sm:$0xf]
        %v772 = vld [vmem:[%s1 + $0x58] sm:$0xf]
        %v773 = vld [vmem:[%s1 + $0x5c] sm:$0xf]
        %v774 = vld [vmem:[%s1 + $0x60] sm:$0xf]
        %v775 = vld [vmem:[%s1 + $0x64] sm:$0xf]
        %v776 = vld [vmem:[%s1 + $0x68] sm:$0xf]
        %v777 = vld [vmem:[%s1 + $0x6c] sm:$0xf]
        %v778 = vld [vmem:[%s1 + $0x70] sm:$0xf]
        %v779 = vld [vmem:[%s1 + $0x74] sm:$0xf]
        %v780 = vld [vmem:[%s1 + $0x78] sm:$0xf]
        %v781 = vld [vmem:[%s1 + $0x7c] sm:$0xf]
        %783 = vset.pattern.permute.xlu0 0
        %784 = vperm.xlu0 %783, %v750
        %v785 = vpop.permute.xlu0 %784
        %v788 = vunpack.c.l.s4 839922192
        %v789 = vunpack.c.0.s8 %v788
        %v790 = vperm.slane %v785, %v789
        %792 = vset.pattern.permute.xlu0 0
        %793 = vperm.xlu0 %792, %v751
        %v794 = vpop.permute.xlu0 %793
        %v797 = vunpack.c.l.s4 839922192
        %v798 = vunpack.c.0.s8 %v797
        %v799 = vperm.slane %v794, %v798
        %801 = vset.pattern.permute.xlu0 0
        %802 = vperm.xlu0 %801, %v752
        %v803 = vpop.permute.xlu0 %802
        %v806 = vunpack.c.l.s4 839922192
        %v807 = vunpack.c.0.s8 %v806
        %v808 = vperm.slane %v803, %v807
        %810 = vset.pattern.permute.xlu0 0
        %811 = vperm.xlu0 %810, %v753
        %v812 = vpop.permute.xlu0 %811
        %v815 = vunpack.c.l.s4 839922192
        %v816 = vunpack.c.0.s8 %v815
        %v817 = vperm.slane %v812, %v816
        %819 = vset.pattern.permute.xlu0 0
        %820 = vperm.xlu0 %819, %v754
        %v821 = vpop.permute.xlu0 %820
        %v824 = vunpack.c.l.s4 839922192
        %v825 = vunpack.c.0.s8 %v824
        %v826 = vperm.slane %v821, %v825
        %828 = vset.pattern.permute.xlu0 0
        %829 = vperm.xlu0 %828, %v755
        %v830 = vpop.permute.xlu0 %829
        %v833 = vunpack.c.l.s4 839922192
        %v834 = vunpack.c.0.s8 %v833
        %v835 = vperm.slane %v830, %v834
        %837 = vset.pattern.permute.xlu0 0
        %838 = vperm.xlu0 %837, %v756
        %v839 = vpop.permute.xlu0 %838
        %v842 = vunpack.c.l.s4 839922192
        %v843 = vunpack.c.0.s8 %v842
        %v844 = vperm.slane %v839, %v843
        %846 = vset.pattern.permute.xlu0 0
        %847 = vperm.xlu0 %846, %v757
        %v848 = vpop.permute.xlu0 %847
        %v851 = vunpack.c.l.s4 839922192
        %v852 = vunpack.c.0.s8 %v851
        %v853 = vperm.slane %v848, %v852
        %855 = vset.pattern.permute.xlu0 0
        %856 = vperm.xlu0 %855, %v758
        %v857 = vpop.permute.xlu0 %856
        %v860 = vunpack.c.l.s4 839922192
        %v861 = vunpack.c.0.s8 %v860
        %v862 = vperm.slane %v857, %v861
        %864 = vset.pattern.permute.xlu0 0
        %865 = vperm.xlu0 %864, %v759
        %v866 = vpop.permute.xlu0 %865
        %v869 = vunpack.c.l.s4 839922192
        %v870 = vunpack.c.0.s8 %v869
        %v871 = vperm.slane %v866, %v870
        %873 = vset.pattern.permute.xlu0 0
        %874 = vperm.xlu0 %873, %v760
        %v875 = vpop.permute.xlu0 %874
        %v878 = vunpack.c.l.s4 839922192
        %v879 = vunpack.c.0.s8 %v878
        %v880 = vperm.slane %v875, %v879
        %882 = vset.pattern.permute.xlu0 0
        %883 = vperm.xlu0 %882, %v761
        %v884 = vpop.permute.xlu0 %883
        %v887 = vunpack.c.l.s4 839922192
        %v888 = vunpack.c.0.s8 %v887
        %v889 = vperm.slane %v884, %v888
        %891 = vset.pattern.permute.xlu0 0
        %892 = vperm.xlu0 %891, %v762
        %v893 = vpop.permute.xlu0 %892
        %v896 = vunpack.c.l.s4 839922192
        %v897 = vunpack.c.0.s8 %v896
        %v898 = vperm.slane %v893, %v897
        %900 = vset.pattern.permute.xlu0 0
        %901 = vperm.xlu0 %900, %v763
        %v902 = vpop.permute.xlu0 %901
        %v905 = vunpack.c.l.s4 839922192
        %v906 = vunpack.c.0.s8 %v905
        %v907 = vperm.slane %v902, %v906
        %909 = vset.pattern.permute.xlu0 0
        %910 = vperm.xlu0 %909, %v764
        %v911 = vpop.permute.xlu0 %910
        %v914 = vunpack.c.l.s4 839922192
        %v915 = vunpack.c.0.s8 %v914
        %v916 = vperm.slane %v911, %v915
        %918 = vset.pattern.permute.xlu0 0
        %919 = vperm.xlu0 %918, %v765
        %v920 = vpop.permute.xlu0 %919
        %v923 = vunpack.c.l.s4 839922192
        %v924 = vunpack.c.0.s8 %v923
        %v925 = vperm.slane %v920, %v924
        %927 = vset.pattern.permute.xlu0 0
        %928 = vperm.xlu0 %927, %v766
        %v929 = vpop.permute.xlu0 %928
        %v932 = vunpack.c.l.s4 839922192
        %v933 = vunpack.c.0.s8 %v932
        %v934 = vperm.slane %v929, %v933
        %936 = vset.pattern.permute.xlu0 0
        %937 = vperm.xlu0 %936, %v767
        %v938 = vpop.permute.xlu0 %937
        %v941 = vunpack.c.l.s4 839922192
        %v942 = vunpack.c.0.s8 %v941
        %v943 = vperm.slane %v938, %v942
        %945 = vset.pattern.permute.xlu0 0
        %946 = vperm.xlu0 %945, %v768
        %v947 = vpop.permute.xlu0 %946
        %v950 = vunpack.c.l.s4 839922192
        %v951 = vunpack.c.0.s8 %v950
        %v952 = vperm.slane %v947, %v951
        %954 = vset.pattern.permute.xlu0 0
        %955 = vperm.xlu0 %954, %v769
        %v956 = vpop.permute.xlu0 %955
        %v959 = vunpack.c.l.s4 839922192
        %v960 = vunpack.c.0.s8 %v959
        %v961 = vperm.slane %v956, %v960
        %963 = vset.pattern.permute.xlu0 0
        %964 = vperm.xlu0 %963, %v770
        %v965 = vpop.permute.xlu0 %964
        %v968 = vunpack.c.l.s4 839922192
        %v969 = vunpack.c.0.s8 %v968
        %v970 = vperm.slane %v965, %v969
        %972 = vset.pattern.permute.xlu0 0
        %973 = vperm.xlu0 %972, %v771
        %v974 = vpop.permute.xlu0 %973
        %v977 = vunpack.c.l.s4 839922192
        %v978 = vunpack.c.0.s8 %v977
        %v979 = vperm.slane %v974, %v978
        %981 = vset.pattern.permute.xlu0 0
        %982 = vperm.xlu0 %981, %v772
        %v983 = vpop.permute.xlu0 %982
        %v986 = vunpack.c.l.s4 839922192
        %v987 = vunpack.c.0.s8 %v986
        %v988 = vperm.slane %v983, %v987
        %990 = vset.pattern.permute.xlu0 0
        %991 = vperm.xlu0 %990, %v773
        %v992 = vpop.permute.xlu0 %991
        %v995 = vunpack.c.l.s4 839922192
        %v996 = vunpack.c.0.s8 %v995
        %v997 = vperm.slane %v992, %v996
        %999 = vset.pattern.permute.xlu0 0
        %1000 = vperm.xlu0 %999, %v774
        %v1001 = vpop.permute.xlu0 %1000
        %v1004 = vunpack.c.l.s4 839922192
        %v1005 = vunpack.c.0.s8 %v1004
        %v1006 = vperm.slane %v1001, %v1005
        %1008 = vset.pattern.permute.xlu0 0
        %1009 = vperm.xlu0 %1008, %v775
        %v1010 = vpop.permute.xlu0 %1009
        %v1013 = vunpack.c.l.s4 839922192
        %v1014 = vunpack.c.0.s8 %v1013
        %v1015 = vperm.slane %v1010, %v1014
        %1017 = vset.pattern.permute.xlu0 0
        %1018 = vperm.xlu0 %1017, %v776
        %v1019 = vpop.permute.xlu0 %1018
        %v1022 = vunpack.c.l.s4 839922192
        %v1023 = vunpack.c.0.s8 %v1022
        %v1024 = vperm.slane %v1019, %v1023
        %1026 = vset.pattern.permute.xlu0 0
        %1027 = vperm.xlu0 %1026, %v777
        %v1028 = vpop.permute.xlu0 %1027
        %v1031 = vunpack.c.l.s4 839922192
        %v1032 = vunpack.c.0.s8 %v1031
        %v1033 = vperm.slane %v1028, %v1032
        %1035 = vset.pattern.permute.xlu0 0
        %1036 = vperm.xlu0 %1035, %v778
        %v1037 = vpop.permute.xlu0 %1036
        %v1040 = vunpack.c.l.s4 839922192
        %v1041 = vunpack.c.0.s8 %v1040
        %v1042 = vperm.slane %v1037, %v1041
        %1044 = vset.pattern.permute.xlu0 0
        %1045 = vperm.xlu0 %1044, %v779
        %v1046 = vpop.permute.xlu0 %1045
        %v1049 = vunpack.c.l.s4 839922192
        %v1050 = vunpack.c.0.s8 %v1049
        %v1051 = vperm.slane %v1046, %v1050
        %1053 = vset.pattern.permute.xlu0 0
        %1054 = vperm.xlu0 %1053, %v780
        %v1055 = vpop.permute.xlu0 %1054
        %v1058 = vunpack.c.l.s4 839922192
        %v1059 = vunpack.c.0.s8 %v1058
        %v1060 = vperm.slane %v1055, %v1059
        %1062 = vset.pattern.permute.xlu0 0
        %1063 = vperm.xlu0 %1062, %v781
        %v1064 = vpop.permute.xlu0 %1063
        %v1067 = vunpack.c.l.s4 839922192
        %v1068 = vunpack.c.0.s8 %v1067
        %v1069 = vperm.slane %v1064, %v1068
        %v1070 = vunpack.c.l.bf16 %v717
        %v1071 = vunpack.c.l.bf16 %v718
        %v1072 = vunpack.c.l.bf16 %v719
        %v1073 = vunpack.c.l.bf16 %v720
        %v1074 = vunpack.c.l.bf16 %v721
        %v1075 = vunpack.c.l.bf16 %v722
        %v1076 = vunpack.c.l.bf16 %v723
        %v1077 = vunpack.c.l.bf16 %v724
        %v1078 = vunpack.c.l.bf16 %v725
        %v1079 = vunpack.c.l.bf16 %v726
        %v1080 = vunpack.c.l.bf16 %v727
        %v1081 = vunpack.c.l.bf16 %v728
        %v1082 = vunpack.c.l.bf16 %v729
        %v1083 = vunpack.c.l.bf16 %v730
        %v1084 = vunpack.c.l.bf16 %v731
        %v1085 = vunpack.c.l.bf16 %v732
        %v1086 = vunpack.c.l.bf16 %v733
        %v1087 = vunpack.c.l.bf16 %v734
        %v1088 = vunpack.c.l.bf16 %v735
        %v1089 = vunpack.c.l.bf16 %v736
        %v1090 = vunpack.c.l.bf16 %v737
        %v1091 = vunpack.c.l.bf16 %v738
        %v1092 = vunpack.c.l.bf16 %v739
        %v1093 = vunpack.c.l.bf16 %v740
        %v1094 = vunpack.c.l.bf16 %v741
        %v1095 = vunpack.c.l.bf16 %v742
        %v1096 = vunpack.c.l.bf16 %v743
        %v1097 = vunpack.c.l.bf16 %v744
        %v1098 = vunpack.c.l.bf16 %v745
        %v1099 = vunpack.c.l.bf16 %v746
        %v1100 = vunpack.c.l.bf16 %v747
        %v1101 = vunpack.c.l.bf16 %v748
        %v1102 = vunpack.c.l.bf16 %v749
        %v1103 = vunpack.c.l.bf16 %v790
        %v1104 = vunpack.c.l.bf16 %v799
        %v1105 = vunpack.c.l.bf16 %v808
        %v1106 = vunpack.c.l.bf16 %v817
        %v1107 = vunpack.c.l.bf16 %v826
        %v1108 = vunpack.c.l.bf16 %v835
        %v1109 = vunpack.c.l.bf16 %v844
        %v1110 = vunpack.c.l.bf16 %v853
        %v1111 = vunpack.c.l.bf16 %v862
        %v1112 = vunpack.c.l.bf16 %v871
        %v1113 = vunpack.c.l.bf16 %v880
        %v1114 = vunpack.c.l.bf16 %v889
        %v1115 = vunpack.c.l.bf16 %v898
        %v1116 = vunpack.c.l.bf16 %v907
        %v1117 = vunpack.c.l.bf16 %v916
        %v1118 = vunpack.c.l.bf16 %v925
        %v1119 = vunpack.c.l.bf16 %v934
        %v1120 = vunpack.c.l.bf16 %v943
        %v1121 = vunpack.c.l.bf16 %v952
        %v1122 = vunpack.c.l.bf16 %v961
        %v1123 = vunpack.c.l.bf16 %v970
        %v1124 = vunpack.c.l.bf16 %v979
        %v1125 = vunpack.c.l.bf16 %v988
        %v1126 = vunpack.c.l.bf16 %v997
        %v1127 = vunpack.c.l.bf16 %v1006
        %v1128 = vunpack.c.l.bf16 %v1015
        %v1129 = vunpack.c.l.bf16 %v1024
        %v1130 = vunpack.c.l.bf16 %v1033
        %v1131 = vunpack.c.l.bf16 %v1042
        %v1132 = vunpack.c.l.bf16 %v1051
        %v1133 = vunpack.c.l.bf16 %v1060
        %v1134 = vunpack.c.l.bf16 %v1069
        %vm1167 = vcmask 1046528
        %v1168 = vrot.slane %v1103, 1
        %v1169 = vrot.slane %v1104, 1
        %v1170 = vsel %vm1167, %v1168, %v1169
        %v1171 = vrot.slane %v1105, 1
        %v1172 = vsel %vm1167, %v1169, %v1171
        %v1173 = vrot.slane %v1106, 1
        %v1174 = vsel %vm1167, %v1171, %v1173
        %v1175 = vrot.slane %v1107, 1
        %v1176 = vsel %vm1167, %v1173, %v1175
        %v1177 = vrot.slane %v1108, 1
        %v1178 = vsel %vm1167, %v1175, %v1177
        %v1179 = vrot.slane %v1109, 1
        %v1180 = vsel %vm1167, %v1177, %v1179
        %v1181 = vrot.slane %v1110, 1
        %v1182 = vsel %vm1167, %v1179, %v1181
        %v1183 = vrot.slane %v1111, 1
        %v1184 = vsel %vm1167, %v1181, %v1183
        %v1185 = vrot.slane %v1112, 1
        %v1186 = vsel %vm1167, %v1183, %v1185
        %v1187 = vrot.slane %v1113, 1
        %v1188 = vsel %vm1167, %v1185, %v1187
        %v1189 = vrot.slane %v1114, 1
        %v1190 = vsel %vm1167, %v1187, %v1189
        %v1191 = vrot.slane %v1115, 1
        %v1192 = vsel %vm1167, %v1189, %v1191
        %v1193 = vrot.slane %v1116, 1
        %v1194 = vsel %vm1167, %v1191, %v1193
        %v1195 = vrot.slane %v1117, 1
        %v1196 = vsel %vm1167, %v1193, %v1195
        %v1197 = vrot.slane %v1118, 1
        %v1198 = vsel %vm1167, %v1195, %v1197
        %v1199 = vrot.slane %v1119, 1
        %v1200 = vsel %vm1167, %v1197, %v1199
        %v1201 = vrot.slane %v1120, 1
        %v1202 = vsel %vm1167, %v1199, %v1201
        %v1203 = vrot.slane %v1121, 1
        %v1204 = vsel %vm1167, %v1201, %v1203
        %v1205 = vrot.slane %v1122, 1
        %v1206 = vsel %vm1167, %v1203, %v1205
        %v1207 = vrot.slane %v1123, 1
        %v1208 = vsel %vm1167, %v1205, %v1207
        %v1209 = vrot.slane %v1124, 1
        %v1210 = vsel %vm1167, %v1207, %v1209
        %v1211 = vrot.slane %v1125, 1
        %v1212 = vsel %vm1167, %v1209, %v1211
        %v1213 = vrot.slane %v1126, 1
        %v1214 = vsel %vm1167, %v1211, %v1213
        %v1215 = vrot.slane %v1127, 1
        %v1216 = vsel %vm1167, %v1213, %v1215
        %v1217 = vrot.slane %v1128, 1
        %v1218 = vsel %vm1167, %v1215, %v1217
        %v1219 = vrot.slane %v1129, 1
        %v1220 = vsel %vm1167, %v1217, %v1219
        %v1221 = vrot.slane %v1130, 1
        %v1222 = vsel %vm1167, %v1219, %v1221
        %v1223 = vrot.slane %v1131, 1
        %v1224 = vsel %vm1167, %v1221, %v1223
        %v1225 = vrot.slane %v1132, 1
        %v1226 = vsel %vm1167, %v1223, %v1225
        %v1227 = vrot.slane %v1133, 1
        %v1228 = vsel %vm1167, %v1225, %v1227
        %v1229 = vrot.slane %v1134, 1
        %v1230 = vsel %vm1167, %v1227, %v1229
        %v1264 = vmul.f32 %v1070, %v1168
        %v1265 = vmul.f32 %v1071, %v1170
        %v1266 = vmul.f32 %v1072, %v1172
        %v1267 = vmul.f32 %v1073, %v1174
        %v1268 = vmul.f32 %v1074, %v1176
        %v1269 = vmul.f32 %v1075, %v1178
        %v1270 = vmul.f32 %v1076, %v1180
        %v1271 = vmul.f32 %v1077, %v1182
        %v1272 = vmul.f32 %v1078, %v1184
        %v1273 = vmul.f32 %v1079, %v1186
        %v1274 = vmul.f32 %v1080, %v1188
        %v1275 = vmul.f32 %v1081, %v1190
        %v1276 = vmul.f32 %v1082, %v1192
        %v1277 = vmul.f32 %v1083, %v1194
        %v1278 = vmul.f32 %v1084, %v1196
        %v1279 = vmul.f32 %v1085, %v1198
        %v1280 = vmul.f32 %v1086, %v1200
        %v1281 = vmul.f32 %v1087, %v1202
        %v1282 = vmul.f32 %v1088, %v1204
        %v1283 = vmul.f32 %v1089, %v1206
        %v1284 = vmul.f32 %v1090, %v1208
        %v1285 = vmul.f32 %v1091, %v1210
        %v1286 = vmul.f32 %v1092, %v1212
        %v1287 = vmul.f32 %v1093, %v1214
        %v1288 = vmul.f32 %v1094, %v1216
        %v1289 = vmul.f32 %v1095, %v1218
        %v1290 = vmul.f32 %v1096, %v1220
        %v1291 = vmul.f32 %v1097, %v1222
        %v1292 = vmul.f32 %v1098, %v1224
        %v1293 = vmul.f32 %v1099, %v1226
        %v1294 = vmul.f32 %v1100, %v1228
        %v1295 = vmul.f32 %v1101, %v1230
        %v1296 = vmul.f32 %v1102, %v1229
        %v1297 = vpack.c.bf16 %v1265, %v1264
        %v1298 = vpack.c.bf16 %v1267, %v1266
        %v1299 = vpack.c.bf16 %v1269, %v1268
        %v1300 = vpack.c.bf16 %v1271, %v1270
        %v1301 = vpack.c.bf16 %v1273, %v1272
        %v1302 = vpack.c.bf16 %v1275, %v1274
        %v1303 = vpack.c.bf16 %v1277, %v1276
        %v1304 = vpack.c.bf16 %v1279, %v1278
        %v1305 = vpack.c.bf16 %v1281, %v1280
        %v1306 = vpack.c.bf16 %v1283, %v1282
        %v1307 = vpack.c.bf16 %v1285, %v1284
        %v1308 = vpack.c.bf16 %v1287, %v1286
        %v1309 = vpack.c.bf16 %v1289, %v1288
        %v1310 = vpack.c.bf16 %v1291, %v1290
        %v1311 = vpack.c.bf16 %v1293, %v1292
        %v1312 = vpack.c.bf16 %v1295, %v1294
        %v1313 = vpack.c.bf16 %v1296, %v1296
        %v1314 = vld [vmem:[%s4] sm:$0xf]
        %v1315 = vld [vmem:[%s4 + $0x4] sm:$0xf]
        %v1316 = vld [vmem:[%s4 + $0x8] sm:$0xf]
        %v1317 = vld [vmem:[%s4 + $0xc] sm:$0xf]
        %v1318 = vld [vmem:[%s4 + $0x10] sm:$0xf]
        %v1319 = vld [vmem:[%s4 + $0x14] sm:$0xf]
        %v1320 = vld [vmem:[%s4 + $0x18] sm:$0xf]
        %v1321 = vld [vmem:[%s4 + $0x1c] sm:$0xf]
        %v1322 = vld [vmem:[%s4 + $0x20] sm:$0xf]
        %v1323 = vld [vmem:[%s4 + $0x24] sm:$0xf]
        %v1324 = vld [vmem:[%s4 + $0x28] sm:$0xf]
        %v1325 = vld [vmem:[%s4 + $0x2c] sm:$0xf]
        %v1326 = vld [vmem:[%s4 + $0x30] sm:$0xf]
        %v1327 = vld [vmem:[%s4 + $0x34] sm:$0xf]
        %v1328 = vld [vmem:[%s4 + $0x38] sm:$0xf]
        %v1329 = vld [vmem:[%s4 + $0x3c] sm:$0xf]
        %s1330 = scalar_lea.vmem %s1, 128
        %v1331 = vld [vmem:[%s1330] sm:$0xf]
        %v1332 = vld [vmem:[%s1330 + $0x4] sm:$0xf]
        %v1333 = vld [vmem:[%s1330 + $0x8] sm:$0xf]
        %v1334 = vld [vmem:[%s1330 + $0xc] sm:$0xf]
        %v1335 = vld [vmem:[%s1330 + $0x10] sm:$0xf]
        %v1336 = vld [vmem:[%s1330 + $0x14] sm:$0xf]
        %v1337 = vld [vmem:[%s1330 + $0x18] sm:$0xf]
        %v1338 = vld [vmem:[%s1330 + $0x1c] sm:$0xf]
        %v1339 = vld [vmem:[%s1330 + $0x20] sm:$0xf]
        %v1340 = vld [vmem:[%s1330 + $0x24] sm:$0xf]
        %v1341 = vld [vmem:[%s1330 + $0x28] sm:$0xf]
        %v1342 = vld [vmem:[%s1330 + $0x2c] sm:$0xf]
        %v1343 = vld [vmem:[%s1330 + $0x30] sm:$0xf]
        %v1344 = vld [vmem:[%s1330 + $0x34] sm:$0xf]
        %v1345 = vld [vmem:[%s1330 + $0x38] sm:$0xf]
        %v1346 = vld [vmem:[%s1330 + $0x3c] sm:$0xf]
        %v1347 = vld [vmem:[%s1330 + $0x40] sm:$0xf]
        %v1348 = vld [vmem:[%s1330 + $0x44] sm:$0xf]
        %v1349 = vld [vmem:[%s1330 + $0x48] sm:$0xf]
        %v1350 = vld [vmem:[%s1330 + $0x4c] sm:$0xf]
        %v1351 = vld [vmem:[%s1330 + $0x50] sm:$0xf]
        %v1352 = vld [vmem:[%s1330 + $0x54] sm:$0xf]
        %v1353 = vld [vmem:[%s1330 + $0x58] sm:$0xf]
        %v1354 = vld [vmem:[%s1330 + $0x5c] sm:$0xf]
        %v1355 = vld [vmem:[%s1330 + $0x60] sm:$0xf]
        %v1356 = vld [vmem:[%s1330 + $0x64] sm:$0xf]
        %v1357 = vld [vmem:[%s1330 + $0x68] sm:$0xf]
        %v1358 = vld [vmem:[%s1330 + $0x6c] sm:$0xf]
        %v1359 = vld [vmem:[%s1330 + $0x70] sm:$0xf]
        %v1360 = vld [vmem:[%s1330 + $0x74] sm:$0xf]
        %v1361 = vld [vmem:[%s1330 + $0x78] sm:$0xf]
        %v1362 = vld [vmem:[%s1330 + $0x7c] sm:$0xf]
        %1364 = vset.pattern.permute.xlu0 0
        %1365 = vperm.xlu0 %1364, %v1331
        %v1366 = vpop.permute.xlu0 %1365
        %v1369 = vunpack.c.l.s4 839922192
        %v1370 = vunpack.c.0.s8 %v1369
        %v1371 = vperm.slane %v1366, %v1370
        %1373 = vset.pattern.permute.xlu0 0
        %1374 = vperm.xlu0 %1373, %v1332
        %v1375 = vpop.permute.xlu0 %1374
        %v1378 = vunpack.c.l.s4 839922192
        %v1379 = vunpack.c.0.s8 %v1378
        %v1380 = vperm.slane %v1375, %v1379
        %1382 = vset.pattern.permute.xlu0 0
        %1383 = vperm.xlu0 %1382, %v1333
        %v1384 = vpop.permute.xlu0 %1383
        %v1387 = vunpack.c.l.s4 839922192
        %v1388 = vunpack.c.0.s8 %v1387
        %v1389 = vperm.slane %v1384, %v1388
        %1391 = vset.pattern.permute.xlu0 0
        %1392 = vperm.xlu0 %1391, %v1334
        %v1393 = vpop.permute.xlu0 %1392
        %v1396 = vunpack.c.l.s4 839922192
        %v1397 = vunpack.c.0.s8 %v1396
        %v1398 = vperm.slane %v1393, %v1397
        %1400 = vset.pattern.permute.xlu0 0
        %1401 = vperm.xlu0 %1400, %v1335
        %v1402 = vpop.permute.xlu0 %1401
        %v1405 = vunpack.c.l.s4 839922192
        %v1406 = vunpack.c.0.s8 %v1405
        %v1407 = vperm.slane %v1402, %v1406
        %1409 = vset.pattern.permute.xlu0 0
        %1410 = vperm.xlu0 %1409, %v1336
        %v1411 = vpop.permute.xlu0 %1410
        %v1414 = vunpack.c.l.s4 839922192
        %v1415 = vunpack.c.0.s8 %v1414
        %v1416 = vperm.slane %v1411, %v1415
        %1418 = vset.pattern.permute.xlu0 0
        %1419 = vperm.xlu0 %1418, %v1337
        %v1420 = vpop.permute.xlu0 %1419
        %v1423 = vunpack.c.l.s4 839922192
        %v1424 = vunpack.c.0.s8 %v1423
        %v1425 = vperm.slane %v1420, %v1424
        %1427 = vset.pattern.permute.xlu0 0
        %1428 = vperm.xlu0 %1427, %v1338
        %v1429 = vpop.permute.xlu0 %1428
        %v1432 = vunpack.c.l.s4 839922192
        %v1433 = vunpack.c.0.s8 %v1432
        %v1434 = vperm.slane %v1429, %v1433
        %1436 = vset.pattern.permute.xlu0 0
        %1437 = vperm.xlu0 %1436, %v1339
        %v1438 = vpop.permute.xlu0 %1437
        %v1441 = vunpack.c.l.s4 839922192
        %v1442 = vunpack.c.0.s8 %v1441
        %v1443 = vperm.slane %v1438, %v1442
        %1445 = vset.pattern.permute.xlu0 0
        %1446 = vperm.xlu0 %1445, %v1340
        %v1447 = vpop.permute.xlu0 %1446
        %v1450 = vunpack.c.l.s4 839922192
        %v1451 = vunpack.c.0.s8 %v1450
        %v1452 = vperm.slane %v1447, %v1451
        %1454 = vset.pattern.permute.xlu0 0
        %1455 = vperm.xlu0 %1454, %v1341
        %v1456 = vpop.permute.xlu0 %1455
        %v1459 = vunpack.c.l.s4 839922192
        %v1460 = vunpack.c.0.s8 %v1459
        %v1461 = vperm.slane %v1456, %v1460
        %1463 = vset.pattern.permute.xlu0 0
        %1464 = vperm.xlu0 %1463, %v1342
        %v1465 = vpop.permute.xlu0 %1464
        %v1468 = vunpack.c.l.s4 839922192
        %v1469 = vunpack.c.0.s8 %v1468
        %v1470 = vperm.slane %v1465, %v1469
        %1472 = vset.pattern.permute.xlu0 0
        %1473 = vperm.xlu0 %1472, %v1343
        %v1474 = vpop.permute.xlu0 %1473
        %v1477 = vunpack.c.l.s4 839922192
        %v1478 = vunpack.c.0.s8 %v1477
        %v1479 = vperm.slane %v1474, %v1478
        %1481 = vset.pattern.permute.xlu0 0
        %1482 = vperm.xlu0 %1481, %v1344
        %v1483 = vpop.permute.xlu0 %1482
        %v1486 = vunpack.c.l.s4 839922192
        %v1487 = vunpack.c.0.s8 %v1486
        %v1488 = vperm.slane %v1483, %v1487
        %1490 = vset.pattern.permute.xlu0 0
        %1491 = vperm.xlu0 %1490, %v1345
        %v1492 = vpop.permute.xlu0 %1491
        %v1495 = vunpack.c.l.s4 839922192
        %v1496 = vunpack.c.0.s8 %v1495
        %v1497 = vperm.slane %v1492, %v1496
        %1499 = vset.pattern.permute.xlu0 0
        %1500 = vperm.xlu0 %1499, %v1346
        %v1501 = vpop.permute.xlu0 %1500
        %v1504 = vunpack.c.l.s4 839922192
        %v1505 = vunpack.c.0.s8 %v1504
        %v1506 = vperm.slane %v1501, %v1505
        %1508 = vset.pattern.permute.xlu0 0
        %1509 = vperm.xlu0 %1508, %v1347
        %v1510 = vpop.permute.xlu0 %1509
        %v1513 = vunpack.c.l.s4 839922192
        %v1514 = vunpack.c.0.s8 %v1513
        %v1515 = vperm.slane %v1510, %v1514
        %1517 = vset.pattern.permute.xlu0 0
        %1518 = vperm.xlu0 %1517, %v1348
        %v1519 = vpop.permute.xlu0 %1518
        %v1522 = vunpack.c.l.s4 839922192
        %v1523 = vunpack.c.0.s8 %v1522
        %v1524 = vperm.slane %v1519, %v1523
        %1526 = vset.pattern.permute.xlu0 0
        %1527 = vperm.xlu0 %1526, %v1349
        %v1528 = vpop.permute.xlu0 %1527
        %v1531 = vunpack.c.l.s4 839922192
        %v1532 = vunpack.c.0.s8 %v1531
        %v1533 = vperm.slane %v1528, %v1532
        %1535 = vset.pattern.permute.xlu0 0
        %1536 = vperm.xlu0 %1535, %v1350
        %v1537 = vpop.permute.xlu0 %1536
        %v1540 = vunpack.c.l.s4 839922192
        %v1541 = vunpack.c.0.s8 %v1540
        %v1542 = vperm.slane %v1537, %v1541
        %1544 = vset.pattern.permute.xlu0 0
        %1545 = vperm.xlu0 %1544, %v1351
        %v1546 = vpop.permute.xlu0 %1545
        %v1549 = vunpack.c.l.s4 839922192
        %v1550 = vunpack.c.0.s8 %v1549
        %v1551 = vperm.slane %v1546, %v1550
        %1553 = vset.pattern.permute.xlu0 0
        %1554 = vperm.xlu0 %1553, %v1352
        %v1555 = vpop.permute.xlu0 %1554
        %v1558 = vunpack.c.l.s4 839922192
        %v1559 = vunpack.c.0.s8 %v1558
        %v1560 = vperm.slane %v1555, %v1559
        %1562 = vset.pattern.permute.xlu0 0
        %1563 = vperm.xlu0 %1562, %v1353
        %v1564 = vpop.permute.xlu0 %1563
        %v1567 = vunpack.c.l.s4 839922192
        %v1568 = vunpack.c.0.s8 %v1567
        %v1569 = vperm.slane %v1564, %v1568
        %1571 = vset.pattern.permute.xlu0 0
        %1572 = vperm.xlu0 %1571, %v1354
        %v1573 = vpop.permute.xlu0 %1572
        %v1576 = vunpack.c.l.s4 839922192
        %v1577 = vunpack.c.0.s8 %v1576
        %v1578 = vperm.slane %v1573, %v1577
        %1580 = vset.pattern.permute.xlu0 0
        %1581 = vperm.xlu0 %1580, %v1355
        %v1582 = vpop.permute.xlu0 %1581
        %v1585 = vunpack.c.l.s4 839922192
        %v1586 = vunpack.c.0.s8 %v1585
        %v1587 = vperm.slane %v1582, %v1586
        %1589 = vset.pattern.permute.xlu0 0
        %1590 = vperm.xlu0 %1589, %v1356
        %v1591 = vpop.permute.xlu0 %1590
        %v1594 = vunpack.c.l.s4 839922192
        %v1595 = vunpack.c.0.s8 %v1594
        %v1596 = vperm.slane %v1591, %v1595
        %1598 = vset.pattern.permute.xlu0 0
        %1599 = vperm.xlu0 %1598, %v1357
        %v1600 = vpop.permute.xlu0 %1599
        %v1603 = vunpack.c.l.s4 839922192
        %v1604 = vunpack.c.0.s8 %v1603
        %v1605 = vperm.slane %v1600, %v1604
        %1607 = vset.pattern.permute.xlu0 0
        %1608 = vperm.xlu0 %1607, %v1358
        %v1609 = vpop.permute.xlu0 %1608
        %v1612 = vunpack.c.l.s4 839922192
        %v1613 = vunpack.c.0.s8 %v1612
        %v1614 = vperm.slane %v1609, %v1613
        %1616 = vset.pattern.permute.xlu0 0
        %1617 = vperm.xlu0 %1616, %v1359
        %v1618 = vpop.permute.xlu0 %1617
        %v1621 = vunpack.c.l.s4 839922192
        %v1622 = vunpack.c.0.s8 %v1621
        %v1623 = vperm.slane %v1618, %v1622
        %1625 = vset.pattern.permute.xlu0 0
        %1626 = vperm.xlu0 %1625, %v1360
        %v1627 = vpop.permute.xlu0 %1626
        %v1630 = vunpack.c.l.s4 839922192
        %v1631 = vunpack.c.0.s8 %v1630
        %v1632 = vperm.slane %v1627, %v1631
        %1634 = vset.pattern.permute.xlu0 0
        %1635 = vperm.xlu0 %1634, %v1361
        %v1636 = vpop.permute.xlu0 %1635
        %v1639 = vunpack.c.l.s4 839922192
        %v1640 = vunpack.c.0.s8 %v1639
        %v1641 = vperm.slane %v1636, %v1640
        %1643 = vset.pattern.permute.xlu0 0
        %1644 = vperm.xlu0 %1643, %v1362
        %v1645 = vpop.permute.xlu0 %1644
        %v1648 = vunpack.c.l.s4 839922192
        %v1649 = vunpack.c.0.s8 %v1648
        %v1650 = vperm.slane %v1645, %v1649
        %v1651 = vunpack.c.l.bf16 %v1371
        %v1652 = vunpack.c.l.bf16 %v1380
        %v1653 = vunpack.c.l.bf16 %v1389
        %v1654 = vunpack.c.l.bf16 %v1398
        %v1655 = vunpack.c.l.bf16 %v1407
        %v1656 = vunpack.c.l.bf16 %v1416
        %v1657 = vunpack.c.l.bf16 %v1425
        %v1658 = vunpack.c.l.bf16 %v1434
        %v1659 = vunpack.c.l.bf16 %v1443
        %v1660 = vunpack.c.l.bf16 %v1452
        %v1661 = vunpack.c.l.bf16 %v1461
        %v1662 = vunpack.c.l.bf16 %v1470
        %v1663 = vunpack.c.l.bf16 %v1479
        %v1664 = vunpack.c.l.bf16 %v1488
        %v1665 = vunpack.c.l.bf16 %v1497
        %v1666 = vunpack.c.l.bf16 %v1506
        %v1667 = vunpack.c.l.bf16 %v1515
        %v1668 = vunpack.c.l.bf16 %v1524
        %v1669 = vunpack.c.l.bf16 %v1533
        %v1670 = vunpack.c.l.bf16 %v1542
        %v1671 = vunpack.c.l.bf16 %v1551
        %v1672 = vunpack.c.l.bf16 %v1560
        %v1673 = vunpack.c.l.bf16 %v1569
        %v1674 = vunpack.c.l.bf16 %v1578
        %v1675 = vunpack.c.l.bf16 %v1587
        %v1676 = vunpack.c.l.bf16 %v1596
        %v1677 = vunpack.c.l.bf16 %v1605
        %v1678 = vunpack.c.l.bf16 %v1614
        %v1679 = vunpack.c.l.bf16 %v1623
        %v1680 = vunpack.c.l.bf16 %v1632
        %v1681 = vunpack.c.l.bf16 %v1641
        %v1682 = vunpack.c.l.bf16 %v1650
        %v1683 = vmul.f32 %v1071, %v1651
        %v1684 = vmul.f32 %v1072, %v1652
        %v1685 = vmul.f32 %v1073, %v1653
        %v1686 = vmul.f32 %v1074, %v1654
        %v1687 = vmul.f32 %v1075, %v1655
        %v1688 = vmul.f32 %v1076, %v1656
        %v1689 = vmul.f32 %v1077, %v1657
        %v1690 = vmul.f32 %v1078, %v1658
        %v1691 = vmul.f32 %v1079, %v1659
        %v1692 = vmul.f32 %v1080, %v1660
        %v1693 = vmul.f32 %v1081, %v1661
        %v1694 = vmul.f32 %v1082, %v1662
        %v1695 = vmul.f32 %v1083, %v1663
        %v1696 = vmul.f32 %v1084, %v1664
        %v1697 = vmul.f32 %v1085, %v1665
        %v1698 = vmul.f32 %v1086, %v1666
        %v1699 = vmul.f32 %v1087, %v1667
        %v1700 = vmul.f32 %v1088, %v1668
        %v1701 = vmul.f32 %v1089, %v1669
        %v1702 = vmul.f32 %v1090, %v1670
        %v1703 = vmul.f32 %v1091, %v1671
        %v1704 = vmul.f32 %v1092, %v1672
        %v1705 = vmul.f32 %v1093, %v1673
        %v1706 = vmul.f32 %v1094, %v1674
        %v1707 = vmul.f32 %v1095, %v1675
        %v1708 = vmul.f32 %v1096, %v1676
        %v1709 = vmul.f32 %v1097, %v1677
        %v1710 = vmul.f32 %v1098, %v1678
        %v1711 = vmul.f32 %v1099, %v1679
        %v1712 = vmul.f32 %v1100, %v1680
        %v1713 = vmul.f32 %v1101, %v1681
        %v1714 = vmul.f32 %v1102, %v1682
        %v1715 = vpack.c.bf16 %v1684, %v1683
        %v1716 = vpack.c.bf16 %v1686, %v1685
        %v1717 = vpack.c.bf16 %v1688, %v1687
        %v1718 = vpack.c.bf16 %v1690, %v1689
        %v1719 = vpack.c.bf16 %v1692, %v1691
        %v1720 = vpack.c.bf16 %v1694, %v1693
        %v1721 = vpack.c.bf16 %v1696, %v1695
        %v1722 = vpack.c.bf16 %v1698, %v1697
        %v1723 = vpack.c.bf16 %v1700, %v1699
        %v1724 = vpack.c.bf16 %v1702, %v1701
        %v1725 = vpack.c.bf16 %v1704, %v1703
        %v1726 = vpack.c.bf16 %v1706, %v1705
        %v1727 = vpack.c.bf16 %v1708, %v1707
        %v1728 = vpack.c.bf16 %v1710, %v1709
        %v1729 = vpack.c.bf16 %v1712, %v1711
        %v1730 = vpack.c.bf16 %v1714, %v1713
        %s1731 = scalar_lea.vmem %s4, 64
        %v1732 = vld [vmem:[%s1731] sm:$0xf]
        %v1733 = vld [vmem:[%s1731 + $0x4] sm:$0xf]
        %v1734 = vld [vmem:[%s1731 + $0x8] sm:$0xf]
        %v1735 = vld [vmem:[%s1731 + $0xc] sm:$0xf]
        %v1736 = vld [vmem:[%s1731 + $0x10] sm:$0xf]
        %v1737 = vld [vmem:[%s1731 + $0x14] sm:$0xf]
        %v1738 = vld [vmem:[%s1731 + $0x18] sm:$0xf]
        %v1739 = vld [vmem:[%s1731 + $0x1c] sm:$0xf]
        %v1740 = vld [vmem:[%s1731 + $0x20] sm:$0xf]
        %v1741 = vld [vmem:[%s1731 + $0x24] sm:$0xf]
        %v1742 = vld [vmem:[%s1731 + $0x28] sm:$0xf]
        %v1743 = vld [vmem:[%s1731 + $0x2c] sm:$0xf]
        %v1744 = vld [vmem:[%s1731 + $0x30] sm:$0xf]
        %v1745 = vld [vmem:[%s1731 + $0x34] sm:$0xf]
        %v1746 = vld [vmem:[%s1731 + $0x38] sm:$0xf]
        %v1747 = vld [vmem:[%s1731 + $0x3c] sm:$0xf]
        %v1764 = vunpack.c.l.b16 %v1732
        %v1765 = vunpack.c.l.b16 %v1733
        %v1766 = vunpack.c.l.b16 %v1734
        %v1767 = vunpack.c.l.b16 %v1735
        %v1768 = vunpack.c.l.b16 %v1736
        %v1769 = vunpack.c.l.b16 %v1737
        %v1770 = vunpack.c.l.b16 %v1738
        %v1771 = vunpack.c.l.b16 %v1739
        %v1772 = vunpack.c.l.b16 %v1740
        %v1773 = vunpack.c.l.b16 %v1741
        %v1774 = vunpack.c.l.b16 %v1742
        %v1775 = vunpack.c.l.b16 %v1743
        %v1776 = vunpack.c.l.b16 %v1744
        %v1777 = vunpack.c.l.b16 %v1745
        %v1778 = vunpack.c.l.b16 %v1746
        %v1779 = vunpack.c.l.b16 %v1747
        %v1780 = vpack.c.b16 %v1765, %v1764
        %v1781 = vpack.c.b16 %v1767, %v1766
        %v1782 = vpack.c.b16 %v1769, %v1768
        %v1783 = vpack.c.b16 %v1771, %v1770
        %v1784 = vpack.c.b16 %v1773, %v1772
        %v1785 = vpack.c.b16 %v1775, %v1774
        %v1786 = vpack.c.b16 %v1777, %v1776
        %v1787 = vpack.c.b16 %v1779, %v1778
        %1796 = vmatpush.bf16.msra.mxu0 %v1787
        %1797 = vmatpush.bf16.msra.mxu0 %v1786
        %1798 = vmatpush.bf16.msra.mxu0 %v1785
        %1799 = vmatpush.bf16.msra.mxu0 %v1784
        %1800 = vmatpush.bf16.msra.mxu0 %v1783
        %1801 = vmatpush.bf16.msra.mxu0 %v1782
        %1802 = vmatpush.bf16.msra.mxu0 %v1781
        %1803 = vmatpush.bf16.msra.mxu0 %v1780
        %1804 = vmatmul.bf16.gmra.mxu0 %v1715
        %v1805 = vpop.f32.mrf.mxu0
        %v1806 = vadd.f32 0.0, %v1805
        %v1807 = vpop.f32.mrf.mxu0
        %v1808 = vadd.f32 0.0, %v1807
        %1809 = vmatmul.bf16.gmra.mxu0 %v1716
        %v1810 = vpop.f32.mrf.mxu0
        %v1811 = vadd.f32 0.0, %v1810
        %v1812 = vpop.f32.mrf.mxu0
        %v1813 = vadd.f32 0.0, %v1812
        %1814 = vmatmul.bf16.gmra.mxu0 %v1717
        %v1815 = vpop.f32.mrf.mxu0
        %v1816 = vadd.f32 0.0, %v1815
        %v1817 = vpop.f32.mrf.mxu0
        %v1818 = vadd.f32 0.0, %v1817
        %1819 = vmatmul.bf16.gmra.mxu0 %v1718
        %v1820 = vpop.f32.mrf.mxu0
        %v1821 = vadd.f32 0.0, %v1820
        %v1822 = vpop.f32.mrf.mxu0
        %v1823 = vadd.f32 0.0, %v1822
        %1824 = vmatmul.bf16.gmra.mxu0 %v1719
        %v1825 = vpop.f32.mrf.mxu0
        %v1826 = vadd.f32 0.0, %v1825
        %v1827 = vpop.f32.mrf.mxu0
        %v1828 = vadd.f32 0.0, %v1827
        %1829 = vmatmul.bf16.gmra.mxu0 %v1720
        %v1830 = vpop.f32.mrf.mxu0
        %v1831 = vadd.f32 0.0, %v1830
        %v1832 = vpop.f32.mrf.mxu0
        %v1833 = vadd.f32 0.0, %v1832
        %1834 = vmatmul.bf16.gmra.mxu0 %v1721
        %v1835 = vpop.f32.mrf.mxu0
        %v1836 = vadd.f32 0.0, %v1835
        %v1837 = vpop.f32.mrf.mxu0
        %v1838 = vadd.f32 0.0, %v1837
        %1839 = vmatmul.bf16.gmra.mxu0 %v1722
        %v1840 = vpop.f32.mrf.mxu0
        %v1841 = vadd.f32 0.0, %v1840
        %v1842 = vpop.f32.mrf.mxu0
        %v1843 = vadd.f32 0.0, %v1842
        %1844 = vmatmul.bf16.gmra.mxu0 %v1723
        %v1845 = vpop.f32.mrf.mxu0
        %v1846 = vadd.f32 0.0, %v1845
        %v1847 = vpop.f32.mrf.mxu0
        %v1848 = vadd.f32 0.0, %v1847
        %1849 = vmatmul.bf16.gmra.mxu0 %v1724
        %v1850 = vpop.f32.mrf.mxu0
        %v1851 = vadd.f32 0.0, %v1850
        %v1852 = vpop.f32.mrf.mxu0
        %v1853 = vadd.f32 0.0, %v1852
        %1854 = vmatmul.bf16.gmra.mxu0 %v1725
        %v1855 = vpop.f32.mrf.mxu0
        %v1856 = vadd.f32 0.0, %v1855
        %v1857 = vpop.f32.mrf.mxu0
        %v1858 = vadd.f32 0.0, %v1857
        %1859 = vmatmul.bf16.gmra.mxu0 %v1726
        %v1860 = vpop.f32.mrf.mxu0
        %v1861 = vadd.f32 0.0, %v1860
        %v1862 = vpop.f32.mrf.mxu0
        %v1863 = vadd.f32 0.0, %v1862
        %1864 = vmatmul.bf16.gmra.mxu0 %v1727
        %v1865 = vpop.f32.mrf.mxu0
        %v1866 = vadd.f32 0.0, %v1865
        %v1867 = vpop.f32.mrf.mxu0
        %v1868 = vadd.f32 0.0, %v1867
        %1869 = vmatmul.bf16.gmra.mxu0 %v1728
        %v1870 = vpop.f32.mrf.mxu0
        %v1871 = vadd.f32 0.0, %v1870
        %v1872 = vpop.f32.mrf.mxu0
        %v1873 = vadd.f32 0.0, %v1872
        %1874 = vmatmul.bf16.gmra.mxu0 %v1729
        %v1875 = vpop.f32.mrf.mxu0
        %v1876 = vadd.f32 0.0, %v1875
        %v1877 = vpop.f32.mrf.mxu0
        %v1878 = vadd.f32 0.0, %v1877
        %1879 = vmatmul.bf16.gmra.mxu0 %v1730
        %v1880 = vpop.f32.mrf.mxu0
        %v1881 = vadd.f32 0.0, %v1880
        %v1882 = vpop.f32.mrf.mxu0
        %v1883 = vadd.f32 0.0, %v1882
        %1884 = vdwg.mxu0
        %vm1885 = vsmask.f32 4352
        %v1887 = vshrl.u32 %v1297, 16
        %v1889 = vrot.slane %v1887, 3
        %v1890 = vshll.u32 %v1297, 16
        %v1892 = vrot.slane %v1890, 4
        %v1893 = vor.u32 %v1889, %v1892
        %v1895 = vshrl.u32 %v1298, 16
        %v1897 = vrot.slane %v1895, 3
        %v1898 = vshll.u32 %v1298, 16
        %v1900 = vrot.slane %v1898, 4
        %v1901 = vor.u32 %v1897, %v1900
        %v1902 = vsel %vm1885, %v1893, %v1901
        %v1904 = vshrl.u32 %v1299, 16
        %v1906 = vrot.slane %v1904, 3
        %v1907 = vshll.u32 %v1299, 16
        %v1909 = vrot.slane %v1907, 4
        %v1910 = vor.u32 %v1906, %v1909
        %v1911 = vsel %vm1885, %v1901, %v1910
        %v1913 = vshrl.u32 %v1300, 16
        %v1915 = vrot.slane %v1913, 3
        %v1916 = vshll.u32 %v1300, 16
        %v1918 = vrot.slane %v1916, 4
        %v1919 = vor.u32 %v1915, %v1918
        %v1920 = vsel %vm1885, %v1910, %v1919
        %v1922 = vshrl.u32 %v1301, 16
        %v1924 = vrot.slane %v1922, 3
        %v1925 = vshll.u32 %v1301, 16
        %v1927 = vrot.slane %v1925, 4
        %v1928 = vor.u32 %v1924, %v1927
        %v1929 = vsel %vm1885, %v1919, %v1928
        %v1931 = vshrl.u32 %v1302, 16
        %v1933 = vrot.slane %v1931, 3
        %v1934 = vshll.u32 %v1302, 16
        %v1936 = vrot.slane %v1934, 4
        %v1937 = vor.u32 %v1933, %v1936
        %v1938 = vsel %vm1885, %v1928, %v1937
        %v1940 = vshrl.u32 %v1303, 16
        %v1942 = vrot.slane %v1940, 3
        %v1943 = vshll.u32 %v1303, 16
        %v1945 = vrot.slane %v1943, 4
        %v1946 = vor.u32 %v1942, %v1945
        %v1947 = vsel %vm1885, %v1937, %v1946
        %v1949 = vshrl.u32 %v1304, 16
        %v1951 = vrot.slane %v1949, 3
        %v1952 = vshll.u32 %v1304, 16
        %v1954 = vrot.slane %v1952, 4
        %v1955 = vor.u32 %v1951, %v1954
        %v1956 = vsel %vm1885, %v1946, %v1955
        %v1958 = vshrl.u32 %v1305, 16
        %v1960 = vrot.slane %v1958, 3
        %v1961 = vshll.u32 %v1305, 16
        %v1963 = vrot.slane %v1961, 4
        %v1964 = vor.u32 %v1960, %v1963
        %v1965 = vsel %vm1885, %v1955, %v1964
        %v1967 = vshrl.u32 %v1306, 16
        %v1969 = vrot.slane %v1967, 3
        %v1970 = vshll.u32 %v1306, 16
        %v1972 = vrot.slane %v1970, 4
        %v1973 = vor.u32 %v1969, %v1972
        %v1974 = vsel %vm1885, %v1964, %v1973
        %v1976 = vshrl.u32 %v1307, 16
        %v1978 = vrot.slane %v1976, 3
        %v1979 = vshll.u32 %v1307, 16
        %v1981 = vrot.slane %v1979, 4
        %v1982 = vor.u32 %v1978, %v1981
        %v1983 = vsel %vm1885, %v1973, %v1982
        %v1985 = vshrl.u32 %v1308, 16
        %v1987 = vrot.slane %v1985, 3
        %v1988 = vshll.u32 %v1308, 16
        %v1990 = vrot.slane %v1988, 4
        %v1991 = vor.u32 %v1987, %v1990
        %v1992 = vsel %vm1885, %v1982, %v1991
        %v1994 = vshrl.u32 %v1309, 16
        %v1996 = vrot.slane %v1994, 3
        %v1997 = vshll.u32 %v1309, 16
        %v1999 = vrot.slane %v1997, 4
        %v2000 = vor.u32 %v1996, %v1999
        %v2001 = vsel %vm1885, %v1991, %v2000
        %v2003 = vshrl.u32 %v1310, 16
        %v2005 = vrot.slane %v2003, 3
        %v2006 = vshll.u32 %v1310, 16
        %v2008 = vrot.slane %v2006, 4
        %v2009 = vor.u32 %v2005, %v2008
        %v2010 = vsel %vm1885, %v2000, %v2009
        %v2012 = vshrl.u32 %v1311, 16
        %v2014 = vrot.slane %v2012, 3
        %v2015 = vshll.u32 %v1311, 16
        %v2017 = vrot.slane %v2015, 4
        %v2018 = vor.u32 %v2014, %v2017
        %v2019 = vsel %vm1885, %v2009, %v2018
        %v2021 = vshrl.u32 %v1312, 16
        %v2023 = vrot.slane %v2021, 3
        %v2024 = vshll.u32 %v1312, 16
        %v2026 = vrot.slane %v2024, 4
        %v2027 = vor.u32 %v2023, %v2026
        %v2028 = vsel %vm1885, %v2018, %v2027
        %v2030 = vshrl.u32 %v1313, 16
        %v2032 = vrot.slane %v2030, 3
        %v2033 = vshll.u32 %v1313, 16
        %v2035 = vrot.slane %v2033, 4
        %v2036 = vor.u32 %v2032, %v2035
        %v2037 = vsel %vm1885, %v2027, %v2036
        %v2070 = vunpack.c.l.b16 %v1314
        %v2071 = vunpack.c.l.b16 %v1315
        %v2072 = vunpack.c.l.b16 %v1316
        %v2073 = vunpack.c.l.b16 %v1317
        %v2074 = vunpack.c.l.b16 %v1318
        %v2075 = vunpack.c.l.b16 %v1319
        %v2076 = vunpack.c.l.b16 %v1320
        %v2077 = vunpack.c.l.b16 %v1321
        %v2078 = vunpack.c.l.b16 %v1322
        %v2079 = vunpack.c.l.b16 %v1323
        %v2080 = vunpack.c.l.b16 %v1324
        %v2081 = vunpack.c.l.b16 %v1325
        %v2082 = vunpack.c.l.b16 %v1326
        %v2083 = vunpack.c.l.b16 %v1327
        %v2084 = vunpack.c.l.b16 %v1328
        %v2085 = vunpack.c.l.b16 %v1329
        %v2086 = vpack.c.b16 %v2071, %v2070
        %v2087 = vpack.c.b16 %v2073, %v2072
        %v2088 = vpack.c.b16 %v2075, %v2074
        %v2089 = vpack.c.b16 %v2077, %v2076
        %v2090 = vpack.c.b16 %v2079, %v2078
        %v2091 = vpack.c.b16 %v2081, %v2080
        %v2092 = vpack.c.b16 %v2083, %v2082
        %v2093 = vpack.c.b16 %v2085, %v2084
        %2102 = vmatpush.bf16.msra.mxu0 %v2093
        %2103 = vmatpush.bf16.msra.mxu0 %v2092
        %2104 = vmatpush.bf16.msra.mxu0 %v2091
        %2105 = vmatpush.bf16.msra.mxu0 %v2090
        %2106 = vmatpush.bf16.msra.mxu0 %v2089
        %2107 = vmatpush.bf16.msra.mxu0 %v2088
        %2108 = vmatpush.bf16.msra.mxu0 %v2087
        %2109 = vmatpush.bf16.msra.mxu0 %v2086
        %2110 = vmatmul.bf16.gmra.mxu0 %v1902
        %v2111 = vpop.f32.mrf.mxu0
        %v2112 = vadd.f32 %v1806, %v2111
        %v2113 = vpop.f32.mrf.mxu0
        %v2114 = vadd.f32 %v1808, %v2113
        %2115 = vmatmul.bf16.gmra.mxu0 %v1911
        %v2116 = vpop.f32.mrf.mxu0
        %v2117 = vadd.f32 %v1811, %v2116
        %v2118 = vpop.f32.mrf.mxu0
        %v2119 = vadd.f32 %v1813, %v2118
        %2120 = vmatmul.bf16.gmra.mxu0 %v1920
        %v2121 = vpop.f32.mrf.mxu0
        %v2122 = vadd.f32 %v1816, %v2121
        %v2123 = vpop.f32.mrf.mxu0
        %v2124 = vadd.f32 %v1818, %v2123
        %2125 = vmatmul.bf16.gmra.mxu0 %v1929
        %v2126 = vpop.f32.mrf.mxu0
        %v2127 = vadd.f32 %v1821, %v2126
        %v2128 = vpop.f32.mrf.mxu0
        %v2129 = vadd.f32 %v1823, %v2128
        %2130 = vmatmul.bf16.gmra.mxu0 %v1938
        %v2131 = vpop.f32.mrf.mxu0
        %v2132 = vadd.f32 %v1826, %v2131
        %v2133 = vpop.f32.mrf.mxu0
        %v2134 = vadd.f32 %v1828, %v2133
        %2135 = vmatmul.bf16.gmra.mxu0 %v1947
        %v2136 = vpop.f32.mrf.mxu0
        %v2137 = vadd.f32 %v1831, %v2136
        %v2138 = vpop.f32.mrf.mxu0
        %v2139 = vadd.f32 %v1833, %v2138
        %2140 = vmatmul.bf16.gmra.mxu0 %v1956
        %v2141 = vpop.f32.mrf.mxu0
        %v2142 = vadd.f32 %v1836, %v2141
        %v2143 = vpop.f32.mrf.mxu0
        %v2144 = vadd.f32 %v1838, %v2143
        %2145 = vmatmul.bf16.gmra.mxu0 %v1965
        %v2146 = vpop.f32.mrf.mxu0
        %v2147 = vadd.f32 %v1841, %v2146
        %v2148 = vpop.f32.mrf.mxu0
        %v2149 = vadd.f32 %v1843, %v2148
        %2150 = vmatmul.bf16.gmra.mxu0 %v1974
        %v2151 = vpop.f32.mrf.mxu0
        %v2152 = vadd.f32 %v1846, %v2151
        %v2153 = vpop.f32.mrf.mxu0
        %v2154 = vadd.f32 %v1848, %v2153
        %2155 = vmatmul.bf16.gmra.mxu0 %v1983
        %v2156 = vpop.f32.mrf.mxu0
        %v2157 = vadd.f32 %v1851, %v2156
        %v2158 = vpop.f32.mrf.mxu0
        %v2159 = vadd.f32 %v1853, %v2158
        %2160 = vmatmul.bf16.gmra.mxu0 %v1992
        %v2161 = vpop.f32.mrf.mxu0
        %v2162 = vadd.f32 %v1856, %v2161
        %v2163 = vpop.f32.mrf.mxu0
        %v2164 = vadd.f32 %v1858, %v2163
        %2165 = vmatmul.bf16.gmra.mxu0 %v2001
        %v2166 = vpop.f32.mrf.mxu0
        %v2167 = vadd.f32 %v1861, %v2166
        %v2168 = vpop.f32.mrf.mxu0
        %v2169 = vadd.f32 %v1863, %v2168
        %2170 = vmatmul.bf16.gmra.mxu0 %v2010
        %v2171 = vpop.f32.mrf.mxu0
        %v2172 = vadd.f32 %v1866, %v2171
        %v2173 = vpop.f32.mrf.mxu0
        %v2174 = vadd.f32 %v1868, %v2173
        %2175 = vmatmul.bf16.gmra.mxu0 %v2019
        %v2176 = vpop.f32.mrf.mxu0
        %v2177 = vadd.f32 %v1871, %v2176
        %v2178 = vpop.f32.mrf.mxu0
        %v2179 = vadd.f32 %v1873, %v2178
        %2180 = vmatmul.bf16.gmra.mxu0 %v2028
        %v2181 = vpop.f32.mrf.mxu0
        %v2182 = vadd.f32 %v1876, %v2181
        %v2183 = vpop.f32.mrf.mxu0
        %v2184 = vadd.f32 %v1878, %v2183
        %2185 = vmatmul.bf16.gmra.mxu0 %v2037
        %v2186 = vpop.f32.mrf.mxu0
        %v2187 = vadd.f32 %v1881, %v2186
        %v2188 = vpop.f32.mrf.mxu0
        %v2189 = vadd.f32 %v1883, %v2188
        %2190 = vdwg.mxu0
        %v2191 = vld [vmem:[#allocation2 + $0x78] sm:$0xf]
        %v2192 = vld [vmem:[#allocation2 + $0x7c] sm:$0xf]
        %v2193 = vld [vmem:[#allocation2 + $0x80] sm:$0xf]
        %v2194 = vld [vmem:[#allocation2 + $0x84] sm:$0xf]
        %v2195 = vld [vmem:[#allocation2 + $0x88] sm:$0xf]
        %v2196 = vld [vmem:[#allocation2 + $0x8c] sm:$0xf]
        %v2197 = vld [vmem:[#allocation2 + $0x90] sm:$0xf]
        %v2198 = vld [vmem:[#allocation2 + $0x94] sm:$0xf]
        %v2199 = vld [vmem:[#allocation2 + $0x98] sm:$0xf]
        %v2200 = vld [vmem:[#allocation2 + $0x9c] sm:$0xf]
        %v2201 = vld [vmem:[#allocation2 + $0xa0] sm:$0xf]
        %v2202 = vld [vmem:[#allocation2 + $0xa4] sm:$0xf]
        %v2203 = vld [vmem:[#allocation2 + $0xa8] sm:$0xf]
        %v2204 = vld [vmem:[#allocation2 + $0xac] sm:$0xf]
        %v2205 = vld [vmem:[#allocation2 + $0xb0] sm:$0xf]
        %v2206 = vld [vmem:[#allocation2 + $0xb4] sm:$0xf]
        %v2207 = vld [vmem:[#allocation2 + $0xb8] sm:$0xf]
        %v2208 = vld [vmem:[#allocation2 + $0xbc] sm:$0xf]
        %v2209 = vld [vmem:[#allocation2 + $0xc0] sm:$0xf]
        %v2210 = vld [vmem:[#allocation2 + $0xc4] sm:$0xf]
        %v2211 = vld [vmem:[#allocation2 + $0xc8] sm:$0xf]
        %v2212 = vld [vmem:[#allocation2 + $0xcc] sm:$0xf]
        %v2213 = vld [vmem:[#allocation2 + $0xd0] sm:$0xf]
        %v2214 = vld [vmem:[#allocation2 + $0xd4] sm:$0xf]
        %v2215 = vld [vmem:[#allocation2 + $0xd8] sm:$0xf]
        %v2216 = vld [vmem:[#allocation2 + $0xdc] sm:$0xf]
        %v2217 = vld [vmem:[#allocation2 + $0xe0] sm:$0xf]
        %v2218 = vld [vmem:[#allocation2 + $0xe4] sm:$0xf]
        %v2219 = vld [vmem:[#allocation2 + $0xe8] sm:$0xf]
        %v2220 = vld [vmem:[#allocation2 + $0xec] sm:$0xf]
        %v2221 = vld [vmem:[#allocation2 + $0xf0] sm:$0xf]
        %v2222 = vld [vmem:[#allocation2 + $0xf4] sm:$0xf]
        %v2223 = vld [vmem:[#allocation2 + $0xf8] sm:$0x1]
        %s2224 = scalar_lea.vmem %s1, 256
        %v2225 = vld [vmem:[%s2224] sm:$0xf]
        %v2226 = vld [vmem:[%s2224 + $0x4] sm:$0xf]
        %v2227 = vld [vmem:[%s2224 + $0x8] sm:$0xf]
        %v2228 = vld [vmem:[%s2224 + $0xc] sm:$0xf]
        %v2229 = vld [vmem:[%s2224 + $0x10] sm:$0xf]
        %v2230 = vld [vmem:[%s2224 + $0x14] sm:$0xf]
        %v2231 = vld [vmem:[%s2224 + $0x18] sm:$0xf]
        %v2232 = vld [vmem:[%s2224 + $0x1c] sm:$0xf]
        %v2233 = vld [vmem:[%s2224 + $0x20] sm:$0xf]
        %v2234 = vld [vmem:[%s2224 + $0x24] sm:$0xf]
        %v2235 = vld [vmem:[%s2224 + $0x28] sm:$0xf]
        %v2236 = vld [vmem:[%s2224 + $0x2c] sm:$0xf]
        %v2237 = vld [vmem:[%s2224 + $0x30] sm:$0xf]
        %v2238 = vld [vmem:[%s2224 + $0x34] sm:$0xf]
        %v2239 = vld [vmem:[%s2224 + $0x38] sm:$0xf]
        %v2240 = vld [vmem:[%s2224 + $0x3c] sm:$0xf]
        %v2241 = vld [vmem:[%s2224 + $0x40] sm:$0xf]
        %v2242 = vld [vmem:[%s2224 + $0x44] sm:$0xf]
        %v2243 = vld [vmem:[%s2224 + $0x48] sm:$0xf]
        %v2244 = vld [vmem:[%s2224 + $0x4c] sm:$0xf]
        %v2245 = vld [vmem:[%s2224 + $0x50] sm:$0xf]
        %v2246 = vld [vmem:[%s2224 + $0x54] sm:$0xf]
        %v2247 = vld [vmem:[%s2224 + $0x58] sm:$0xf]
        %v2248 = vld [vmem:[%s2224 + $0x5c] sm:$0xf]
        %v2249 = vld [vmem:[%s2224 + $0x60] sm:$0xf]
        %v2250 = vld [vmem:[%s2224 + $0x64] sm:$0xf]
        %v2251 = vld [vmem:[%s2224 + $0x68] sm:$0xf]
        %v2252 = vld [vmem:[%s2224 + $0x6c] sm:$0xf]
        %v2253 = vld [vmem:[%s2224 + $0x70] sm:$0xf]
        %v2254 = vld [vmem:[%s2224 + $0x74] sm:$0xf]
        %v2255 = vld [vmem:[%s2224 + $0x78] sm:$0xf]
        %v2256 = vld [vmem:[%s2224 + $0x7c] sm:$0xf]
        %2258 = vset.pattern.permute.xlu0 0
        %2259 = vperm.xlu0 %2258, %v2225
        %v2260 = vpop.permute.xlu0 %2259
        %v2263 = vunpack.c.l.s4 839922192
        %v2264 = vunpack.c.0.s8 %v2263
        %v2265 = vperm.slane %v2260, %v2264
        %2267 = vset.pattern.permute.xlu0 0
        %2268 = vperm.xlu0 %2267, %v2226
        %v2269 = vpop.permute.xlu0 %2268
        %v2272 = vunpack.c.l.s4 839922192
        %v2273 = vunpack.c.0.s8 %v2272
        %v2274 = vperm.slane %v2269, %v2273
        %2276 = vset.pattern.permute.xlu0 0
        %2277 = vperm.xlu0 %2276, %v2227
        %v2278 = vpop.permute.xlu0 %2277
        %v2281 = vunpack.c.l.s4 839922192
        %v2282 = vunpack.c.0.s8 %v2281
        %v2283 = vperm.slane %v2278, %v2282
        %2285 = vset.pattern.permute.xlu0 0
        %2286 = vperm.xlu0 %2285, %v2228
        %v2287 = vpop.permute.xlu0 %2286
        %v2290 = vunpack.c.l.s4 839922192
        %v2291 = vunpack.c.0.s8 %v2290
        %v2292 = vperm.slane %v2287, %v2291
        %2294 = vset.pattern.permute.xlu0 0
        %2295 = vperm.xlu0 %2294, %v2229
        %v2296 = vpop.permute.xlu0 %2295
        %v2299 = vunpack.c.l.s4 839922192
        %v2300 = vunpack.c.0.s8 %v2299
        %v2301 = vperm.slane %v2296, %v2300
        %2303 = vset.pattern.permute.xlu0 0
        %2304 = vperm.xlu0 %2303, %v2230
        %v2305 = vpop.permute.xlu0 %2304
        %v2308 = vunpack.c.l.s4 839922192
        %v2309 = vunpack.c.0.s8 %v2308
        %v2310 = vperm.slane %v2305, %v2309
        %2312 = vset.pattern.permute.xlu0 0
        %2313 = vperm.xlu0 %2312, %v2231
        %v2314 = vpop.permute.xlu0 %2313
        %v2317 = vunpack.c.l.s4 839922192
        %v2318 = vunpack.c.0.s8 %v2317
        %v2319 = vperm.slane %v2314, %v2318
        %2321 = vset.pattern.permute.xlu0 0
        %2322 = vperm.xlu0 %2321, %v2232
        %v2323 = vpop.permute.xlu0 %2322
        %v2326 = vunpack.c.l.s4 839922192
        %v2327 = vunpack.c.0.s8 %v2326
        %v2328 = vperm.slane %v2323, %v2327
        %2330 = vset.pattern.permute.xlu0 0
        %2331 = vperm.xlu0 %2330, %v2233
        %v2332 = vpop.permute.xlu0 %2331
        %v2335 = vunpack.c.l.s4 839922192
        %v2336 = vunpack.c.0.s8 %v2335
        %v2337 = vperm.slane %v2332, %v2336
        %2339 = vset.pattern.permute.xlu0 0
        %2340 = vperm.xlu0 %2339, %v2234
        %v2341 = vpop.permute.xlu0 %2340
        %v2344 = vunpack.c.l.s4 839922192
        %v2345 = vunpack.c.0.s8 %v2344
        %v2346 = vperm.slane %v2341, %v2345
        %2348 = vset.pattern.permute.xlu0 0
        %2349 = vperm.xlu0 %2348, %v2235
        %v2350 = vpop.permute.xlu0 %2349
        %v2353 = vunpack.c.l.s4 839922192
        %v2354 = vunpack.c.0.s8 %v2353
        %v2355 = vperm.slane %v2350, %v2354
        %2357 = vset.pattern.permute.xlu0 0
        %2358 = vperm.xlu0 %2357, %v2236
        %v2359 = vpop.permute.xlu0 %2358
        %v2362 = vunpack.c.l.s4 839922192
        %v2363 = vunpack.c.0.s8 %v2362
        %v2364 = vperm.slane %v2359, %v2363
        %2366 = vset.pattern.permute.xlu0 0
        %2367 = vperm.xlu0 %2366, %v2237
        %v2368 = vpop.permute.xlu0 %2367
        %v2371 = vunpack.c.l.s4 839922192
        %v2372 = vunpack.c.0.s8 %v2371
        %v2373 = vperm.slane %v2368, %v2372
        %2375 = vset.pattern.permute.xlu0 0
        %2376 = vperm.xlu0 %2375, %v2238
        %v2377 = vpop.permute.xlu0 %2376
        %v2380 = vunpack.c.l.s4 839922192
        %v2381 = vunpack.c.0.s8 %v2380
        %v2382 = vperm.slane %v2377, %v2381
        %2384 = vset.pattern.permute.xlu0 0
        %2385 = vperm.xlu0 %2384, %v2239
        %v2386 = vpop.permute.xlu0 %2385
        %v2389 = vunpack.c.l.s4 839922192
        %v2390 = vunpack.c.0.s8 %v2389
        %v2391 = vperm.slane %v2386, %v2390
        %2393 = vset.pattern.permute.xlu0 0
        %2394 = vperm.xlu0 %2393, %v2240
        %v2395 = vpop.permute.xlu0 %2394
        %v2398 = vunpack.c.l.s4 839922192
        %v2399 = vunpack.c.0.s8 %v2398
        %v2400 = vperm.slane %v2395, %v2399
        %2402 = vset.pattern.permute.xlu0 0
        %2403 = vperm.xlu0 %2402, %v2241
        %v2404 = vpop.permute.xlu0 %2403
        %v2407 = vunpack.c.l.s4 839922192
        %v2408 = vunpack.c.0.s8 %v2407
        %v2409 = vperm.slane %v2404, %v2408
        %2411 = vset.pattern.permute.xlu0 0
        %2412 = vperm.xlu0 %2411, %v2242
        %v2413 = vpop.permute.xlu0 %2412
        %v2416 = vunpack.c.l.s4 839922192
        %v2417 = vunpack.c.0.s8 %v2416
        %v2418 = vperm.slane %v2413, %v2417
        %2420 = vset.pattern.permute.xlu0 0
        %2421 = vperm.xlu0 %2420, %v2243
        %v2422 = vpop.permute.xlu0 %2421
        %v2425 = vunpack.c.l.s4 839922192
        %v2426 = vunpack.c.0.s8 %v2425
        %v2427 = vperm.slane %v2422, %v2426
        %2429 = vset.pattern.permute.xlu0 0
        %2430 = vperm.xlu0 %2429, %v2244
        %v2431 = vpop.permute.xlu0 %2430
        %v2434 = vunpack.c.l.s4 839922192
        %v2435 = vunpack.c.0.s8 %v2434
        %v2436 = vperm.slane %v2431, %v2435
        %2438 = vset.pattern.permute.xlu0 0
        %2439 = vperm.xlu0 %2438, %v2245
        %v2440 = vpop.permute.xlu0 %2439
        %v2443 = vunpack.c.l.s4 839922192
        %v2444 = vunpack.c.0.s8 %v2443
        %v2445 = vperm.slane %v2440, %v2444
        %2447 = vset.pattern.permute.xlu0 0
        %2448 = vperm.xlu0 %2447, %v2246
        %v2449 = vpop.permute.xlu0 %2448
        %v2452 = vunpack.c.l.s4 839922192
        %v2453 = vunpack.c.0.s8 %v2452
        %v2454 = vperm.slane %v2449, %v2453
        %2456 = vset.pattern.permute.xlu0 0
        %2457 = vperm.xlu0 %2456, %v2247
        %v2458 = vpop.permute.xlu0 %2457
        %v2461 = vunpack.c.l.s4 839922192
        %v2462 = vunpack.c.0.s8 %v2461
        %v2463 = vperm.slane %v2458, %v2462
        %2465 = vset.pattern.permute.xlu0 0
        %2466 = vperm.xlu0 %2465, %v2248
        %v2467 = vpop.permute.xlu0 %2466
        %v2470 = vunpack.c.l.s4 839922192
        %v2471 = vunpack.c.0.s8 %v2470
        %v2472 = vperm.slane %v2467, %v2471
        %2474 = vset.pattern.permute.xlu0 0
        %2475 = vperm.xlu0 %2474, %v2249
        %v2476 = vpop.permute.xlu0 %2475
        %v2479 = vunpack.c.l.s4 839922192
        %v2480 = vunpack.c.0.s8 %v2479
        %v2481 = vperm.slane %v2476, %v2480
        %2483 = vset.pattern.permute.xlu0 0
        %2484 = vperm.xlu0 %2483, %v2250
        %v2485 = vpop.permute.xlu0 %2484
        %v2488 = vunpack.c.l.s4 839922192
        %v2489 = vunpack.c.0.s8 %v2488
        %v2490 = vperm.slane %v2485, %v2489
        %2492 = vset.pattern.permute.xlu0 0
        %2493 = vperm.xlu0 %2492, %v2251
        %v2494 = vpop.permute.xlu0 %2493
        %v2497 = vunpack.c.l.s4 839922192
        %v2498 = vunpack.c.0.s8 %v2497
        %v2499 = vperm.slane %v2494, %v2498
        %2501 = vset.pattern.permute.xlu0 0
        %2502 = vperm.xlu0 %2501, %v2252
        %v2503 = vpop.permute.xlu0 %2502
        %v2506 = vunpack.c.l.s4 839922192
        %v2507 = vunpack.c.0.s8 %v2506
        %v2508 = vperm.slane %v2503, %v2507
        %2510 = vset.pattern.permute.xlu0 0
        %2511 = vperm.xlu0 %2510, %v2253
        %v2512 = vpop.permute.xlu0 %2511
        %v2515 = vunpack.c.l.s4 839922192
        %v2516 = vunpack.c.0.s8 %v2515
        %v2517 = vperm.slane %v2512, %v2516
        %2519 = vset.pattern.permute.xlu0 0
        %2520 = vperm.xlu0 %2519, %v2254
        %v2521 = vpop.permute.xlu0 %2520
        %v2524 = vunpack.c.l.s4 839922192
        %v2525 = vunpack.c.0.s8 %v2524
        %v2526 = vperm.slane %v2521, %v2525
        %2528 = vset.pattern.permute.xlu0 0
        %2529 = vperm.xlu0 %2528, %v2255
        %v2530 = vpop.permute.xlu0 %2529
        %v2533 = vunpack.c.l.s4 839922192
        %v2534 = vunpack.c.0.s8 %v2533
        %v2535 = vperm.slane %v2530, %v2534
        %2537 = vset.pattern.permute.xlu0 0
        %2538 = vperm.xlu0 %2537, %v2256
        %v2539 = vpop.permute.xlu0 %2538
        %v2542 = vunpack.c.l.s4 839922192
        %v2543 = vunpack.c.0.s8 %v2542
        %v2544 = vperm.slane %v2539, %v2543
        %v2545 = vunpack.c.l.bf16 %v2191
        %v2546 = vunpack.c.l.bf16 %v2192
        %v2547 = vunpack.c.l.bf16 %v2193
        %v2548 = vunpack.c.l.bf16 %v2194
        %v2549 = vunpack.c.l.bf16 %v2195
        %v2550 = vunpack.c.l.bf16 %v2196
        %v2551 = vunpack.c.l.bf16 %v2197
        %v2552 = vunpack.c.l.bf16 %v2198
        %v2553 = vunpack.c.l.bf16 %v2199
        %v2554 = vunpack.c.l.bf16 %v2200
        %v2555 = vunpack.c.l.bf16 %v2201
        %v2556 = vunpack.c.l.bf16 %v2202
        %v2557 = vunpack.c.l.bf16 %v2203
        %v2558 = vunpack.c.l.bf16 %v2204
        %v2559 = vunpack.c.l.bf16 %v2205
        %v2560 = vunpack.c.l.bf16 %v2206
        %v2561 = vunpack.c.l.bf16 %v2207
        %v2562 = vunpack.c.l.bf16 %v2208
        %v2563 = vunpack.c.l.bf16 %v2209
        %v2564 = vunpack.c.l.bf16 %v2210
        %v2565 = vunpack.c.l.bf16 %v2211
        %v2566 = vunpack.c.l.bf16 %v2212
        %v2567 = vunpack.c.l.bf16 %v2213
        %v2568 = vunpack.c.l.bf16 %v2214
        %v2569 = vunpack.c.l.bf16 %v2215
        %v2570 = vunpack.c.l.bf16 %v2216
        %v2571 = vunpack.c.l.bf16 %v2217
        %v2572 = vunpack.c.l.bf16 %v2218
        %v2573 = vunpack.c.l.bf16 %v2219
        %v2574 = vunpack.c.l.bf16 %v2220
        %v2575 = vunpack.c.l.bf16 %v2221
        %v2576 = vunpack.c.l.bf16 %v2222
        %v2577 = vunpack.c.l.bf16 %v2223
        %v2578 = vunpack.c.l.bf16 %v2265
        %v2579 = vunpack.c.l.bf16 %v2274
        %v2580 = vunpack.c.l.bf16 %v2283
        %v2581 = vunpack.c.l.bf16 %v2292
        %v2582 = vunpack.c.l.bf16 %v2301
        %v2583 = vunpack.c.l.bf16 %v2310
        %v2584 = vunpack.c.l.bf16 %v2319
        %v2585 = vunpack.c.l.bf16 %v2328
        %v2586 = vunpack.c.l.bf16 %v2337
        %v2587 = vunpack.c.l.bf16 %v2346
        %v2588 = vunpack.c.l.bf16 %v2355
        %v2589 = vunpack.c.l.bf16 %v2364
        %v2590 = vunpack.c.l.bf16 %v2373
        %v2591 = vunpack.c.l.bf16 %v2382
        %v2592 = vunpack.c.l.bf16 %v2391
        %v2593 = vunpack.c.l.bf16 %v2400
        %v2594 = vunpack.c.l.bf16 %v2409
        %v2595 = vunpack.c.l.bf16 %v2418
        %v2596 = vunpack.c.l.bf16 %v2427
        %v2597 = vunpack.c.l.bf16 %v2436
        %v2598 = vunpack.c.l.bf16 %v2445
        %v2599 = vunpack.c.l.bf16 %v2454
        %v2600 = vunpack.c.l.bf16 %v2463
        %v2601 = vunpack.c.l.bf16 %v2472
        %v2602 = vunpack.c.l.bf16 %v2481
        %v2603 = vunpack.c.l.bf16 %v2490
        %v2604 = vunpack.c.l.bf16 %v2499
        %v2605 = vunpack.c.l.bf16 %v2508
        %v2606 = vunpack.c.l.bf16 %v2517
        %v2607 = vunpack.c.l.bf16 %v2526
        %v2608 = vunpack.c.l.bf16 %v2535
        %v2609 = vunpack.c.l.bf16 %v2544
        %vm2642 = vcmask 1040384
        %v2643 = vrot.slane %v2578, 7
        %v2644 = vrot.slane %v2579, 7
        %v2645 = vsel %vm2642, %v2643, %v2644
        %v2646 = vrot.slane %v2580, 7
        %v2647 = vsel %vm2642, %v2644, %v2646
        %v2648 = vrot.slane %v2581, 7
        %v2649 = vsel %vm2642, %v2646, %v2648
        %v2650 = vrot.slane %v2582, 7
        %v2651 = vsel %vm2642, %v2648, %v2650
        %v2652 = vrot.slane %v2583, 7
        %v2653 = vsel %vm2642, %v2650, %v2652
        %v2654 = vrot.slane %v2584, 7
        %v2655 = vsel %vm2642, %v2652, %v2654
        %v2656 = vrot.slane %v2585, 7
        %v2657 = vsel %vm2642, %v2654, %v2656
        %v2658 = vrot.slane %v2586, 7
        %v2659 = vsel %vm2642, %v2656, %v2658
        %v2660 = vrot.slane %v2587, 7
        %v2661 = vsel %vm2642, %v2658, %v2660
        %v2662 = vrot.slane %v2588, 7
        %v2663 = vsel %vm2642, %v2660, %v2662
        %v2664 = vrot.slane %v2589, 7
        %v2665 = vsel %vm2642, %v2662, %v2664
        %v2666 = vrot.slane %v2590, 7
        %v2667 = vsel %vm2642, %v2664, %v2666
        %v2668 = vrot.slane %v2591, 7
        %v2669 = vsel %vm2642, %v2666, %v2668
        %v2670 = vrot.slane %v2592, 7
        %v2671 = vsel %vm2642, %v2668, %v2670
        %v2672 = vrot.slane %v2593, 7
        %v2673 = vsel %vm2642, %v2670, %v2672
        %v2674 = vrot.slane %v2594, 7
        %v2675 = vsel %vm2642, %v2672, %v2674
        %v2676 = vrot.slane %v2595, 7
        %v2677 = vsel %vm2642, %v2674, %v2676
        %v2678 = vrot.slane %v2596, 7
        %v2679 = vsel %vm2642, %v2676, %v2678
        %v2680 = vrot.slane %v2597, 7
        %v2681 = vsel %vm2642, %v2678, %v2680
        %v2682 = vrot.slane %v2598, 7
        %v2683 = vsel %vm2642, %v2680, %v2682
        %v2684 = vrot.slane %v2599, 7
        %v2685 = vsel %vm2642, %v2682, %v2684
        %v2686 = vrot.slane %v2600, 7
        %v2687 = vsel %vm2642, %v2684, %v2686
        %v2688 = vrot.slane %v2601, 7
        %v2689 = vsel %vm2642, %v2686, %v2688
        %v2690 = vrot.slane %v2602, 7
        %v2691 = vsel %vm2642, %v2688, %v2690
        %v2692 = vrot.slane %v2603, 7
        %v2693 = vsel %vm2642, %v2690, %v2692
        %v2694 = vrot.slane %v2604, 7
        %v2695 = vsel %vm2642, %v2692, %v2694
        %v2696 = vrot.slane %v2605, 7
        %v2697 = vsel %vm2642, %v2694, %v2696
        %v2698 = vrot.slane %v2606, 7
        %v2699 = vsel %vm2642, %v2696, %v2698
        %v2700 = vrot.slane %v2607, 7
        %v2701 = vsel %vm2642, %v2698, %v2700
        %v2702 = vrot.slane %v2608, 7
        %v2703 = vsel %vm2642, %v2700, %v2702
        %v2704 = vrot.slane %v2609, 7
        %v2705 = vsel %vm2642, %v2702, %v2704
        %v2739 = vmul.f32 %v2545, %v2643
        %v2740 = vmul.f32 %v2546, %v2645
        %v2741 = vmul.f32 %v2547, %v2647
        %v2742 = vmul.f32 %v2548, %v2649
        %v2743 = vmul.f32 %v2549, %v2651
        %v2744 = vmul.f32 %v2550, %v2653
        %v2745 = vmul.f32 %v2551, %v2655
        %v2746 = vmul.f32 %v2552, %v2657
        %v2747 = vmul.f32 %v2553, %v2659
        %v2748 = vmul.f32 %v2554, %v2661
        %v2749 = vmul.f32 %v2555, %v2663
        %v2750 = vmul.f32 %v2556, %v2665
        %v2751 = vmul.f32 %v2557, %v2667
        %v2752 = vmul.f32 %v2558, %v2669
        %v2753 = vmul.f32 %v2559, %v2671
        %v2754 = vmul.f32 %v2560, %v2673
        %v2755 = vmul.f32 %v2561, %v2675
        %v2756 = vmul.f32 %v2562, %v2677
        %v2757 = vmul.f32 %v2563, %v2679
        %v2758 = vmul.f32 %v2564, %v2681
        %v2759 = vmul.f32 %v2565, %v2683
        %v2760 = vmul.f32 %v2566, %v2685
        %v2761 = vmul.f32 %v2567, %v2687
        %v2762 = vmul.f32 %v2568, %v2689
        %v2763 = vmul.f32 %v2569, %v2691
        %v2764 = vmul.f32 %v2570, %v2693
        %v2765 = vmul.f32 %v2571, %v2695
        %v2766 = vmul.f32 %v2572, %v2697
        %v2767 = vmul.f32 %v2573, %v2699
        %v2768 = vmul.f32 %v2574, %v2701
        %v2769 = vmul.f32 %v2575, %v2703
        %v2770 = vmul.f32 %v2576, %v2705
        %v2771 = vmul.f32 %v2577, %v2704
        %v2772 = vpack.c.bf16 %v2740, %v2739
        %v2773 = vpack.c.bf16 %v2742, %v2741
        %v2774 = vpack.c.bf16 %v2744, %v2743
        %v2775 = vpack.c.bf16 %v2746, %v2745
        %v2776 = vpack.c.bf16 %v2748, %v2747
        %v2777 = vpack.c.bf16 %v2750, %v2749
        %v2778 = vpack.c.bf16 %v2752, %v2751
        %v2779 = vpack.c.bf16 %v2754, %v2753
        %v2780 = vpack.c.bf16 %v2756, %v2755
        %v2781 = vpack.c.bf16 %v2758, %v2757
        %v2782 = vpack.c.bf16 %v2760, %v2759
        %v2783 = vpack.c.bf16 %v2762, %v2761
        %v2784 = vpack.c.bf16 %v2764, %v2763
        %v2785 = vpack.c.bf16 %v2766, %v2765
        %v2786 = vpack.c.bf16 %v2768, %v2767
        %v2787 = vpack.c.bf16 %v2770, %v2769
        %v2788 = vpack.c.bf16 %v2771, %v2771
        %s2789 = scalar_lea.vmem %s4, 128
        %v2790 = vld [vmem:[%s2789] sm:$0xf]
        %v2791 = vld [vmem:[%s2789 + $0x4] sm:$0xf]
        %v2792 = vld [vmem:[%s2789 + $0x8] sm:$0xf]
        %v2793 = vld [vmem:[%s2789 + $0xc] sm:$0xf]
        %v2794 = vld [vmem:[%s2789 + $0x10] sm:$0xf]
        %v2795 = vld [vmem:[%s2789 + $0x14] sm:$0xf]
        %v2796 = vld [vmem:[%s2789 + $0x18] sm:$0xf]
        %v2797 = vld [vmem:[%s2789 + $0x1c] sm:$0xf]
        %v2798 = vld [vmem:[%s2789 + $0x20] sm:$0xf]
        %v2799 = vld [vmem:[%s2789 + $0x24] sm:$0xf]
        %v2800 = vld [vmem:[%s2789 + $0x28] sm:$0xf]
        %v2801 = vld [vmem:[%s2789 + $0x2c] sm:$0xf]
        %v2802 = vld [vmem:[%s2789 + $0x30] sm:$0xf]
        %v2803 = vld [vmem:[%s2789 + $0x34] sm:$0xf]
        %v2804 = vld [vmem:[%s2789 + $0x38] sm:$0xf]
        %v2805 = vld [vmem:[%s2789 + $0x3c] sm:$0xf]
        %vm2806 = vsmask.f32 7424
        %v2808 = vshrl.u32 %v2772, 16
        %v2810 = vshll.u32 %v2772, 16
        %v2812 = vrot.slane %v2810, 1
        %v2813 = vor.u32 %v2808, %v2812
        %v2815 = vshll.u32 %v2773, 16
        %v2817 = vrot.slane %v2815, 1
        %v2818 = vsel %vm2806, %v2813, %v2817
        %v2819 = vshrl.u32 %v2773, 16
        %v2821 = vor.u32 %v2819, %v2817
        %v2823 = vshll.u32 %v2774, 16
        %v2825 = vrot.slane %v2823, 1
        %v2826 = vsel %vm2806, %v2821, %v2825
        %v2827 = vshrl.u32 %v2774, 16
        %v2829 = vor.u32 %v2827, %v2825
        %v2831 = vshll.u32 %v2775, 16
        %v2833 = vrot.slane %v2831, 1
        %v2834 = vsel %vm2806, %v2829, %v2833
        %v2835 = vshrl.u32 %v2775, 16
        %v2837 = vor.u32 %v2835, %v2833
        %v2839 = vshll.u32 %v2776, 16
        %v2841 = vrot.slane %v2839, 1
        %v2842 = vsel %vm2806, %v2837, %v2841
        %v2843 = vshrl.u32 %v2776, 16
        %v2845 = vor.u32 %v2843, %v2841
        %v2847 = vshll.u32 %v2777, 16
        %v2849 = vrot.slane %v2847, 1
        %v2850 = vsel %vm2806, %v2845, %v2849
        %v2851 = vshrl.u32 %v2777, 16
        %v2853 = vor.u32 %v2851, %v2849
        %v2855 = vshll.u32 %v2778, 16
        %v2857 = vrot.slane %v2855, 1
        %v2858 = vsel %vm2806, %v2853, %v2857
        %v2859 = vshrl.u32 %v2778, 16
        %v2861 = vor.u32 %v2859, %v2857
        %v2863 = vshll.u32 %v2779, 16
        %v2865 = vrot.slane %v2863, 1
        %v2866 = vsel %vm2806, %v2861, %v2865
        %v2867 = vshrl.u32 %v2779, 16
        %v2869 = vor.u32 %v2867, %v2865
        %v2871 = vshll.u32 %v2780, 16
        %v2873 = vrot.slane %v2871, 1
        %v2874 = vsel %vm2806, %v2869, %v2873
        %v2875 = vshrl.u32 %v2780, 16
        %v2877 = vor.u32 %v2875, %v2873
        %v2879 = vshll.u32 %v2781, 16
        %v2881 = vrot.slane %v2879, 1
        %v2882 = vsel %vm2806, %v2877, %v2881
        %v2883 = vshrl.u32 %v2781, 16
        %v2885 = vor.u32 %v2883, %v2881
        %v2887 = vshll.u32 %v2782, 16
        %v2889 = vrot.slane %v2887, 1
        %v2890 = vsel %vm2806, %v2885, %v2889
        %v2891 = vshrl.u32 %v2782, 16
        %v2893 = vor.u32 %v2891, %v2889
        %v2895 = vshll.u32 %v2783, 16
        %v2897 = vrot.slane %v2895, 1
        %v2898 = vsel %vm2806, %v2893, %v2897
        %v2899 = vshrl.u32 %v2783, 16
        %v2901 = vor.u32 %v2899, %v2897
        %v2903 = vshll.u32 %v2784, 16
        %v2905 = vrot.slane %v2903, 1
        %v2906 = vsel %vm2806, %v2901, %v2905
        %v2907 = vshrl.u32 %v2784, 16
        %v2909 = vor.u32 %v2907, %v2905
        %v2911 = vshll.u32 %v2785, 16
        %v2913 = vrot.slane %v2911, 1
        %v2914 = vsel %vm2806, %v2909, %v2913
        %v2915 = vshrl.u32 %v2785, 16
        %v2917 = vor.u32 %v2915, %v2913
        %v2919 = vshll.u32 %v2786, 16
        %v2921 = vrot.slane %v2919, 1
        %v2922 = vsel %vm2806, %v2917, %v2921
        %v2923 = vshrl.u32 %v2786, 16
        %v2925 = vor.u32 %v2923, %v2921
        %v2927 = vshll.u32 %v2787, 16
        %v2929 = vrot.slane %v2927, 1
        %v2930 = vsel %vm2806, %v2925, %v2929
        %v2931 = vshrl.u32 %v2787, 16
        %v2933 = vor.u32 %v2931, %v2929
        %v2935 = vshll.u32 %v2788, 16
        %v2937 = vrot.slane %v2935, 1
        %v2938 = vsel %vm2806, %v2933, %v2937
        %v2971 = vunpack.c.l.b16 %v2790
        %v2972 = vunpack.c.l.b16 %v2791
        %v2973 = vunpack.c.l.b16 %v2792
        %v2974 = vunpack.c.l.b16 %v2793
        %v2975 = vunpack.c.l.b16 %v2794
        %v2976 = vunpack.c.l.b16 %v2795
        %v2977 = vunpack.c.l.b16 %v2796
        %v2978 = vunpack.c.l.b16 %v2797
        %v2979 = vunpack.c.l.b16 %v2798
        %v2980 = vunpack.c.l.b16 %v2799
        %v2981 = vunpack.c.l.b16 %v2800
        %v2982 = vunpack.c.l.b16 %v2801
        %v2983 = vunpack.c.l.b16 %v2802
        %v2984 = vunpack.c.l.b16 %v2803
        %v2985 = vunpack.c.l.b16 %v2804
        %v2986 = vunpack.c.l.b16 %v2805
        %v2987 = vpack.c.b16 %v2972, %v2971
        %v2988 = vpack.c.b16 %v2974, %v2973
        %v2989 = vpack.c.b16 %v2976, %v2975
        %v2990 = vpack.c.b16 %v2978, %v2977
        %v2991 = vpack.c.b16 %v2980, %v2979
        %v2992 = vpack.c.b16 %v2982, %v2981
        %v2993 = vpack.c.b16 %v2984, %v2983
        %v2994 = vpack.c.b16 %v2986, %v2985
        %3003 = vmatpush.bf16.msra.mxu0 %v2994
        %3004 = vmatpush.bf16.msra.mxu0 %v2993
        %3005 = vmatpush.bf16.msra.mxu0 %v2992
        %3006 = vmatpush.bf16.msra.mxu0 %v2991
        %3007 = vmatpush.bf16.msra.mxu0 %v2990
        %3008 = vmatpush.bf16.msra.mxu0 %v2989
        %3009 = vmatpush.bf16.msra.mxu0 %v2988
        %3010 = vmatpush.bf16.msra.mxu0 %v2987
        %3011 = vmatmul.bf16.gmra.mxu0 %v2818
        %v3012 = vpop.f32.mrf.mxu0
        %v3013 = vadd.f32 0.0, %v3012
        %v3014 = vpop.f32.mrf.mxu0
        %v3015 = vadd.f32 0.0, %v3014
        %3016 = vmatmul.bf16.gmra.mxu0 %v2826
        %v3017 = vpop.f32.mrf.mxu0
        %v3018 = vadd.f32 0.0, %v3017
        %v3019 = vpop.f32.mrf.mxu0
        %v3020 = vadd.f32 0.0, %v3019
        %3021 = vmatmul.bf16.gmra.mxu0 %v2834
        %v3022 = vpop.f32.mrf.mxu0
        %v3023 = vadd.f32 0.0, %v3022
        %v3024 = vpop.f32.mrf.mxu0
        %v3025 = vadd.f32 0.0, %v3024
        %3026 = vmatmul.bf16.gmra.mxu0 %v2842
        %v3027 = vpop.f32.mrf.mxu0
        %v3028 = vadd.f32 0.0, %v3027
        %v3029 = vpop.f32.mrf.mxu0
        %v3030 = vadd.f32 0.0, %v3029
        %3031 = vmatmul.bf16.gmra.mxu0 %v2850
        %v3032 = vpop.f32.mrf.mxu0
        %v3033 = vadd.f32 0.0, %v3032
        %v3034 = vpop.f32.mrf.mxu0
        %v3035 = vadd.f32 0.0, %v3034
        %3036 = vmatmul.bf16.gmra.mxu0 %v2858
        %v3037 = vpop.f32.mrf.mxu0
        %v3038 = vadd.f32 0.0, %v3037
        %v3039 = vpop.f32.mrf.mxu0
        %v3040 = vadd.f32 0.0, %v3039
        %3041 = vmatmul.bf16.gmra.mxu0 %v2866
        %v3042 = vpop.f32.mrf.mxu0
        %v3043 = vadd.f32 0.0, %v3042
        %v3044 = vpop.f32.mrf.mxu0
        %v3045 = vadd.f32 0.0, %v3044
        %3046 = vmatmul.bf16.gmra.mxu0 %v2874
        %v3047 = vpop.f32.mrf.mxu0
        %v3048 = vadd.f32 0.0, %v3047
        %v3049 = vpop.f32.mrf.mxu0
        %v3050 = vadd.f32 0.0, %v3049
        %3051 = vmatmul.bf16.gmra.mxu0 %v2882
        %v3052 = vpop.f32.mrf.mxu0
        %v3053 = vadd.f32 0.0, %v3052
        %v3054 = vpop.f32.mrf.mxu0
        %v3055 = vadd.f32 0.0, %v3054
        %3056 = vmatmul.bf16.gmra.mxu0 %v2890
        %v3057 = vpop.f32.mrf.mxu0
        %v3058 = vadd.f32 0.0, %v3057
        %v3059 = vpop.f32.mrf.mxu0
        %v3060 = vadd.f32 0.0, %v3059
        %3061 = vmatmul.bf16.gmra.mxu0 %v2898
        %v3062 = vpop.f32.mrf.mxu0
        %v3063 = vadd.f32 0.0, %v3062
        %v3064 = vpop.f32.mrf.mxu0
        %v3065 = vadd.f32 0.0, %v3064
        %3066 = vmatmul.bf16.gmra.mxu0 %v2906
        %v3067 = vpop.f32.mrf.mxu0
        %v3068 = vadd.f32 0.0, %v3067
        %v3069 = vpop.f32.mrf.mxu0
        %v3070 = vadd.f32 0.0, %v3069
        %3071 = vmatmul.bf16.gmra.mxu0 %v2914
        %v3072 = vpop.f32.mrf.mxu0
        %v3073 = vadd.f32 0.0, %v3072
        %v3074 = vpop.f32.mrf.mxu0
        %v3075 = vadd.f32 0.0, %v3074
        %3076 = vmatmul.bf16.gmra.mxu0 %v2922
        %v3077 = vpop.f32.mrf.mxu0
        %v3078 = vadd.f32 0.0, %v3077
        %v3079 = vpop.f32.mrf.mxu0
        %v3080 = vadd.f32 0.0, %v3079
        %3081 = vmatmul.bf16.gmra.mxu0 %v2930
        %v3082 = vpop.f32.mrf.mxu0
        %v3083 = vadd.f32 0.0, %v3082
        %v3084 = vpop.f32.mrf.mxu0
        %v3085 = vadd.f32 0.0, %v3084
        %3086 = vmatmul.bf16.gmra.mxu0 %v2938
        %v3087 = vpop.f32.mrf.mxu0
        %v3088 = vadd.f32 0.0, %v3087
        %v3089 = vpop.f32.mrf.mxu0
        %v3090 = vadd.f32 0.0, %v3089
        %3091 = vdwg.mxu0
        %v3092 = vadd.f32 %v2112, %v3013
        %v3093 = vadd.f32 %v2114, %v3015
        %v3094 = vadd.f32 %v2117, %v3018
        %v3095 = vadd.f32 %v2119, %v3020
        %v3096 = vadd.f32 %v2122, %v3023
        %v3097 = vadd.f32 %v2124, %v3025
        %v3098 = vadd.f32 %v2127, %v3028
        %v3099 = vadd.f32 %v2129, %v3030
        %v3100 = vadd.f32 %v2132, %v3033
        %v3101 = vadd.f32 %v2134, %v3035
        %v3102 = vadd.f32 %v2137, %v3038
        %v3103 = vadd.f32 %v2139, %v3040
        %v3104 = vadd.f32 %v2142, %v3043
        %v3105 = vadd.f32 %v2144, %v3045
        %v3106 = vadd.f32 %v2147, %v3048
        %v3107 = vadd.f32 %v2149, %v3050
        %v3108 = vadd.f32 %v2152, %v3053
        %v3109 = vadd.f32 %v2154, %v3055
        %v3110 = vadd.f32 %v2157, %v3058
        %v3111 = vadd.f32 %v2159, %v3060
        %v3112 = vadd.f32 %v2162, %v3063
        %v3113 = vadd.f32 %v2164, %v3065
        %v3114 = vadd.f32 %v2167, %v3068
        %v3115 = vadd.f32 %v2169, %v3070
        %v3116 = vadd.f32 %v2172, %v3073
        %v3117 = vadd.f32 %v2174, %v3075
        %v3118 = vadd.f32 %v2177, %v3078
        %v3119 = vadd.f32 %v2179, %v3080
        %v3120 = vadd.f32 %v2182, %v3083
        %v3121 = vadd.f32 %v2184, %v3085
        %v3122 = vadd.f32 %v2187, %v3088
        %v3123 = vadd.f32 %v2189, %v3090
        %v3124 = vld [vmem:[#allocation2 + $0x7c] sm:$0x8]
        %v3125 = vld [vmem:[#allocation2 + $0x80] sm:$0xf]
        %v3126 = vld [vmem:[#allocation2 + $0x84] sm:$0xf]
        %v3127 = vld [vmem:[#allocation2 + $0x88] sm:$0xf]
        %v3128 = vld [vmem:[#allocation2 + $0x8c] sm:$0xf]
        %v3129 = vld [vmem:[#allocation2 + $0x90] sm:$0xf]
        %v3130 = vld [vmem:[#allocation2 + $0x94] sm:$0xf]
        %v3131 = vld [vmem:[#allocation2 + $0x98] sm:$0xf]
        %v3132 = vld [vmem:[#allocation2 + $0x9c] sm:$0xf]
        %v3133 = vld [vmem:[#allocation2 + $0xa0] sm:$0xf]
        %v3134 = vld [vmem:[#allocation2 + $0xa4] sm:$0xf]
        %v3135 = vld [vmem:[#allocation2 + $0xa8] sm:$0xf]
        %v3136 = vld [vmem:[#allocation2 + $0xac] sm:$0xf]
        %v3137 = vld [vmem:[#allocation2 + $0xb0] sm:$0xf]
        %v3138 = vld [vmem:[#allocation2 + $0xb4] sm:$0xf]
        %v3139 = vld [vmem:[#allocation2 + $0xb8] sm:$0xf]
        %v3140 = vld [vmem:[#allocation2 + $0xbc] sm:$0xf]
        %v3141 = vld [vmem:[#allocation2 + $0xc0] sm:$0xf]
        %v3142 = vld [vmem:[#allocation2 + $0xc4] sm:$0xf]
        %v3143 = vld [vmem:[#allocation2 + $0xc8] sm:$0xf]
        %v3144 = vld [vmem:[#allocation2 + $0xcc] sm:$0xf]
        %v3145 = vld [vmem:[#allocation2 + $0xd0] sm:$0xf]
        %v3146 = vld [vmem:[#allocation2 + $0xd4] sm:$0xf]
        %v3147 = vld [vmem:[#allocation2 + $0xd8] sm:$0xf]
        %v3148 = vld [vmem:[#allocation2 + $0xdc] sm:$0xf]
        %v3149 = vld [vmem:[#allocation2 + $0xe0] sm:$0xf]
        %v3150 = vld [vmem:[#allocation2 + $0xe4] sm:$0xf]
        %v3151 = vld [vmem:[#allocation2 + $0xe8] sm:$0xf]
        %v3152 = vld [vmem:[#allocation2 + $0xec] sm:$0xf]
        %v3153 = vld [vmem:[#allocation2 + $0xf0] sm:$0xf]
        %v3154 = vld [vmem:[#allocation2 + $0xf4] sm:$0xf]
        %v3155 = vld [vmem:[#allocation2 + $0xf8] sm:$0xf]
        %v3156 = vld [vmem:[#allocation2 + $0xfc] sm:$0xf]
        %s3157 = scalar_lea.vmem %s1, 384
        %v3158 = vld [vmem:[%s3157] sm:$0xf]
        %v3159 = vld [vmem:[%s3157 + $0x4] sm:$0xf]
        %v3160 = vld [vmem:[%s3157 + $0x8] sm:$0xf]
        %v3161 = vld [vmem:[%s3157 + $0xc] sm:$0xf]
        %v3162 = vld [vmem:[%s3157 + $0x10] sm:$0xf]
        %v3163 = vld [vmem:[%s3157 + $0x14] sm:$0xf]
        %v3164 = vld [vmem:[%s3157 + $0x18] sm:$0xf]
        %v3165 = vld [vmem:[%s3157 + $0x1c] sm:$0xf]
        %v3166 = vld [vmem:[%s3157 + $0x20] sm:$0xf]
        %v3167 = vld [vmem:[%s3157 + $0x24] sm:$0xf]
        %v3168 = vld [vmem:[%s3157 + $0x28] sm:$0xf]
        %v3169 = vld [vmem:[%s3157 + $0x2c] sm:$0xf]
        %v3170 = vld [vmem:[%s3157 + $0x30] sm:$0xf]
        %v3171 = vld [vmem:[%s3157 + $0x34] sm:$0xf]
        %v3172 = vld [vmem:[%s3157 + $0x38] sm:$0xf]
        %v3173 = vld [vmem:[%s3157 + $0x3c] sm:$0xf]
        %v3174 = vld [vmem:[%s3157 + $0x40] sm:$0xf]
        %v3175 = vld [vmem:[%s3157 + $0x44] sm:$0xf]
        %v3176 = vld [vmem:[%s3157 + $0x48] sm:$0xf]
        %v3177 = vld [vmem:[%s3157 + $0x4c] sm:$0xf]
        %v3178 = vld [vmem:[%s3157 + $0x50] sm:$0xf]
        %v3179 = vld [vmem:[%s3157 + $0x54] sm:$0xf]
        %v3180 = vld [vmem:[%s3157 + $0x58] sm:$0xf]
        %v3181 = vld [vmem:[%s3157 + $0x5c] sm:$0xf]
        %v3182 = vld [vmem:[%s3157 + $0x60] sm:$0xf]
        %v3183 = vld [vmem:[%s3157 + $0x64] sm:$0xf]
        %v3184 = vld [vmem:[%s3157 + $0x68] sm:$0xf]
        %v3185 = vld [vmem:[%s3157 + $0x6c] sm:$0xf]
        %v3186 = vld [vmem:[%s3157 + $0x70] sm:$0xf]
        %v3187 = vld [vmem:[%s3157 + $0x74] sm:$0xf]
        %v3188 = vld [vmem:[%s3157 + $0x78] sm:$0xf]
        %v3189 = vld [vmem:[%s3157 + $0x7c] sm:$0xf]
        %3191 = vset.pattern.permute.xlu0 0
        %3192 = vperm.xlu0 %3191, %v3158
        %v3193 = vpop.permute.xlu0 %3192
        %v3196 = vunpack.c.l.s4 839922192
        %v3197 = vunpack.c.0.s8 %v3196
        %v3198 = vperm.slane %v3193, %v3197
        %3200 = vset.pattern.permute.xlu0 0
        %3201 = vperm.xlu0 %3200, %v3159
        %v3202 = vpop.permute.xlu0 %3201
        %v3205 = vunpack.c.l.s4 839922192
        %v3206 = vunpack.c.0.s8 %v3205
        %v3207 = vperm.slane %v3202, %v3206
        %3209 = vset.pattern.permute.xlu0 0
        %3210 = vperm.xlu0 %3209, %v3160
        %v3211 = vpop.permute.xlu0 %3210
        %v3214 = vunpack.c.l.s4 839922192
        %v3215 = vunpack.c.0.s8 %v3214
        %v3216 = vperm.slane %v3211, %v3215
        %3218 = vset.pattern.permute.xlu0 0
        %3219 = vperm.xlu0 %3218, %v3161
        %v3220 = vpop.permute.xlu0 %3219
        %v3223 = vunpack.c.l.s4 839922192
        %v3224 = vunpack.c.0.s8 %v3223
        %v3225 = vperm.slane %v3220, %v3224
        %3227 = vset.pattern.permute.xlu0 0
        %3228 = vperm.xlu0 %3227, %v3162
        %v3229 = vpop.permute.xlu0 %3228
        %v3232 = vunpack.c.l.s4 839922192
        %v3233 = vunpack.c.0.s8 %v3232
        %v3234 = vperm.slane %v3229, %v3233
        %3236 = vset.pattern.permute.xlu0 0
        %3237 = vperm.xlu0 %3236, %v3163
        %v3238 = vpop.permute.xlu0 %3237
        %v3241 = vunpack.c.l.s4 839922192
        %v3242 = vunpack.c.0.s8 %v3241
        %v3243 = vperm.slane %v3238, %v3242
        %3245 = vset.pattern.permute.xlu0 0
        %3246 = vperm.xlu0 %3245, %v3164
        %v3247 = vpop.permute.xlu0 %3246
        %v3250 = vunpack.c.l.s4 839922192
        %v3251 = vunpack.c.0.s8 %v3250
        %v3252 = vperm.slane %v3247, %v3251
        %3254 = vset.pattern.permute.xlu0 0
        %3255 = vperm.xlu0 %3254, %v3165
        %v3256 = vpop.permute.xlu0 %3255
        %v3259 = vunpack.c.l.s4 839922192
        %v3260 = vunpack.c.0.s8 %v3259
        %v3261 = vperm.slane %v3256, %v3260
        %3263 = vset.pattern.permute.xlu0 0
        %3264 = vperm.xlu0 %3263, %v3166
        %v3265 = vpop.permute.xlu0 %3264
        %v3268 = vunpack.c.l.s4 839922192
        %v3269 = vunpack.c.0.s8 %v3268
        %v3270 = vperm.slane %v3265, %v3269
        %3272 = vset.pattern.permute.xlu0 0
        %3273 = vperm.xlu0 %3272, %v3167
        %v3274 = vpop.permute.xlu0 %3273
        %v3277 = vunpack.c.l.s4 839922192
        %v3278 = vunpack.c.0.s8 %v3277
        %v3279 = vperm.slane %v3274, %v3278
        %3281 = vset.pattern.permute.xlu0 0
        %3282 = vperm.xlu0 %3281, %v3168
        %v3283 = vpop.permute.xlu0 %3282
        %v3286 = vunpack.c.l.s4 839922192
        %v3287 = vunpack.c.0.s8 %v3286
        %v3288 = vperm.slane %v3283, %v3287
        %3290 = vset.pattern.permute.xlu0 0
        %3291 = vperm.xlu0 %3290, %v3169
        %v3292 = vpop.permute.xlu0 %3291
        %v3295 = vunpack.c.l.s4 839922192
        %v3296 = vunpack.c.0.s8 %v3295
        %v3297 = vperm.slane %v3292, %v3296
        %3299 = vset.pattern.permute.xlu0 0
        %3300 = vperm.xlu0 %3299, %v3170
        %v3301 = vpop.permute.xlu0 %3300
        %v3304 = vunpack.c.l.s4 839922192
        %v3305 = vunpack.c.0.s8 %v3304
        %v3306 = vperm.slane %v3301, %v3305
        %3308 = vset.pattern.permute.xlu0 0
        %3309 = vperm.xlu0 %3308, %v3171
        %v3310 = vpop.permute.xlu0 %3309
        %v3313 = vunpack.c.l.s4 839922192
        %v3314 = vunpack.c.0.s8 %v3313
        %v3315 = vperm.slane %v3310, %v3314
        %3317 = vset.pattern.permute.xlu0 0
        %3318 = vperm.xlu0 %3317, %v3172
        %v3319 = vpop.permute.xlu0 %3318
        %v3322 = vunpack.c.l.s4 839922192
        %v3323 = vunpack.c.0.s8 %v3322
        %v3324 = vperm.slane %v3319, %v3323
        %3326 = vset.pattern.permute.xlu0 0
        %3327 = vperm.xlu0 %3326, %v3173
        %v3328 = vpop.permute.xlu0 %3327
        %v3331 = vunpack.c.l.s4 839922192
        %v3332 = vunpack.c.0.s8 %v3331
        %v3333 = vperm.slane %v3328, %v3332
        %3335 = vset.pattern.permute.xlu0 0
        %3336 = vperm.xlu0 %3335, %v3174
        %v3337 = vpop.permute.xlu0 %3336
        %v3340 = vunpack.c.l.s4 839922192
        %v3341 = vunpack.c.0.s8 %v3340
        %v3342 = vperm.slane %v3337, %v3341
        %3344 = vset.pattern.permute.xlu0 0
        %3345 = vperm.xlu0 %3344, %v3175
        %v3346 = vpop.permute.xlu0 %3345
        %v3349 = vunpack.c.l.s4 839922192
        %v3350 = vunpack.c.0.s8 %v3349
        %v3351 = vperm.slane %v3346, %v3350
        %3353 = vset.pattern.permute.xlu0 0
        %3354 = vperm.xlu0 %3353, %v3176
        %v3355 = vpop.permute.xlu0 %3354
        %v3358 = vunpack.c.l.s4 839922192
        %v3359 = vunpack.c.0.s8 %v3358
        %v3360 = vperm.slane %v3355, %v3359
        %3362 = vset.pattern.permute.xlu0 0
        %3363 = vperm.xlu0 %3362, %v3177
        %v3364 = vpop.permute.xlu0 %3363
        %v3367 = vunpack.c.l.s4 839922192
        %v3368 = vunpack.c.0.s8 %v3367
        %v3369 = vperm.slane %v3364, %v3368
        %3371 = vset.pattern.permute.xlu0 0
        %3372 = vperm.xlu0 %3371, %v3178
        %v3373 = vpop.permute.xlu0 %3372
        %v3376 = vunpack.c.l.s4 839922192
        %v3377 = vunpack.c.0.s8 %v3376
        %v3378 = vperm.slane %v3373, %v3377
        %3380 = vset.pattern.permute.xlu0 0
        %3381 = vperm.xlu0 %3380, %v3179
        %v3382 = vpop.permute.xlu0 %3381
        %v3385 = vunpack.c.l.s4 839922192
        %v3386 = vunpack.c.0.s8 %v3385
        %v3387 = vperm.slane %v3382, %v3386
        %3389 = vset.pattern.permute.xlu0 0
        %3390 = vperm.xlu0 %3389, %v3180
        %v3391 = vpop.permute.xlu0 %3390
        %v3394 = vunpack.c.l.s4 839922192
        %v3395 = vunpack.c.0.s8 %v3394
        %v3396 = vperm.slane %v3391, %v3395
        %3398 = vset.pattern.permute.xlu0 0
        %3399 = vperm.xlu0 %3398, %v3181
        %v3400 = vpop.permute.xlu0 %3399
        %v3403 = vunpack.c.l.s4 839922192
        %v3404 = vunpack.c.0.s8 %v3403
        %v3405 = vperm.slane %v3400, %v3404
        %3407 = vset.pattern.permute.xlu0 0
        %3408 = vperm.xlu0 %3407, %v3182
        %v3409 = vpop.permute.xlu0 %3408
        %v3412 = vunpack.c.l.s4 839922192
        %v3413 = vunpack.c.0.s8 %v3412
        %v3414 = vperm.slane %v3409, %v3413
        %3416 = vset.pattern.permute.xlu0 0
        %3417 = vperm.xlu0 %3416, %v3183
        %v3418 = vpop.permute.xlu0 %3417
        %v3421 = vunpack.c.l.s4 839922192
        %v3422 = vunpack.c.0.s8 %v3421
        %v3423 = vperm.slane %v3418, %v3422
        %3425 = vset.pattern.permute.xlu0 0
        %3426 = vperm.xlu0 %3425, %v3184
        %v3427 = vpop.permute.xlu0 %3426
        %v3430 = vunpack.c.l.s4 839922192
        %v3431 = vunpack.c.0.s8 %v3430
        %v3432 = vperm.slane %v3427, %v3431
        %3434 = vset.pattern.permute.xlu0 0
        %3435 = vperm.xlu0 %3434, %v3185
        %v3436 = vpop.permute.xlu0 %3435
        %v3439 = vunpack.c.l.s4 839922192
        %v3440 = vunpack.c.0.s8 %v3439
        %v3441 = vperm.slane %v3436, %v3440
        %3443 = vset.pattern.permute.xlu0 0
        %3444 = vperm.xlu0 %3443, %v3186
        %v3445 = vpop.permute.xlu0 %3444
        %v3448 = vunpack.c.l.s4 839922192
        %v3449 = vunpack.c.0.s8 %v3448
        %v3450 = vperm.slane %v3445, %v3449
        %3452 = vset.pattern.permute.xlu0 0
        %3453 = vperm.xlu0 %3452, %v3187
        %v3454 = vpop.permute.xlu0 %3453
        %v3457 = vunpack.c.l.s4 839922192
        %v3458 = vunpack.c.0.s8 %v3457
        %v3459 = vperm.slane %v3454, %v3458
        %3461 = vset.pattern.permute.xlu0 0
        %3462 = vperm.xlu0 %3461, %v3188
        %v3463 = vpop.permute.xlu0 %3462
        %v3466 = vunpack.c.l.s4 839922192
        %v3467 = vunpack.c.0.s8 %v3466
        %v3468 = vperm.slane %v3463, %v3467
        %3470 = vset.pattern.permute.xlu0 0
        %3471 = vperm.xlu0 %3470, %v3189
        %v3472 = vpop.permute.xlu0 %3471
        %v3475 = vunpack.c.l.s4 839922192
        %v3476 = vunpack.c.0.s8 %v3475
        %v3477 = vperm.slane %v3472, %v3476
        %v3478 = vunpack.c.l.bf16 %v3124
        %v3479 = vunpack.c.l.bf16 %v3125
        %v3480 = vunpack.c.l.bf16 %v3126
        %v3481 = vunpack.c.l.bf16 %v3127
        %v3482 = vunpack.c.l.bf16 %v3128
        %v3483 = vunpack.c.l.bf16 %v3129
        %v3484 = vunpack.c.l.bf16 %v3130
        %v3485 = vunpack.c.l.bf16 %v3131
        %v3486 = vunpack.c.l.bf16 %v3132
        %v3487 = vunpack.c.l.bf16 %v3133
        %v3488 = vunpack.c.l.bf16 %v3134
        %v3489 = vunpack.c.l.bf16 %v3135
        %v3490 = vunpack.c.l.bf16 %v3136
        %v3491 = vunpack.c.l.bf16 %v3137
        %v3492 = vunpack.c.l.bf16 %v3138
        %v3493 = vunpack.c.l.bf16 %v3139
        %v3494 = vunpack.c.l.bf16 %v3140
        %v3495 = vunpack.c.l.bf16 %v3141
        %v3496 = vunpack.c.l.bf16 %v3142
        %v3497 = vunpack.c.l.bf16 %v3143
        %v3498 = vunpack.c.l.bf16 %v3144
        %v3499 = vunpack.c.l.bf16 %v3145
        %v3500 = vunpack.c.l.bf16 %v3146
        %v3501 = vunpack.c.l.bf16 %v3147
        %v3502 = vunpack.c.l.bf16 %v3148
        %v3503 = vunpack.c.l.bf16 %v3149
        %v3504 = vunpack.c.l.bf16 %v3150
        %v3505 = vunpack.c.l.bf16 %v3151
        %v3506 = vunpack.c.l.bf16 %v3152
        %v3507 = vunpack.c.l.bf16 %v3153
        %v3508 = vunpack.c.l.bf16 %v3154
        %v3509 = vunpack.c.l.bf16 %v3155
        %v3510 = vunpack.c.l.bf16 %v3156
        %v3511 = vunpack.c.l.bf16 %v3198
        %v3512 = vunpack.c.l.bf16 %v3207
        %v3513 = vunpack.c.l.bf16 %v3216
        %v3514 = vunpack.c.l.bf16 %v3225
        %v3515 = vunpack.c.l.bf16 %v3234
        %v3516 = vunpack.c.l.bf16 %v3243
        %v3517 = vunpack.c.l.bf16 %v3252
        %v3518 = vunpack.c.l.bf16 %v3261
        %v3519 = vunpack.c.l.bf16 %v3270
        %v3520 = vunpack.c.l.bf16 %v3279
        %v3521 = vunpack.c.l.bf16 %v3288
        %v3522 = vunpack.c.l.bf16 %v3297
        %v3523 = vunpack.c.l.bf16 %v3306
        %v3524 = vunpack.c.l.bf16 %v3315
        %v3525 = vunpack.c.l.bf16 %v3324
        %v3526 = vunpack.c.l.bf16 %v3333
        %v3527 = vunpack.c.l.bf16 %v3342
        %v3528 = vunpack.c.l.bf16 %v3351
        %v3529 = vunpack.c.l.bf16 %v3360
        %v3530 = vunpack.c.l.bf16 %v3369
        %v3531 = vunpack.c.l.bf16 %v3378
        %v3532 = vunpack.c.l.bf16 %v3387
        %v3533 = vunpack.c.l.bf16 %v3396
        %v3534 = vunpack.c.l.bf16 %v3405
        %v3535 = vunpack.c.l.bf16 %v3414
        %v3536 = vunpack.c.l.bf16 %v3423
        %v3537 = vunpack.c.l.bf16 %v3432
        %v3538 = vunpack.c.l.bf16 %v3441
        %v3539 = vunpack.c.l.bf16 %v3450
        %v3540 = vunpack.c.l.bf16 %v3459
        %v3541 = vunpack.c.l.bf16 %v3468
        %v3542 = vunpack.c.l.bf16 %v3477
        %v3575 = vrot.slane %v3511, 1
        %v3576 = vrot.slane %v3512, 1
        %v3577 = vsel %vm1167, %v3575, %v3576
        %v3578 = vrot.slane %v3513, 1
        %v3579 = vsel %vm1167, %v3576, %v3578
        %v3580 = vrot.slane %v3514, 1
        %v3581 = vsel %vm1167, %v3578, %v3580
        %v3582 = vrot.slane %v3515, 1
        %v3583 = vsel %vm1167, %v3580, %v3582
        %v3584 = vrot.slane %v3516, 1
        %v3585 = vsel %vm1167, %v3582, %v3584
        %v3586 = vrot.slane %v3517, 1
        %v3587 = vsel %vm1167, %v3584, %v3586
        %v3588 = vrot.slane %v3518, 1
        %v3589 = vsel %vm1167, %v3586, %v3588
        %v3590 = vrot.slane %v3519, 1
        %v3591 = vsel %vm1167, %v3588, %v3590
        %v3592 = vrot.slane %v3520, 1
        %v3593 = vsel %vm1167, %v3590, %v3592
        %v3594 = vrot.slane %v3521, 1
        %v3595 = vsel %vm1167, %v3592, %v3594
        %v3596 = vrot.slane %v3522, 1
        %v3597 = vsel %vm1167, %v3594, %v3596
        %v3598 = vrot.slane %v3523, 1
        %v3599 = vsel %vm1167, %v3596, %v3598
        %v3600 = vrot.slane %v3524, 1
        %v3601 = vsel %vm1167, %v3598, %v3600
        %v3602 = vrot.slane %v3525, 1
        %v3603 = vsel %vm1167, %v3600, %v3602
        %v3604 = vrot.slane %v3526, 1
        %v3605 = vsel %vm1167, %v3602, %v3604
        %v3606 = vrot.slane %v3527, 1
        %v3607 = vsel %vm1167, %v3604, %v3606
        %v3608 = vrot.slane %v3528, 1
        %v3609 = vsel %vm1167, %v3606, %v3608
        %v3610 = vrot.slane %v3529, 1
        %v3611 = vsel %vm1167, %v3608, %v3610
        %v3612 = vrot.slane %v3530, 1
        %v3613 = vsel %vm1167, %v3610, %v3612
        %v3614 = vrot.slane %v3531, 1
        %v3615 = vsel %vm1167, %v3612, %v3614
        %v3616 = vrot.slane %v3532, 1
        %v3617 = vsel %vm1167, %v3614, %v3616
        %v3618 = vrot.slane %v3533, 1
        %v3619 = vsel %vm1167, %v3616, %v3618
        %v3620 = vrot.slane %v3534, 1
        %v3621 = vsel %vm1167, %v3618, %v3620
        %v3622 = vrot.slane %v3535, 1
        %v3623 = vsel %vm1167, %v3620, %v3622
        %v3624 = vrot.slane %v3536, 1
        %v3625 = vsel %vm1167, %v3622, %v3624
        %v3626 = vrot.slane %v3537, 1
        %v3627 = vsel %vm1167, %v3624, %v3626
        %v3628 = vrot.slane %v3538, 1
        %v3629 = vsel %vm1167, %v3626, %v3628
        %v3630 = vrot.slane %v3539, 1
        %v3631 = vsel %vm1167, %v3628, %v3630
        %v3632 = vrot.slane %v3540, 1
        %v3633 = vsel %vm1167, %v3630, %v3632
        %v3634 = vrot.slane %v3541, 1
        %v3635 = vsel %vm1167, %v3632, %v3634
        %v3636 = vrot.slane %v3542, 1
        %v3637 = vsel %vm1167, %v3634, %v3636
        %v3671 = vmul.f32 %v3478, %v3575
        %v3672 = vmul.f32 %v3479, %v3577
        %v3673 = vmul.f32 %v3480, %v3579
        %v3674 = vmul.f32 %v3481, %v3581
        %v3675 = vmul.f32 %v3482, %v3583
        %v3676 = vmul.f32 %v3483, %v3585
        %v3677 = vmul.f32 %v3484, %v3587
        %v3678 = vmul.f32 %v3485, %v3589
        %v3679 = vmul.f32 %v3486, %v3591
        %v3680 = vmul.f32 %v3487, %v3593
        %v3681 = vmul.f32 %v3488, %v3595
        %v3682 = vmul.f32 %v3489, %v3597
        %v3683 = vmul.f32 %v3490, %v3599
        %v3684 = vmul.f32 %v3491, %v3601
        %v3685 = vmul.f32 %v3492, %v3603
        %v3686 = vmul.f32 %v3493, %v3605
        %v3687 = vmul.f32 %v3494, %v3607
        %v3688 = vmul.f32 %v3495, %v3609
        %v3689 = vmul.f32 %v3496, %v3611
        %v3690 = vmul.f32 %v3497, %v3613
        %v3691 = vmul.f32 %v3498, %v3615
        %v3692 = vmul.f32 %v3499, %v3617
        %v3693 = vmul.f32 %v3500, %v3619
        %v3694 = vmul.f32 %v3501, %v3621
        %v3695 = vmul.f32 %v3502, %v3623
        %v3696 = vmul.f32 %v3503, %v3625
        %v3697 = vmul.f32 %v3504, %v3627
        %v3698 = vmul.f32 %v3505, %v3629
        %v3699 = vmul.f32 %v3506, %v3631
        %v3700 = vmul.f32 %v3507, %v3633
        %v3701 = vmul.f32 %v3508, %v3635
        %v3702 = vmul.f32 %v3509, %v3637
        %v3703 = vmul.f32 %v3510, %v3636
        %v3704 = vpack.c.bf16 %v3672, %v3671
        %v3705 = vpack.c.bf16 %v3674, %v3673
        %v3706 = vpack.c.bf16 %v3676, %v3675
        %v3707 = vpack.c.bf16 %v3678, %v3677
        %v3708 = vpack.c.bf16 %v3680, %v3679
        %v3709 = vpack.c.bf16 %v3682, %v3681
        %v3710 = vpack.c.bf16 %v3684, %v3683
        %v3711 = vpack.c.bf16 %v3686, %v3685
        %v3712 = vpack.c.bf16 %v3688, %v3687
        %v3713 = vpack.c.bf16 %v3690, %v3689
        %v3714 = vpack.c.bf16 %v3692, %v3691
        %v3715 = vpack.c.bf16 %v3694, %v3693
        %v3716 = vpack.c.bf16 %v3696, %v3695
        %v3717 = vpack.c.bf16 %v3698, %v3697
        %v3718 = vpack.c.bf16 %v3700, %v3699
        %v3719 = vpack.c.bf16 %v3702, %v3701
        %v3720 = vpack.c.bf16 %v3703, %v3703
        %s3721 = scalar_lea.vmem %s4, 192
        %v3722 = vld [vmem:[%s3721] sm:$0xf]
        %v3723 = vld [vmem:[%s3721 + $0x4] sm:$0xf]
        %v3724 = vld [vmem:[%s3721 + $0x8] sm:$0xf]
        %v3725 = vld [vmem:[%s3721 + $0xc] sm:$0xf]
        %v3726 = vld [vmem:[%s3721 + $0x10] sm:$0xf]
        %v3727 = vld [vmem:[%s3721 + $0x14] sm:$0xf]
        %v3728 = vld [vmem:[%s3721 + $0x18] sm:$0xf]
        %v3729 = vld [vmem:[%s3721 + $0x1c] sm:$0xf]
        %v3730 = vld [vmem:[%s3721 + $0x20] sm:$0xf]
        %v3731 = vld [vmem:[%s3721 + $0x24] sm:$0xf]
        %v3732 = vld [vmem:[%s3721 + $0x28] sm:$0xf]
        %v3733 = vld [vmem:[%s3721 + $0x2c] sm:$0xf]
        %v3734 = vld [vmem:[%s3721 + $0x30] sm:$0xf]
        %v3735 = vld [vmem:[%s3721 + $0x34] sm:$0xf]
        %v3736 = vld [vmem:[%s3721 + $0x38] sm:$0xf]
        %v3737 = vld [vmem:[%s3721 + $0x3c] sm:$0xf]
        %v3739 = vshrl.u32 %v3704, 16
        %v3741 = vrot.slane %v3739, 3
        %v3742 = vshll.u32 %v3704, 16
        %v3744 = vrot.slane %v3742, 4
        %v3745 = vor.u32 %v3741, %v3744
        %v3747 = vshrl.u32 %v3705, 16
        %v3749 = vrot.slane %v3747, 3
        %v3750 = vshll.u32 %v3705, 16
        %v3752 = vrot.slane %v3750, 4
        %v3753 = vor.u32 %v3749, %v3752
        %v3754 = vsel %vm1885, %v3745, %v3753
        %v3756 = vshrl.u32 %v3706, 16
        %v3758 = vrot.slane %v3756, 3
        %v3759 = vshll.u32 %v3706, 16
        %v3761 = vrot.slane %v3759, 4
        %v3762 = vor.u32 %v3758, %v3761
        %v3763 = vsel %vm1885, %v3753, %v3762
        %v3765 = vshrl.u32 %v3707, 16
        %v3767 = vrot.slane %v3765, 3
        %v3768 = vshll.u32 %v3707, 16
        %v3770 = vrot.slane %v3768, 4
        %v3771 = vor.u32 %v3767, %v3770
        %v3772 = vsel %vm1885, %v3762, %v3771
        %v3774 = vshrl.u32 %v3708, 16
        %v3776 = vrot.slane %v3774, 3
        %v3777 = vshll.u32 %v3708, 16
        %v3779 = vrot.slane %v3777, 4
        %v3780 = vor.u32 %v3776, %v3779
        %v3781 = vsel %vm1885, %v3771, %v3780
        %v3783 = vshrl.u32 %v3709, 16
        %v3785 = vrot.slane %v3783, 3
        %v3786 = vshll.u32 %v3709, 16
        %v3788 = vrot.slane %v3786, 4
        %v3789 = vor.u32 %v3785, %v3788
        %v3790 = vsel %vm1885, %v3780, %v3789
        %v3792 = vshrl.u32 %v3710, 16
        %v3794 = vrot.slane %v3792, 3
        %v3795 = vshll.u32 %v3710, 16
        %v3797 = vrot.slane %v3795, 4
        %v3798 = vor.u32 %v3794, %v3797
        %v3799 = vsel %vm1885, %v3789, %v3798
        %v3801 = vshrl.u32 %v3711, 16
        %v3803 = vrot.slane %v3801, 3
        %v3804 = vshll.u32 %v3711, 16
        %v3806 = vrot.slane %v3804, 4
        %v3807 = vor.u32 %v3803, %v3806
        %v3808 = vsel %vm1885, %v3798, %v3807
        %v3810 = vshrl.u32 %v3712, 16
        %v3812 = vrot.slane %v3810, 3
        %v3813 = vshll.u32 %v3712, 16
        %v3815 = vrot.slane %v3813, 4
        %v3816 = vor.u32 %v3812, %v3815
        %v3817 = vsel %vm1885, %v3807, %v3816
        %v3819 = vshrl.u32 %v3713, 16
        %v3821 = vrot.slane %v3819, 3
        %v3822 = vshll.u32 %v3713, 16
        %v3824 = vrot.slane %v3822, 4
        %v3825 = vor.u32 %v3821, %v3824
        %v3826 = vsel %vm1885, %v3816, %v3825
        %v3828 = vshrl.u32 %v3714, 16
        %v3830 = vrot.slane %v3828, 3
        %v3831 = vshll.u32 %v3714, 16
        %v3833 = vrot.slane %v3831, 4
        %v3834 = vor.u32 %v3830, %v3833
        %v3835 = vsel %vm1885, %v3825, %v3834
        %v3837 = vshrl.u32 %v3715, 16
        %v3839 = vrot.slane %v3837, 3
        %v3840 = vshll.u32 %v3715, 16
        %v3842 = vrot.slane %v3840, 4
        %v3843 = vor.u32 %v3839, %v3842
        %v3844 = vsel %vm1885, %v3834, %v3843
        %v3846 = vshrl.u32 %v3716, 16
        %v3848 = vrot.slane %v3846, 3
        %v3849 = vshll.u32 %v3716, 16
        %v3851 = vrot.slane %v3849, 4
        %v3852 = vor.u32 %v3848, %v3851
        %v3853 = vsel %vm1885, %v3843, %v3852
        %v3855 = vshrl.u32 %v3717, 16
        %v3857 = vrot.slane %v3855, 3
        %v3858 = vshll.u32 %v3717, 16
        %v3860 = vrot.slane %v3858, 4
        %v3861 = vor.u32 %v3857, %v3860
        %v3862 = vsel %vm1885, %v3852, %v3861
        %v3864 = vshrl.u32 %v3718, 16
        %v3866 = vrot.slane %v3864, 3
        %v3867 = vshll.u32 %v3718, 16
        %v3869 = vrot.slane %v3867, 4
        %v3870 = vor.u32 %v3866, %v3869
        %v3871 = vsel %vm1885, %v3861, %v3870
        %v3873 = vshrl.u32 %v3719, 16
        %v3875 = vrot.slane %v3873, 3
        %v3876 = vshll.u32 %v3719, 16
        %v3878 = vrot.slane %v3876, 4
        %v3879 = vor.u32 %v3875, %v3878
        %v3880 = vsel %vm1885, %v3870, %v3879
        %v3882 = vshrl.u32 %v3720, 16
        %v3884 = vrot.slane %v3882, 3
        %v3885 = vshll.u32 %v3720, 16
        %v3887 = vrot.slane %v3885, 4
        %v3888 = vor.u32 %v3884, %v3887
        %v3889 = vsel %vm1885, %v3879, %v3888
        %v3922 = vunpack.c.l.b16 %v3722
        %v3923 = vunpack.c.l.b16 %v3723
        %v3924 = vunpack.c.l.b16 %v3724
        %v3925 = vunpack.c.l.b16 %v3725
        %v3926 = vunpack.c.l.b16 %v3726
        %v3927 = vunpack.c.l.b16 %v3727
        %v3928 = vunpack.c.l.b16 %v3728
        %v3929 = vunpack.c.l.b16 %v3729
        %v3930 = vunpack.c.l.b16 %v3730
        %v3931 = vunpack.c.l.b16 %v3731
        %v3932 = vunpack.c.l.b16 %v3732
        %v3933 = vunpack.c.l.b16 %v3733
        %v3934 = vunpack.c.l.b16 %v3734
        %v3935 = vunpack.c.l.b16 %v3735
        %v3936 = vunpack.c.l.b16 %v3736
        %v3937 = vunpack.c.l.b16 %v3737
        %v3938 = vpack.c.b16 %v3923, %v3922
        %v3939 = vpack.c.b16 %v3925, %v3924
        %v3940 = vpack.c.b16 %v3927, %v3926
        %v3941 = vpack.c.b16 %v3929, %v3928
        %v3942 = vpack.c.b16 %v3931, %v3930
        %v3943 = vpack.c.b16 %v3933, %v3932
        %v3944 = vpack.c.b16 %v3935, %v3934
        %v3945 = vpack.c.b16 %v3937, %v3936
        %3954 = vmatpush.bf16.msra.mxu0 %v3945
        %3955 = vmatpush.bf16.msra.mxu0 %v3944
        %3956 = vmatpush.bf16.msra.mxu0 %v3943
        %3957 = vmatpush.bf16.msra.mxu0 %v3942
        %3958 = vmatpush.bf16.msra.mxu0 %v3941
        %3959 = vmatpush.bf16.msra.mxu0 %v3940
        %3960 = vmatpush.bf16.msra.mxu0 %v3939
        %3961 = vmatpush.bf16.msra.mxu0 %v3938
        %3962 = vmatmul.bf16.gmra.mxu0 %v3754
        %v3963 = vpop.f32.mrf.mxu0
        %v3964 = vadd.f32 0.0, %v3963
        %v3965 = vpop.f32.mrf.mxu0
        %v3966 = vadd.f32 0.0, %v3965
        %3967 = vmatmul.bf16.gmra.mxu0 %v3763
        %v3968 = vpop.f32.mrf.mxu0
        %v3969 = vadd.f32 0.0, %v3968
        %v3970 = vpop.f32.mrf.mxu0
        %v3971 = vadd.f32 0.0, %v3970
        %3972 = vmatmul.bf16.gmra.mxu0 %v3772
        %v3973 = vpop.f32.mrf.mxu0
        %v3974 = vadd.f32 0.0, %v3973
        %v3975 = vpop.f32.mrf.mxu0
        %v3976 = vadd.f32 0.0, %v3975
        %3977 = vmatmul.bf16.gmra.mxu0 %v3781
        %v3978 = vpop.f32.mrf.mxu0
        %v3979 = vadd.f32 0.0, %v3978
        %v3980 = vpop.f32.mrf.mxu0
        %v3981 = vadd.f32 0.0, %v3980
        %3982 = vmatmul.bf16.gmra.mxu0 %v3790
        %v3983 = vpop.f32.mrf.mxu0
        %v3984 = vadd.f32 0.0, %v3983
        %v3985 = vpop.f32.mrf.mxu0
        %v3986 = vadd.f32 0.0, %v3985
        %3987 = vmatmul.bf16.gmra.mxu0 %v3799
        %v3988 = vpop.f32.mrf.mxu0
        %v3989 = vadd.f32 0.0, %v3988
        %v3990 = vpop.f32.mrf.mxu0
        %v3991 = vadd.f32 0.0, %v3990
        %3992 = vmatmul.bf16.gmra.mxu0 %v3808
        %v3993 = vpop.f32.mrf.mxu0
        %v3994 = vadd.f32 0.0, %v3993
        %v3995 = vpop.f32.mrf.mxu0
        %v3996 = vadd.f32 0.0, %v3995
        %3997 = vmatmul.bf16.gmra.mxu0 %v3817
        %v3998 = vpop.f32.mrf.mxu0
        %v3999 = vadd.f32 0.0, %v3998
        %v4000 = vpop.f32.mrf.mxu0
        %v4001 = vadd.f32 0.0, %v4000
        %4002 = vmatmul.bf16.gmra.mxu0 %v3826
        %v4003 = vpop.f32.mrf.mxu0
        %v4004 = vadd.f32 0.0, %v4003
        %v4005 = vpop.f32.mrf.mxu0
        %v4006 = vadd.f32 0.0, %v4005
        %4007 = vmatmul.bf16.gmra.mxu0 %v3835
        %v4008 = vpop.f32.mrf.mxu0
        %v4009 = vadd.f32 0.0, %v4008
        %v4010 = vpop.f32.mrf.mxu0
        %v4011 = vadd.f32 0.0, %v4010
        %4012 = vmatmul.bf16.gmra.mxu0 %v3844
        %v4013 = vpop.f32.mrf.mxu0
        %v4014 = vadd.f32 0.0, %v4013
        %v4015 = vpop.f32.mrf.mxu0
        %v4016 = vadd.f32 0.0, %v4015
        %4017 = vmatmul.bf16.gmra.mxu0 %v3853
        %v4018 = vpop.f32.mrf.mxu0
        %v4019 = vadd.f32 0.0, %v4018
        %v4020 = vpop.f32.mrf.mxu0
        %v4021 = vadd.f32 0.0, %v4020
        %4022 = vmatmul.bf16.gmra.mxu0 %v3862
        %v4023 = vpop.f32.mrf.mxu0
        %v4024 = vadd.f32 0.0, %v4023
        %v4025 = vpop.f32.mrf.mxu0
        %v4026 = vadd.f32 0.0, %v4025
        %4027 = vmatmul.bf16.gmra.mxu0 %v3871
        %v4028 = vpop.f32.mrf.mxu0
        %v4029 = vadd.f32 0.0, %v4028
        %v4030 = vpop.f32.mrf.mxu0
        %v4031 = vadd.f32 0.0, %v4030
        %4032 = vmatmul.bf16.gmra.mxu0 %v3880
        %v4033 = vpop.f32.mrf.mxu0
        %v4034 = vadd.f32 0.0, %v4033
        %v4035 = vpop.f32.mrf.mxu0
        %v4036 = vadd.f32 0.0, %v4035
        %4037 = vmatmul.bf16.gmra.mxu0 %v3889
        %v4038 = vpop.f32.mrf.mxu0
        %v4039 = vadd.f32 0.0, %v4038
        %v4040 = vpop.f32.mrf.mxu0
        %v4041 = vadd.f32 0.0, %v4040
        %4042 = vdwg.mxu0
        %v4043 = vadd.f32 %v3092, %v3964
        %v4044 = vadd.f32 %v3093, %v3966
        %v4045 = vadd.f32 %v3094, %v3969
        %v4046 = vadd.f32 %v3095, %v3971
        %v4047 = vadd.f32 %v3096, %v3974
        %v4048 = vadd.f32 %v3097, %v3976
        %v4049 = vadd.f32 %v3098, %v3979
        %v4050 = vadd.f32 %v3099, %v3981
        %v4051 = vadd.f32 %v3100, %v3984
        %v4052 = vadd.f32 %v3101, %v3986
        %v4053 = vadd.f32 %v3102, %v3989
        %v4054 = vadd.f32 %v3103, %v3991
        %v4055 = vadd.f32 %v3104, %v3994
        %v4056 = vadd.f32 %v3105, %v3996
        %v4057 = vadd.f32 %v3106, %v3999
        %v4058 = vadd.f32 %v3107, %v4001
        %v4059 = vadd.f32 %v3108, %v4004
        %v4060 = vadd.f32 %v3109, %v4006
        %v4061 = vadd.f32 %v3110, %v4009
        %v4062 = vadd.f32 %v3111, %v4011
        %v4063 = vadd.f32 %v3112, %v4014
        %v4064 = vadd.f32 %v3113, %v4016
        %v4065 = vadd.f32 %v3114, %v4019
        %v4066 = vadd.f32 %v3115, %v4021
        %v4067 = vadd.f32 %v3116, %v4024
        %v4068 = vadd.f32 %v3117, %v4026
        %v4069 = vadd.f32 %v3118, %v4029
        %v4070 = vadd.f32 %v3119, %v4031
        %v4071 = vadd.f32 %v3120, %v4034
        %v4072 = vadd.f32 %v3121, %v4036
        %v4073 = vadd.f32 %v3122, %v4039
        %v4074 = vadd.f32 %v3123, %v4041
        %v4075 = vld [vmem:[#allocation2] sm:$0xf]
        %v4076 = vld [vmem:[#allocation2 + $0x4] sm:$0xf]
        %v4077 = vld [vmem:[#allocation2 + $0x8] sm:$0xf]
        %v4078 = vld [vmem:[#allocation2 + $0xc] sm:$0xf]
        %v4079 = vld [vmem:[#allocation2 + $0x10] sm:$0xf]
        %v4080 = vld [vmem:[#allocation2 + $0x14] sm:$0xf]
        %v4081 = vld [vmem:[#allocation2 + $0x18] sm:$0xf]
        %v4082 = vld [vmem:[#allocation2 + $0x1c] sm:$0xf]
        %v4083 = vld [vmem:[#allocation2 + $0x20] sm:$0xf]
        %v4084 = vld [vmem:[#allocation2 + $0x24] sm:$0xf]
        %v4085 = vld [vmem:[#allocation2 + $0x28] sm:$0xf]
        %v4086 = vld [vmem:[#allocation2 + $0x2c] sm:$0xf]
        %v4087 = vld [vmem:[#allocation2 + $0x30] sm:$0xf]
        %v4088 = vld [vmem:[#allocation2 + $0x34] sm:$0xf]
        %v4089 = vld [vmem:[#allocation2 + $0x38] sm:$0xf]
        %v4090 = vld [vmem:[#allocation2 + $0x3c] sm:$0xf]
        %v4091 = vld [vmem:[#allocation2 + $0x40] sm:$0xf]
        %v4092 = vld [vmem:[#allocation2 + $0x44] sm:$0xf]
        %v4093 = vld [vmem:[#allocation2 + $0x48] sm:$0xf]
        %v4094 = vld [vmem:[#allocation2 + $0x4c] sm:$0xf]
        %v4095 = vld [vmem:[#allocation2 + $0x50] sm:$0xf]
        %v4096 = vld [vmem:[#allocation2 + $0x54] sm:$0xf]
        %v4097 = vld [vmem:[#allocation2 + $0x58] sm:$0xf]
        %v4098 = vld [vmem:[#allocation2 + $0x5c] sm:$0xf]
        %v4099 = vld [vmem:[#allocation2 + $0x60] sm:$0xf]
        %v4100 = vld [vmem:[#allocation2 + $0x64] sm:$0xf]
        %v4101 = vld [vmem:[#allocation2 + $0x68] sm:$0xf]
        %v4102 = vld [vmem:[#allocation2 + $0x6c] sm:$0xf]
        %v4103 = vld [vmem:[#allocation2 + $0x70] sm:$0xf]
        %v4104 = vld [vmem:[#allocation2 + $0x74] sm:$0xf]
        %v4105 = vld [vmem:[#allocation2 + $0x78] sm:$0xf]
        %v4106 = vld [vmem:[#allocation2 + $0x7c] sm:$0xf]
        %s4107 = scalar_lea.vmem %s1, 512
        %v4108 = vld [vmem:[%s4107] sm:$0xf]
        %v4109 = vld [vmem:[%s4107 + $0x4] sm:$0xf]
        %v4110 = vld [vmem:[%s4107 + $0x8] sm:$0xf]
        %v4111 = vld [vmem:[%s4107 + $0xc] sm:$0xf]
        %v4112 = vld [vmem:[%s4107 + $0x10] sm:$0xf]
        %v4113 = vld [vmem:[%s4107 + $0x14] sm:$0xf]
        %v4114 = vld [vmem:[%s4107 + $0x18] sm:$0xf]
        %v4115 = vld [vmem:[%s4107 + $0x1c] sm:$0xf]
        %v4116 = vld [vmem:[%s4107 + $0x20] sm:$0xf]
        %v4117 = vld [vmem:[%s4107 + $0x24] sm:$0xf]
        %v4118 = vld [vmem:[%s4107 + $0x28] sm:$0xf]
        %v4119 = vld [vmem:[%s4107 + $0x2c] sm:$0xf]
        %v4120 = vld [vmem:[%s4107 + $0x30] sm:$0xf]
        %v4121 = vld [vmem:[%s4107 + $0x34] sm:$0xf]
        %v4122 = vld [vmem:[%s4107 + $0x38] sm:$0xf]
        %v4123 = vld [vmem:[%s4107 + $0x3c] sm:$0xf]
        %v4124 = vld [vmem:[%s4107 + $0x40] sm:$0xf]
        %v4125 = vld [vmem:[%s4107 + $0x44] sm:$0xf]
        %v4126 = vld [vmem:[%s4107 + $0x48] sm:$0xf]
        %v4127 = vld [vmem:[%s4107 + $0x4c] sm:$0xf]
        %v4128 = vld [vmem:[%s4107 + $0x50] sm:$0xf]
        %v4129 = vld [vmem:[%s4107 + $0x54] sm:$0xf]
        %v4130 = vld [vmem:[%s4107 + $0x58] sm:$0xf]
        %v4131 = vld [vmem:[%s4107 + $0x5c] sm:$0xf]
        %v4132 = vld [vmem:[%s4107 + $0x60] sm:$0xf]
        %v4133 = vld [vmem:[%s4107 + $0x64] sm:$0xf]
        %v4134 = vld [vmem:[%s4107 + $0x68] sm:$0xf]
        %v4135 = vld [vmem:[%s4107 + $0x6c] sm:$0xf]
        %v4136 = vld [vmem:[%s4107 + $0x70] sm:$0xf]
        %v4137 = vld [vmem:[%s4107 + $0x74] sm:$0xf]
        %v4138 = vld [vmem:[%s4107 + $0x78] sm:$0xf]
        %v4139 = vld [vmem:[%s4107 + $0x7c] sm:$0xf]
        %4141 = vset.pattern.permute.xlu0 0
        %4142 = vperm.xlu0 %4141, %v4108
        %v4143 = vpop.permute.xlu0 %4142
        %v4146 = vunpack.c.l.s4 839922192
        %v4147 = vunpack.c.0.s8 %v4146
        %v4148 = vperm.slane %v4143, %v4147
        %4150 = vset.pattern.permute.xlu0 0
        %4151 = vperm.xlu0 %4150, %v4109
        %v4152 = vpop.permute.xlu0 %4151
        %v4155 = vunpack.c.l.s4 839922192
        %v4156 = vunpack.c.0.s8 %v4155
        %v4157 = vperm.slane %v4152, %v4156
        %4159 = vset.pattern.permute.xlu0 0
        %4160 = vperm.xlu0 %4159, %v4110
        %v4161 = vpop.permute.xlu0 %4160
        %v4164 = vunpack.c.l.s4 839922192
        %v4165 = vunpack.c.0.s8 %v4164
        %v4166 = vperm.slane %v4161, %v4165
        %4168 = vset.pattern.permute.xlu0 0
        %4169 = vperm.xlu0 %4168, %v4111
        %v4170 = vpop.permute.xlu0 %4169
        %v4173 = vunpack.c.l.s4 839922192
        %v4174 = vunpack.c.0.s8 %v4173
        %v4175 = vperm.slane %v4170, %v4174
        %4177 = vset.pattern.permute.xlu0 0
        %4178 = vperm.xlu0 %4177, %v4112
        %v4179 = vpop.permute.xlu0 %4178
        %v4182 = vunpack.c.l.s4 839922192
        %v4183 = vunpack.c.0.s8 %v4182
        %v4184 = vperm.slane %v4179, %v4183
        %4186 = vset.pattern.permute.xlu0 0
        %4187 = vperm.xlu0 %4186, %v4113
        %v4188 = vpop.permute.xlu0 %4187
        %v4191 = vunpack.c.l.s4 839922192
        %v4192 = vunpack.c.0.s8 %v4191
        %v4193 = vperm.slane %v4188, %v4192
        %4195 = vset.pattern.permute.xlu0 0
        %4196 = vperm.xlu0 %4195, %v4114
        %v4197 = vpop.permute.xlu0 %4196
        %v4200 = vunpack.c.l.s4 839922192
        %v4201 = vunpack.c.0.s8 %v4200
        %v4202 = vperm.slane %v4197, %v4201
        %4204 = vset.pattern.permute.xlu0 0
        %4205 = vperm.xlu0 %4204, %v4115
        %v4206 = vpop.permute.xlu0 %4205
        %v4209 = vunpack.c.l.s4 839922192
        %v4210 = vunpack.c.0.s8 %v4209
        %v4211 = vperm.slane %v4206, %v4210
        %4213 = vset.pattern.permute.xlu0 0
        %4214 = vperm.xlu0 %4213, %v4116
        %v4215 = vpop.permute.xlu0 %4214
        %v4218 = vunpack.c.l.s4 839922192
        %v4219 = vunpack.c.0.s8 %v4218
        %v4220 = vperm.slane %v4215, %v4219
        %4222 = vset.pattern.permute.xlu0 0
        %4223 = vperm.xlu0 %4222, %v4117
        %v4224 = vpop.permute.xlu0 %4223
        %v4227 = vunpack.c.l.s4 839922192
        %v4228 = vunpack.c.0.s8 %v4227
        %v4229 = vperm.slane %v4224, %v4228
        %4231 = vset.pattern.permute.xlu0 0
        %4232 = vperm.xlu0 %4231, %v4118
        %v4233 = vpop.permute.xlu0 %4232
        %v4236 = vunpack.c.l.s4 839922192
        %v4237 = vunpack.c.0.s8 %v4236
        %v4238 = vperm.slane %v4233, %v4237
        %4240 = vset.pattern.permute.xlu0 0
        %4241 = vperm.xlu0 %4240, %v4119
        %v4242 = vpop.permute.xlu0 %4241
        %v4245 = vunpack.c.l.s4 839922192
        %v4246 = vunpack.c.0.s8 %v4245
        %v4247 = vperm.slane %v4242, %v4246
        %4249 = vset.pattern.permute.xlu0 0
        %4250 = vperm.xlu0 %4249, %v4120
        %v4251 = vpop.permute.xlu0 %4250
        %v4254 = vunpack.c.l.s4 839922192
        %v4255 = vunpack.c.0.s8 %v4254
        %v4256 = vperm.slane %v4251, %v4255
        %4258 = vset.pattern.permute.xlu0 0
        %4259 = vperm.xlu0 %4258, %v4121
        %v4260 = vpop.permute.xlu0 %4259
        %v4263 = vunpack.c.l.s4 839922192
        %v4264 = vunpack.c.0.s8 %v4263
        %v4265 = vperm.slane %v4260, %v4264
        %4267 = vset.pattern.permute.xlu0 0
        %4268 = vperm.xlu0 %4267, %v4122
        %v4269 = vpop.permute.xlu0 %4268
        %v4272 = vunpack.c.l.s4 839922192
        %v4273 = vunpack.c.0.s8 %v4272
        %v4274 = vperm.slane %v4269, %v4273
        %4276 = vset.pattern.permute.xlu0 0
        %4277 = vperm.xlu0 %4276, %v4123
        %v4278 = vpop.permute.xlu0 %4277
        %v4281 = vunpack.c.l.s4 839922192
        %v4282 = vunpack.c.0.s8 %v4281
        %v4283 = vperm.slane %v4278, %v4282
        %4285 = vset.pattern.permute.xlu0 0
        %4286 = vperm.xlu0 %4285, %v4124
        %v4287 = vpop.permute.xlu0 %4286
        %v4290 = vunpack.c.l.s4 839922192
        %v4291 = vunpack.c.0.s8 %v4290
        %v4292 = vperm.slane %v4287, %v4291
        %4294 = vset.pattern.permute.xlu0 0
        %4295 = vperm.xlu0 %4294, %v4125
        %v4296 = vpop.permute.xlu0 %4295
        %v4299 = vunpack.c.l.s4 839922192
        %v4300 = vunpack.c.0.s8 %v4299
        %v4301 = vperm.slane %v4296, %v4300
        %4303 = vset.pattern.permute.xlu0 0
        %4304 = vperm.xlu0 %4303, %v4126
        %v4305 = vpop.permute.xlu0 %4304
        %v4308 = vunpack.c.l.s4 839922192
        %v4309 = vunpack.c.0.s8 %v4308
        %v4310 = vperm.slane %v4305, %v4309
        %4312 = vset.pattern.permute.xlu0 0
        %4313 = vperm.xlu0 %4312, %v4127
        %v4314 = vpop.permute.xlu0 %4313
        %v4317 = vunpack.c.l.s4 839922192
        %v4318 = vunpack.c.0.s8 %v4317
        %v4319 = vperm.slane %v4314, %v4318
        %4321 = vset.pattern.permute.xlu0 0
        %4322 = vperm.xlu0 %4321, %v4128
        %v4323 = vpop.permute.xlu0 %4322
        %v4326 = vunpack.c.l.s4 839922192
        %v4327 = vunpack.c.0.s8 %v4326
        %v4328 = vperm.slane %v4323, %v4327
        %4330 = vset.pattern.permute.xlu0 0
        %4331 = vperm.xlu0 %4330, %v4129
        %v4332 = vpop.permute.xlu0 %4331
        %v4335 = vunpack.c.l.s4 839922192
        %v4336 = vunpack.c.0.s8 %v4335
        %v4337 = vperm.slane %v4332, %v4336
        %4339 = vset.pattern.permute.xlu0 0
        %4340 = vperm.xlu0 %4339, %v4130
        %v4341 = vpop.permute.xlu0 %4340
        %v4344 = vunpack.c.l.s4 839922192
        %v4345 = vunpack.c.0.s8 %v4344
        %v4346 = vperm.slane %v4341, %v4345
        %4348 = vset.pattern.permute.xlu0 0
        %4349 = vperm.xlu0 %4348, %v4131
        %v4350 = vpop.permute.xlu0 %4349
        %v4353 = vunpack.c.l.s4 839922192
        %v4354 = vunpack.c.0.s8 %v4353
        %v4355 = vperm.slane %v4350, %v4354
        %4357 = vset.pattern.permute.xlu0 0
        %4358 = vperm.xlu0 %4357, %v4132
        %v4359 = vpop.permute.xlu0 %4358
        %v4362 = vunpack.c.l.s4 839922192
        %v4363 = vunpack.c.0.s8 %v4362
        %v4364 = vperm.slane %v4359, %v4363
        %4366 = vset.pattern.permute.xlu0 0
        %4367 = vperm.xlu0 %4366, %v4133
        %v4368 = vpop.permute.xlu0 %4367
        %v4371 = vunpack.c.l.s4 839922192
        %v4372 = vunpack.c.0.s8 %v4371
        %v4373 = vperm.slane %v4368, %v4372
        %4375 = vset.pattern.permute.xlu0 0
        %4376 = vperm.xlu0 %4375, %v4134
        %v4377 = vpop.permute.xlu0 %4376
        %v4380 = vunpack.c.l.s4 839922192
        %v4381 = vunpack.c.0.s8 %v4380
        %v4382 = vperm.slane %v4377, %v4381
        %4384 = vset.pattern.permute.xlu0 0
        %4385 = vperm.xlu0 %4384, %v4135
        %v4386 = vpop.permute.xlu0 %4385
        %v4389 = vunpack.c.l.s4 839922192
        %v4390 = vunpack.c.0.s8 %v4389
        %v4391 = vperm.slane %v4386, %v4390
        %4393 = vset.pattern.permute.xlu0 0
        %4394 = vperm.xlu0 %4393, %v4136
        %v4395 = vpop.permute.xlu0 %4394
        %v4398 = vunpack.c.l.s4 839922192
        %v4399 = vunpack.c.0.s8 %v4398
        %v4400 = vperm.slane %v4395, %v4399
        %4402 = vset.pattern.permute.xlu0 0
        %4403 = vperm.xlu0 %4402, %v4137
        %v4404 = vpop.permute.xlu0 %4403
        %v4407 = vunpack.c.l.s4 839922192
        %v4408 = vunpack.c.0.s8 %v4407
        %v4409 = vperm.slane %v4404, %v4408
        %4411 = vset.pattern.permute.xlu0 0
        %4412 = vperm.xlu0 %4411, %v4138
        %v4413 = vpop.permute.xlu0 %4412
        %v4416 = vunpack.c.l.s4 839922192
        %v4417 = vunpack.c.0.s8 %v4416
        %v4418 = vperm.slane %v4413, %v4417
        %4420 = vset.pattern.permute.xlu0 0
        %4421 = vperm.xlu0 %4420, %v4139
        %v4422 = vpop.permute.xlu0 %4421
        %v4425 = vunpack.c.l.s4 839922192
        %v4426 = vunpack.c.0.s8 %v4425
        %v4427 = vperm.slane %v4422, %v4426
        %v4428 = vunpack.c.l.bf16 %v4075
        %v4429 = vunpack.c.l.bf16 %v4076
        %v4430 = vunpack.c.l.bf16 %v4077
        %v4431 = vunpack.c.l.bf16 %v4078
        %v4432 = vunpack.c.l.bf16 %v4079
        %v4433 = vunpack.c.l.bf16 %v4080
        %v4434 = vunpack.c.l.bf16 %v4081
        %v4435 = vunpack.c.l.bf16 %v4082
        %v4436 = vunpack.c.l.bf16 %v4083
        %v4437 = vunpack.c.l.bf16 %v4084
        %v4438 = vunpack.c.l.bf16 %v4085
        %v4439 = vunpack.c.l.bf16 %v4086
        %v4440 = vunpack.c.l.bf16 %v4087
        %v4441 = vunpack.c.l.bf16 %v4088
        %v4442 = vunpack.c.l.bf16 %v4089
        %v4443 = vunpack.c.l.bf16 %v4090
        %v4444 = vunpack.c.l.bf16 %v4091
        %v4445 = vunpack.c.l.bf16 %v4092
        %v4446 = vunpack.c.l.bf16 %v4093
        %v4447 = vunpack.c.l.bf16 %v4094
        %v4448 = vunpack.c.l.bf16 %v4095
        %v4449 = vunpack.c.l.bf16 %v4096
        %v4450 = vunpack.c.l.bf16 %v4097
        %v4451 = vunpack.c.l.bf16 %v4098
        %v4452 = vunpack.c.l.bf16 %v4099
        %v4453 = vunpack.c.l.bf16 %v4100
        %v4454 = vunpack.c.l.bf16 %v4101
        %v4455 = vunpack.c.l.bf16 %v4102
        %v4456 = vunpack.c.l.bf16 %v4103
        %v4457 = vunpack.c.l.bf16 %v4104
        %v4458 = vunpack.c.l.bf16 %v4105
        %v4459 = vunpack.c.l.bf16 %v4106
        %v4460 = vunpack.c.l.bf16 %v4148
        %v4461 = vunpack.c.l.bf16 %v4157
        %v4462 = vunpack.c.l.bf16 %v4166
        %v4463 = vunpack.c.l.bf16 %v4175
        %v4464 = vunpack.c.l.bf16 %v4184
        %v4465 = vunpack.c.l.bf16 %v4193
        %v4466 = vunpack.c.l.bf16 %v4202
        %v4467 = vunpack.c.l.bf16 %v4211
        %v4468 = vunpack.c.l.bf16 %v4220
        %v4469 = vunpack.c.l.bf16 %v4229
        %v4470 = vunpack.c.l.bf16 %v4238
        %v4471 = vunpack.c.l.bf16 %v4247
        %v4472 = vunpack.c.l.bf16 %v4256
        %v4473 = vunpack.c.l.bf16 %v4265
        %v4474 = vunpack.c.l.bf16 %v4274
        %v4475 = vunpack.c.l.bf16 %v4283
        %v4476 = vunpack.c.l.bf16 %v4292
        %v4477 = vunpack.c.l.bf16 %v4301
        %v4478 = vunpack.c.l.bf16 %v4310
        %v4479 = vunpack.c.l.bf16 %v4319
        %v4480 = vunpack.c.l.bf16 %v4328
        %v4481 = vunpack.c.l.bf16 %v4337
        %v4482 = vunpack.c.l.bf16 %v4346
        %v4483 = vunpack.c.l.bf16 %v4355
        %v4484 = vunpack.c.l.bf16 %v4364
        %v4485 = vunpack.c.l.bf16 %v4373
        %v4486 = vunpack.c.l.bf16 %v4382
        %v4487 = vunpack.c.l.bf16 %v4391
        %v4488 = vunpack.c.l.bf16 %v4400
        %v4489 = vunpack.c.l.bf16 %v4409
        %v4490 = vunpack.c.l.bf16 %v4418
        %v4491 = vunpack.c.l.bf16 %v4427
        %v4492 = vmul.f32 %v4428, %v4460
        %v4493 = vmul.f32 %v4429, %v4461
        %v4494 = vmul.f32 %v4430, %v4462
        %v4495 = vmul.f32 %v4431, %v4463
        %v4496 = vmul.f32 %v4432, %v4464
        %v4497 = vmul.f32 %v4433, %v4465
        %v4498 = vmul.f32 %v4434, %v4466
        %v4499 = vmul.f32 %v4435, %v4467
        %v4500 = vmul.f32 %v4436, %v4468
        %v4501 = vmul.f32 %v4437, %v4469
        %v4502 = vmul.f32 %v4438, %v4470
        %v4503 = vmul.f32 %v4439, %v4471
        %v4504 = vmul.f32 %v4440, %v4472
        %v4505 = vmul.f32 %v4441, %v4473
        %v4506 = vmul.f32 %v4442, %v4474
        %v4507 = vmul.f32 %v4443, %v4475
        %v4508 = vmul.f32 %v4444, %v4476
        %v4509 = vmul.f32 %v4445, %v4477
        %v4510 = vmul.f32 %v4446, %v4478
        %v4511 = vmul.f32 %v4447, %v4479
        %v4512 = vmul.f32 %v4448, %v4480
        %v4513 = vmul.f32 %v4449, %v4481
        %v4514 = vmul.f32 %v4450, %v4482
        %v4515 = vmul.f32 %v4451, %v4483
        %v4516 = vmul.f32 %v4452, %v4484
        %v4517 = vmul.f32 %v4453, %v4485
        %v4518 = vmul.f32 %v4454, %v4486
        %v4519 = vmul.f32 %v4455, %v4487
        %v4520 = vmul.f32 %v4456, %v4488
        %v4521 = vmul.f32 %v4457, %v4489
        %v4522 = vmul.f32 %v4458, %v4490
        %v4523 = vmul.f32 %v4459, %v4491
        %v4524 = vpack.c.bf16 %v4493, %v4492
        %v4525 = vpack.c.bf16 %v4495, %v4494
        %v4526 = vpack.c.bf16 %v4497, %v4496
        %v4527 = vpack.c.bf16 %v4499, %v4498
        %v4528 = vpack.c.bf16 %v4501, %v4500
        %v4529 = vpack.c.bf16 %v4503, %v4502
        %v4530 = vpack.c.bf16 %v4505, %v4504
        %v4531 = vpack.c.bf16 %v4507, %v4506
        %v4532 = vpack.c.bf16 %v4509, %v4508
        %v4533 = vpack.c.bf16 %v4511, %v4510
        %v4534 = vpack.c.bf16 %v4513, %v4512
        %v4535 = vpack.c.bf16 %v4515, %v4514
        %v4536 = vpack.c.bf16 %v4517, %v4516
        %v4537 = vpack.c.bf16 %v4519, %v4518
        %v4538 = vpack.c.bf16 %v4521, %v4520
        %v4539 = vpack.c.bf16 %v4523, %v4522
        %s4540 = scalar_lea.vmem %s4, 256
        %v4541 = vld [vmem:[%s4540] sm:$0xf]
        %v4542 = vld [vmem:[%s4540 + $0x4] sm:$0xf]
        %v4543 = vld [vmem:[%s4540 + $0x8] sm:$0xf]
        %v4544 = vld [vmem:[%s4540 + $0xc] sm:$0xf]
        %v4545 = vld [vmem:[%s4540 + $0x10] sm:$0xf]
        %v4546 = vld [vmem:[%s4540 + $0x14] sm:$0xf]
        %v4547 = vld [vmem:[%s4540 + $0x18] sm:$0xf]
        %v4548 = vld [vmem:[%s4540 + $0x1c] sm:$0xf]
        %v4549 = vld [vmem:[%s4540 + $0x20] sm:$0xf]
        %v4550 = vld [vmem:[%s4540 + $0x24] sm:$0xf]
        %v4551 = vld [vmem:[%s4540 + $0x28] sm:$0xf]
        %v4552 = vld [vmem:[%s4540 + $0x2c] sm:$0xf]
        %v4553 = vld [vmem:[%s4540 + $0x30] sm:$0xf]
        %v4554 = vld [vmem:[%s4540 + $0x34] sm:$0xf]
        %v4555 = vld [vmem:[%s4540 + $0x38] sm:$0xf]
        %v4556 = vld [vmem:[%s4540 + $0x3c] sm:$0xf]
        %v4573 = vunpack.c.l.b16 %v4541
        %v4574 = vunpack.c.l.b16 %v4542
        %v4575 = vunpack.c.l.b16 %v4543
        %v4576 = vunpack.c.l.b16 %v4544
        %v4577 = vunpack.c.l.b16 %v4545
        %v4578 = vunpack.c.l.b16 %v4546
        %v4579 = vunpack.c.l.b16 %v4547
        %v4580 = vunpack.c.l.b16 %v4548
        %v4581 = vunpack.c.l.b16 %v4549
        %v4582 = vunpack.c.l.b16 %v4550
        %v4583 = vunpack.c.l.b16 %v4551
        %v4584 = vunpack.c.l.b16 %v4552
        %v4585 = vunpack.c.l.b16 %v4553
        %v4586 = vunpack.c.l.b16 %v4554
        %v4587 = vunpack.c.l.b16 %v4555
        %v4588 = vunpack.c.l.b16 %v4556
        %v4589 = vpack.c.b16 %v4574, %v4573
        %v4590 = vpack.c.b16 %v4576, %v4575
        %v4591 = vpack.c.b16 %v4578, %v4577
        %v4592 = vpack.c.b16 %v4580, %v4579
        %v4593 = vpack.c.b16 %v4582, %v4581
        %v4594 = vpack.c.b16 %v4584, %v4583
        %v4595 = vpack.c.b16 %v4586, %v4585
        %v4596 = vpack.c.b16 %v4588, %v4587
        %4605 = vmatpush.bf16.msra.mxu0 %v4596
        %4606 = vmatpush.bf16.msra.mxu0 %v4595
        %4607 = vmatpush.bf16.msra.mxu0 %v4594
        %4608 = vmatpush.bf16.msra.mxu0 %v4593
        %4609 = vmatpush.bf16.msra.mxu0 %v4592
        %4610 = vmatpush.bf16.msra.mxu0 %v4591
        %4611 = vmatpush.bf16.msra.mxu0 %v4590
        %4612 = vmatpush.bf16.msra.mxu0 %v4589
        %4613 = vmatmul.bf16.gmra.mxu0 %v4524
        %v4614 = vpop.f32.mrf.mxu0
        %v4615 = vadd.f32 0.0, %v4614
        %v4616 = vpop.f32.mrf.mxu0
        %v4617 = vadd.f32 0.0, %v4616
        %4618 = vmatmul.bf16.gmra.mxu0 %v4525
        %v4619 = vpop.f32.mrf.mxu0
        %v4620 = vadd.f32 0.0, %v4619
        %v4621 = vpop.f32.mrf.mxu0
        %v4622 = vadd.f32 0.0, %v4621
        %4623 = vmatmul.bf16.gmra.mxu0 %v4526
        %v4624 = vpop.f32.mrf.mxu0
        %v4625 = vadd.f32 0.0, %v4624
        %v4626 = vpop.f32.mrf.mxu0
        %v4627 = vadd.f32 0.0, %v4626
        %4628 = vmatmul.bf16.gmra.mxu0 %v4527
        %v4629 = vpop.f32.mrf.mxu0
        %v4630 = vadd.f32 0.0, %v4629
        %v4631 = vpop.f32.mrf.mxu0
        %v4632 = vadd.f32 0.0, %v4631
        %4633 = vmatmul.bf16.gmra.mxu0 %v4528
        %v4634 = vpop.f32.mrf.mxu0
        %v4635 = vadd.f32 0.0, %v4634
        %v4636 = vpop.f32.mrf.mxu0
        %v4637 = vadd.f32 0.0, %v4636
        %4638 = vmatmul.bf16.gmra.mxu0 %v4529
        %v4639 = vpop.f32.mrf.mxu0
        %v4640 = vadd.f32 0.0, %v4639
        %v4641 = vpop.f32.mrf.mxu0
        %v4642 = vadd.f32 0.0, %v4641
        %4643 = vmatmul.bf16.gmra.mxu0 %v4530
        %v4644 = vpop.f32.mrf.mxu0
        %v4645 = vadd.f32 0.0, %v4644
        %v4646 = vpop.f32.mrf.mxu0
        %v4647 = vadd.f32 0.0, %v4646
        %4648 = vmatmul.bf16.gmra.mxu0 %v4531
        %v4649 = vpop.f32.mrf.mxu0
        %v4650 = vadd.f32 0.0, %v4649
        %v4651 = vpop.f32.mrf.mxu0
        %v4652 = vadd.f32 0.0, %v4651
        %4653 = vmatmul.bf16.gmra.mxu0 %v4532
        %v4654 = vpop.f32.mrf.mxu0
        %v4655 = vadd.f32 0.0, %v4654
        %v4656 = vpop.f32.mrf.mxu0
        %v4657 = vadd.f32 0.0, %v4656
        %4658 = vmatmul.bf16.gmra.mxu0 %v4533
        %v4659 = vpop.f32.mrf.mxu0
        %v4660 = vadd.f32 0.0, %v4659
        %v4661 = vpop.f32.mrf.mxu0
        %v4662 = vadd.f32 0.0, %v4661
        %4663 = vmatmul.bf16.gmra.mxu0 %v4534
        %v4664 = vpop.f32.mrf.mxu0
        %v4665 = vadd.f32 0.0, %v4664
        %v4666 = vpop.f32.mrf.mxu0
        %v4667 = vadd.f32 0.0, %v4666
        %4668 = vmatmul.bf16.gmra.mxu0 %v4535
        %v4669 = vpop.f32.mrf.mxu0
        %v4670 = vadd.f32 0.0, %v4669
        %v4671 = vpop.f32.mrf.mxu0
        %v4672 = vadd.f32 0.0, %v4671
        %4673 = vmatmul.bf16.gmra.mxu0 %v4536
        %v4674 = vpop.f32.mrf.mxu0
        %v4675 = vadd.f32 0.0, %v4674
        %v4676 = vpop.f32.mrf.mxu0
        %v4677 = vadd.f32 0.0, %v4676
        %4678 = vmatmul.bf16.gmra.mxu0 %v4537
        %v4679 = vpop.f32.mrf.mxu0
        %v4680 = vadd.f32 0.0, %v4679
        %v4681 = vpop.f32.mrf.mxu0
        %v4682 = vadd.f32 0.0, %v4681
        %4683 = vmatmul.bf16.gmra.mxu0 %v4538
        %v4684 = vpop.f32.mrf.mxu0
        %v4685 = vadd.f32 0.0, %v4684
        %v4686 = vpop.f32.mrf.mxu0
        %v4687 = vadd.f32 0.0, %v4686
        %4688 = vmatmul.bf16.gmra.mxu0 %v4539
        %v4689 = vpop.f32.mrf.mxu0
        %v4690 = vadd.f32 0.0, %v4689
        %v4691 = vpop.f32.mrf.mxu0
        %v4692 = vadd.f32 0.0, %v4691
        %4693 = vdwg.mxu0
        %v4694 = vadd.f32 %v4043, %v4615
        %v4695 = vadd.f32 %v4044, %v4617
        %v4696 = vadd.f32 %v4045, %v4620
        %v4697 = vadd.f32 %v4046, %v4622
        %v4698 = vadd.f32 %v4047, %v4625
        %v4699 = vadd.f32 %v4048, %v4627
        %v4700 = vadd.f32 %v4049, %v4630
        %v4701 = vadd.f32 %v4050, %v4632
        %v4702 = vadd.f32 %v4051, %v4635
        %v4703 = vadd.f32 %v4052, %v4637
        %v4704 = vadd.f32 %v4053, %v4640
        %v4705 = vadd.f32 %v4054, %v4642
        %v4706 = vadd.f32 %v4055, %v4645
        %v4707 = vadd.f32 %v4056, %v4647
        %v4708 = vadd.f32 %v4057, %v4650
        %v4709 = vadd.f32 %v4058, %v4652
        %v4710 = vadd.f32 %v4059, %v4655
        %v4711 = vadd.f32 %v4060, %v4657
        %v4712 = vadd.f32 %v4061, %v4660
        %v4713 = vadd.f32 %v4062, %v4662
        %v4714 = vadd.f32 %v4063, %v4665
        %v4715 = vadd.f32 %v4064, %v4667
        %v4716 = vadd.f32 %v4065, %v4670
        %v4717 = vadd.f32 %v4066, %v4672
        %v4718 = vadd.f32 %v4067, %v4675
        %v4719 = vadd.f32 %v4068, %v4677
        %v4720 = vadd.f32 %v4069, %v4680
        %v4721 = vadd.f32 %v4070, %v4682
        %v4722 = vadd.f32 %v4071, %v4685
        %v4723 = vadd.f32 %v4072, %v4687
        %v4724 = vadd.f32 %v4073, %v4690
        %v4725 = vadd.f32 %v4074, %v4692
        %v4726 = vld [vmem:[#allocation2] sm:$0xf]
        %v4727 = vld [vmem:[#allocation2 + $0x4] sm:$0xf]
        %v4728 = vld [vmem:[#allocation2 + $0x8] sm:$0xf]
        %v4729 = vld [vmem:[#allocation2 + $0xc] sm:$0xf]
        %v4730 = vld [vmem:[#allocation2 + $0x10] sm:$0xf]
        %v4731 = vld [vmem:[#allocation2 + $0x14] sm:$0xf]
        %v4732 = vld [vmem:[#allocation2 + $0x18] sm:$0xf]
        %v4733 = vld [vmem:[#allocation2 + $0x1c] sm:$0xf]
        %v4734 = vld [vmem:[#allocation2 + $0x20] sm:$0xf]
        %v4735 = vld [vmem:[#allocation2 + $0x24] sm:$0xf]
        %v4736 = vld [vmem:[#allocation2 + $0x28] sm:$0xf]
        %v4737 = vld [vmem:[#allocation2 + $0x2c] sm:$0xf]
        %v4738 = vld [vmem:[#allocation2 + $0x30] sm:$0xf]
        %v4739 = vld [vmem:[#allocation2 + $0x34] sm:$0xf]
        %v4740 = vld [vmem:[#allocation2 + $0x38] sm:$0xf]
        %v4741 = vld [vmem:[#allocation2 + $0x3c] sm:$0xf]
        %v4742 = vld [vmem:[#allocation2 + $0x40] sm:$0xf]
        %v4743 = vld [vmem:[#allocation2 + $0x44] sm:$0xf]
        %v4744 = vld [vmem:[#allocation2 + $0x48] sm:$0xf]
        %v4745 = vld [vmem:[#allocation2 + $0x4c] sm:$0xf]
        %v4746 = vld [vmem:[#allocation2 + $0x50] sm:$0xf]
        %v4747 = vld [vmem:[#allocation2 + $0x54] sm:$0xf]
        %v4748 = vld [vmem:[#allocation2 + $0x58] sm:$0xf]
        %v4749 = vld [vmem:[#allocation2 + $0x5c] sm:$0xf]
        %v4750 = vld [vmem:[#allocation2 + $0x60] sm:$0xf]
        %v4751 = vld [vmem:[#allocation2 + $0x64] sm:$0xf]
        %v4752 = vld [vmem:[#allocation2 + $0x68] sm:$0xf]
        %v4753 = vld [vmem:[#allocation2 + $0x6c] sm:$0xf]
        %v4754 = vld [vmem:[#allocation2 + $0x70] sm:$0xf]
        %v4755 = vld [vmem:[#allocation2 + $0x74] sm:$0xf]
        %v4756 = vld [vmem:[#allocation2 + $0x78] sm:$0xf]
        %v4757 = vld [vmem:[#allocation2 + $0x7c] sm:$0xf]
        %v4758 = vld [vmem:[#allocation2 + $0x80] sm:$0x1]
        %s4759 = scalar_lea.vmem %s1, 640
        %v4760 = vld [vmem:[%s4759] sm:$0xf]
        %v4761 = vld [vmem:[%s4759 + $0x4] sm:$0xf]
        %v4762 = vld [vmem:[%s4759 + $0x8] sm:$0xf]
        %v4763 = vld [vmem:[%s4759 + $0xc] sm:$0xf]
        %v4764 = vld [vmem:[%s4759 + $0x10] sm:$0xf]
        %v4765 = vld [vmem:[%s4759 + $0x14] sm:$0xf]
        %v4766 = vld [vmem:[%s4759 + $0x18] sm:$0xf]
        %v4767 = vld [vmem:[%s4759 + $0x1c] sm:$0xf]
        %v4768 = vld [vmem:[%s4759 + $0x20] sm:$0xf]
        %v4769 = vld [vmem:[%s4759 + $0x24] sm:$0xf]
        %v4770 = vld [vmem:[%s4759 + $0x28] sm:$0xf]
        %v4771 = vld [vmem:[%s4759 + $0x2c] sm:$0xf]
        %v4772 = vld [vmem:[%s4759 + $0x30] sm:$0xf]
        %v4773 = vld [vmem:[%s4759 + $0x34] sm:$0xf]
        %v4774 = vld [vmem:[%s4759 + $0x38] sm:$0xf]
        %v4775 = vld [vmem:[%s4759 + $0x3c] sm:$0xf]
        %v4776 = vld [vmem:[%s4759 + $0x40] sm:$0xf]
        %v4777 = vld [vmem:[%s4759 + $0x44] sm:$0xf]
        %v4778 = vld [vmem:[%s4759 + $0x48] sm:$0xf]
        %v4779 = vld [vmem:[%s4759 + $0x4c] sm:$0xf]
        %v4780 = vld [vmem:[%s4759 + $0x50] sm:$0xf]
        %v4781 = vld [vmem:[%s4759 + $0x54] sm:$0xf]
        %v4782 = vld [vmem:[%s4759 + $0x58] sm:$0xf]
        %v4783 = vld [vmem:[%s4759 + $0x5c] sm:$0xf]
        %v4784 = vld [vmem:[%s4759 + $0x60] sm:$0xf]
        %v4785 = vld [vmem:[%s4759 + $0x64] sm:$0xf]
        %v4786 = vld [vmem:[%s4759 + $0x68] sm:$0xf]
        %v4787 = vld [vmem:[%s4759 + $0x6c] sm:$0xf]
        %v4788 = vld [vmem:[%s4759 + $0x70] sm:$0xf]
        %v4789 = vld [vmem:[%s4759 + $0x74] sm:$0xf]
        %v4790 = vld [vmem:[%s4759 + $0x78] sm:$0xf]
        %v4791 = vld [vmem:[%s4759 + $0x7c] sm:$0xf]
        %4793 = vset.pattern.permute.xlu0 0
        %4794 = vperm.xlu0 %4793, %v4760
        %v4795 = vpop.permute.xlu0 %4794
        %v4798 = vunpack.c.l.s4 839922192
        %v4799 = vunpack.c.0.s8 %v4798
        %v4800 = vperm.slane %v4795, %v4799
        %4802 = vset.pattern.permute.xlu0 0
        %4803 = vperm.xlu0 %4802, %v4761
        %v4804 = vpop.permute.xlu0 %4803
        %v4807 = vunpack.c.l.s4 839922192
        %v4808 = vunpack.c.0.s8 %v4807
        %v4809 = vperm.slane %v4804, %v4808
        %4811 = vset.pattern.permute.xlu0 0
        %4812 = vperm.xlu0 %4811, %v4762
        %v4813 = vpop.permute.xlu0 %4812
        %v4816 = vunpack.c.l.s4 839922192
        %v4817 = vunpack.c.0.s8 %v4816
        %v4818 = vperm.slane %v4813, %v4817
        %4820 = vset.pattern.permute.xlu0 0
        %4821 = vperm.xlu0 %4820, %v4763
        %v4822 = vpop.permute.xlu0 %4821
        %v4825 = vunpack.c.l.s4 839922192
        %v4826 = vunpack.c.0.s8 %v4825
        %v4827 = vperm.slane %v4822, %v4826
        %4829 = vset.pattern.permute.xlu0 0
        %4830 = vperm.xlu0 %4829, %v4764
        %v4831 = vpop.permute.xlu0 %4830
        %v4834 = vunpack.c.l.s4 839922192
        %v4835 = vunpack.c.0.s8 %v4834
        %v4836 = vperm.slane %v4831, %v4835
        %4838 = vset.pattern.permute.xlu0 0
        %4839 = vperm.xlu0 %4838, %v4765
        %v4840 = vpop.permute.xlu0 %4839
        %v4843 = vunpack.c.l.s4 839922192
        %v4844 = vunpack.c.0.s8 %v4843
        %v4845 = vperm.slane %v4840, %v4844
        %4847 = vset.pattern.permute.xlu0 0
        %4848 = vperm.xlu0 %4847, %v4766
        %v4849 = vpop.permute.xlu0 %4848
        %v4852 = vunpack.c.l.s4 839922192
        %v4853 = vunpack.c.0.s8 %v4852
        %v4854 = vperm.slane %v4849, %v4853
        %4856 = vset.pattern.permute.xlu0 0
        %4857 = vperm.xlu0 %4856, %v4767
        %v4858 = vpop.permute.xlu0 %4857
        %v4861 = vunpack.c.l.s4 839922192
        %v4862 = vunpack.c.0.s8 %v4861
        %v4863 = vperm.slane %v4858, %v4862
        %4865 = vset.pattern.permute.xlu0 0
        %4866 = vperm.xlu0 %4865, %v4768
        %v4867 = vpop.permute.xlu0 %4866
        %v4870 = vunpack.c.l.s4 839922192
        %v4871 = vunpack.c.0.s8 %v4870
        %v4872 = vperm.slane %v4867, %v4871
        %4874 = vset.pattern.permute.xlu0 0
        %4875 = vperm.xlu0 %4874, %v4769
        %v4876 = vpop.permute.xlu0 %4875
        %v4879 = vunpack.c.l.s4 839922192
        %v4880 = vunpack.c.0.s8 %v4879
        %v4881 = vperm.slane %v4876, %v4880
        %4883 = vset.pattern.permute.xlu0 0
        %4884 = vperm.xlu0 %4883, %v4770
        %v4885 = vpop.permute.xlu0 %4884
        %v4888 = vunpack.c.l.s4 839922192
        %v4889 = vunpack.c.0.s8 %v4888
        %v4890 = vperm.slane %v4885, %v4889
        %4892 = vset.pattern.permute.xlu0 0
        %4893 = vperm.xlu0 %4892, %v4771
        %v4894 = vpop.permute.xlu0 %4893
        %v4897 = vunpack.c.l.s4 839922192
        %v4898 = vunpack.c.0.s8 %v4897
        %v4899 = vperm.slane %v4894, %v4898
        %4901 = vset.pattern.permute.xlu0 0
        %4902 = vperm.xlu0 %4901, %v4772
        %v4903 = vpop.permute.xlu0 %4902
        %v4906 = vunpack.c.l.s4 839922192
        %v4907 = vunpack.c.0.s8 %v4906
        %v4908 = vperm.slane %v4903, %v4907
        %4910 = vset.pattern.permute.xlu0 0
        %4911 = vperm.xlu0 %4910, %v4773
        %v4912 = vpop.permute.xlu0 %4911
        %v4915 = vunpack.c.l.s4 839922192
        %v4916 = vunpack.c.0.s8 %v4915
        %v4917 = vperm.slane %v4912, %v4916
        %4919 = vset.pattern.permute.xlu0 0
        %4920 = vperm.xlu0 %4919, %v4774
        %v4921 = vpop.permute.xlu0 %4920
        %v4924 = vunpack.c.l.s4 839922192
        %v4925 = vunpack.c.0.s8 %v4924
        %v4926 = vperm.slane %v4921, %v4925
        %4928 = vset.pattern.permute.xlu0 0
        %4929 = vperm.xlu0 %4928, %v4775
        %v4930 = vpop.permute.xlu0 %4929
        %v4933 = vunpack.c.l.s4 839922192
        %v4934 = vunpack.c.0.s8 %v4933
        %v4935 = vperm.slane %v4930, %v4934
        %4937 = vset.pattern.permute.xlu0 0
        %4938 = vperm.xlu0 %4937, %v4776
        %v4939 = vpop.permute.xlu0 %4938
        %v4942 = vunpack.c.l.s4 839922192
        %v4943 = vunpack.c.0.s8 %v4942
        %v4944 = vperm.slane %v4939, %v4943
        %4946 = vset.pattern.permute.xlu0 0
        %4947 = vperm.xlu0 %4946, %v4777
        %v4948 = vpop.permute.xlu0 %4947
        %v4951 = vunpack.c.l.s4 839922192
        %v4952 = vunpack.c.0.s8 %v4951
        %v4953 = vperm.slane %v4948, %v4952
        %4955 = vset.pattern.permute.xlu0 0
        %4956 = vperm.xlu0 %4955, %v4778
        %v4957 = vpop.permute.xlu0 %4956
        %v4960 = vunpack.c.l.s4 839922192
        %v4961 = vunpack.c.0.s8 %v4960
        %v4962 = vperm.slane %v4957, %v4961
        %4964 = vset.pattern.permute.xlu0 0
        %4965 = vperm.xlu0 %4964, %v4779
        %v4966 = vpop.permute.xlu0 %4965
        %v4969 = vunpack.c.l.s4 839922192
        %v4970 = vunpack.c.0.s8 %v4969
        %v4971 = vperm.slane %v4966, %v4970
        %4973 = vset.pattern.permute.xlu0 0
        %4974 = vperm.xlu0 %4973, %v4780
        %v4975 = vpop.permute.xlu0 %4974
        %v4978 = vunpack.c.l.s4 839922192
        %v4979 = vunpack.c.0.s8 %v4978
        %v4980 = vperm.slane %v4975, %v4979
        %4982 = vset.pattern.permute.xlu0 0
        %4983 = vperm.xlu0 %4982, %v4781
        %v4984 = vpop.permute.xlu0 %4983
        %v4987 = vunpack.c.l.s4 839922192
        %v4988 = vunpack.c.0.s8 %v4987
        %v4989 = vperm.slane %v4984, %v4988
        %4991 = vset.pattern.permute.xlu0 0
        %4992 = vperm.xlu0 %4991, %v4782
        %v4993 = vpop.permute.xlu0 %4992
        %v4996 = vunpack.c.l.s4 839922192
        %v4997 = vunpack.c.0.s8 %v4996
        %v4998 = vperm.slane %v4993, %v4997
        %5000 = vset.pattern.permute.xlu0 0
        %5001 = vperm.xlu0 %5000, %v4783
        %v5002 = vpop.permute.xlu0 %5001
        %v5005 = vunpack.c.l.s4 839922192
        %v5006 = vunpack.c.0.s8 %v5005
        %v5007 = vperm.slane %v5002, %v5006
        %5009 = vset.pattern.permute.xlu0 0
        %5010 = vperm.xlu0 %5009, %v4784
        %v5011 = vpop.permute.xlu0 %5010
        %v5014 = vunpack.c.l.s4 839922192
        %v5015 = vunpack.c.0.s8 %v5014
        %v5016 = vperm.slane %v5011, %v5015
        %5018 = vset.pattern.permute.xlu0 0
        %5019 = vperm.xlu0 %5018, %v4785
        %v5020 = vpop.permute.xlu0 %5019
        %v5023 = vunpack.c.l.s4 839922192
        %v5024 = vunpack.c.0.s8 %v5023
        %v5025 = vperm.slane %v5020, %v5024
        %5027 = vset.pattern.permute.xlu0 0
        %5028 = vperm.xlu0 %5027, %v4786
        %v5029 = vpop.permute.xlu0 %5028
        %v5032 = vunpack.c.l.s4 839922192
        %v5033 = vunpack.c.0.s8 %v5032
        %v5034 = vperm.slane %v5029, %v5033
        %5036 = vset.pattern.permute.xlu0 0
        %5037 = vperm.xlu0 %5036, %v4787
        %v5038 = vpop.permute.xlu0 %5037
        %v5041 = vunpack.c.l.s4 839922192
        %v5042 = vunpack.c.0.s8 %v5041
        %v5043 = vperm.slane %v5038, %v5042
        %5045 = vset.pattern.permute.xlu0 0
        %5046 = vperm.xlu0 %5045, %v4788
        %v5047 = vpop.permute.xlu0 %5046
        %v5050 = vunpack.c.l.s4 839922192
        %v5051 = vunpack.c.0.s8 %v5050
        %v5052 = vperm.slane %v5047, %v5051
        %5054 = vset.pattern.permute.xlu0 0
        %5055 = vperm.xlu0 %5054, %v4789
        %v5056 = vpop.permute.xlu0 %5055
        %v5059 = vunpack.c.l.s4 839922192
        %v5060 = vunpack.c.0.s8 %v5059
        %v5061 = vperm.slane %v5056, %v5060
        %5063 = vset.pattern.permute.xlu0 0
        %5064 = vperm.xlu0 %5063, %v4790
        %v5065 = vpop.permute.xlu0 %5064
        %v5068 = vunpack.c.l.s4 839922192
        %v5069 = vunpack.c.0.s8 %v5068
        %v5070 = vperm.slane %v5065, %v5069
        %5072 = vset.pattern.permute.xlu0 0
        %5073 = vperm.xlu0 %5072, %v4791
        %v5074 = vpop.permute.xlu0 %5073
        %v5077 = vunpack.c.l.s4 839922192
        %v5078 = vunpack.c.0.s8 %v5077
        %v5079 = vperm.slane %v5074, %v5078
        %v5080 = vunpack.c.l.bf16 %v4726
        %v5081 = vunpack.c.l.bf16 %v4727
        %v5082 = vunpack.c.l.bf16 %v4728
        %v5083 = vunpack.c.l.bf16 %v4729
        %v5084 = vunpack.c.l.bf16 %v4730
        %v5085 = vunpack.c.l.bf16 %v4731
        %v5086 = vunpack.c.l.bf16 %v4732
        %v5087 = vunpack.c.l.bf16 %v4733
        %v5088 = vunpack.c.l.bf16 %v4734
        %v5089 = vunpack.c.l.bf16 %v4735
        %v5090 = vunpack.c.l.bf16 %v4736
        %v5091 = vunpack.c.l.bf16 %v4737
        %v5092 = vunpack.c.l.bf16 %v4738
        %v5093 = vunpack.c.l.bf16 %v4739
        %v5094 = vunpack.c.l.bf16 %v4740
        %v5095 = vunpack.c.l.bf16 %v4741
        %v5096 = vunpack.c.l.bf16 %v4742
        %v5097 = vunpack.c.l.bf16 %v4743
        %v5098 = vunpack.c.l.bf16 %v4744
        %v5099 = vunpack.c.l.bf16 %v4745
        %v5100 = vunpack.c.l.bf16 %v4746
        %v5101 = vunpack.c.l.bf16 %v4747
        %v5102 = vunpack.c.l.bf16 %v4748
        %v5103 = vunpack.c.l.bf16 %v4749
        %v5104 = vunpack.c.l.bf16 %v4750
        %v5105 = vunpack.c.l.bf16 %v4751
        %v5106 = vunpack.c.l.bf16 %v4752
        %v5107 = vunpack.c.l.bf16 %v4753
        %v5108 = vunpack.c.l.bf16 %v4754
        %v5109 = vunpack.c.l.bf16 %v4755
        %v5110 = vunpack.c.l.bf16 %v4756
        %v5111 = vunpack.c.l.bf16 %v4757
        %v5112 = vunpack.c.l.bf16 %v4758
        %v5113 = vunpack.c.l.bf16 %v4800
        %v5114 = vunpack.c.l.bf16 %v4809
        %v5115 = vunpack.c.l.bf16 %v4818
        %v5116 = vunpack.c.l.bf16 %v4827
        %v5117 = vunpack.c.l.bf16 %v4836
        %v5118 = vunpack.c.l.bf16 %v4845
        %v5119 = vunpack.c.l.bf16 %v4854
        %v5120 = vunpack.c.l.bf16 %v4863
        %v5121 = vunpack.c.l.bf16 %v4872
        %v5122 = vunpack.c.l.bf16 %v4881
        %v5123 = vunpack.c.l.bf16 %v4890
        %v5124 = vunpack.c.l.bf16 %v4899
        %v5125 = vunpack.c.l.bf16 %v4908
        %v5126 = vunpack.c.l.bf16 %v4917
        %v5127 = vunpack.c.l.bf16 %v4926
        %v5128 = vunpack.c.l.bf16 %v4935
        %v5129 = vunpack.c.l.bf16 %v4944
        %v5130 = vunpack.c.l.bf16 %v4953
        %v5131 = vunpack.c.l.bf16 %v4962
        %v5132 = vunpack.c.l.bf16 %v4971
        %v5133 = vunpack.c.l.bf16 %v4980
        %v5134 = vunpack.c.l.bf16 %v4989
        %v5135 = vunpack.c.l.bf16 %v4998
        %v5136 = vunpack.c.l.bf16 %v5007
        %v5137 = vunpack.c.l.bf16 %v5016
        %v5138 = vunpack.c.l.bf16 %v5025
        %v5139 = vunpack.c.l.bf16 %v5034
        %v5140 = vunpack.c.l.bf16 %v5043
        %v5141 = vunpack.c.l.bf16 %v5052
        %v5142 = vunpack.c.l.bf16 %v5061
        %v5143 = vunpack.c.l.bf16 %v5070
        %v5144 = vunpack.c.l.bf16 %v5079
        %v5177 = vrot.slane %v5113, 7
        %v5178 = vrot.slane %v5114, 7
        %v5179 = vsel %vm2642, %v5177, %v5178
        %v5180 = vrot.slane %v5115, 7
        %v5181 = vsel %vm2642, %v5178, %v5180
        %v5182 = vrot.slane %v5116, 7
        %v5183 = vsel %vm2642, %v5180, %v5182
        %v5184 = vrot.slane %v5117, 7
        %v5185 = vsel %vm2642, %v5182, %v5184
        %v5186 = vrot.slane %v5118, 7
        %v5187 = vsel %vm2642, %v5184, %v5186
        %v5188 = vrot.slane %v5119, 7
        %v5189 = vsel %vm2642, %v5186, %v5188
        %v5190 = vrot.slane %v5120, 7
        %v5191 = vsel %vm2642, %v5188, %v5190
        %v5192 = vrot.slane %v5121, 7
        %v5193 = vsel %vm2642, %v5190, %v5192
        %v5194 = vrot.slane %v5122, 7
        %v5195 = vsel %vm2642, %v5192, %v5194
        %v5196 = vrot.slane %v5123, 7
        %v5197 = vsel %vm2642, %v5194, %v5196
        %v5198 = vrot.slane %v5124, 7
        %v5199 = vsel %vm2642, %v5196, %v5198
        %v5200 = vrot.slane %v5125, 7
        %v5201 = vsel %vm2642, %v5198, %v5200
        %v5202 = vrot.slane %v5126, 7
        %v5203 = vsel %vm2642, %v5200, %v5202
        %v5204 = vrot.slane %v5127, 7
        %v5205 = vsel %vm2642, %v5202, %v5204
        %v5206 = vrot.slane %v5128, 7
        %v5207 = vsel %vm2642, %v5204, %v5206
        %v5208 = vrot.slane %v5129, 7
        %v5209 = vsel %vm2642, %v5206, %v5208
        %v5210 = vrot.slane %v5130, 7
        %v5211 = vsel %vm2642, %v5208, %v5210
        %v5212 = vrot.slane %v5131, 7
        %v5213 = vsel %vm2642, %v5210, %v5212
        %v5214 = vrot.slane %v5132, 7
        %v5215 = vsel %vm2642, %v5212, %v5214
        %v5216 = vrot.slane %v5133, 7
        %v5217 = vsel %vm2642, %v5214, %v5216
        %v5218 = vrot.slane %v5134, 7
        %v5219 = vsel %vm2642, %v5216, %v5218
        %v5220 = vrot.slane %v5135, 7
        %v5221 = vsel %vm2642, %v5218, %v5220
        %v5222 = vrot.slane %v5136, 7
        %v5223 = vsel %vm2642, %v5220, %v5222
        %v5224 = vrot.slane %v5137, 7
        %v5225 = vsel %vm2642, %v5222, %v5224
        %v5226 = vrot.slane %v5138, 7
        %v5227 = vsel %vm2642, %v5224, %v5226
        %v5228 = vrot.slane %v5139, 7
        %v5229 = vsel %vm2642, %v5226, %v5228
        %v5230 = vrot.slane %v5140, 7
        %v5231 = vsel %vm2642, %v5228, %v5230
        %v5232 = vrot.slane %v5141, 7
        %v5233 = vsel %vm2642, %v5230, %v5232
        %v5234 = vrot.slane %v5142, 7
        %v5235 = vsel %vm2642, %v5232, %v5234
        %v5236 = vrot.slane %v5143, 7
        %v5237 = vsel %vm2642, %v5234, %v5236
        %v5238 = vrot.slane %v5144, 7
        %v5239 = vsel %vm2642, %v5236, %v5238
        %v5273 = vmul.f32 %v5080, %v5177
        %v5274 = vmul.f32 %v5081, %v5179
        %v5275 = vmul.f32 %v5082, %v5181
        %v5276 = vmul.f32 %v5083, %v5183
        %v5277 = vmul.f32 %v5084, %v5185
        %v5278 = vmul.f32 %v5085, %v5187
        %v5279 = vmul.f32 %v5086, %v5189
        %v5280 = vmul.f32 %v5087, %v5191
        %v5281 = vmul.f32 %v5088, %v5193
        %v5282 = vmul.f32 %v5089, %v5195
        %v5283 = vmul.f32 %v5090, %v5197
        %v5284 = vmul.f32 %v5091, %v5199
        %v5285 = vmul.f32 %v5092, %v5201
        %v5286 = vmul.f32 %v5093, %v5203
        %v5287 = vmul.f32 %v5094, %v5205
        %v5288 = vmul.f32 %v5095, %v5207
        %v5289 = vmul.f32 %v5096, %v5209
        %v5290 = vmul.f32 %v5097, %v5211
        %v5291 = vmul.f32 %v5098, %v5213
        %v5292 = vmul.f32 %v5099, %v5215
        %v5293 = vmul.f32 %v5100, %v5217
        %v5294 = vmul.f32 %v5101, %v5219
        %v5295 = vmul.f32 %v5102, %v5221
        %v5296 = vmul.f32 %v5103, %v5223
        %v5297 = vmul.f32 %v5104, %v5225
        %v5298 = vmul.f32 %v5105, %v5227
        %v5299 = vmul.f32 %v5106, %v5229
        %v5300 = vmul.f32 %v5107, %v5231
        %v5301 = vmul.f32 %v5108, %v5233
        %v5302 = vmul.f32 %v5109, %v5235
        %v5303 = vmul.f32 %v5110, %v5237
        %v5304 = vmul.f32 %v5111, %v5239
        %v5305 = vmul.f32 %v5112, %v5238
        %v5306 = vpack.c.bf16 %v5274, %v5273
        %v5307 = vpack.c.bf16 %v5276, %v5275
        %v5308 = vpack.c.bf16 %v5278, %v5277
        %v5309 = vpack.c.bf16 %v5280, %v5279
        %v5310 = vpack.c.bf16 %v5282, %v5281
        %v5311 = vpack.c.bf16 %v5284, %v5283
        %v5312 = vpack.c.bf16 %v5286, %v5285
        %v5313 = vpack.c.bf16 %v5288, %v5287
        %v5314 = vpack.c.bf16 %v5290, %v5289
        %v5315 = vpack.c.bf16 %v5292, %v5291
        %v5316 = vpack.c.bf16 %v5294, %v5293
        %v5317 = vpack.c.bf16 %v5296, %v5295
        %v5318 = vpack.c.bf16 %v5298, %v5297
        %v5319 = vpack.c.bf16 %v5300, %v5299
        %v5320 = vpack.c.bf16 %v5302, %v5301
        %v5321 = vpack.c.bf16 %v5304, %v5303
        %v5322 = vpack.c.bf16 %v5305, %v5305
        %s5323 = scalar_lea.vmem %s4, 320
        %v5324 = vld [vmem:[%s5323] sm:$0xf]
        %v5325 = vld [vmem:[%s5323 + $0x4] sm:$0xf]
        %v5326 = vld [vmem:[%s5323 + $0x8] sm:$0xf]
        %v5327 = vld [vmem:[%s5323 + $0xc] sm:$0xf]
        %v5328 = vld [vmem:[%s5323 + $0x10] sm:$0xf]
        %v5329 = vld [vmem:[%s5323 + $0x14] sm:$0xf]
        %v5330 = vld [vmem:[%s5323 + $0x18] sm:$0xf]
        %v5331 = vld [vmem:[%s5323 + $0x1c] sm:$0xf]
        %v5332 = vld [vmem:[%s5323 + $0x20] sm:$0xf]
        %v5333 = vld [vmem:[%s5323 + $0x24] sm:$0xf]
        %v5334 = vld [vmem:[%s5323 + $0x28] sm:$0xf]
        %v5335 = vld [vmem:[%s5323 + $0x2c] sm:$0xf]
        %v5336 = vld [vmem:[%s5323 + $0x30] sm:$0xf]
        %v5337 = vld [vmem:[%s5323 + $0x34] sm:$0xf]
        %v5338 = vld [vmem:[%s5323 + $0x38] sm:$0xf]
        %v5339 = vld [vmem:[%s5323 + $0x3c] sm:$0xf]
        %v5341 = vshrl.u32 %v5306, 16
        %v5343 = vshll.u32 %v5306, 16
        %v5345 = vrot.slane %v5343, 1
        %v5346 = vor.u32 %v5341, %v5345
        %v5348 = vshll.u32 %v5307, 16
        %v5350 = vrot.slane %v5348, 1
        %v5351 = vsel %vm2806, %v5346, %v5350
        %v5352 = vshrl.u32 %v5307, 16
        %v5354 = vor.u32 %v5352, %v5350
        %v5356 = vshll.u32 %v5308, 16
        %v5358 = vrot.slane %v5356, 1
        %v5359 = vsel %vm2806, %v5354, %v5358
        %v5360 = vshrl.u32 %v5308, 16
        %v5362 = vor.u32 %v5360, %v5358
        %v5364 = vshll.u32 %v5309, 16
        %v5366 = vrot.slane %v5364, 1
        %v5367 = vsel %vm2806, %v5362, %v5366
        %v5368 = vshrl.u32 %v5309, 16
        %v5370 = vor.u32 %v5368, %v5366
        %v5372 = vshll.u32 %v5310, 16
        %v5374 = vrot.slane %v5372, 1
        %v5375 = vsel %vm2806, %v5370, %v5374
        %v5376 = vshrl.u32 %v5310, 16
        %v5378 = vor.u32 %v5376, %v5374
        %v5380 = vshll.u32 %v5311, 16
        %v5382 = vrot.slane %v5380, 1
        %v5383 = vsel %vm2806, %v5378, %v5382
        %v5384 = vshrl.u32 %v5311, 16
        %v5386 = vor.u32 %v5384, %v5382
        %v5388 = vshll.u32 %v5312, 16
        %v5390 = vrot.slane %v5388, 1
        %v5391 = vsel %vm2806, %v5386, %v5390
        %v5392 = vshrl.u32 %v5312, 16
        %v5394 = vor.u32 %v5392, %v5390
        %v5396 = vshll.u32 %v5313, 16
        %v5398 = vrot.slane %v5396, 1
        %v5399 = vsel %vm2806, %v5394, %v5398
        %v5400 = vshrl.u32 %v5313, 16
        %v5402 = vor.u32 %v5400, %v5398
        %v5404 = vshll.u32 %v5314, 16
        %v5406 = vrot.slane %v5404, 1
        %v5407 = vsel %vm2806, %v5402, %v5406
        %v5408 = vshrl.u32 %v5314, 16
        %v5410 = vor.u32 %v5408, %v5406
        %v5412 = vshll.u32 %v5315, 16
        %v5414 = vrot.slane %v5412, 1
        %v5415 = vsel %vm2806, %v5410, %v5414
        %v5416 = vshrl.u32 %v5315, 16
        %v5418 = vor.u32 %v5416, %v5414
        %v5420 = vshll.u32 %v5316, 16
        %v5422 = vrot.slane %v5420, 1
        %v5423 = vsel %vm2806, %v5418, %v5422
        %v5424 = vshrl.u32 %v5316, 16
        %v5426 = vor.u32 %v5424, %v5422
        %v5428 = vshll.u32 %v5317, 16
        %v5430 = vrot.slane %v5428, 1
        %v5431 = vsel %vm2806, %v5426, %v5430
        %v5432 = vshrl.u32 %v5317, 16
        %v5434 = vor.u32 %v5432, %v5430
        %v5436 = vshll.u32 %v5318, 16
        %v5438 = vrot.slane %v5436, 1
        %v5439 = vsel %vm2806, %v5434, %v5438
        %v5440 = vshrl.u32 %v5318, 16
        %v5442 = vor.u32 %v5440, %v5438
        %v5444 = vshll.u32 %v5319, 16
        %v5446 = vrot.slane %v5444, 1
        %v5447 = vsel %vm2806, %v5442, %v5446
        %v5448 = vshrl.u32 %v5319, 16
        %v5450 = vor.u32 %v5448, %v5446
        %v5452 = vshll.u32 %v5320, 16
        %v5454 = vrot.slane %v5452, 1
        %v5455 = vsel %vm2806, %v5450, %v5454
        %v5456 = vshrl.u32 %v5320, 16
        %v5458 = vor.u32 %v5456, %v5454
        %v5460 = vshll.u32 %v5321, 16
        %v5462 = vrot.slane %v5460, 1
        %v5463 = vsel %vm2806, %v5458, %v5462
        %v5464 = vshrl.u32 %v5321, 16
        %v5466 = vor.u32 %v5464, %v5462
        %v5468 = vshll.u32 %v5322, 16
        %v5470 = vrot.slane %v5468, 1
        %v5471 = vsel %vm2806, %v5466, %v5470
        %v5504 = vunpack.c.l.b16 %v5324
        %v5505 = vunpack.c.l.b16 %v5325
        %v5506 = vunpack.c.l.b16 %v5326
        %v5507 = vunpack.c.l.b16 %v5327
        %v5508 = vunpack.c.l.b16 %v5328
        %v5509 = vunpack.c.l.b16 %v5329
        %v5510 = vunpack.c.l.b16 %v5330
        %v5511 = vunpack.c.l.b16 %v5331
        %v5512 = vunpack.c.l.b16 %v5332
        %v5513 = vunpack.c.l.b16 %v5333
        %v5514 = vunpack.c.l.b16 %v5334
        %v5515 = vunpack.c.l.b16 %v5335
        %v5516 = vunpack.c.l.b16 %v5336
        %v5517 = vunpack.c.l.b16 %v5337
        %v5518 = vunpack.c.l.b16 %v5338
        %v5519 = vunpack.c.l.b16 %v5339
        %v5520 = vpack.c.b16 %v5505, %v5504
        %v5521 = vpack.c.b16 %v5507, %v5506
        %v5522 = vpack.c.b16 %v5509, %v5508
        %v5523 = vpack.c.b16 %v5511, %v5510
        %v5524 = vpack.c.b16 %v5513, %v5512
        %v5525 = vpack.c.b16 %v5515, %v5514
        %v5526 = vpack.c.b16 %v5517, %v5516
        %v5527 = vpack.c.b16 %v5519, %v5518
        %5536 = vmatpush.bf16.msra.mxu0 %v5527
        %5537 = vmatpush.bf16.msra.mxu0 %v5526
        %5538 = vmatpush.bf16.msra.mxu0 %v5525
        %5539 = vmatpush.bf16.msra.mxu0 %v5524
        %5540 = vmatpush.bf16.msra.mxu0 %v5523
        %5541 = vmatpush.bf16.msra.mxu0 %v5522
        %5542 = vmatpush.bf16.msra.mxu0 %v5521
        %5543 = vmatpush.bf16.msra.mxu0 %v5520
        %5544 = vmatmul.bf16.gmra.mxu0 %v5351
        %v5545 = vpop.f32.mrf.mxu0
        %v5546 = vadd.f32 0.0, %v5545
        %v5547 = vpop.f32.mrf.mxu0
        %v5548 = vadd.f32 0.0, %v5547
        %5549 = vmatmul.bf16.gmra.mxu0 %v5359
        %v5550 = vpop.f32.mrf.mxu0
        %v5551 = vadd.f32 0.0, %v5550
        %v5552 = vpop.f32.mrf.mxu0
        %v5553 = vadd.f32 0.0, %v5552
        %5554 = vmatmul.bf16.gmra.mxu0 %v5367
        %v5555 = vpop.f32.mrf.mxu0
        %v5556 = vadd.f32 0.0, %v5555
        %v5557 = vpop.f32.mrf.mxu0
        %v5558 = vadd.f32 0.0, %v5557
        %5559 = vmatmul.bf16.gmra.mxu0 %v5375
        %v5560 = vpop.f32.mrf.mxu0
        %v5561 = vadd.f32 0.0, %v5560
        %v5562 = vpop.f32.mrf.mxu0
        %v5563 = vadd.f32 0.0, %v5562
        %5564 = vmatmul.bf16.gmra.mxu0 %v5383
        %v5565 = vpop.f32.mrf.mxu0
        %v5566 = vadd.f32 0.0, %v5565
        %v5567 = vpop.f32.mrf.mxu0
        %v5568 = vadd.f32 0.0, %v5567
        %5569 = vmatmul.bf16.gmra.mxu0 %v5391
        %v5570 = vpop.f32.mrf.mxu0
        %v5571 = vadd.f32 0.0, %v5570
        %v5572 = vpop.f32.mrf.mxu0
        %v5573 = vadd.f32 0.0, %v5572
        %5574 = vmatmul.bf16.gmra.mxu0 %v5399
        %v5575 = vpop.f32.mrf.mxu0
        %v5576 = vadd.f32 0.0, %v5575
        %v5577 = vpop.f32.mrf.mxu0
        %v5578 = vadd.f32 0.0, %v5577
        %5579 = vmatmul.bf16.gmra.mxu0 %v5407
        %v5580 = vpop.f32.mrf.mxu0
        %v5581 = vadd.f32 0.0, %v5580
        %v5582 = vpop.f32.mrf.mxu0
        %v5583 = vadd.f32 0.0, %v5582
        %5584 = vmatmul.bf16.gmra.mxu0 %v5415
        %v5585 = vpop.f32.mrf.mxu0
        %v5586 = vadd.f32 0.0, %v5585
        %v5587 = vpop.f32.mrf.mxu0
        %v5588 = vadd.f32 0.0, %v5587
        %5589 = vmatmul.bf16.gmra.mxu0 %v5423
        %v5590 = vpop.f32.mrf.mxu0
        %v5591 = vadd.f32 0.0, %v5590
        %v5592 = vpop.f32.mrf.mxu0
        %v5593 = vadd.f32 0.0, %v5592
        %5594 = vmatmul.bf16.gmra.mxu0 %v5431
        %v5595 = vpop.f32.mrf.mxu0
        %v5596 = vadd.f32 0.0, %v5595
        %v5597 = vpop.f32.mrf.mxu0
        %v5598 = vadd.f32 0.0, %v5597
        %5599 = vmatmul.bf16.gmra.mxu0 %v5439
        %v5600 = vpop.f32.mrf.mxu0
        %v5601 = vadd.f32 0.0, %v5600
        %v5602 = vpop.f32.mrf.mxu0
        %v5603 = vadd.f32 0.0, %v5602
        %5604 = vmatmul.bf16.gmra.mxu0 %v5447
        %v5605 = vpop.f32.mrf.mxu0
        %v5606 = vadd.f32 0.0, %v5605
        %v5607 = vpop.f32.mrf.mxu0
        %v5608 = vadd.f32 0.0, %v5607
        %5609 = vmatmul.bf16.gmra.mxu0 %v5455
        %v5610 = vpop.f32.mrf.mxu0
        %v5611 = vadd.f32 0.0, %v5610
        %v5612 = vpop.f32.mrf.mxu0
        %v5613 = vadd.f32 0.0, %v5612
        %5614 = vmatmul.bf16.gmra.mxu0 %v5463
        %v5615 = vpop.f32.mrf.mxu0
        %v5616 = vadd.f32 0.0, %v5615
        %v5617 = vpop.f32.mrf.mxu0
        %v5618 = vadd.f32 0.0, %v5617
        %5619 = vmatmul.bf16.gmra.mxu0 %v5471
        %v5620 = vpop.f32.mrf.mxu0
        %v5621 = vadd.f32 0.0, %v5620
        %v5622 = vpop.f32.mrf.mxu0
        %v5623 = vadd.f32 0.0, %v5622
        %5624 = vdwg.mxu0
        %v5625 = vadd.f32 %v4694, %v5546
        %v5626 = vadd.f32 %v4695, %v5548
        %v5627 = vadd.f32 %v4696, %v5551
        %v5628 = vadd.f32 %v4697, %v5553
        %v5629 = vadd.f32 %v4698, %v5556
        %v5630 = vadd.f32 %v4699, %v5558
        %v5631 = vadd.f32 %v4700, %v5561
        %v5632 = vadd.f32 %v4701, %v5563
        %v5633 = vadd.f32 %v4702, %v5566
        %v5634 = vadd.f32 %v4703, %v5568
        %v5635 = vadd.f32 %v4704, %v5571
        %v5636 = vadd.f32 %v4705, %v5573
        %v5637 = vadd.f32 %v4706, %v5576
        %v5638 = vadd.f32 %v4707, %v5578
        %v5639 = vadd.f32 %v4708, %v5581
        %v5640 = vadd.f32 %v4709, %v5583
        %v5641 = vadd.f32 %v4710, %v5586
        %v5642 = vadd.f32 %v4711, %v5588
        %v5643 = vadd.f32 %v4712, %v5591
        %v5644 = vadd.f32 %v4713, %v5593
        %v5645 = vadd.f32 %v4714, %v5596
        %v5646 = vadd.f32 %v4715, %v5598
        %v5647 = vadd.f32 %v4716, %v5601
        %v5648 = vadd.f32 %v4717, %v5603
        %v5649 = vadd.f32 %v4718, %v5606
        %v5650 = vadd.f32 %v4719, %v5608
        %v5651 = vadd.f32 %v4720, %v5611
        %v5652 = vadd.f32 %v4721, %v5613
        %v5653 = vadd.f32 %v4722, %v5616
        %v5654 = vadd.f32 %v4723, %v5618
        %v5655 = vadd.f32 %v4724, %v5621
        %v5656 = vadd.f32 %v4725, %v5623
        %v5657 = vld [vmem:[#allocation2 + $0x4] sm:$0x8]
        %v5658 = vld [vmem:[#allocation2 + $0x8] sm:$0xf]
        %v5659 = vld [vmem:[#allocation2 + $0xc] sm:$0xf]
        %v5660 = vld [vmem:[#allocation2 + $0x10] sm:$0xf]
        %v5661 = vld [vmem:[#allocation2 + $0x14] sm:$0xf]
        %v5662 = vld [vmem:[#allocation2 + $0x18] sm:$0xf]
        %v5663 = vld [vmem:[#allocation2 + $0x1c] sm:$0xf]
        %v5664 = vld [vmem:[#allocation2 + $0x20] sm:$0xf]
        %v5665 = vld [vmem:[#allocation2 + $0x24] sm:$0xf]
        %v5666 = vld [vmem:[#allocation2 + $0x28] sm:$0xf]
        %v5667 = vld [vmem:[#allocation2 + $0x2c] sm:$0xf]
        %v5668 = vld [vmem:[#allocation2 + $0x30] sm:$0xf]
        %v5669 = vld [vmem:[#allocation2 + $0x34] sm:$0xf]
        %v5670 = vld [vmem:[#allocation2 + $0x38] sm:$0xf]
        %v5671 = vld [vmem:[#allocation2 + $0x3c] sm:$0xf]
        %v5672 = vld [vmem:[#allocation2 + $0x40] sm:$0xf]
        %v5673 = vld [vmem:[#allocation2 + $0x44] sm:$0xf]
        %v5674 = vld [vmem:[#allocation2 + $0x48] sm:$0xf]
        %v5675 = vld [vmem:[#allocation2 + $0x4c] sm:$0xf]
        %v5676 = vld [vmem:[#allocation2 + $0x50] sm:$0xf]
        %v5677 = vld [vmem:[#allocation2 + $0x54] sm:$0xf]
        %v5678 = vld [vmem:[#allocation2 + $0x58] sm:$0xf]
        %v5679 = vld [vmem:[#allocation2 + $0x5c] sm:$0xf]
        %v5680 = vld [vmem:[#allocation2 + $0x60] sm:$0xf]
        %v5681 = vld [vmem:[#allocation2 + $0x64] sm:$0xf]
        %v5682 = vld [vmem:[#allocation2 + $0x68] sm:$0xf]
        %v5683 = vld [vmem:[#allocation2 + $0x6c] sm:$0xf]
        %v5684 = vld [vmem:[#allocation2 + $0x70] sm:$0xf]
        %v5685 = vld [vmem:[#allocation2 + $0x74] sm:$0xf]
        %v5686 = vld [vmem:[#allocation2 + $0x78] sm:$0xf]
        %v5687 = vld [vmem:[#allocation2 + $0x7c] sm:$0xf]
        %v5688 = vld [vmem:[#allocation2 + $0x80] sm:$0xf]
        %v5689 = vld [vmem:[#allocation2 + $0x84] sm:$0xf]
        %s5690 = scalar_lea.vmem %s1, 768
        %v5691 = vld [vmem:[%s5690] sm:$0xf]
        %v5692 = vld [vmem:[%s5690 + $0x4] sm:$0xf]
        %v5693 = vld [vmem:[%s5690 + $0x8] sm:$0xf]
        %v5694 = vld [vmem:[%s5690 + $0xc] sm:$0xf]
        %v5695 = vld [vmem:[%s5690 + $0x10] sm:$0xf]
        %v5696 = vld [vmem:[%s5690 + $0x14] sm:$0xf]
        %v5697 = vld [vmem:[%s5690 + $0x18] sm:$0xf]
        %v5698 = vld [vmem:[%s5690 + $0x1c] sm:$0xf]
        %v5699 = vld [vmem:[%s5690 + $0x20] sm:$0xf]
        %v5700 = vld [vmem:[%s5690 + $0x24] sm:$0xf]
        %v5701 = vld [vmem:[%s5690 + $0x28] sm:$0xf]
        %v5702 = vld [vmem:[%s5690 + $0x2c] sm:$0xf]
        %v5703 = vld [vmem:[%s5690 + $0x30] sm:$0xf]
        %v5704 = vld [vmem:[%s5690 + $0x34] sm:$0xf]
        %v5705 = vld [vmem:[%s5690 + $0x38] sm:$0xf]
        %v5706 = vld [vmem:[%s5690 + $0x3c] sm:$0xf]
        %v5707 = vld [vmem:[%s5690 + $0x40] sm:$0xf]
        %v5708 = vld [vmem:[%s5690 + $0x44] sm:$0xf]
        %v5709 = vld [vmem:[%s5690 + $0x48] sm:$0xf]
        %v5710 = vld [vmem:[%s5690 + $0x4c] sm:$0xf]
        %v5711 = vld [vmem:[%s5690 + $0x50] sm:$0xf]
        %v5712 = vld [vmem:[%s5690 + $0x54] sm:$0xf]
        %v5713 = vld [vmem:[%s5690 + $0x58] sm:$0xf]
        %v5714 = vld [vmem:[%s5690 + $0x5c] sm:$0xf]
        %v5715 = vld [vmem:[%s5690 + $0x60] sm:$0xf]
        %v5716 = vld [vmem:[%s5690 + $0x64] sm:$0xf]
        %v5717 = vld [vmem:[%s5690 + $0x68] sm:$0xf]
        %v5718 = vld [vmem:[%s5690 + $0x6c] sm:$0xf]
        %v5719 = vld [vmem:[%s5690 + $0x70] sm:$0xf]
        %v5720 = vld [vmem:[%s5690 + $0x74] sm:$0xf]
        %v5721 = vld [vmem:[%s5690 + $0x78] sm:$0xf]
        %v5722 = vld [vmem:[%s5690 + $0x7c] sm:$0xf]
        %5724 = vset.pattern.permute.xlu0 0
        %5725 = vperm.xlu0 %5724, %v5691
        %v5726 = vpop.permute.xlu0 %5725
        %v5729 = vunpack.c.l.s4 839922192
        %v5730 = vunpack.c.0.s8 %v5729
        %v5731 = vperm.slane %v5726, %v5730
        %5733 = vset.pattern.permute.xlu0 0
        %5734 = vperm.xlu0 %5733, %v5692
        %v5735 = vpop.permute.xlu0 %5734
        %v5738 = vunpack.c.l.s4 839922192
        %v5739 = vunpack.c.0.s8 %v5738
        %v5740 = vperm.slane %v5735, %v5739
        %5742 = vset.pattern.permute.xlu0 0
        %5743 = vperm.xlu0 %5742, %v5693
        %v5744 = vpop.permute.xlu0 %5743
        %v5747 = vunpack.c.l.s4 839922192
        %v5748 = vunpack.c.0.s8 %v5747
        %v5749 = vperm.slane %v5744, %v5748
        %5751 = vset.pattern.permute.xlu0 0
        %5752 = vperm.xlu0 %5751, %v5694
        %v5753 = vpop.permute.xlu0 %5752
        %v5756 = vunpack.c.l.s4 839922192
        %v5757 = vunpack.c.0.s8 %v5756
        %v5758 = vperm.slane %v5753, %v5757
        %5760 = vset.pattern.permute.xlu0 0
        %5761 = vperm.xlu0 %5760, %v5695
        %v5762 = vpop.permute.xlu0 %5761
        %v5765 = vunpack.c.l.s4 839922192
        %v5766 = vunpack.c.0.s8 %v5765
        %v5767 = vperm.slane %v5762, %v5766
        %5769 = vset.pattern.permute.xlu0 0
        %5770 = vperm.xlu0 %5769, %v5696
        %v5771 = vpop.permute.xlu0 %5770
        %v5774 = vunpack.c.l.s4 839922192
        %v5775 = vunpack.c.0.s8 %v5774
        %v5776 = vperm.slane %v5771, %v5775
        %5778 = vset.pattern.permute.xlu0 0
        %5779 = vperm.xlu0 %5778, %v5697
        %v5780 = vpop.permute.xlu0 %5779
        %v5783 = vunpack.c.l.s4 839922192
        %v5784 = vunpack.c.0.s8 %v5783
        %v5785 = vperm.slane %v5780, %v5784
        %5787 = vset.pattern.permute.xlu0 0
        %5788 = vperm.xlu0 %5787, %v5698
        %v5789 = vpop.permute.xlu0 %5788
        %v5792 = vunpack.c.l.s4 839922192
        %v5793 = vunpack.c.0.s8 %v5792
        %v5794 = vperm.slane %v5789, %v5793
        %5796 = vset.pattern.permute.xlu0 0
        %5797 = vperm.xlu0 %5796, %v5699
        %v5798 = vpop.permute.xlu0 %5797
        %v5801 = vunpack.c.l.s4 839922192
        %v5802 = vunpack.c.0.s8 %v5801
        %v5803 = vperm.slane %v5798, %v5802
        %5805 = vset.pattern.permute.xlu0 0
        %5806 = vperm.xlu0 %5805, %v5700
        %v5807 = vpop.permute.xlu0 %5806
        %v5810 = vunpack.c.l.s4 839922192
        %v5811 = vunpack.c.0.s8 %v5810
        %v5812 = vperm.slane %v5807, %v5811
        %5814 = vset.pattern.permute.xlu0 0
        %5815 = vperm.xlu0 %5814, %v5701
        %v5816 = vpop.permute.xlu0 %5815
        %v5819 = vunpack.c.l.s4 839922192
        %v5820 = vunpack.c.0.s8 %v5819
        %v5821 = vperm.slane %v5816, %v5820
        %5823 = vset.pattern.permute.xlu0 0
        %5824 = vperm.xlu0 %5823, %v5702
        %v5825 = vpop.permute.xlu0 %5824
        %v5828 = vunpack.c.l.s4 839922192
        %v5829 = vunpack.c.0.s8 %v5828
        %v5830 = vperm.slane %v5825, %v5829
        %5832 = vset.pattern.permute.xlu0 0
        %5833 = vperm.xlu0 %5832, %v5703
        %v5834 = vpop.permute.xlu0 %5833
        %v5837 = vunpack.c.l.s4 839922192
        %v5838 = vunpack.c.0.s8 %v5837
        %v5839 = vperm.slane %v5834, %v5838
        %5841 = vset.pattern.permute.xlu0 0
        %5842 = vperm.xlu0 %5841, %v5704
        %v5843 = vpop.permute.xlu0 %5842
        %v5846 = vunpack.c.l.s4 839922192
        %v5847 = vunpack.c.0.s8 %v5846
        %v5848 = vperm.slane %v5843, %v5847
        %5850 = vset.pattern.permute.xlu0 0
        %5851 = vperm.xlu0 %5850, %v5705
        %v5852 = vpop.permute.xlu0 %5851
        %v5855 = vunpack.c.l.s4 839922192
        %v5856 = vunpack.c.0.s8 %v5855
        %v5857 = vperm.slane %v5852, %v5856
        %5859 = vset.pattern.permute.xlu0 0
        %5860 = vperm.xlu0 %5859, %v5706
        %v5861 = vpop.permute.xlu0 %5860
        %v5864 = vunpack.c.l.s4 839922192
        %v5865 = vunpack.c.0.s8 %v5864
        %v5866 = vperm.slane %v5861, %v5865
        %5868 = vset.pattern.permute.xlu0 0
        %5869 = vperm.xlu0 %5868, %v5707
        %v5870 = vpop.permute.xlu0 %5869
        %v5873 = vunpack.c.l.s4 839922192
        %v5874 = vunpack.c.0.s8 %v5873
        %v5875 = vperm.slane %v5870, %v5874
        %5877 = vset.pattern.permute.xlu0 0
        %5878 = vperm.xlu0 %5877, %v5708
        %v5879 = vpop.permute.xlu0 %5878
        %v5882 = vunpack.c.l.s4 839922192
        %v5883 = vunpack.c.0.s8 %v5882
        %v5884 = vperm.slane %v5879, %v5883
        %5886 = vset.pattern.permute.xlu0 0
        %5887 = vperm.xlu0 %5886, %v5709
        %v5888 = vpop.permute.xlu0 %5887
        %v5891 = vunpack.c.l.s4 839922192
        %v5892 = vunpack.c.0.s8 %v5891
        %v5893 = vperm.slane %v5888, %v5892
        %5895 = vset.pattern.permute.xlu0 0
        %5896 = vperm.xlu0 %5895, %v5710
        %v5897 = vpop.permute.xlu0 %5896
        %v5900 = vunpack.c.l.s4 839922192
        %v5901 = vunpack.c.0.s8 %v5900
        %v5902 = vperm.slane %v5897, %v5901
        %5904 = vset.pattern.permute.xlu0 0
        %5905 = vperm.xlu0 %5904, %v5711
        %v5906 = vpop.permute.xlu0 %5905
        %v5909 = vunpack.c.l.s4 839922192
        %v5910 = vunpack.c.0.s8 %v5909
        %v5911 = vperm.slane %v5906, %v5910
        %5913 = vset.pattern.permute.xlu0 0
        %5914 = vperm.xlu0 %5913, %v5712
        %v5915 = vpop.permute.xlu0 %5914
        %v5918 = vunpack.c.l.s4 839922192
        %v5919 = vunpack.c.0.s8 %v5918
        %v5920 = vperm.slane %v5915, %v5919
        %5922 = vset.pattern.permute.xlu0 0
        %5923 = vperm.xlu0 %5922, %v5713
        %v5924 = vpop.permute.xlu0 %5923
        %v5927 = vunpack.c.l.s4 839922192
        %v5928 = vunpack.c.0.s8 %v5927
        %v5929 = vperm.slane %v5924, %v5928
        %5931 = vset.pattern.permute.xlu0 0
        %5932 = vperm.xlu0 %5931, %v5714
        %v5933 = vpop.permute.xlu0 %5932
        %v5936 = vunpack.c.l.s4 839922192
        %v5937 = vunpack.c.0.s8 %v5936
        %v5938 = vperm.slane %v5933, %v5937
        %5940 = vset.pattern.permute.xlu0 0
        %5941 = vperm.xlu0 %5940, %v5715
        %v5942 = vpop.permute.xlu0 %5941
        %v5945 = vunpack.c.l.s4 839922192
        %v5946 = vunpack.c.0.s8 %v5945
        %v5947 = vperm.slane %v5942, %v5946
        %5949 = vset.pattern.permute.xlu0 0
        %5950 = vperm.xlu0 %5949, %v5716
        %v5951 = vpop.permute.xlu0 %5950
        %v5954 = vunpack.c.l.s4 839922192
        %v5955 = vunpack.c.0.s8 %v5954
        %v5956 = vperm.slane %v5951, %v5955
        %5958 = vset.pattern.permute.xlu0 0
        %5959 = vperm.xlu0 %5958, %v5717
        %v5960 = vpop.permute.xlu0 %5959
        %v5963 = vunpack.c.l.s4 839922192
        %v5964 = vunpack.c.0.s8 %v5963
        %v5965 = vperm.slane %v5960, %v5964
        %5967 = vset.pattern.permute.xlu0 0
        %5968 = vperm.xlu0 %5967, %v5718
        %v5969 = vpop.permute.xlu0 %5968
        %v5972 = vunpack.c.l.s4 839922192
        %v5973 = vunpack.c.0.s8 %v5972
        %v5974 = vperm.slane %v5969, %v5973
        %5976 = vset.pattern.permute.xlu0 0
        %5977 = vperm.xlu0 %5976, %v5719
        %v5978 = vpop.permute.xlu0 %5977
        %v5981 = vunpack.c.l.s4 839922192
        %v5982 = vunpack.c.0.s8 %v5981
        %v5983 = vperm.slane %v5978, %v5982
        %5985 = vset.pattern.permute.xlu0 0
        %5986 = vperm.xlu0 %5985, %v5720
        %v5987 = vpop.permute.xlu0 %5986
        %v5990 = vunpack.c.l.s4 839922192
        %v5991 = vunpack.c.0.s8 %v5990
        %v5992 = vperm.slane %v5987, %v5991
        %5994 = vset.pattern.permute.xlu0 0
        %5995 = vperm.xlu0 %5994, %v5721
        %v5996 = vpop.permute.xlu0 %5995
        %v5999 = vunpack.c.l.s4 839922192
        %v6000 = vunpack.c.0.s8 %v5999
        %v6001 = vperm.slane %v5996, %v6000
        %6003 = vset.pattern.permute.xlu0 0
        %6004 = vperm.xlu0 %6003, %v5722
        %v6005 = vpop.permute.xlu0 %6004
        %v6008 = vunpack.c.l.s4 839922192
        %v6009 = vunpack.c.0.s8 %v6008
        %v6010 = vperm.slane %v6005, %v6009
        %v6011 = vunpack.c.l.bf16 %v5657
        %v6012 = vunpack.c.l.bf16 %v5658
        %v6013 = vunpack.c.l.bf16 %v5659
        %v6014 = vunpack.c.l.bf16 %v5660
        %v6015 = vunpack.c.l.bf16 %v5661
        %v6016 = vunpack.c.l.bf16 %v5662
        %v6017 = vunpack.c.l.bf16 %v5663
        %v6018 = vunpack.c.l.bf16 %v5664
        %v6019 = vunpack.c.l.bf16 %v5665
        %v6020 = vunpack.c.l.bf16 %v5666
        %v6021 = vunpack.c.l.bf16 %v5667
        %v6022 = vunpack.c.l.bf16 %v5668
        %v6023 = vunpack.c.l.bf16 %v5669
        %v6024 = vunpack.c.l.bf16 %v5670
        %v6025 = vunpack.c.l.bf16 %v5671
        %v6026 = vunpack.c.l.bf16 %v5672
        %v6027 = vunpack.c.l.bf16 %v5673
        %v6028 = vunpack.c.l.bf16 %v5674
        %v6029 = vunpack.c.l.bf16 %v5675
        %v6030 = vunpack.c.l.bf16 %v5676
        %v6031 = vunpack.c.l.bf16 %v5677
        %v6032 = vunpack.c.l.bf16 %v5678
        %v6033 = vunpack.c.l.bf16 %v5679
        %v6034 = vunpack.c.l.bf16 %v5680
        %v6035 = vunpack.c.l.bf16 %v5681
        %v6036 = vunpack.c.l.bf16 %v5682
        %v6037 = vunpack.c.l.bf16 %v5683
        %v6038 = vunpack.c.l.bf16 %v5684
        %v6039 = vunpack.c.l.bf16 %v5685
        %v6040 = vunpack.c.l.bf16 %v5686
        %v6041 = vunpack.c.l.bf16 %v5687
        %v6042 = vunpack.c.l.bf16 %v5688
        %v6043 = vunpack.c.l.bf16 %v5689
        %v6044 = vunpack.c.l.bf16 %v5731
        %v6045 = vunpack.c.l.bf16 %v5740
        %v6046 = vunpack.c.l.bf16 %v5749
        %v6047 = vunpack.c.l.bf16 %v5758
        %v6048 = vunpack.c.l.bf16 %v5767
        %v6049 = vunpack.c.l.bf16 %v5776
        %v6050 = vunpack.c.l.bf16 %v5785
        %v6051 = vunpack.c.l.bf16 %v5794
        %v6052 = vunpack.c.l.bf16 %v5803
        %v6053 = vunpack.c.l.bf16 %v5812
        %v6054 = vunpack.c.l.bf16 %v5821
        %v6055 = vunpack.c.l.bf16 %v5830
        %v6056 = vunpack.c.l.bf16 %v5839
        %v6057 = vunpack.c.l.bf16 %v5848
        %v6058 = vunpack.c.l.bf16 %v5857
        %v6059 = vunpack.c.l.bf16 %v5866
        %v6060 = vunpack.c.l.bf16 %v5875
        %v6061 = vunpack.c.l.bf16 %v5884
        %v6062 = vunpack.c.l.bf16 %v5893
        %v6063 = vunpack.c.l.bf16 %v5902
        %v6064 = vunpack.c.l.bf16 %v5911
        %v6065 = vunpack.c.l.bf16 %v5920
        %v6066 = vunpack.c.l.bf16 %v5929
        %v6067 = vunpack.c.l.bf16 %v5938
        %v6068 = vunpack.c.l.bf16 %v5947
        %v6069 = vunpack.c.l.bf16 %v5956
        %v6070 = vunpack.c.l.bf16 %v5965
        %v6071 = vunpack.c.l.bf16 %v5974
        %v6072 = vunpack.c.l.bf16 %v5983
        %v6073 = vunpack.c.l.bf16 %v5992
        %v6074 = vunpack.c.l.bf16 %v6001
        %v6075 = vunpack.c.l.bf16 %v6010
        %v6108 = vrot.slane %v6044, 1
        %v6109 = vrot.slane %v6045, 1
        %v6110 = vsel %vm1167, %v6108, %v6109
        %v6111 = vrot.slane %v6046, 1
        %v6112 = vsel %vm1167, %v6109, %v6111
        %v6113 = vrot.slane %v6047, 1
        %v6114 = vsel %vm1167, %v6111, %v6113
        %v6115 = vrot.slane %v6048, 1
        %v6116 = vsel %vm1167, %v6113, %v6115
        %v6117 = vrot.slane %v6049, 1
        %v6118 = vsel %vm1167, %v6115, %v6117
        %v6119 = vrot.slane %v6050, 1
        %v6120 = vsel %vm1167, %v6117, %v6119
        %v6121 = vrot.slane %v6051, 1
        %v6122 = vsel %vm1167, %v6119, %v6121
        %v6123 = vrot.slane %v6052, 1
        %v6124 = vsel %vm1167, %v6121, %v6123
        %v6125 = vrot.slane %v6053, 1
        %v6126 = vsel %vm1167, %v6123, %v6125
        %v6127 = vrot.slane %v6054, 1
        %v6128 = vsel %vm1167, %v6125, %v6127
        %v6129 = vrot.slane %v6055, 1
        %v6130 = vsel %vm1167, %v6127, %v6129
        %v6131 = vrot.slane %v6056, 1
        %v6132 = vsel %vm1167, %v6129, %v6131
        %v6133 = vrot.slane %v6057, 1
        %v6134 = vsel %vm1167, %v6131, %v6133
        %v6135 = vrot.slane %v6058, 1
        %v6136 = vsel %vm1167, %v6133, %v6135
        %v6137 = vrot.slane %v6059, 1
        %v6138 = vsel %vm1167, %v6135, %v6137
        %v6139 = vrot.slane %v6060, 1
        %v6140 = vsel %vm1167, %v6137, %v6139
        %v6141 = vrot.slane %v6061, 1
        %v6142 = vsel %vm1167, %v6139, %v6141
        %v6143 = vrot.slane %v6062, 1
        %v6144 = vsel %vm1167, %v6141, %v6143
        %v6145 = vrot.slane %v6063, 1
        %v6146 = vsel %vm1167, %v6143, %v6145
        %v6147 = vrot.slane %v6064, 1
        %v6148 = vsel %vm1167, %v6145, %v6147
        %v6149 = vrot.slane %v6065, 1
        %v6150 = vsel %vm1167, %v6147, %v6149
        %v6151 = vrot.slane %v6066, 1
        %v6152 = vsel %vm1167, %v6149, %v6151
        %v6153 = vrot.slane %v6067, 1
        %v6154 = vsel %vm1167, %v6151, %v6153
        %v6155 = vrot.slane %v6068, 1
        %v6156 = vsel %vm1167, %v6153, %v6155
        %v6157 = vrot.slane %v6069, 1
        %v6158 = vsel %vm1167, %v6155, %v6157
        %v6159 = vrot.slane %v6070, 1
        %v6160 = vsel %vm1167, %v6157, %v6159
        %v6161 = vrot.slane %v6071, 1
        %v6162 = vsel %vm1167, %v6159, %v6161
        %v6163 = vrot.slane %v6072, 1
        %v6164 = vsel %vm1167, %v6161, %v6163
        %v6165 = vrot.slane %v6073, 1
        %v6166 = vsel %vm1167, %v6163, %v6165
        %v6167 = vrot.slane %v6074, 1
        %v6168 = vsel %vm1167, %v6165, %v6167
        %v6169 = vrot.slane %v6075, 1
        %v6170 = vsel %vm1167, %v6167, %v6169
        %v6204 = vmul.f32 %v6011, %v6108
        %v6205 = vmul.f32 %v6012, %v6110
        %v6206 = vmul.f32 %v6013, %v6112
        %v6207 = vmul.f32 %v6014, %v6114
        %v6208 = vmul.f32 %v6015, %v6116
        %v6209 = vmul.f32 %v6016, %v6118
        %v6210 = vmul.f32 %v6017, %v6120
        %v6211 = vmul.f32 %v6018, %v6122
        %v6212 = vmul.f32 %v6019, %v6124
        %v6213 = vmul.f32 %v6020, %v6126
        %v6214 = vmul.f32 %v6021, %v6128
        %v6215 = vmul.f32 %v6022, %v6130
        %v6216 = vmul.f32 %v6023, %v6132
        %v6217 = vmul.f32 %v6024, %v6134
        %v6218 = vmul.f32 %v6025, %v6136
        %v6219 = vmul.f32 %v6026, %v6138
        %v6220 = vmul.f32 %v6027, %v6140
        %v6221 = vmul.f32 %v6028, %v6142
        %v6222 = vmul.f32 %v6029, %v6144
        %v6223 = vmul.f32 %v6030, %v6146
        %v6224 = vmul.f32 %v6031, %v6148
        %v6225 = vmul.f32 %v6032, %v6150
        %v6226 = vmul.f32 %v6033, %v6152
        %v6227 = vmul.f32 %v6034, %v6154
        %v6228 = vmul.f32 %v6035, %v6156
        %v6229 = vmul.f32 %v6036, %v6158
        %v6230 = vmul.f32 %v6037, %v6160
        %v6231 = vmul.f32 %v6038, %v6162
        %v6232 = vmul.f32 %v6039, %v6164
        %v6233 = vmul.f32 %v6040, %v6166
        %v6234 = vmul.f32 %v6041, %v6168
        %v6235 = vmul.f32 %v6042, %v6170
        %v6236 = vmul.f32 %v6043, %v6169
        %v6237 = vpack.c.bf16 %v6205, %v6204
        %v6238 = vpack.c.bf16 %v6207, %v6206
        %v6239 = vpack.c.bf16 %v6209, %v6208
        %v6240 = vpack.c.bf16 %v6211, %v6210
        %v6241 = vpack.c.bf16 %v6213, %v6212
        %v6242 = vpack.c.bf16 %v6215, %v6214
        %v6243 = vpack.c.bf16 %v6217, %v6216
        %v6244 = vpack.c.bf16 %v6219, %v6218
        %v6245 = vpack.c.bf16 %v6221, %v6220
        %v6246 = vpack.c.bf16 %v6223, %v6222
        %v6247 = vpack.c.bf16 %v6225, %v6224
        %v6248 = vpack.c.bf16 %v6227, %v6226
        %v6249 = vpack.c.bf16 %v6229, %v6228
        %v6250 = vpack.c.bf16 %v6231, %v6230
        %v6251 = vpack.c.bf16 %v6233, %v6232
        %v6252 = vpack.c.bf16 %v6235, %v6234
        %v6253 = vpack.c.bf16 %v6236, %v6236
        %s6254 = scalar_lea.vmem %s4, 384
        %v6255 = vld [vmem:[%s6254] sm:$0xf]
        %v6256 = vld [vmem:[%s6254 + $0x4] sm:$0xf]
        %v6257 = vld [vmem:[%s6254 + $0x8] sm:$0xf]
        %v6258 = vld [vmem:[%s6254 + $0xc] sm:$0xf]
        %v6259 = vld [vmem:[%s6254 + $0x10] sm:$0xf]
        %v6260 = vld [vmem:[%s6254 + $0x14] sm:$0xf]
        %v6261 = vld [vmem:[%s6254 + $0x18] sm:$0xf]
        %v6262 = vld [vmem:[%s6254 + $0x1c] sm:$0xf]
        %v6263 = vld [vmem:[%s6254 + $0x20] sm:$0xf]
        %v6264 = vld [vmem:[%s6254 + $0x24] sm:$0xf]
        %v6265 = vld [vmem:[%s6254 + $0x28] sm:$0xf]
        %v6266 = vld [vmem:[%s6254 + $0x2c] sm:$0xf]
        %v6267 = vld [vmem:[%s6254 + $0x30] sm:$0xf]
        %v6268 = vld [vmem:[%s6254 + $0x34] sm:$0xf]
        %v6269 = vld [vmem:[%s6254 + $0x38] sm:$0xf]
        %v6270 = vld [vmem:[%s6254 + $0x3c] sm:$0xf]
        %v6272 = vshrl.u32 %v6237, 16
        %v6274 = vrot.slane %v6272, 3
        %v6275 = vshll.u32 %v6237, 16
        %v6277 = vrot.slane %v6275, 4
        %v6278 = vor.u32 %v6274, %v6277
        %v6280 = vshrl.u32 %v6238, 16
        %v6282 = vrot.slane %v6280, 3
        %v6283 = vshll.u32 %v6238, 16
        %v6285 = vrot.slane %v6283, 4
        %v6286 = vor.u32 %v6282, %v6285
        %v6287 = vsel %vm1885, %v6278, %v6286
        %v6289 = vshrl.u32 %v6239, 16
        %v6291 = vrot.slane %v6289, 3
        %v6292 = vshll.u32 %v6239, 16
        %v6294 = vrot.slane %v6292, 4
        %v6295 = vor.u32 %v6291, %v6294
        %v6296 = vsel %vm1885, %v6286, %v6295
        %v6298 = vshrl.u32 %v6240, 16
        %v6300 = vrot.slane %v6298, 3
        %v6301 = vshll.u32 %v6240, 16
        %v6303 = vrot.slane %v6301, 4
        %v6304 = vor.u32 %v6300, %v6303
        %v6305 = vsel %vm1885, %v6295, %v6304
        %v6307 = vshrl.u32 %v6241, 16
        %v6309 = vrot.slane %v6307, 3
        %v6310 = vshll.u32 %v6241, 16
        %v6312 = vrot.slane %v6310, 4
        %v6313 = vor.u32 %v6309, %v6312
        %v6314 = vsel %vm1885, %v6304, %v6313
        %v6316 = vshrl.u32 %v6242, 16
        %v6318 = vrot.slane %v6316, 3
        %v6319 = vshll.u32 %v6242, 16
        %v6321 = vrot.slane %v6319, 4
        %v6322 = vor.u32 %v6318, %v6321
        %v6323 = vsel %vm1885, %v6313, %v6322
        %v6325 = vshrl.u32 %v6243, 16
        %v6327 = vrot.slane %v6325, 3
        %v6328 = vshll.u32 %v6243, 16
        %v6330 = vrot.slane %v6328, 4
        %v6331 = vor.u32 %v6327, %v6330
        %v6332 = vsel %vm1885, %v6322, %v6331
        %v6334 = vshrl.u32 %v6244, 16
        %v6336 = vrot.slane %v6334, 3
        %v6337 = vshll.u32 %v6244, 16
        %v6339 = vrot.slane %v6337, 4
        %v6340 = vor.u32 %v6336, %v6339
        %v6341 = vsel %vm1885, %v6331, %v6340
        %v6343 = vshrl.u32 %v6245, 16
        %v6345 = vrot.slane %v6343, 3
        %v6346 = vshll.u32 %v6245, 16
        %v6348 = vrot.slane %v6346, 4
        %v6349 = vor.u32 %v6345, %v6348
        %v6350 = vsel %vm1885, %v6340, %v6349
        %v6352 = vshrl.u32 %v6246, 16
        %v6354 = vrot.slane %v6352, 3
        %v6355 = vshll.u32 %v6246, 16
        %v6357 = vrot.slane %v6355, 4
        %v6358 = vor.u32 %v6354, %v6357
        %v6359 = vsel %vm1885, %v6349, %v6358
        %v6361 = vshrl.u32 %v6247, 16
        %v6363 = vrot.slane %v6361, 3
        %v6364 = vshll.u32 %v6247, 16
        %v6366 = vrot.slane %v6364, 4
        %v6367 = vor.u32 %v6363, %v6366
        %v6368 = vsel %vm1885, %v6358, %v6367
        %v6370 = vshrl.u32 %v6248, 16
        %v6372 = vrot.slane %v6370, 3
        %v6373 = vshll.u32 %v6248, 16
        %v6375 = vrot.slane %v6373, 4
        %v6376 = vor.u32 %v6372, %v6375
        %v6377 = vsel %vm1885, %v6367, %v6376
        %v6379 = vshrl.u32 %v6249, 16
        %v6381 = vrot.slane %v6379, 3
        %v6382 = vshll.u32 %v6249, 16
        %v6384 = vrot.slane %v6382, 4
        %v6385 = vor.u32 %v6381, %v6384
        %v6386 = vsel %vm1885, %v6376, %v6385
        %v6388 = vshrl.u32 %v6250, 16
        %v6390 = vrot.slane %v6388, 3
        %v6391 = vshll.u32 %v6250, 16
        %v6393 = vrot.slane %v6391, 4
        %v6394 = vor.u32 %v6390, %v6393
        %v6395 = vsel %vm1885, %v6385, %v6394
        %v6397 = vshrl.u32 %v6251, 16
        %v6399 = vrot.slane %v6397, 3
        %v6400 = vshll.u32 %v6251, 16
        %v6402 = vrot.slane %v6400, 4
        %v6403 = vor.u32 %v6399, %v6402
        %v6404 = vsel %vm1885, %v6394, %v6403
        %v6406 = vshrl.u32 %v6252, 16
        %v6408 = vrot.slane %v6406, 3
        %v6409 = vshll.u32 %v6252, 16
        %v6411 = vrot.slane %v6409, 4
        %v6412 = vor.u32 %v6408, %v6411
        %v6413 = vsel %vm1885, %v6403, %v6412
        %v6415 = vshrl.u32 %v6253, 16
        %v6417 = vrot.slane %v6415, 3
        %v6418 = vshll.u32 %v6253, 16
        %v6420 = vrot.slane %v6418, 4
        %v6421 = vor.u32 %v6417, %v6420
        %v6422 = vsel %vm1885, %v6412, %v6421
        %v6455 = vunpack.c.l.b16 %v6255
        %v6456 = vunpack.c.l.b16 %v6256
        %v6457 = vunpack.c.l.b16 %v6257
        %v6458 = vunpack.c.l.b16 %v6258
        %v6459 = vunpack.c.l.b16 %v6259
        %v6460 = vunpack.c.l.b16 %v6260
        %v6461 = vunpack.c.l.b16 %v6261
        %v6462 = vunpack.c.l.b16 %v6262
        %v6463 = vunpack.c.l.b16 %v6263
        %v6464 = vunpack.c.l.b16 %v6264
        %v6465 = vunpack.c.l.b16 %v6265
        %v6466 = vunpack.c.l.b16 %v6266
        %v6467 = vunpack.c.l.b16 %v6267
        %v6468 = vunpack.c.l.b16 %v6268
        %v6469 = vunpack.c.l.b16 %v6269
        %v6470 = vunpack.c.l.b16 %v6270
        %v6471 = vpack.c.b16 %v6456, %v6455
        %v6472 = vpack.c.b16 %v6458, %v6457
        %v6473 = vpack.c.b16 %v6460, %v6459
        %v6474 = vpack.c.b16 %v6462, %v6461
        %v6475 = vpack.c.b16 %v6464, %v6463
        %v6476 = vpack.c.b16 %v6466, %v6465
        %v6477 = vpack.c.b16 %v6468, %v6467
        %v6478 = vpack.c.b16 %v6470, %v6469
        %6487 = vmatpush.bf16.msra.mxu0 %v6478
        %6488 = vmatpush.bf16.msra.mxu0 %v6477
        %6489 = vmatpush.bf16.msra.mxu0 %v6476
        %6490 = vmatpush.bf16.msra.mxu0 %v6475
        %6491 = vmatpush.bf16.msra.mxu0 %v6474
        %6492 = vmatpush.bf16.msra.mxu0 %v6473
        %6493 = vmatpush.bf16.msra.mxu0 %v6472
        %6494 = vmatpush.bf16.msra.mxu0 %v6471
        %6495 = vmatmul.bf16.gmra.mxu0 %v6287
        %v6496 = vpop.f32.mrf.mxu0
        %v6497 = vadd.f32 0.0, %v6496
        %v6498 = vpop.f32.mrf.mxu0
        %v6499 = vadd.f32 0.0, %v6498
        %6500 = vmatmul.bf16.gmra.mxu0 %v6296
        %v6501 = vpop.f32.mrf.mxu0
        %v6502 = vadd.f32 0.0, %v6501
        %v6503 = vpop.f32.mrf.mxu0
        %v6504 = vadd.f32 0.0, %v6503
        %6505 = vmatmul.bf16.gmra.mxu0 %v6305
        %v6506 = vpop.f32.mrf.mxu0
        %v6507 = vadd.f32 0.0, %v6506
        %v6508 = vpop.f32.mrf.mxu0
        %v6509 = vadd.f32 0.0, %v6508
        %6510 = vmatmul.bf16.gmra.mxu0 %v6314
        %v6511 = vpop.f32.mrf.mxu0
        %v6512 = vadd.f32 0.0, %v6511
        %v6513 = vpop.f32.mrf.mxu0
        %v6514 = vadd.f32 0.0, %v6513
        %6515 = vmatmul.bf16.gmra.mxu0 %v6323
        %v6516 = vpop.f32.mrf.mxu0
        %v6517 = vadd.f32 0.0, %v6516
        %v6518 = vpop.f32.mrf.mxu0
        %v6519 = vadd.f32 0.0, %v6518
        %6520 = vmatmul.bf16.gmra.mxu0 %v6332
        %v6521 = vpop.f32.mrf.mxu0
        %v6522 = vadd.f32 0.0, %v6521
        %v6523 = vpop.f32.mrf.mxu0
        %v6524 = vadd.f32 0.0, %v6523
        %6525 = vmatmul.bf16.gmra.mxu0 %v6341
        %v6526 = vpop.f32.mrf.mxu0
        %v6527 = vadd.f32 0.0, %v6526
        %v6528 = vpop.f32.mrf.mxu0
        %v6529 = vadd.f32 0.0, %v6528
        %6530 = vmatmul.bf16.gmra.mxu0 %v6350
        %v6531 = vpop.f32.mrf.mxu0
        %v6532 = vadd.f32 0.0, %v6531
        %v6533 = vpop.f32.mrf.mxu0
        %v6534 = vadd.f32 0.0, %v6533
        %6535 = vmatmul.bf16.gmra.mxu0 %v6359
        %v6536 = vpop.f32.mrf.mxu0
        %v6537 = vadd.f32 0.0, %v6536
        %v6538 = vpop.f32.mrf.mxu0
        %v6539 = vadd.f32 0.0, %v6538
        %6540 = vmatmul.bf16.gmra.mxu0 %v6368
        %v6541 = vpop.f32.mrf.mxu0
        %v6542 = vadd.f32 0.0, %v6541
        %v6543 = vpop.f32.mrf.mxu0
        %v6544 = vadd.f32 0.0, %v6543
        %6545 = vmatmul.bf16.gmra.mxu0 %v6377
        %v6546 = vpop.f32.mrf.mxu0
        %v6547 = vadd.f32 0.0, %v6546
        %v6548 = vpop.f32.mrf.mxu0
        %v6549 = vadd.f32 0.0, %v6548
        %6550 = vmatmul.bf16.gmra.mxu0 %v6386
        %v6551 = vpop.f32.mrf.mxu0
        %v6552 = vadd.f32 0.0, %v6551
        %v6553 = vpop.f32.mrf.mxu0
        %v6554 = vadd.f32 0.0, %v6553
        %6555 = vmatmul.bf16.gmra.mxu0 %v6395
        %v6556 = vpop.f32.mrf.mxu0
        %v6557 = vadd.f32 0.0, %v6556
        %v6558 = vpop.f32.mrf.mxu0
        %v6559 = vadd.f32 0.0, %v6558
        %6560 = vmatmul.bf16.gmra.mxu0 %v6404
        %v6561 = vpop.f32.mrf.mxu0
        %v6562 = vadd.f32 0.0, %v6561
        %v6563 = vpop.f32.mrf.mxu0
        %v6564 = vadd.f32 0.0, %v6563
        %6565 = vmatmul.bf16.gmra.mxu0 %v6413
        %v6566 = vpop.f32.mrf.mxu0
        %v6567 = vadd.f32 0.0, %v6566
        %v6568 = vpop.f32.mrf.mxu0
        %v6569 = vadd.f32 0.0, %v6568
        %6570 = vmatmul.bf16.gmra.mxu0 %v6422
        %v6571 = vpop.f32.mrf.mxu0
        %v6572 = vadd.f32 0.0, %v6571
        %v6573 = vpop.f32.mrf.mxu0
        %v6574 = vadd.f32 0.0, %v6573
        %6575 = vdwg.mxu0
        %v6576 = vadd.f32 %v5625, %v6497
        %v6577 = vadd.f32 %v5626, %v6499
        %v6578 = vadd.f32 %v5627, %v6502
        %v6579 = vadd.f32 %v5628, %v6504
        %v6580 = vadd.f32 %v5629, %v6507
        %v6581 = vadd.f32 %v5630, %v6509
        %v6582 = vadd.f32 %v5631, %v6512
        %v6583 = vadd.f32 %v5632, %v6514
        %v6584 = vadd.f32 %v5633, %v6517
        %v6585 = vadd.f32 %v5634, %v6519
        %v6586 = vadd.f32 %v5635, %v6522
        %v6587 = vadd.f32 %v5636, %v6524
        %v6588 = vadd.f32 %v5637, %v6527
        %v6589 = vadd.f32 %v5638, %v6529
        %v6590 = vadd.f32 %v5639, %v6532
        %v6591 = vadd.f32 %v5640, %v6534
        %v6592 = vadd.f32 %v5641, %v6537
        %v6593 = vadd.f32 %v5642, %v6539
        %v6594 = vadd.f32 %v5643, %v6542
        %v6595 = vadd.f32 %v5644, %v6544
        %v6596 = vadd.f32 %v5645, %v6547
        %v6597 = vadd.f32 %v5646, %v6549
        %v6598 = vadd.f32 %v5647, %v6552
        %v6599 = vadd.f32 %v5648, %v6554
        %v6600 = vadd.f32 %v5649, %v6557
        %v6601 = vadd.f32 %v5650, %v6559
        %v6602 = vadd.f32 %v5651, %v6562
        %v6603 = vadd.f32 %v5652, %v6564
        %v6604 = vadd.f32 %v5653, %v6567
        %v6605 = vadd.f32 %v5654, %v6569
        %v6606 = vadd.f32 %v5655, %v6572
        %v6607 = vadd.f32 %v5656, %v6574
        %s6608 = scalar_lea.vmem %s1, 896
        %v6609 = vld [vmem:[%s6608] sm:$0xf]
        %v6610 = vld [vmem:[%s6608 + $0x4] sm:$0xf]
        %v6611 = vld [vmem:[%s6608 + $0x8] sm:$0xf]
        %v6612 = vld [vmem:[%s6608 + $0xc] sm:$0xf]
        %v6613 = vld [vmem:[%s6608 + $0x10] sm:$0xf]
        %v6614 = vld [vmem:[%s6608 + $0x14] sm:$0xf]
        %v6615 = vld [vmem:[%s6608 + $0x18] sm:$0xf]
        %v6616 = vld [vmem:[%s6608 + $0x1c] sm:$0xf]
        %v6617 = vld [vmem:[%s6608 + $0x20] sm:$0xf]
        %v6618 = vld [vmem:[%s6608 + $0x24] sm:$0xf]
        %v6619 = vld [vmem:[%s6608 + $0x28] sm:$0xf]
        %v6620 = vld [vmem:[%s6608 + $0x2c] sm:$0xf]
        %v6621 = vld [vmem:[%s6608 + $0x30] sm:$0xf]
        %v6622 = vld [vmem:[%s6608 + $0x34] sm:$0xf]
        %v6623 = vld [vmem:[%s6608 + $0x38] sm:$0xf]
        %v6624 = vld [vmem:[%s6608 + $0x3c] sm:$0xf]
        %v6625 = vld [vmem:[%s6608 + $0x40] sm:$0xf]
        %v6626 = vld [vmem:[%s6608 + $0x44] sm:$0xf]
        %v6627 = vld [vmem:[%s6608 + $0x48] sm:$0xf]
        %v6628 = vld [vmem:[%s6608 + $0x4c] sm:$0xf]
        %v6629 = vld [vmem:[%s6608 + $0x50] sm:$0xf]
        %v6630 = vld [vmem:[%s6608 + $0x54] sm:$0xf]
        %v6631 = vld [vmem:[%s6608 + $0x58] sm:$0xf]
        %v6632 = vld [vmem:[%s6608 + $0x5c] sm:$0xf]
        %v6633 = vld [vmem:[%s6608 + $0x60] sm:$0xf]
        %v6634 = vld [vmem:[%s6608 + $0x64] sm:$0xf]
        %v6635 = vld [vmem:[%s6608 + $0x68] sm:$0xf]
        %v6636 = vld [vmem:[%s6608 + $0x6c] sm:$0xf]
        %v6637 = vld [vmem:[%s6608 + $0x70] sm:$0xf]
        %v6638 = vld [vmem:[%s6608 + $0x74] sm:$0xf]
        %v6639 = vld [vmem:[%s6608 + $0x78] sm:$0xf]
        %v6640 = vld [vmem:[%s6608 + $0x7c] sm:$0xf]
        %6642 = vset.pattern.permute.xlu0 0
        %6643 = vperm.xlu0 %6642, %v6609
        %v6644 = vpop.permute.xlu0 %6643
        %v6647 = vunpack.c.l.s4 839922192
        %v6648 = vunpack.c.0.s8 %v6647
        %v6649 = vperm.slane %v6644, %v6648
        %6651 = vset.pattern.permute.xlu0 0
        %6652 = vperm.xlu0 %6651, %v6610
        %v6653 = vpop.permute.xlu0 %6652
        %v6656 = vunpack.c.l.s4 839922192
        %v6657 = vunpack.c.0.s8 %v6656
        %v6658 = vperm.slane %v6653, %v6657
        %6660 = vset.pattern.permute.xlu0 0
        %6661 = vperm.xlu0 %6660, %v6611
        %v6662 = vpop.permute.xlu0 %6661
        %v6665 = vunpack.c.l.s4 839922192
        %v6666 = vunpack.c.0.s8 %v6665
        %v6667 = vperm.slane %v6662, %v6666
        %6669 = vset.pattern.permute.xlu0 0
        %6670 = vperm.xlu0 %6669, %v6612
        %v6671 = vpop.permute.xlu0 %6670
        %v6674 = vunpack.c.l.s4 839922192
        %v6675 = vunpack.c.0.s8 %v6674
        %v6676 = vperm.slane %v6671, %v6675
        %6678 = vset.pattern.permute.xlu0 0
        %6679 = vperm.xlu0 %6678, %v6613
        %v6680 = vpop.permute.xlu0 %6679
        %v6683 = vunpack.c.l.s4 839922192
        %v6684 = vunpack.c.0.s8 %v6683
        %v6685 = vperm.slane %v6680, %v6684
        %6687 = vset.pattern.permute.xlu0 0
        %6688 = vperm.xlu0 %6687, %v6614
        %v6689 = vpop.permute.xlu0 %6688
        %v6692 = vunpack.c.l.s4 839922192
        %v6693 = vunpack.c.0.s8 %v6692
        %v6694 = vperm.slane %v6689, %v6693
        %6696 = vset.pattern.permute.xlu0 0
        %6697 = vperm.xlu0 %6696, %v6615
        %v6698 = vpop.permute.xlu0 %6697
        %v6701 = vunpack.c.l.s4 839922192
        %v6702 = vunpack.c.0.s8 %v6701
        %v6703 = vperm.slane %v6698, %v6702
        %6705 = vset.pattern.permute.xlu0 0
        %6706 = vperm.xlu0 %6705, %v6616
        %v6707 = vpop.permute.xlu0 %6706
        %v6710 = vunpack.c.l.s4 839922192
        %v6711 = vunpack.c.0.s8 %v6710
        %v6712 = vperm.slane %v6707, %v6711
        %6714 = vset.pattern.permute.xlu0 0
        %6715 = vperm.xlu0 %6714, %v6617
        %v6716 = vpop.permute.xlu0 %6715
        %v6719 = vunpack.c.l.s4 839922192
        %v6720 = vunpack.c.0.s8 %v6719
        %v6721 = vperm.slane %v6716, %v6720
        %6723 = vset.pattern.permute.xlu0 0
        %6724 = vperm.xlu0 %6723, %v6618
        %v6725 = vpop.permute.xlu0 %6724
        %v6728 = vunpack.c.l.s4 839922192
        %v6729 = vunpack.c.0.s8 %v6728
        %v6730 = vperm.slane %v6725, %v6729
        %6732 = vset.pattern.permute.xlu0 0
        %6733 = vperm.xlu0 %6732, %v6619
        %v6734 = vpop.permute.xlu0 %6733
        %v6737 = vunpack.c.l.s4 839922192
        %v6738 = vunpack.c.0.s8 %v6737
        %v6739 = vperm.slane %v6734, %v6738
        %6741 = vset.pattern.permute.xlu0 0
        %6742 = vperm.xlu0 %6741, %v6620
        %v6743 = vpop.permute.xlu0 %6742
        %v6746 = vunpack.c.l.s4 839922192
        %v6747 = vunpack.c.0.s8 %v6746
        %v6748 = vperm.slane %v6743, %v6747
        %6750 = vset.pattern.permute.xlu0 0
        %6751 = vperm.xlu0 %6750, %v6621
        %v6752 = vpop.permute.xlu0 %6751
        %v6755 = vunpack.c.l.s4 839922192
        %v6756 = vunpack.c.0.s8 %v6755
        %v6757 = vperm.slane %v6752, %v6756
        %6759 = vset.pattern.permute.xlu0 0
        %6760 = vperm.xlu0 %6759, %v6622
        %v6761 = vpop.permute.xlu0 %6760
        %v6764 = vunpack.c.l.s4 839922192
        %v6765 = vunpack.c.0.s8 %v6764
        %v6766 = vperm.slane %v6761, %v6765
        %6768 = vset.pattern.permute.xlu0 0
        %6769 = vperm.xlu0 %6768, %v6623
        %v6770 = vpop.permute.xlu0 %6769
        %v6773 = vunpack.c.l.s4 839922192
        %v6774 = vunpack.c.0.s8 %v6773
        %v6775 = vperm.slane %v6770, %v6774
        %6777 = vset.pattern.permute.xlu0 0
        %6778 = vperm.xlu0 %6777, %v6624
        %v6779 = vpop.permute.xlu0 %6778
        %v6782 = vunpack.c.l.s4 839922192
        %v6783 = vunpack.c.0.s8 %v6782
        %v6784 = vperm.slane %v6779, %v6783
        %6786 = vset.pattern.permute.xlu0 0
        %6787 = vperm.xlu0 %6786, %v6625
        %v6788 = vpop.permute.xlu0 %6787
        %v6791 = vunpack.c.l.s4 839922192
        %v6792 = vunpack.c.0.s8 %v6791
        %v6793 = vperm.slane %v6788, %v6792
        %6795 = vset.pattern.permute.xlu0 0
        %6796 = vperm.xlu0 %6795, %v6626
        %v6797 = vpop.permute.xlu0 %6796
        %v6800 = vunpack.c.l.s4 839922192
        %v6801 = vunpack.c.0.s8 %v6800
        %v6802 = vperm.slane %v6797, %v6801
        %6804 = vset.pattern.permute.xlu0 0
        %6805 = vperm.xlu0 %6804, %v6627
        %v6806 = vpop.permute.xlu0 %6805
        %v6809 = vunpack.c.l.s4 839922192
        %v6810 = vunpack.c.0.s8 %v6809
        %v6811 = vperm.slane %v6806, %v6810
        %6813 = vset.pattern.permute.xlu0 0
        %6814 = vperm.xlu0 %6813, %v6628
        %v6815 = vpop.permute.xlu0 %6814
        %v6818 = vunpack.c.l.s4 839922192
        %v6819 = vunpack.c.0.s8 %v6818
        %v6820 = vperm.slane %v6815, %v6819
        %6822 = vset.pattern.permute.xlu0 0
        %6823 = vperm.xlu0 %6822, %v6629
        %v6824 = vpop.permute.xlu0 %6823
        %v6827 = vunpack.c.l.s4 839922192
        %v6828 = vunpack.c.0.s8 %v6827
        %v6829 = vperm.slane %v6824, %v6828
        %6831 = vset.pattern.permute.xlu0 0
        %6832 = vperm.xlu0 %6831, %v6630
        %v6833 = vpop.permute.xlu0 %6832
        %v6836 = vunpack.c.l.s4 839922192
        %v6837 = vunpack.c.0.s8 %v6836
        %v6838 = vperm.slane %v6833, %v6837
        %6840 = vset.pattern.permute.xlu0 0
        %6841 = vperm.xlu0 %6840, %v6631
        %v6842 = vpop.permute.xlu0 %6841
        %v6845 = vunpack.c.l.s4 839922192
        %v6846 = vunpack.c.0.s8 %v6845
        %v6847 = vperm.slane %v6842, %v6846
        %6849 = vset.pattern.permute.xlu0 0
        %6850 = vperm.xlu0 %6849, %v6632
        %v6851 = vpop.permute.xlu0 %6850
        %v6854 = vunpack.c.l.s4 839922192
        %v6855 = vunpack.c.0.s8 %v6854
        %v6856 = vperm.slane %v6851, %v6855
        %6858 = vset.pattern.permute.xlu0 0
        %6859 = vperm.xlu0 %6858, %v6633
        %v6860 = vpop.permute.xlu0 %6859
        %v6863 = vunpack.c.l.s4 839922192
        %v6864 = vunpack.c.0.s8 %v6863
        %v6865 = vperm.slane %v6860, %v6864
        %6867 = vset.pattern.permute.xlu0 0
        %6868 = vperm.xlu0 %6867, %v6634
        %v6869 = vpop.permute.xlu0 %6868
        %v6872 = vunpack.c.l.s4 839922192
        %v6873 = vunpack.c.0.s8 %v6872
        %v6874 = vperm.slane %v6869, %v6873
        %6876 = vset.pattern.permute.xlu0 0
        %6877 = vperm.xlu0 %6876, %v6635
        %v6878 = vpop.permute.xlu0 %6877
        %v6881 = vunpack.c.l.s4 839922192
        %v6882 = vunpack.c.0.s8 %v6881
        %v6883 = vperm.slane %v6878, %v6882
        %6885 = vset.pattern.permute.xlu0 0
        %6886 = vperm.xlu0 %6885, %v6636
        %v6887 = vpop.permute.xlu0 %6886
        %v6890 = vunpack.c.l.s4 839922192
        %v6891 = vunpack.c.0.s8 %v6890
        %v6892 = vperm.slane %v6887, %v6891
        %6894 = vset.pattern.permute.xlu0 0
        %6895 = vperm.xlu0 %6894, %v6637
        %v6896 = vpop.permute.xlu0 %6895
        %v6899 = vunpack.c.l.s4 839922192
        %v6900 = vunpack.c.0.s8 %v6899
        %v6901 = vperm.slane %v6896, %v6900
        %6903 = vset.pattern.permute.xlu0 0
        %6904 = vperm.xlu0 %6903, %v6638
        %v6905 = vpop.permute.xlu0 %6904
        %v6908 = vunpack.c.l.s4 839922192
        %v6909 = vunpack.c.0.s8 %v6908
        %v6910 = vperm.slane %v6905, %v6909
        %6912 = vset.pattern.permute.xlu0 0
        %6913 = vperm.xlu0 %6912, %v6639
        %v6914 = vpop.permute.xlu0 %6913
        %v6917 = vunpack.c.l.s4 839922192
        %v6918 = vunpack.c.0.s8 %v6917
        %v6919 = vperm.slane %v6914, %v6918
        %6921 = vset.pattern.permute.xlu0 0
        %6922 = vperm.xlu0 %6921, %v6640
        %v6923 = vpop.permute.xlu0 %6922
        %v6926 = vunpack.c.l.s4 839922192
        %v6927 = vunpack.c.0.s8 %v6926
        %v6928 = vperm.slane %v6923, %v6927
        %v6929 = vunpack.c.l.bf16 %v6649
        %v6930 = vunpack.c.l.bf16 %v6658
        %v6931 = vunpack.c.l.bf16 %v6667
        %v6932 = vunpack.c.l.bf16 %v6676
        %v6933 = vunpack.c.l.bf16 %v6685
        %v6934 = vunpack.c.l.bf16 %v6694
        %v6935 = vunpack.c.l.bf16 %v6703
        %v6936 = vunpack.c.l.bf16 %v6712
        %v6937 = vunpack.c.l.bf16 %v6721
        %v6938 = vunpack.c.l.bf16 %v6730
        %v6939 = vunpack.c.l.bf16 %v6739
        %v6940 = vunpack.c.l.bf16 %v6748
        %v6941 = vunpack.c.l.bf16 %v6757
        %v6942 = vunpack.c.l.bf16 %v6766
        %v6943 = vunpack.c.l.bf16 %v6775
        %v6944 = vunpack.c.l.bf16 %v6784
        %v6945 = vunpack.c.l.bf16 %v6793
        %v6946 = vunpack.c.l.bf16 %v6802
        %v6947 = vunpack.c.l.bf16 %v6811
        %v6948 = vunpack.c.l.bf16 %v6820
        %v6949 = vunpack.c.l.bf16 %v6829
        %v6950 = vunpack.c.l.bf16 %v6838
        %v6951 = vunpack.c.l.bf16 %v6847
        %v6952 = vunpack.c.l.bf16 %v6856
        %v6953 = vunpack.c.l.bf16 %v6865
        %v6954 = vunpack.c.l.bf16 %v6874
        %v6955 = vunpack.c.l.bf16 %v6883
        %v6956 = vunpack.c.l.bf16 %v6892
        %v6957 = vunpack.c.l.bf16 %v6901
        %v6958 = vunpack.c.l.bf16 %v6910
        %v6959 = vunpack.c.l.bf16 %v6919
        %v6960 = vunpack.c.l.bf16 %v6928
        %v6961 = vmul.f32 %v6012, %v6929
        %v6962 = vmul.f32 %v6013, %v6930
        %v6963 = vmul.f32 %v6014, %v6931
        %v6964 = vmul.f32 %v6015, %v6932
        %v6965 = vmul.f32 %v6016, %v6933
        %v6966 = vmul.f32 %v6017, %v6934
        %v6967 = vmul.f32 %v6018, %v6935
        %v6968 = vmul.f32 %v6019, %v6936
        %v6969 = vmul.f32 %v6020, %v6937
        %v6970 = vmul.f32 %v6021, %v6938
        %v6971 = vmul.f32 %v6022, %v6939
        %v6972 = vmul.f32 %v6023, %v6940
        %v6973 = vmul.f32 %v6024, %v6941
        %v6974 = vmul.f32 %v6025, %v6942
        %v6975 = vmul.f32 %v6026, %v6943
        %v6976 = vmul.f32 %v6027, %v6944
        %v6977 = vmul.f32 %v6028, %v6945
        %v6978 = vmul.f32 %v6029, %v6946
        %v6979 = vmul.f32 %v6030, %v6947
        %v6980 = vmul.f32 %v6031, %v6948
        %v6981 = vmul.f32 %v6032, %v6949
        %v6982 = vmul.f32 %v6033, %v6950
        %v6983 = vmul.f32 %v6034, %v6951
        %v6984 = vmul.f32 %v6035, %v6952
        %v6985 = vmul.f32 %v6036, %v6953
        %v6986 = vmul.f32 %v6037, %v6954
        %v6987 = vmul.f32 %v6038, %v6955
        %v6988 = vmul.f32 %v6039, %v6956
        %v6989 = vmul.f32 %v6040, %v6957
        %v6990 = vmul.f32 %v6041, %v6958
        %v6991 = vmul.f32 %v6042, %v6959
        %v6992 = vmul.f32 %v6043, %v6960
        %v6993 = vpack.c.bf16 %v6962, %v6961
        %v6994 = vpack.c.bf16 %v6964, %v6963
        %v6995 = vpack.c.bf16 %v6966, %v6965
        %v6996 = vpack.c.bf16 %v6968, %v6967
        %v6997 = vpack.c.bf16 %v6970, %v6969
        %v6998 = vpack.c.bf16 %v6972, %v6971
        %v6999 = vpack.c.bf16 %v6974, %v6973
        %v7000 = vpack.c.bf16 %v6976, %v6975
        %v7001 = vpack.c.bf16 %v6978, %v6977
        %v7002 = vpack.c.bf16 %v6980, %v6979
        %v7003 = vpack.c.bf16 %v6982, %v6981
        %v7004 = vpack.c.bf16 %v6984, %v6983
        %v7005 = vpack.c.bf16 %v6986, %v6985
        %v7006 = vpack.c.bf16 %v6988, %v6987
        %v7007 = vpack.c.bf16 %v6990, %v6989
        %v7008 = vpack.c.bf16 %v6992, %v6991
        %s7009 = scalar_lea.vmem %s4, 448
        %v7010 = vld [vmem:[%s7009] sm:$0xf]
        %v7011 = vld [vmem:[%s7009 + $0x4] sm:$0xf]
        %v7012 = vld [vmem:[%s7009 + $0x8] sm:$0xf]
        %v7013 = vld [vmem:[%s7009 + $0xc] sm:$0xf]
        %v7014 = vld [vmem:[%s7009 + $0x10] sm:$0xf]
        %v7015 = vld [vmem:[%s7009 + $0x14] sm:$0xf]
        %v7016 = vld [vmem:[%s7009 + $0x18] sm:$0xf]
        %v7017 = vld [vmem:[%s7009 + $0x1c] sm:$0xf]
        %v7018 = vld [vmem:[%s7009 + $0x20] sm:$0xf]
        %v7019 = vld [vmem:[%s7009 + $0x24] sm:$0xf]
        %v7020 = vld [vmem:[%s7009 + $0x28] sm:$0xf]
        %v7021 = vld [vmem:[%s7009 + $0x2c] sm:$0xf]
        %v7022 = vld [vmem:[%s7009 + $0x30] sm:$0xf]
        %v7023 = vld [vmem:[%s7009 + $0x34] sm:$0xf]
        %v7024 = vld [vmem:[%s7009 + $0x38] sm:$0xf]
        %v7025 = vld [vmem:[%s7009 + $0x3c] sm:$0xf]
        %v7042 = vunpack.c.l.b16 %v7010
        %v7043 = vunpack.c.l.b16 %v7011
        %v7044 = vunpack.c.l.b16 %v7012
        %v7045 = vunpack.c.l.b16 %v7013
        %v7046 = vunpack.c.l.b16 %v7014
        %v7047 = vunpack.c.l.b16 %v7015
        %v7048 = vunpack.c.l.b16 %v7016
        %v7049 = vunpack.c.l.b16 %v7017
        %v7050 = vunpack.c.l.b16 %v7018
        %v7051 = vunpack.c.l.b16 %v7019
        %v7052 = vunpack.c.l.b16 %v7020
        %v7053 = vunpack.c.l.b16 %v7021
        %v7054 = vunpack.c.l.b16 %v7022
        %v7055 = vunpack.c.l.b16 %v7023
        %v7056 = vunpack.c.l.b16 %v7024
        %v7057 = vunpack.c.l.b16 %v7025
        %v7058 = vpack.c.b16 %v7043, %v7042
        %v7059 = vpack.c.b16 %v7045, %v7044
        %v7060 = vpack.c.b16 %v7047, %v7046
        %v7061 = vpack.c.b16 %v7049, %v7048
        %v7062 = vpack.c.b16 %v7051, %v7050
        %v7063 = vpack.c.b16 %v7053, %v7052
        %v7064 = vpack.c.b16 %v7055, %v7054
        %v7065 = vpack.c.b16 %v7057, %v7056
        %7074 = vmatpush.bf16.msra.mxu0 %v7065
        %7075 = vmatpush.bf16.msra.mxu0 %v7064
        %7076 = vmatpush.bf16.msra.mxu0 %v7063
        %7077 = vmatpush.bf16.msra.mxu0 %v7062
        %7078 = vmatpush.bf16.msra.mxu0 %v7061
        %7079 = vmatpush.bf16.msra.mxu0 %v7060
        %7080 = vmatpush.bf16.msra.mxu0 %v7059
        %7081 = vmatpush.bf16.msra.mxu0 %v7058
        %7082 = vmatmul.bf16.gmra.mxu0 %v6993
        %v7083 = vpop.f32.mrf.mxu0
        %v7084 = vadd.f32 0.0, %v7083
        %v7085 = vpop.f32.mrf.mxu0
        %v7086 = vadd.f32 0.0, %v7085
        %7087 = vmatmul.bf16.gmra.mxu0 %v6994
        %v7088 = vpop.f32.mrf.mxu0
        %v7089 = vadd.f32 0.0, %v7088
        %v7090 = vpop.f32.mrf.mxu0
        %v7091 = vadd.f32 0.0, %v7090
        %7092 = vmatmul.bf16.gmra.mxu0 %v6995
        %v7093 = vpop.f32.mrf.mxu0
        %v7094 = vadd.f32 0.0, %v7093
        %v7095 = vpop.f32.mrf.mxu0
        %v7096 = vadd.f32 0.0, %v7095
        %7097 = vmatmul.bf16.gmra.mxu0 %v6996
        %v7098 = vpop.f32.mrf.mxu0
        %v7099 = vadd.f32 0.0, %v7098
        %v7100 = vpop.f32.mrf.mxu0
        %v7101 = vadd.f32 0.0, %v7100
        %7102 = vmatmul.bf16.gmra.mxu0 %v6997
        %v7103 = vpop.f32.mrf.mxu0
        %v7104 = vadd.f32 0.0, %v7103
        %v7105 = vpop.f32.mrf.mxu0
        %v7106 = vadd.f32 0.0, %v7105
        %7107 = vmatmul.bf16.gmra.mxu0 %v6998
        %v7108 = vpop.f32.mrf.mxu0
        %v7109 = vadd.f32 0.0, %v7108
        %v7110 = vpop.f32.mrf.mxu0
        %v7111 = vadd.f32 0.0, %v7110
        %7112 = vmatmul.bf16.gmra.mxu0 %v6999
        %v7113 = vpop.f32.mrf.mxu0
        %v7114 = vadd.f32 0.0, %v7113
        %v7115 = vpop.f32.mrf.mxu0
        %v7116 = vadd.f32 0.0, %v7115
        %7117 = vmatmul.bf16.gmra.mxu0 %v7000
        %v7118 = vpop.f32.mrf.mxu0
        %v7119 = vadd.f32 0.0, %v7118
        %v7120 = vpop.f32.mrf.mxu0
        %v7121 = vadd.f32 0.0, %v7120
        %7122 = vmatmul.bf16.gmra.mxu0 %v7001
        %v7123 = vpop.f32.mrf.mxu0
        %v7124 = vadd.f32 0.0, %v7123
        %v7125 = vpop.f32.mrf.mxu0
        %v7126 = vadd.f32 0.0, %v7125
        %7127 = vmatmul.bf16.gmra.mxu0 %v7002
        %v7128 = vpop.f32.mrf.mxu0
        %v7129 = vadd.f32 0.0, %v7128
        %v7130 = vpop.f32.mrf.mxu0
        %v7131 = vadd.f32 0.0, %v7130
        %7132 = vmatmul.bf16.gmra.mxu0 %v7003
        %v7133 = vpop.f32.mrf.mxu0
        %v7134 = vadd.f32 0.0, %v7133
        %v7135 = vpop.f32.mrf.mxu0
        %v7136 = vadd.f32 0.0, %v7135
        %7137 = vmatmul.bf16.gmra.mxu0 %v7004
        %v7138 = vpop.f32.mrf.mxu0
        %v7139 = vadd.f32 0.0, %v7138
        %v7140 = vpop.f32.mrf.mxu0
        %v7141 = vadd.f32 0.0, %v7140
        %7142 = vmatmul.bf16.gmra.mxu0 %v7005
        %v7143 = vpop.f32.mrf.mxu0
        %v7144 = vadd.f32 0.0, %v7143
        %v7145 = vpop.f32.mrf.mxu0
        %v7146 = vadd.f32 0.0, %v7145
        %7147 = vmatmul.bf16.gmra.mxu0 %v7006
        %v7148 = vpop.f32.mrf.mxu0
        %v7149 = vadd.f32 0.0, %v7148
        %v7150 = vpop.f32.mrf.mxu0
        %v7151 = vadd.f32 0.0, %v7150
        %7152 = vmatmul.bf16.gmra.mxu0 %v7007
        %v7153 = vpop.f32.mrf.mxu0
        %v7154 = vadd.f32 0.0, %v7153
        %v7155 = vpop.f32.mrf.mxu0
        %v7156 = vadd.f32 0.0, %v7155
        %7157 = vmatmul.bf16.gmra.mxu0 %v7008
        %v7158 = vpop.f32.mrf.mxu0
        %v7159 = vadd.f32 0.0, %v7158
        %v7160 = vpop.f32.mrf.mxu0
        %v7161 = vadd.f32 0.0, %v7160
        %7162 = vdwg.mxu0
        %v7163 = vadd.f32 %v6576, %v7084
        %v7164 = vadd.f32 %v6577, %v7086
        %v7165 = vadd.f32 %v6578, %v7089
        %v7166 = vadd.f32 %v6579, %v7091
        %v7167 = vadd.f32 %v6580, %v7094
        %v7168 = vadd.f32 %v6581, %v7096
        %v7169 = vadd.f32 %v6582, %v7099
        %v7170 = vadd.f32 %v6583, %v7101
        %v7171 = vadd.f32 %v6584, %v7104
        %v7172 = vadd.f32 %v6585, %v7106
        %v7173 = vadd.f32 %v6586, %v7109
        %v7174 = vadd.f32 %v6587, %v7111
        %v7175 = vadd.f32 %v6588, %v7114
        %v7176 = vadd.f32 %v6589, %v7116
        %v7177 = vadd.f32 %v6590, %v7119
        %v7178 = vadd.f32 %v6591, %v7121
        %v7179 = vadd.f32 %v6592, %v7124
        %v7180 = vadd.f32 %v6593, %v7126
        %v7181 = vadd.f32 %v6594, %v7129
        %v7182 = vadd.f32 %v6595, %v7131
        %v7183 = vadd.f32 %v6596, %v7134
        %v7184 = vadd.f32 %v6597, %v7136
        %v7185 = vadd.f32 %v6598, %v7139
        %v7186 = vadd.f32 %v6599, %v7141
        %v7187 = vadd.f32 %v6600, %v7144
        %v7188 = vadd.f32 %v6601, %v7146
        %v7189 = vadd.f32 %v6602, %v7149
        %v7190 = vadd.f32 %v6603, %v7151
        %v7191 = vadd.f32 %v6604, %v7154
        %v7192 = vadd.f32 %v6605, %v7156
        %v7193 = vadd.f32 %v6606, %v7159
        %v7194 = vadd.f32 %v6607, %v7161
        %v7195 = vld [vmem:[#allocation2 + $0x8] sm:$0xf]
        %v7196 = vld [vmem:[#allocation2 + $0xc] sm:$0xf]
        %v7197 = vld [vmem:[#allocation2 + $0x10] sm:$0xf]
        %v7198 = vld [vmem:[#allocation2 + $0x14] sm:$0xf]
        %v7199 = vld [vmem:[#allocation2 + $0x18] sm:$0xf]
        %v7200 = vld [vmem:[#allocation2 + $0x1c] sm:$0xf]
        %v7201 = vld [vmem:[#allocation2 + $0x20] sm:$0xf]
        %v7202 = vld [vmem:[#allocation2 + $0x24] sm:$0xf]
        %v7203 = vld [vmem:[#allocation2 + $0x28] sm:$0xf]
        %v7204 = vld [vmem:[#allocation2 + $0x2c] sm:$0xf]
        %v7205 = vld [vmem:[#allocation2 + $0x30] sm:$0xf]
        %v7206 = vld [vmem:[#allocation2 + $0x34] sm:$0xf]
        %v7207 = vld [vmem:[#allocation2 + $0x38] sm:$0xf]
        %v7208 = vld [vmem:[#allocation2 + $0x3c] sm:$0xf]
        %v7209 = vld [vmem:[#allocation2 + $0x40] sm:$0xf]
        %v7210 = vld [vmem:[#allocation2 + $0x44] sm:$0xf]
        %v7211 = vld [vmem:[#allocation2 + $0x48] sm:$0xf]
        %v7212 = vld [vmem:[#allocation2 + $0x4c] sm:$0xf]
        %v7213 = vld [vmem:[#allocation2 + $0x50] sm:$0xf]
        %v7214 = vld [vmem:[#allocation2 + $0x54] sm:$0xf]
        %v7215 = vld [vmem:[#allocation2 + $0x58] sm:$0xf]
        %v7216 = vld [vmem:[#allocation2 + $0x5c] sm:$0xf]
        %v7217 = vld [vmem:[#allocation2 + $0x60] sm:$0xf]
        %v7218 = vld [vmem:[#allocation2 + $0x64] sm:$0xf]
        %v7219 = vld [vmem:[#allocation2 + $0x68] sm:$0xf]
        %v7220 = vld [vmem:[#allocation2 + $0x6c] sm:$0xf]
        %v7221 = vld [vmem:[#allocation2 + $0x70] sm:$0xf]
        %v7222 = vld [vmem:[#allocation2 + $0x74] sm:$0xf]
        %v7223 = vld [vmem:[#allocation2 + $0x78] sm:$0xf]
        %v7224 = vld [vmem:[#allocation2 + $0x7c] sm:$0xf]
        %v7225 = vld [vmem:[#allocation2 + $0x80] sm:$0xf]
        %v7226 = vld [vmem:[#allocation2 + $0x84] sm:$0xf]
        %v7227 = vld [vmem:[#allocation2 + $0x88] sm:$0x1]
        %s7228 = scalar_lea.vmem %s1, 1024
        %v7229 = vld [vmem:[%s7228] sm:$0xf]
        %v7230 = vld [vmem:[%s7228 + $0x4] sm:$0xf]
        %v7231 = vld [vmem:[%s7228 + $0x8] sm:$0xf]
        %v7232 = vld [vmem:[%s7228 + $0xc] sm:$0xf]
        %v7233 = vld [vmem:[%s7228 + $0x10] sm:$0xf]
        %v7234 = vld [vmem:[%s7228 + $0x14] sm:$0xf]
        %v7235 = vld [vmem:[%s7228 + $0x18] sm:$0xf]
        %v7236 = vld [vmem:[%s7228 + $0x1c] sm:$0xf]
        %v7237 = vld [vmem:[%s7228 + $0x20] sm:$0xf]
        %v7238 = vld [vmem:[%s7228 + $0x24] sm:$0xf]
        %v7239 = vld [vmem:[%s7228 + $0x28] sm:$0xf]
        %v7240 = vld [vmem:[%s7228 + $0x2c] sm:$0xf]
        %v7241 = vld [vmem:[%s7228 + $0x30] sm:$0xf]
        %v7242 = vld [vmem:[%s7228 + $0x34] sm:$0xf]
        %v7243 = vld [vmem:[%s7228 + $0x38] sm:$0xf]
        %v7244 = vld [vmem:[%s7228 + $0x3c] sm:$0xf]
        %v7245 = vld [vmem:[%s7228 + $0x40] sm:$0xf]
        %v7246 = vld [vmem:[%s7228 + $0x44] sm:$0xf]
        %v7247 = vld [vmem:[%s7228 + $0x48] sm:$0xf]
        %v7248 = vld [vmem:[%s7228 + $0x4c] sm:$0xf]
        %v7249 = vld [vmem:[%s7228 + $0x50] sm:$0xf]
        %v7250 = vld [vmem:[%s7228 + $0x54] sm:$0xf]
        %v7251 = vld [vmem:[%s7228 + $0x58] sm:$0xf]
        %v7252 = vld [vmem:[%s7228 + $0x5c] sm:$0xf]
        %v7253 = vld [vmem:[%s7228 + $0x60] sm:$0xf]
        %v7254 = vld [vmem:[%s7228 + $0x64] sm:$0xf]
        %v7255 = vld [vmem:[%s7228 + $0x68] sm:$0xf]
        %v7256 = vld [vmem:[%s7228 + $0x6c] sm:$0xf]
        %v7257 = vld [vmem:[%s7228 + $0x70] sm:$0xf]
        %v7258 = vld [vmem:[%s7228 + $0x74] sm:$0xf]
        %v7259 = vld [vmem:[%s7228 + $0x78] sm:$0xf]
        %v7260 = vld [vmem:[%s7228 + $0x7c] sm:$0xf]
        %7262 = vset.pattern.permute.xlu0 0
        %7263 = vperm.xlu0 %7262, %v7229
        %v7264 = vpop.permute.xlu0 %7263
        %v7267 = vunpack.c.l.s4 839922192
        %v7268 = vunpack.c.0.s8 %v7267
        %v7269 = vperm.slane %v7264, %v7268
        %7271 = vset.pattern.permute.xlu0 0
        %7272 = vperm.xlu0 %7271, %v7230
        %v7273 = vpop.permute.xlu0 %7272
        %v7276 = vunpack.c.l.s4 839922192
        %v7277 = vunpack.c.0.s8 %v7276
        %v7278 = vperm.slane %v7273, %v7277
        %7280 = vset.pattern.permute.xlu0 0
        %7281 = vperm.xlu0 %7280, %v7231
        %v7282 = vpop.permute.xlu0 %7281
        %v7285 = vunpack.c.l.s4 839922192
        %v7286 = vunpack.c.0.s8 %v7285
        %v7287 = vperm.slane %v7282, %v7286
        %7289 = vset.pattern.permute.xlu0 0
        %7290 = vperm.xlu0 %7289, %v7232
        %v7291 = vpop.permute.xlu0 %7290
        %v7294 = vunpack.c.l.s4 839922192
        %v7295 = vunpack.c.0.s8 %v7294
        %v7296 = vperm.slane %v7291, %v7295
        %7298 = vset.pattern.permute.xlu0 0
        %7299 = vperm.xlu0 %7298, %v7233
        %v7300 = vpop.permute.xlu0 %7299
        %v7303 = vunpack.c.l.s4 839922192
        %v7304 = vunpack.c.0.s8 %v7303
        %v7305 = vperm.slane %v7300, %v7304
        %7307 = vset.pattern.permute.xlu0 0
        %7308 = vperm.xlu0 %7307, %v7234
        %v7309 = vpop.permute.xlu0 %7308
        %v7312 = vunpack.c.l.s4 839922192
        %v7313 = vunpack.c.0.s8 %v7312
        %v7314 = vperm.slane %v7309, %v7313
        %7316 = vset.pattern.permute.xlu0 0
        %7317 = vperm.xlu0 %7316, %v7235
        %v7318 = vpop.permute.xlu0 %7317
        %v7321 = vunpack.c.l.s4 839922192
        %v7322 = vunpack.c.0.s8 %v7321
        %v7323 = vperm.slane %v7318, %v7322
        %7325 = vset.pattern.permute.xlu0 0
        %7326 = vperm.xlu0 %7325, %v7236
        %v7327 = vpop.permute.xlu0 %7326
        %v7330 = vunpack.c.l.s4 839922192
        %v7331 = vunpack.c.0.s8 %v7330
        %v7332 = vperm.slane %v7327, %v7331
        %7334 = vset.pattern.permute.xlu0 0
        %7335 = vperm.xlu0 %7334, %v7237
        %v7336 = vpop.permute.xlu0 %7335
        %v7339 = vunpack.c.l.s4 839922192
        %v7340 = vunpack.c.0.s8 %v7339
        %v7341 = vperm.slane %v7336, %v7340
        %7343 = vset.pattern.permute.xlu0 0
        %7344 = vperm.xlu0 %7343, %v7238
        %v7345 = vpop.permute.xlu0 %7344
        %v7348 = vunpack.c.l.s4 839922192
        %v7349 = vunpack.c.0.s8 %v7348
        %v7350 = vperm.slane %v7345, %v7349
        %7352 = vset.pattern.permute.xlu0 0
        %7353 = vperm.xlu0 %7352, %v7239
        %v7354 = vpop.permute.xlu0 %7353
        %v7357 = vunpack.c.l.s4 839922192
        %v7358 = vunpack.c.0.s8 %v7357
        %v7359 = vperm.slane %v7354, %v7358
        %7361 = vset.pattern.permute.xlu0 0
        %7362 = vperm.xlu0 %7361, %v7240
        %v7363 = vpop.permute.xlu0 %7362
        %v7366 = vunpack.c.l.s4 839922192
        %v7367 = vunpack.c.0.s8 %v7366
        %v7368 = vperm.slane %v7363, %v7367
        %7370 = vset.pattern.permute.xlu0 0
        %7371 = vperm.xlu0 %7370, %v7241
        %v7372 = vpop.permute.xlu0 %7371
        %v7375 = vunpack.c.l.s4 839922192
        %v7376 = vunpack.c.0.s8 %v7375
        %v7377 = vperm.slane %v7372, %v7376
        %7379 = vset.pattern.permute.xlu0 0
        %7380 = vperm.xlu0 %7379, %v7242
        %v7381 = vpop.permute.xlu0 %7380
        %v7384 = vunpack.c.l.s4 839922192
        %v7385 = vunpack.c.0.s8 %v7384
        %v7386 = vperm.slane %v7381, %v7385
        %7388 = vset.pattern.permute.xlu0 0
        %7389 = vperm.xlu0 %7388, %v7243
        %v7390 = vpop.permute.xlu0 %7389
        %v7393 = vunpack.c.l.s4 839922192
        %v7394 = vunpack.c.0.s8 %v7393
        %v7395 = vperm.slane %v7390, %v7394
        %7397 = vset.pattern.permute.xlu0 0
        %7398 = vperm.xlu0 %7397, %v7244
        %v7399 = vpop.permute.xlu0 %7398
        %v7402 = vunpack.c.l.s4 839922192
        %v7403 = vunpack.c.0.s8 %v7402
        %v7404 = vperm.slane %v7399, %v7403
        %7406 = vset.pattern.permute.xlu0 0
        %7407 = vperm.xlu0 %7406, %v7245
        %v7408 = vpop.permute.xlu0 %7407
        %v7411 = vunpack.c.l.s4 839922192
        %v7412 = vunpack.c.0.s8 %v7411
        %v7413 = vperm.slane %v7408, %v7412
        %7415 = vset.pattern.permute.xlu0 0
        %7416 = vperm.xlu0 %7415, %v7246
        %v7417 = vpop.permute.xlu0 %7416
        %v7420 = vunpack.c.l.s4 839922192
        %v7421 = vunpack.c.0.s8 %v7420
        %v7422 = vperm.slane %v7417, %v7421
        %7424 = vset.pattern.permute.xlu0 0
        %7425 = vperm.xlu0 %7424, %v7247
        %v7426 = vpop.permute.xlu0 %7425
        %v7429 = vunpack.c.l.s4 839922192
        %v7430 = vunpack.c.0.s8 %v7429
        %v7431 = vperm.slane %v7426, %v7430
        %7433 = vset.pattern.permute.xlu0 0
        %7434 = vperm.xlu0 %7433, %v7248
        %v7435 = vpop.permute.xlu0 %7434
        %v7438 = vunpack.c.l.s4 839922192
        %v7439 = vunpack.c.0.s8 %v7438
        %v7440 = vperm.slane %v7435, %v7439
        %7442 = vset.pattern.permute.xlu0 0
        %7443 = vperm.xlu0 %7442, %v7249
        %v7444 = vpop.permute.xlu0 %7443
        %v7447 = vunpack.c.l.s4 839922192
        %v7448 = vunpack.c.0.s8 %v7447
        %v7449 = vperm.slane %v7444, %v7448
        %7451 = vset.pattern.permute.xlu0 0
        %7452 = vperm.xlu0 %7451, %v7250
        %v7453 = vpop.permute.xlu0 %7452
        %v7456 = vunpack.c.l.s4 839922192
        %v7457 = vunpack.c.0.s8 %v7456
        %v7458 = vperm.slane %v7453, %v7457
        %7460 = vset.pattern.permute.xlu0 0
        %7461 = vperm.xlu0 %7460, %v7251
        %v7462 = vpop.permute.xlu0 %7461
        %v7465 = vunpack.c.l.s4 839922192
        %v7466 = vunpack.c.0.s8 %v7465
        %v7467 = vperm.slane %v7462, %v7466
        %7469 = vset.pattern.permute.xlu0 0
        %7470 = vperm.xlu0 %7469, %v7252
        %v7471 = vpop.permute.xlu0 %7470
        %v7474 = vunpack.c.l.s4 839922192
        %v7475 = vunpack.c.0.s8 %v7474
        %v7476 = vperm.slane %v7471, %v7475
        %7478 = vset.pattern.permute.xlu0 0
        %7479 = vperm.xlu0 %7478, %v7253
        %v7480 = vpop.permute.xlu0 %7479
        %v7483 = vunpack.c.l.s4 839922192
        %v7484 = vunpack.c.0.s8 %v7483
        %v7485 = vperm.slane %v7480, %v7484
        %7487 = vset.pattern.permute.xlu0 0
        %7488 = vperm.xlu0 %7487, %v7254
        %v7489 = vpop.permute.xlu0 %7488
        %v7492 = vunpack.c.l.s4 839922192
        %v7493 = vunpack.c.0.s8 %v7492
        %v7494 = vperm.slane %v7489, %v7493
        %7496 = vset.pattern.permute.xlu0 0
        %7497 = vperm.xlu0 %7496, %v7255
        %v7498 = vpop.permute.xlu0 %7497
        %v7501 = vunpack.c.l.s4 839922192
        %v7502 = vunpack.c.0.s8 %v7501
        %v7503 = vperm.slane %v7498, %v7502
        %7505 = vset.pattern.permute.xlu0 0
        %7506 = vperm.xlu0 %7505, %v7256
        %v7507 = vpop.permute.xlu0 %7506
        %v7510 = vunpack.c.l.s4 839922192
        %v7511 = vunpack.c.0.s8 %v7510
        %v7512 = vperm.slane %v7507, %v7511
        %7514 = vset.pattern.permute.xlu0 0
        %7515 = vperm.xlu0 %7514, %v7257
        %v7516 = vpop.permute.xlu0 %7515
        %v7519 = vunpack.c.l.s4 839922192
        %v7520 = vunpack.c.0.s8 %v7519
        %v7521 = vperm.slane %v7516, %v7520
        %7523 = vset.pattern.permute.xlu0 0
        %7524 = vperm.xlu0 %7523, %v7258
        %v7525 = vpop.permute.xlu0 %7524
        %v7528 = vunpack.c.l.s4 839922192
        %v7529 = vunpack.c.0.s8 %v7528
        %v7530 = vperm.slane %v7525, %v7529
        %7532 = vset.pattern.permute.xlu0 0
        %7533 = vperm.xlu0 %7532, %v7259
        %v7534 = vpop.permute.xlu0 %7533
        %v7537 = vunpack.c.l.s4 839922192
        %v7538 = vunpack.c.0.s8 %v7537
        %v7539 = vperm.slane %v7534, %v7538
        %7541 = vset.pattern.permute.xlu0 0
        %7542 = vperm.xlu0 %7541, %v7260
        %v7543 = vpop.permute.xlu0 %7542
        %v7546 = vunpack.c.l.s4 839922192
        %v7547 = vunpack.c.0.s8 %v7546
        %v7548 = vperm.slane %v7543, %v7547
        %v7549 = vunpack.c.l.bf16 %v7195
        %v7550 = vunpack.c.l.bf16 %v7196
        %v7551 = vunpack.c.l.bf16 %v7197
        %v7552 = vunpack.c.l.bf16 %v7198
        %v7553 = vunpack.c.l.bf16 %v7199
        %v7554 = vunpack.c.l.bf16 %v7200
        %v7555 = vunpack.c.l.bf16 %v7201
        %v7556 = vunpack.c.l.bf16 %v7202
        %v7557 = vunpack.c.l.bf16 %v7203
        %v7558 = vunpack.c.l.bf16 %v7204
        %v7559 = vunpack.c.l.bf16 %v7205
        %v7560 = vunpack.c.l.bf16 %v7206
        %v7561 = vunpack.c.l.bf16 %v7207
        %v7562 = vunpack.c.l.bf16 %v7208
        %v7563 = vunpack.c.l.bf16 %v7209
        %v7564 = vunpack.c.l.bf16 %v7210
        %v7565 = vunpack.c.l.bf16 %v7211
        %v7566 = vunpack.c.l.bf16 %v7212
        %v7567 = vunpack.c.l.bf16 %v7213
        %v7568 = vunpack.c.l.bf16 %v7214
        %v7569 = vunpack.c.l.bf16 %v7215
        %v7570 = vunpack.c.l.bf16 %v7216
        %v7571 = vunpack.c.l.bf16 %v7217
        %v7572 = vunpack.c.l.bf16 %v7218
        %v7573 = vunpack.c.l.bf16 %v7219
        %v7574 = vunpack.c.l.bf16 %v7220
        %v7575 = vunpack.c.l.bf16 %v7221
        %v7576 = vunpack.c.l.bf16 %v7222
        %v7577 = vunpack.c.l.bf16 %v7223
        %v7578 = vunpack.c.l.bf16 %v7224
        %v7579 = vunpack.c.l.bf16 %v7225
        %v7580 = vunpack.c.l.bf16 %v7226
        %v7581 = vunpack.c.l.bf16 %v7227
        %v7582 = vunpack.c.l.bf16 %v7269
        %v7583 = vunpack.c.l.bf16 %v7278
        %v7584 = vunpack.c.l.bf16 %v7287
        %v7585 = vunpack.c.l.bf16 %v7296
        %v7586 = vunpack.c.l.bf16 %v7305
        %v7587 = vunpack.c.l.bf16 %v7314
        %v7588 = vunpack.c.l.bf16 %v7323
        %v7589 = vunpack.c.l.bf16 %v7332
        %v7590 = vunpack.c.l.bf16 %v7341
        %v7591 = vunpack.c.l.bf16 %v7350
        %v7592 = vunpack.c.l.bf16 %v7359
        %v7593 = vunpack.c.l.bf16 %v7368
        %v7594 = vunpack.c.l.bf16 %v7377
        %v7595 = vunpack.c.l.bf16 %v7386
        %v7596 = vunpack.c.l.bf16 %v7395
        %v7597 = vunpack.c.l.bf16 %v7404
        %v7598 = vunpack.c.l.bf16 %v7413
        %v7599 = vunpack.c.l.bf16 %v7422
        %v7600 = vunpack.c.l.bf16 %v7431
        %v7601 = vunpack.c.l.bf16 %v7440
        %v7602 = vunpack.c.l.bf16 %v7449
        %v7603 = vunpack.c.l.bf16 %v7458
        %v7604 = vunpack.c.l.bf16 %v7467
        %v7605 = vunpack.c.l.bf16 %v7476
        %v7606 = vunpack.c.l.bf16 %v7485
        %v7607 = vunpack.c.l.bf16 %v7494
        %v7608 = vunpack.c.l.bf16 %v7503
        %v7609 = vunpack.c.l.bf16 %v7512
        %v7610 = vunpack.c.l.bf16 %v7521
        %v7611 = vunpack.c.l.bf16 %v7530
        %v7612 = vunpack.c.l.bf16 %v7539
        %v7613 = vunpack.c.l.bf16 %v7548
        %v7646 = vrot.slane %v7582, 7
        %v7647 = vrot.slane %v7583, 7
        %v7648 = vsel %vm2642, %v7646, %v7647
        %v7649 = vrot.slane %v7584, 7
        %v7650 = vsel %vm2642, %v7647, %v7649
        %v7651 = vrot.slane %v7585, 7
        %v7652 = vsel %vm2642, %v7649, %v7651
        %v7653 = vrot.slane %v7586, 7
        %v7654 = vsel %vm2642, %v7651, %v7653
        %v7655 = vrot.slane %v7587, 7
        %v7656 = vsel %vm2642, %v7653, %v7655
        %v7657 = vrot.slane %v7588, 7
        %v7658 = vsel %vm2642, %v7655, %v7657
        %v7659 = vrot.slane %v7589, 7
        %v7660 = vsel %vm2642, %v7657, %v7659
        %v7661 = vrot.slane %v7590, 7
        %v7662 = vsel %vm2642, %v7659, %v7661
        %v7663 = vrot.slane %v7591, 7
        %v7664 = vsel %vm2642, %v7661, %v7663
        %v7665 = vrot.slane %v7592, 7
        %v7666 = vsel %vm2642, %v7663, %v7665
        %v7667 = vrot.slane %v7593, 7
        %v7668 = vsel %vm2642, %v7665, %v7667
        %v7669 = vrot.slane %v7594, 7
        %v7670 = vsel %vm2642, %v7667, %v7669
        %v7671 = vrot.slane %v7595, 7
        %v7672 = vsel %vm2642, %v7669, %v7671
        %v7673 = vrot.slane %v7596, 7
        %v7674 = vsel %vm2642, %v7671, %v7673
        %v7675 = vrot.slane %v7597, 7
        %v7676 = vsel %vm2642, %v7673, %v7675
        %v7677 = vrot.slane %v7598, 7
        %v7678 = vsel %vm2642, %v7675, %v7677
        %v7679 = vrot.slane %v7599, 7
        %v7680 = vsel %vm2642, %v7677, %v7679
        %v7681 = vrot.slane %v7600, 7
        %v7682 = vsel %vm2642, %v7679, %v7681
        %v7683 = vrot.slane %v7601, 7
        %v7684 = vsel %vm2642, %v7681, %v7683
        %v7685 = vrot.slane %v7602, 7
        %v7686 = vsel %vm2642, %v7683, %v7685
        %v7687 = vrot.slane %v7603, 7
        %v7688 = vsel %vm2642, %v7685, %v7687
        %v7689 = vrot.slane %v7604, 7
        %v7690 = vsel %vm2642, %v7687, %v7689
        %v7691 = vrot.slane %v7605, 7
        %v7692 = vsel %vm2642, %v7689, %v7691
        %v7693 = vrot.slane %v7606, 7
        %v7694 = vsel %vm2642, %v7691, %v7693
        %v7695 = vrot.slane %v7607, 7
        %v7696 = vsel %vm2642, %v7693, %v7695
        %v7697 = vrot.slane %v7608, 7
        %v7698 = vsel %vm2642, %v7695, %v7697
        %v7699 = vrot.slane %v7609, 7
        %v7700 = vsel %vm2642, %v7697, %v7699
        %v7701 = vrot.slane %v7610, 7
        %v7702 = vsel %vm2642, %v7699, %v7701
        %v7703 = vrot.slane %v7611, 7
        %v7704 = vsel %vm2642, %v7701, %v7703
        %v7705 = vrot.slane %v7612, 7
        %v7706 = vsel %vm2642, %v7703, %v7705
        %v7707 = vrot.slane %v7613, 7
        %v7708 = vsel %vm2642, %v7705, %v7707
        %v7742 = vmul.f32 %v7549, %v7646
        %v7743 = vmul.f32 %v7550, %v7648
        %v7744 = vmul.f32 %v7551, %v7650
        %v7745 = vmul.f32 %v7552, %v7652
        %v7746 = vmul.f32 %v7553, %v7654
        %v7747 = vmul.f32 %v7554, %v7656
        %v7748 = vmul.f32 %v7555, %v7658
        %v7749 = vmul.f32 %v7556, %v7660
        %v7750 = vmul.f32 %v7557, %v7662
        %v7751 = vmul.f32 %v7558, %v7664
        %v7752 = vmul.f32 %v7559, %v7666
        %v7753 = vmul.f32 %v7560, %v7668
        %v7754 = vmul.f32 %v7561, %v7670
        %v7755 = vmul.f32 %v7562, %v7672
        %v7756 = vmul.f32 %v7563, %v7674
        %v7757 = vmul.f32 %v7564, %v7676
        %v7758 = vmul.f32 %v7565, %v7678
        %v7759 = vmul.f32 %v7566, %v7680
        %v7760 = vmul.f32 %v7567, %v7682
        %v7761 = vmul.f32 %v7568, %v7684
        %v7762 = vmul.f32 %v7569, %v7686
        %v7763 = vmul.f32 %v7570, %v7688
        %v7764 = vmul.f32 %v7571, %v7690
        %v7765 = vmul.f32 %v7572, %v7692
        %v7766 = vmul.f32 %v7573, %v7694
        %v7767 = vmul.f32 %v7574, %v7696
        %v7768 = vmul.f32 %v7575, %v7698
        %v7769 = vmul.f32 %v7576, %v7700
        %v7770 = vmul.f32 %v7577, %v7702
        %v7771 = vmul.f32 %v7578, %v7704
        %v7772 = vmul.f32 %v7579, %v7706
        %v7773 = vmul.f32 %v7580, %v7708
        %v7774 = vmul.f32 %v7581, %v7707
        %v7775 = vpack.c.bf16 %v7743, %v7742
        %v7776 = vpack.c.bf16 %v7745, %v7744
        %v7777 = vpack.c.bf16 %v7747, %v7746
        %v7778 = vpack.c.bf16 %v7749, %v7748
        %v7779 = vpack.c.bf16 %v7751, %v7750
        %v7780 = vpack.c.bf16 %v7753, %v7752
        %v7781 = vpack.c.bf16 %v7755, %v7754
        %v7782 = vpack.c.bf16 %v7757, %v7756
        %v7783 = vpack.c.bf16 %v7759, %v7758
        %v7784 = vpack.c.bf16 %v7761, %v7760
        %v7785 = vpack.c.bf16 %v7763, %v7762
        %v7786 = vpack.c.bf16 %v7765, %v7764
        %v7787 = vpack.c.bf16 %v7767, %v7766
        %v7788 = vpack.c.bf16 %v7769, %v7768
        %v7789 = vpack.c.bf16 %v7771, %v7770
        %v7790 = vpack.c.bf16 %v7773, %v7772
        %v7791 = vpack.c.bf16 %v7774, %v7774
        %s7792 = scalar_lea.vmem %s4, 512
        %v7793 = vld [vmem:[%s7792] sm:$0xf]
        %v7794 = vld [vmem:[%s7792 + $0x4] sm:$0xf]
        %v7795 = vld [vmem:[%s7792 + $0x8] sm:$0xf]
        %v7796 = vld [vmem:[%s7792 + $0xc] sm:$0xf]
        %v7797 = vld [vmem:[%s7792 + $0x10] sm:$0xf]
        %v7798 = vld [vmem:[%s7792 + $0x14] sm:$0xf]
        %v7799 = vld [vmem:[%s7792 + $0x18] sm:$0xf]
        %v7800 = vld [vmem:[%s7792 + $0x1c] sm:$0xf]
        %v7801 = vld [vmem:[%s7792 + $0x20] sm:$0xf]
        %v7802 = vld [vmem:[%s7792 + $0x24] sm:$0xf]
        %v7803 = vld [vmem:[%s7792 + $0x28] sm:$0xf]
        %v7804 = vld [vmem:[%s7792 + $0x2c] sm:$0xf]
        %v7805 = vld [vmem:[%s7792 + $0x30] sm:$0xf]
        %v7806 = vld [vmem:[%s7792 + $0x34] sm:$0xf]
        %v7807 = vld [vmem:[%s7792 + $0x38] sm:$0xf]
        %v7808 = vld [vmem:[%s7792 + $0x3c] sm:$0xf]
        %v7810 = vshrl.u32 %v7775, 16
        %v7812 = vshll.u32 %v7775, 16
        %v7814 = vrot.slane %v7812, 1
        %v7815 = vor.u32 %v7810, %v7814
        %v7817 = vshll.u32 %v7776, 16
        %v7819 = vrot.slane %v7817, 1
        %v7820 = vsel %vm2806, %v7815, %v7819
        %v7821 = vshrl.u32 %v7776, 16
        %v7823 = vor.u32 %v7821, %v7819
        %v7825 = vshll.u32 %v7777, 16
        %v7827 = vrot.slane %v7825, 1
        %v7828 = vsel %vm2806, %v7823, %v7827
        %v7829 = vshrl.u32 %v7777, 16
        %v7831 = vor.u32 %v7829, %v7827
        %v7833 = vshll.u32 %v7778, 16
        %v7835 = vrot.slane %v7833, 1
        %v7836 = vsel %vm2806, %v7831, %v7835
        %v7837 = vshrl.u32 %v7778, 16
        %v7839 = vor.u32 %v7837, %v7835
        %v7841 = vshll.u32 %v7779, 16
        %v7843 = vrot.slane %v7841, 1
        %v7844 = vsel %vm2806, %v7839, %v7843
        %v7845 = vshrl.u32 %v7779, 16
        %v7847 = vor.u32 %v7845, %v7843
        %v7849 = vshll.u32 %v7780, 16
        %v7851 = vrot.slane %v7849, 1
        %v7852 = vsel %vm2806, %v7847, %v7851
        %v7853 = vshrl.u32 %v7780, 16
        %v7855 = vor.u32 %v7853, %v7851
        %v7857 = vshll.u32 %v7781, 16
        %v7859 = vrot.slane %v7857, 1
        %v7860 = vsel %vm2806, %v7855, %v7859
        %v7861 = vshrl.u32 %v7781, 16
        %v7863 = vor.u32 %v7861, %v7859
        %v7865 = vshll.u32 %v7782, 16
        %v7867 = vrot.slane %v7865, 1
        %v7868 = vsel %vm2806, %v7863, %v7867
        %v7869 = vshrl.u32 %v7782, 16
        %v7871 = vor.u32 %v7869, %v7867
        %v7873 = vshll.u32 %v7783, 16
        %v7875 = vrot.slane %v7873, 1
        %v7876 = vsel %vm2806, %v7871, %v7875
        %v7877 = vshrl.u32 %v7783, 16
        %v7879 = vor.u32 %v7877, %v7875
        %v7881 = vshll.u32 %v7784, 16
        %v7883 = vrot.slane %v7881, 1
        %v7884 = vsel %vm2806, %v7879, %v7883
        %v7885 = vshrl.u32 %v7784, 16
        %v7887 = vor.u32 %v7885, %v7883
        %v7889 = vshll.u32 %v7785, 16
        %v7891 = vrot.slane %v7889, 1
        %v7892 = vsel %vm2806, %v7887, %v7891
        %v7893 = vshrl.u32 %v7785, 16
        %v7895 = vor.u32 %v7893, %v7891
        %v7897 = vshll.u32 %v7786, 16
        %v7899 = vrot.slane %v7897, 1
        %v7900 = vsel %vm2806, %v7895, %v7899
        %v7901 = vshrl.u32 %v7786, 16
        %v7903 = vor.u32 %v7901, %v7899
        %v7905 = vshll.u32 %v7787, 16
        %v7907 = vrot.slane %v7905, 1
        %v7908 = vsel %vm2806, %v7903, %v7907
        %v7909 = vshrl.u32 %v7787, 16
        %v7911 = vor.u32 %v7909, %v7907
        %v7913 = vshll.u32 %v7788, 16
        %v7915 = vrot.slane %v7913, 1
        %v7916 = vsel %vm2806, %v7911, %v7915
        %v7917 = vshrl.u32 %v7788, 16
        %v7919 = vor.u32 %v7917, %v7915
        %v7921 = vshll.u32 %v7789, 16
        %v7923 = vrot.slane %v7921, 1
        %v7924 = vsel %vm2806, %v7919, %v7923
        %v7925 = vshrl.u32 %v7789, 16
        %v7927 = vor.u32 %v7925, %v7923
        %v7929 = vshll.u32 %v7790, 16
        %v7931 = vrot.slane %v7929, 1
        %v7932 = vsel %vm2806, %v7927, %v7931
        %v7933 = vshrl.u32 %v7790, 16
        %v7935 = vor.u32 %v7933, %v7931
        %v7937 = vshll.u32 %v7791, 16
        %v7939 = vrot.slane %v7937, 1
        %v7940 = vsel %vm2806, %v7935, %v7939
        %v7973 = vunpack.c.l.b16 %v7793
        %v7974 = vunpack.c.l.b16 %v7794
        %v7975 = vunpack.c.l.b16 %v7795
        %v7976 = vunpack.c.l.b16 %v7796
        %v7977 = vunpack.c.l.b16 %v7797
        %v7978 = vunpack.c.l.b16 %v7798
        %v7979 = vunpack.c.l.b16 %v7799
        %v7980 = vunpack.c.l.b16 %v7800
        %v7981 = vunpack.c.l.b16 %v7801
        %v7982 = vunpack.c.l.b16 %v7802
        %v7983 = vunpack.c.l.b16 %v7803
        %v7984 = vunpack.c.l.b16 %v7804
        %v7985 = vunpack.c.l.b16 %v7805
        %v7986 = vunpack.c.l.b16 %v7806
        %v7987 = vunpack.c.l.b16 %v7807
        %v7988 = vunpack.c.l.b16 %v7808
        %v7989 = vpack.c.b16 %v7974, %v7973
        %v7990 = vpack.c.b16 %v7976, %v7975
        %v7991 = vpack.c.b16 %v7978, %v7977
        %v7992 = vpack.c.b16 %v7980, %v7979
        %v7993 = vpack.c.b16 %v7982, %v7981
        %v7994 = vpack.c.b16 %v7984, %v7983
        %v7995 = vpack.c.b16 %v7986, %v7985
        %v7996 = vpack.c.b16 %v7988, %v7987
        %8005 = vmatpush.bf16.msra.mxu0 %v7996
        %8006 = vmatpush.bf16.msra.mxu0 %v7995
        %8007 = vmatpush.bf16.msra.mxu0 %v7994
        %8008 = vmatpush.bf16.msra.mxu0 %v7993
        %8009 = vmatpush.bf16.msra.mxu0 %v7992
        %8010 = vmatpush.bf16.msra.mxu0 %v7991
        %8011 = vmatpush.bf16.msra.mxu0 %v7990
        %8012 = vmatpush.bf16.msra.mxu0 %v7989
        %8013 = vmatmul.bf16.gmra.mxu0 %v7820
        %v8014 = vpop.f32.mrf.mxu0
        %v8015 = vadd.f32 0.0, %v8014
        %v8016 = vpop.f32.mrf.mxu0
        %v8017 = vadd.f32 0.0, %v8016
        %8018 = vmatmul.bf16.gmra.mxu0 %v7828
        %v8019 = vpop.f32.mrf.mxu0
        %v8020 = vadd.f32 0.0, %v8019
        %v8021 = vpop.f32.mrf.mxu0
        %v8022 = vadd.f32 0.0, %v8021
        %8023 = vmatmul.bf16.gmra.mxu0 %v7836
        %v8024 = vpop.f32.mrf.mxu0
        %v8025 = vadd.f32 0.0, %v8024
        %v8026 = vpop.f32.mrf.mxu0
        %v8027 = vadd.f32 0.0, %v8026
        %8028 = vmatmul.bf16.gmra.mxu0 %v7844
        %v8029 = vpop.f32.mrf.mxu0
        %v8030 = vadd.f32 0.0, %v8029
        %v8031 = vpop.f32.mrf.mxu0
        %v8032 = vadd.f32 0.0, %v8031
        %8033 = vmatmul.bf16.gmra.mxu0 %v7852
        %v8034 = vpop.f32.mrf.mxu0
        %v8035 = vadd.f32 0.0, %v8034
        %v8036 = vpop.f32.mrf.mxu0
        %v8037 = vadd.f32 0.0, %v8036
        %8038 = vmatmul.bf16.gmra.mxu0 %v7860
        %v8039 = vpop.f32.mrf.mxu0
        %v8040 = vadd.f32 0.0, %v8039
        %v8041 = vpop.f32.mrf.mxu0
        %v8042 = vadd.f32 0.0, %v8041
        %8043 = vmatmul.bf16.gmra.mxu0 %v7868
        %v8044 = vpop.f32.mrf.mxu0
        %v8045 = vadd.f32 0.0, %v8044
        %v8046 = vpop.f32.mrf.mxu0
        %v8047 = vadd.f32 0.0, %v8046
        %8048 = vmatmul.bf16.gmra.mxu0 %v7876
        %v8049 = vpop.f32.mrf.mxu0
        %v8050 = vadd.f32 0.0, %v8049
        %v8051 = vpop.f32.mrf.mxu0
        %v8052 = vadd.f32 0.0, %v8051
        %8053 = vmatmul.bf16.gmra.mxu0 %v7884
        %v8054 = vpop.f32.mrf.mxu0
        %v8055 = vadd.f32 0.0, %v8054
        %v8056 = vpop.f32.mrf.mxu0
        %v8057 = vadd.f32 0.0, %v8056
        %8058 = vmatmul.bf16.gmra.mxu0 %v7892
        %v8059 = vpop.f32.mrf.mxu0
        %v8060 = vadd.f32 0.0, %v8059
        %v8061 = vpop.f32.mrf.mxu0
        %v8062 = vadd.f32 0.0, %v8061
        %8063 = vmatmul.bf16.gmra.mxu0 %v7900
        %v8064 = vpop.f32.mrf.mxu0
        %v8065 = vadd.f32 0.0, %v8064
        %v8066 = vpop.f32.mrf.mxu0
        %v8067 = vadd.f32 0.0, %v8066
        %8068 = vmatmul.bf16.gmra.mxu0 %v7908
        %v8069 = vpop.f32.mrf.mxu0
        %v8070 = vadd.f32 0.0, %v8069
        %v8071 = vpop.f32.mrf.mxu0
        %v8072 = vadd.f32 0.0, %v8071
        %8073 = vmatmul.bf16.gmra.mxu0 %v7916
        %v8074 = vpop.f32.mrf.mxu0
        %v8075 = vadd.f32 0.0, %v8074
        %v8076 = vpop.f32.mrf.mxu0
        %v8077 = vadd.f32 0.0, %v8076
        %8078 = vmatmul.bf16.gmra.mxu0 %v7924
        %v8079 = vpop.f32.mrf.mxu0
        %v8080 = vadd.f32 0.0, %v8079
        %v8081 = vpop.f32.mrf.mxu0
        %v8082 = vadd.f32 0.0, %v8081
        %8083 = vmatmul.bf16.gmra.mxu0 %v7932
        %v8084 = vpop.f32.mrf.mxu0
        %v8085 = vadd.f32 0.0, %v8084
        %v8086 = vpop.f32.mrf.mxu0
        %v8087 = vadd.f32 0.0, %v8086
        %8088 = vmatmul.bf16.gmra.mxu0 %v7940
        %v8089 = vpop.f32.mrf.mxu0
        %v8090 = vadd.f32 0.0, %v8089
        %v8091 = vpop.f32.mrf.mxu0
        %v8092 = vadd.f32 0.0, %v8091
        %8093 = vdwg.mxu0
        %v8094 = vadd.f32 %v7163, %v8015
        %v8095 = vadd.f32 %v7164, %v8017
        %v8096 = vadd.f32 %v7165, %v8020
        %v8097 = vadd.f32 %v7166, %v8022
        %v8098 = vadd.f32 %v7167, %v8025
        %v8099 = vadd.f32 %v7168, %v8027
        %v8100 = vadd.f32 %v7169, %v8030
        %v8101 = vadd.f32 %v7170, %v8032
        %v8102 = vadd.f32 %v7171, %v8035
        %v8103 = vadd.f32 %v7172, %v8037
        %v8104 = vadd.f32 %v7173, %v8040
        %v8105 = vadd.f32 %v7174, %v8042
        %v8106 = vadd.f32 %v7175, %v8045
        %v8107 = vadd.f32 %v7176, %v8047
        %v8108 = vadd.f32 %v7177, %v8050
        %v8109 = vadd.f32 %v7178, %v8052
        %v8110 = vadd.f32 %v7179, %v8055
        %v8111 = vadd.f32 %v7180, %v8057
        %v8112 = vadd.f32 %v7181, %v8060
        %v8113 = vadd.f32 %v7182, %v8062
        %v8114 = vadd.f32 %v7183, %v8065
        %v8115 = vadd.f32 %v7184, %v8067
        %v8116 = vadd.f32 %v7185, %v8070
        %v8117 = vadd.f32 %v7186, %v8072
        %v8118 = vadd.f32 %v7187, %v8075
        %v8119 = vadd.f32 %v7188, %v8077
        %v8120 = vadd.f32 %v7189, %v8080
        %v8121 = vadd.f32 %v7190, %v8082
        %v8122 = vadd.f32 %v7191, %v8085
        %v8123 = vadd.f32 %v7192, %v8087
        %v8124 = vadd.f32 %v7193, %v8090
        %v8125 = vadd.f32 %v7194, %v8092
        %v8126 = vld [vmem:[%s5] sm:$0x1]
        %v8128 = vperm.slane %v8126, 0
        %v8130 = vadd.f32 %v8094, %v8128
        %v8131 = vadd.f32 %v8095, %v8128
        %v8132 = vadd.f32 %v8096, %v8128
        %v8133 = vadd.f32 %v8097, %v8128
        %v8134 = vadd.f32 %v8098, %v8128
        %v8135 = vadd.f32 %v8099, %v8128
        %v8136 = vadd.f32 %v8100, %v8128
        %v8137 = vadd.f32 %v8101, %v8128
        %v8138 = vadd.f32 %v8102, %v8128
        %v8139 = vadd.f32 %v8103, %v8128
        %v8140 = vadd.f32 %v8104, %v8128
        %v8141 = vadd.f32 %v8105, %v8128
        %v8142 = vadd.f32 %v8106, %v8128
        %v8143 = vadd.f32 %v8107, %v8128
        %v8144 = vadd.f32 %v8108, %v8128
        %v8145 = vadd.f32 %v8109, %v8128
        %v8146 = vadd.f32 %v8110, %v8128
        %v8147 = vadd.f32 %v8111, %v8128
        %v8148 = vadd.f32 %v8112, %v8128
        %v8149 = vadd.f32 %v8113, %v8128
        %v8150 = vadd.f32 %v8114, %v8128
        %v8151 = vadd.f32 %v8115, %v8128
        %v8152 = vadd.f32 %v8116, %v8128
        %v8153 = vadd.f32 %v8117, %v8128
        %v8154 = vadd.f32 %v8118, %v8128
        %v8155 = vadd.f32 %v8119, %v8128
        %v8156 = vadd.f32 %v8120, %v8128
        %v8157 = vadd.f32 %v8121, %v8128
        %v8158 = vadd.f32 %v8122, %v8128
        %v8159 = vadd.f32 %v8123, %v8128
        %v8160 = vadd.f32 %v8124, %v8128
        %v8161 = vadd.f32 %v8125, %v8128
        %v8162 = vmax.f32 %v8130, 0.0
        %v8163 = vmax.f32 %v8131, 0.0
        %v8164 = vmax.f32 %v8132, 0.0
        %v8165 = vmax.f32 %v8133, 0.0
        %v8166 = vmax.f32 %v8134, 0.0
        %v8167 = vmax.f32 %v8135, 0.0
        %v8168 = vmax.f32 %v8136, 0.0
        %v8169 = vmax.f32 %v8137, 0.0
        %v8170 = vmax.f32 %v8138, 0.0
        %v8171 = vmax.f32 %v8139, 0.0
        %v8172 = vmax.f32 %v8140, 0.0
        %v8173 = vmax.f32 %v8141, 0.0
        %v8174 = vmax.f32 %v8142, 0.0
        %v8175 = vmax.f32 %v8143, 0.0
        %v8176 = vmax.f32 %v8144, 0.0
        %v8177 = vmax.f32 %v8145, 0.0
        %v8178 = vmax.f32 %v8146, 0.0
        %v8179 = vmax.f32 %v8147, 0.0
        %v8180 = vmax.f32 %v8148, 0.0
        %v8181 = vmax.f32 %v8149, 0.0
        %v8182 = vmax.f32 %v8150, 0.0
        %v8183 = vmax.f32 %v8151, 0.0
        %v8184 = vmax.f32 %v8152, 0.0
        %v8185 = vmax.f32 %v8153, 0.0
        %v8186 = vmax.f32 %v8154, 0.0
        %v8187 = vmax.f32 %v8155, 0.0
        %v8188 = vmax.f32 %v8156, 0.0
        %v8189 = vmax.f32 %v8157, 0.0
        %v8190 = vmax.f32 %v8158, 0.0
        %v8191 = vmax.f32 %v8159, 0.0
        %v8192 = vmax.f32 %v8160, 0.0
        %v8193 = vmax.f32 %v8161, 0.0
        %v8194 = vpack.c.bf16 %v8163, %v8162
        %v8195 = vpack.c.bf16 %v8165, %v8164
        %v8196 = vpack.c.bf16 %v8167, %v8166
        %v8197 = vpack.c.bf16 %v8169, %v8168
        %v8198 = vpack.c.bf16 %v8171, %v8170
        %v8199 = vpack.c.bf16 %v8173, %v8172
        %v8200 = vpack.c.bf16 %v8175, %v8174
        %v8201 = vpack.c.bf16 %v8177, %v8176
        %v8202 = vpack.c.bf16 %v8179, %v8178
        %v8203 = vpack.c.bf16 %v8181, %v8180
        %v8204 = vpack.c.bf16 %v8183, %v8182
        %v8205 = vpack.c.bf16 %v8185, %v8184
        %v8206 = vpack.c.bf16 %v8187, %v8186
        %v8207 = vpack.c.bf16 %v8189, %v8188
        %v8208 = vpack.c.bf16 %v8191, %v8190
        %v8209 = vpack.c.bf16 %v8193, %v8192
        %v8210 = vld [vmem:[%s6] sm:$0xf]
        %v8211 = vld [vmem:[%s6 + $0x4] sm:$0xf]
        %v8212 = vld [vmem:[%s6 + $0x8] sm:$0xf]
        %v8213 = vld [vmem:[%s6 + $0xc] sm:$0xf]
        %v8214 = vld [vmem:[%s6 + $0x10] sm:$0xf]
        %v8215 = vld [vmem:[%s6 + $0x14] sm:$0xf]
        %v8216 = vld [vmem:[%s6 + $0x18] sm:$0xf]
        %v8217 = vld [vmem:[%s6 + $0x1c] sm:$0xf]
        %v8218 = vld [vmem:[%s6 + $0x20] sm:$0xf]
        %v8219 = vld [vmem:[%s6 + $0x24] sm:$0xf]
        %v8220 = vld [vmem:[%s6 + $0x28] sm:$0xf]
        %v8221 = vld [vmem:[%s6 + $0x2c] sm:$0xf]
        %v8222 = vld [vmem:[%s6 + $0x30] sm:$0xf]
        %v8223 = vld [vmem:[%s6 + $0x34] sm:$0xf]
        %v8224 = vld [vmem:[%s6 + $0x38] sm:$0xf]
        %v8225 = vld [vmem:[%s6 + $0x3c] sm:$0xf]
        %v8226 = vld [vmem:[%s7] sm:$0x1]
        %v8228 = vperm.slane %v8226, 0
        %v8246 = vunpack.c.l.b16 %v8210
        %v8247 = vunpack.c.l.b16 %v8211
        %v8248 = vunpack.c.l.b16 %v8212
        %v8249 = vunpack.c.l.b16 %v8213
        %v8250 = vunpack.c.l.b16 %v8214
        %v8251 = vunpack.c.l.b16 %v8215
        %v8252 = vunpack.c.l.b16 %v8216
        %v8253 = vunpack.c.l.b16 %v8217
        %v8254 = vunpack.c.l.b16 %v8218
        %v8255 = vunpack.c.l.b16 %v8219
        %v8256 = vunpack.c.l.b16 %v8220
        %v8257 = vunpack.c.l.b16 %v8221
        %v8258 = vunpack.c.l.b16 %v8222
        %v8259 = vunpack.c.l.b16 %v8223
        %v8260 = vunpack.c.l.b16 %v8224
        %v8261 = vunpack.c.l.b16 %v8225
        %v8262 = vpack.c.b16 %v8247, %v8246
        %v8263 = vpack.c.b16 %v8249, %v8248
        %v8264 = vpack.c.b16 %v8251, %v8250
        %v8265 = vpack.c.b16 %v8253, %v8252
        %v8266 = vpack.c.b16 %v8255, %v8254
        %v8267 = vpack.c.b16 %v8257, %v8256
        %v8268 = vpack.c.b16 %v8259, %v8258
        %v8269 = vpack.c.b16 %v8261, %v8260
        %8278 = vmatpush.bf16.msra.mxu0 %v8269
        %8279 = vmatpush.bf16.msra.mxu0 %v8268
        %8280 = vmatpush.bf16.msra.mxu0 %v8267
        %8281 = vmatpush.bf16.msra.mxu0 %v8266
        %8282 = vmatpush.bf16.msra.mxu0 %v8265
        %8283 = vmatpush.bf16.msra.mxu0 %v8264
        %8284 = vmatpush.bf16.msra.mxu0 %v8263
        %8285 = vmatpush.bf16.msra.mxu0 %v8262
        %8286 = vmatmul.bf16.gmra.mxu0 %v8194
        %v8287 = vpop.f32.mrf.mxu0
        %v8288 = vadd.f32 %v8228, %v8287
        %v8289 = vpop.f32.mrf.mxu0
        %v8290 = vadd.f32 %v8228, %v8289
        %8291 = vmatmul.bf16.gmra.mxu0 %v8195
        %v8292 = vpop.f32.mrf.mxu0
        %v8293 = vadd.f32 %v8228, %v8292
        %v8294 = vpop.f32.mrf.mxu0
        %v8295 = vadd.f32 %v8228, %v8294
        %8296 = vmatmul.bf16.gmra.mxu0 %v8196
        %v8297 = vpop.f32.mrf.mxu0
        %v8298 = vadd.f32 %v8228, %v8297
        %v8299 = vpop.f32.mrf.mxu0
        %v8300 = vadd.f32 %v8228, %v8299
        %8301 = vmatmul.bf16.gmra.mxu0 %v8197
        %v8302 = vpop.f32.mrf.mxu0
        %v8303 = vadd.f32 %v8228, %v8302
        %v8304 = vpop.f32.mrf.mxu0
        %v8305 = vadd.f32 %v8228, %v8304
        %8306 = vmatmul.bf16.gmra.mxu0 %v8198
        %v8307 = vpop.f32.mrf.mxu0
        %v8308 = vadd.f32 %v8228, %v8307
        %v8309 = vpop.f32.mrf.mxu0
        %v8310 = vadd.f32 %v8228, %v8309
        %8311 = vmatmul.bf16.gmra.mxu0 %v8199
        %v8312 = vpop.f32.mrf.mxu0
        %v8313 = vadd.f32 %v8228, %v8312
        %v8314 = vpop.f32.mrf.mxu0
        %v8315 = vadd.f32 %v8228, %v8314
        %8316 = vmatmul.bf16.gmra.mxu0 %v8200
        %v8317 = vpop.f32.mrf.mxu0
        %v8318 = vadd.f32 %v8228, %v8317
        %v8319 = vpop.f32.mrf.mxu0
        %v8320 = vadd.f32 %v8228, %v8319
        %8321 = vmatmul.bf16.gmra.mxu0 %v8201
        %v8322 = vpop.f32.mrf.mxu0
        %v8323 = vadd.f32 %v8228, %v8322
        %v8324 = vpop.f32.mrf.mxu0
        %v8325 = vadd.f32 %v8228, %v8324
        %8326 = vmatmul.bf16.gmra.mxu0 %v8202
        %v8327 = vpop.f32.mrf.mxu0
        %v8328 = vadd.f32 %v8228, %v8327
        %v8329 = vpop.f32.mrf.mxu0
        %v8330 = vadd.f32 %v8228, %v8329
        %8331 = vmatmul.bf16.gmra.mxu0 %v8203
        %v8332 = vpop.f32.mrf.mxu0
        %v8333 = vadd.f32 %v8228, %v8332
        %v8334 = vpop.f32.mrf.mxu0
        %v8335 = vadd.f32 %v8228, %v8334
        %8336 = vmatmul.bf16.gmra.mxu0 %v8204
        %v8337 = vpop.f32.mrf.mxu0
        %v8338 = vadd.f32 %v8228, %v8337
        %v8339 = vpop.f32.mrf.mxu0
        %v8340 = vadd.f32 %v8228, %v8339
        %8341 = vmatmul.bf16.gmra.mxu0 %v8205
        %v8342 = vpop.f32.mrf.mxu0
        %v8343 = vadd.f32 %v8228, %v8342
        %v8344 = vpop.f32.mrf.mxu0
        %v8345 = vadd.f32 %v8228, %v8344
        %8346 = vmatmul.bf16.gmra.mxu0 %v8206
        %v8347 = vpop.f32.mrf.mxu0
        %v8348 = vadd.f32 %v8228, %v8347
        %v8349 = vpop.f32.mrf.mxu0
        %v8350 = vadd.f32 %v8228, %v8349
        %8351 = vmatmul.bf16.gmra.mxu0 %v8207
        %v8352 = vpop.f32.mrf.mxu0
        %v8353 = vadd.f32 %v8228, %v8352
        %v8354 = vpop.f32.mrf.mxu0
        %v8355 = vadd.f32 %v8228, %v8354
        %8356 = vmatmul.bf16.gmra.mxu0 %v8208
        %v8357 = vpop.f32.mrf.mxu0
        %v8358 = vadd.f32 %v8228, %v8357
        %v8359 = vpop.f32.mrf.mxu0
        %v8360 = vadd.f32 %v8228, %v8359
        %8361 = vmatmul.bf16.gmra.mxu0 %v8209
        %v8362 = vpop.f32.mrf.mxu0
        %v8363 = vadd.f32 %v8228, %v8362
        %v8364 = vpop.f32.mrf.mxu0
        %v8365 = vadd.f32 %v8228, %v8364
        %8366 = vdwg.mxu0
        %v8367 = vunpack.c.l.bf16 %v304
        %v8368 = vunpack.c.l.bf16 %v305
        %v8369 = vunpack.c.l.bf16 %v306
        %v8370 = vunpack.c.l.bf16 %v307
        %v8371 = vunpack.c.l.bf16 %v308
        %v8372 = vunpack.c.l.bf16 %v309
        %v8373 = vunpack.c.l.bf16 %v310
        %v8374 = vunpack.c.l.bf16 %v311
        %v8375 = vunpack.c.l.bf16 %v312
        %v8376 = vunpack.c.l.bf16 %v313
        %v8377 = vunpack.c.l.bf16 %v314
        %v8378 = vunpack.c.l.bf16 %v315
        %v8379 = vunpack.c.l.bf16 %v316
        %v8380 = vunpack.c.l.bf16 %v317
        %v8381 = vunpack.c.l.bf16 %v318
        %v8382 = vunpack.c.l.bf16 %v319
        %v8383 = vunpack.c.l.bf16 %v320
        %v8384 = vunpack.c.l.bf16 %v321
        %v8385 = vunpack.c.l.bf16 %v322
        %v8386 = vunpack.c.l.bf16 %v323
        %v8387 = vunpack.c.l.bf16 %v324
        %v8388 = vunpack.c.l.bf16 %v325
        %v8389 = vunpack.c.l.bf16 %v326
        %v8390 = vunpack.c.l.bf16 %v327
        %v8391 = vunpack.c.l.bf16 %v328
        %v8392 = vunpack.c.l.bf16 %v329
        %v8393 = vunpack.c.l.bf16 %v330
        %v8394 = vunpack.c.l.bf16 %v331
        %v8395 = vunpack.c.l.bf16 %v332
        %v8396 = vunpack.c.l.bf16 %v333
        %v8397 = vunpack.c.l.bf16 %v334
        %v8398 = vunpack.c.l.bf16 %v335
        %v8399 = vadd.f32 %v8288, %v8367
        %v8400 = vadd.f32 %v8290, %v8368
        %v8401 = vadd.f32 %v8293, %v8369
        %v8402 = vadd.f32 %v8295, %v8370
        %v8403 = vadd.f32 %v8298, %v8371
        %v8404 = vadd.f32 %v8300, %v8372
        %v8405 = vadd.f32 %v8303, %v8373
        %v8406 = vadd.f32 %v8305, %v8374
        %v8407 = vadd.f32 %v8308, %v8375
        %v8408 = vadd.f32 %v8310, %v8376
        %v8409 = vadd.f32 %v8313, %v8377
        %v8410 = vadd.f32 %v8315, %v8378
        %v8411 = vadd.f32 %v8318, %v8379
        %v8412 = vadd.f32 %v8320, %v8380
        %v8413 = vadd.f32 %v8323, %v8381
        %v8414 = vadd.f32 %v8325, %v8382
        %v8415 = vadd.f32 %v8328, %v8383
        %v8416 = vadd.f32 %v8330, %v8384
        %v8417 = vadd.f32 %v8333, %v8385
        %v8418 = vadd.f32 %v8335, %v8386
        %v8419 = vadd.f32 %v8338, %v8387
        %v8420 = vadd.f32 %v8340, %v8388
        %v8421 = vadd.f32 %v8343, %v8389
        %v8422 = vadd.f32 %v8345, %v8390
        %v8423 = vadd.f32 %v8348, %v8391
        %v8424 = vadd.f32 %v8350, %v8392
        %v8425 = vadd.f32 %v8353, %v8393
        %v8426 = vadd.f32 %v8355, %v8394
        %v8427 = vadd.f32 %v8358, %v8395
        %v8428 = vadd.f32 %v8360, %v8396
        %v8429 = vadd.f32 %v8363, %v8397
        %v8430 = vadd.f32 %v8365, %v8398
        %v8431 = vmax.f32 %v8399, 0.0
        %v8432 = vmax.f32 %v8400, 0.0
        %v8433 = vmax.f32 %v8401, 0.0
        %v8434 = vmax.f32 %v8402, 0.0
        %v8435 = vmax.f32 %v8403, 0.0
        %v8436 = vmax.f32 %v8404, 0.0
        %v8437 = vmax.f32 %v8405, 0.0
        %v8438 = vmax.f32 %v8406, 0.0
        %v8439 = vmax.f32 %v8407, 0.0
        %v8440 = vmax.f32 %v8408, 0.0
        %v8441 = vmax.f32 %v8409, 0.0
        %v8442 = vmax.f32 %v8410, 0.0
        %v8443 = vmax.f32 %v8411, 0.0
        %v8444 = vmax.f32 %v8412, 0.0
        %v8445 = vmax.f32 %v8413, 0.0
        %v8446 = vmax.f32 %v8414, 0.0
        %v8447 = vmax.f32 %v8415, 0.0
        %v8448 = vmax.f32 %v8416, 0.0
        %v8449 = vmax.f32 %v8417, 0.0
        %v8450 = vmax.f32 %v8418, 0.0
        %v8451 = vmax.f32 %v8419, 0.0
        %v8452 = vmax.f32 %v8420, 0.0
        %v8453 = vmax.f32 %v8421, 0.0
        %v8454 = vmax.f32 %v8422, 0.0
        %v8455 = vmax.f32 %v8423, 0.0
        %v8456 = vmax.f32 %v8424, 0.0
        %v8457 = vmax.f32 %v8425, 0.0
        %v8458 = vmax.f32 %v8426, 0.0
        %v8459 = vmax.f32 %v8427, 0.0
        %v8460 = vmax.f32 %v8428, 0.0
        %v8461 = vmax.f32 %v8429, 0.0
        %v8462 = vmax.f32 %v8430, 0.0
        %v8463 = vpack.c.bf16 %v8431, %v8431
        %v8464 = vpack.c.bf16 %v8432, %v8432
        %v8465 = vpack.c.bf16 %v8433, %v8433
        %v8466 = vpack.c.bf16 %v8434, %v8434
        %v8467 = vpack.c.bf16 %v8435, %v8435
        %v8468 = vpack.c.bf16 %v8436, %v8436
        %v8469 = vpack.c.bf16 %v8437, %v8437
        %v8470 = vpack.c.bf16 %v8438, %v8438
        %v8471 = vpack.c.bf16 %v8439, %v8439
        %v8472 = vpack.c.bf16 %v8440, %v8440
        %v8473 = vpack.c.bf16 %v8441, %v8441
        %v8474 = vpack.c.bf16 %v8442, %v8442
        %v8475 = vpack.c.bf16 %v8443, %v8443
        %v8476 = vpack.c.bf16 %v8444, %v8444
        %v8477 = vpack.c.bf16 %v8445, %v8445
        %v8478 = vpack.c.bf16 %v8446, %v8446
        %v8479 = vpack.c.bf16 %v8447, %v8447
        %v8480 = vpack.c.bf16 %v8448, %v8448
        %v8481 = vpack.c.bf16 %v8449, %v8449
        %v8482 = vpack.c.bf16 %v8450, %v8450
        %v8483 = vpack.c.bf16 %v8451, %v8451
        %v8484 = vpack.c.bf16 %v8452, %v8452
        %v8485 = vpack.c.bf16 %v8453, %v8453
        %v8486 = vpack.c.bf16 %v8454, %v8454
        %v8487 = vpack.c.bf16 %v8455, %v8455
        %v8488 = vpack.c.bf16 %v8456, %v8456
        %v8489 = vpack.c.bf16 %v8457, %v8457
        %v8490 = vpack.c.bf16 %v8458, %v8458
        %v8491 = vpack.c.bf16 %v8459, %v8459
        %v8492 = vpack.c.bf16 %v8460, %v8460
        %v8493 = vpack.c.bf16 %v8461, %v8461
        %v8494 = vpack.c.bf16 %v8462, %v8462
        %8495 = vst [vmem:[%s298] sm:$0xf] %v8463
        %8496 = vst [vmem:[%s298 + $0x4] sm:$0xf] %v8464
        %8497 = vst [vmem:[%s298 + $0x8] sm:$0xf] %v8465
        %8498 = vst [vmem:[%s298 + $0xc] sm:$0xf] %v8466
        %8499 = vst [vmem:[%s298 + $0x10] sm:$0xf] %v8467
        %8500 = vst [vmem:[%s298 + $0x14] sm:$0xf] %v8468
        %8501 = vst [vmem:[%s298 + $0x18] sm:$0xf] %v8469
        %8502 = vst [vmem:[%s298 + $0x1c] sm:$0xf] %v8470
        %8503 = vst [vmem:[%s298 + $0x20] sm:$0xf] %v8471
        %8504 = vst [vmem:[%s298 + $0x24] sm:$0xf] %v8472
        %8505 = vst [vmem:[%s298 + $0x28] sm:$0xf] %v8473
        %8506 = vst [vmem:[%s298 + $0x2c] sm:$0xf] %v8474
        %8507 = vst [vmem:[%s298 + $0x30] sm:$0xf] %v8475
        %8508 = vst [vmem:[%s298 + $0x34] sm:$0xf] %v8476
        %8509 = vst [vmem:[%s298 + $0x38] sm:$0xf] %v8477
        %8510 = vst [vmem:[%s298 + $0x3c] sm:$0xf] %v8478
        %8511 = vst [vmem:[%s298 + $0x40] sm:$0xf] %v8479
        %8512 = vst [vmem:[%s298 + $0x44] sm:$0xf] %v8480
        %8513 = vst [vmem:[%s298 + $0x48] sm:$0xf] %v8481
        %8514 = vst [vmem:[%s298 + $0x4c] sm:$0xf] %v8482
        %8515 = vst [vmem:[%s298 + $0x50] sm:$0xf] %v8483
        %8516 = vst [vmem:[%s298 + $0x54] sm:$0xf] %v8484
        %8517 = vst [vmem:[%s298 + $0x58] sm:$0xf] %v8485
        %8518 = vst [vmem:[%s298 + $0x5c] sm:$0xf] %v8486
        %8519 = vst [vmem:[%s298 + $0x60] sm:$0xf] %v8487
        %8520 = vst [vmem:[%s298 + $0x64] sm:$0xf] %v8488
        %8521 = vst [vmem:[%s298 + $0x68] sm:$0xf] %v8489
        %8522 = vst [vmem:[%s298 + $0x6c] sm:$0xf] %v8490
        %8523 = vst [vmem:[%s298 + $0x70] sm:$0xf] %v8491
        %8524 = vst [vmem:[%s298 + $0x74] sm:$0xf] %v8492
        %8525 = vst [vmem:[%s298 + $0x78] sm:$0xf] %v8493
        %8526 = vst [vmem:[%s298 + $0x7c] sm:$0xf] %v8494
        %s8527 = sand.u32 %s203, 1
        %s8528 = scalar_lea.sflag [#allocation4], %s8527
        %s8529 = sand.u32 %s203, 1
        %s8530 = smul.addr %s8529, 128
        %s8531 = scalar_lea.vmem [#allocation3], %s8530
        // Predicated region
        $region53: #{tpu_custom_call.1} parent=51 // pred_check
          %p8532 = pneg %p213
        $region54: #{tpu_custom_call.1} parent=51 // pred_check_branch
          %8534 = sbr.rel (%p8532) target = $region56
        $region55: #{tpu_custom_call.1} parent=51 // pred_region
          %8536 = vsyncadd %s8528, 0
          %s8537 = smul.addr %s22, 32
          %s8538 = smul.addr %s8537, 4
          %s8539 = scalar_lea.hbm %s8, %s8538
          %s8540 = sshll.u32 %s8531, 4
          %s8541 = int_to_ptr.vmem [resolvable:$true] %s8540
          %s8542 = sshll.u32 %s8539, 4
          %s8543 = int_to_ptr.hbm [resolvable:$true] %s8542
          %8548 = dma.vmem_to_hbm [thread:$0]  %s8541, 2048, %s8543, %s8528, 64, 64, 4
        $region56: #{tpu_custom_call.1} parent=51 // pred_fallthru
          _
      $region52: #{tpu_custom_call.1} parent=5 // pred_fallthru
        _
      %p8549 = scmp.le.s32.totalorder 2, %s17
      // Predicated region
      $region57: #{tpu_custom_call.1} parent=5 // pred_check
        %p8550 = pneg %p8549
      $region58: #{tpu_custom_call.1} parent=5 // pred_check_branch
        %8552 = sbr.rel (%p8550) target = $region60
      $region59: #{tpu_custom_call.1} parent=5 // pred_region
        %s8553 = ssub.s32 %s17, 2
        // Predicated region
        $region61: #{tpu_custom_call.1} parent=59 // pred_check
          %p8554 = pneg %p219
        $region62: #{tpu_custom_call.1} parent=59 // pred_check_branch
          %8556 = sbr.rel (%p8554) target = $region64
        $region63: #{tpu_custom_call.1} parent=59 // pred_region
          %s8557 = sand.u32 %s204, 1
          %s8558 = scalar_lea.sflag [#allocation4], %s8557
          %s8559 = sand.u32 %s204, 1
          %s8560 = smul.addr %s8559, 128
          %s8561 = scalar_lea.vmem [#allocation3], %s8560
          %8563 = dma.done %s8558, 2048
        $region64: #{tpu_custom_call.1} parent=59 // pred_fallthru
          _
      $region60: #{tpu_custom_call.1} parent=5 // pred_fallthru
        _
    $region6: #{tpu_custom_call.1} parent=1 // loop_footer
      %s21 = sadd.s32 1, %s17
    $region7: #{tpu_custom_call.1} parent=1 // loop_footer_branch
      %16 = sbr.rel target = $region3
    $region8: #{tpu_custom_call.1} parent=1 // loop_exit
      _
    %8564 = vsyncpa [#allocation4], 1
    %s8565 = scalar_lea.sflag [#allocation4], 1
    %8566 = vsyncpa %s8565, 1

</llo_original>
